<compile_context>
chip_gen: v7x
topology: tpu7x:2x2x1
jax: 0.10.0
libtpu: 0.0.40
codegen_flags: <defaults>
</compile_context>

<pallas_src>
import functools

import jax
import jax.numpy as jnp
from jax import lax
from jax.experimental import pallas as pl
from jax.experimental.pallas import tpu as pltpu


def _cdiv(a, b):
    return -(-a // b)


def _round_up(a, b):
    return _cdiv(a, b) * b


def _apply_act(x, activ):
    if activ == 'relu':
        return jnp.maximum(x, 0.0)
    if activ == 'lrelu':
        return jnp.where(x >= 0, x, 0.2 * x)
    if activ == 'tanh':
        return jnp.tanh(x)
    if activ == 'none':
        return x
    raise NotImplementedError(activ)  # TODO(synk): prelu/selu activations not implemented.


def _conv_taps(x_ref, w_ref, offs, ov, c_out, tl):
    """Conv for one L tile = sum over taps of W_tap @ lane-shifted input window (f32 acc)."""
    t = pl.program_id(1)
    base = pl.multiple_of(t * tl, 128)          # TL is always a multiple of 128
    xwin = x_ref[0, :, pl.ds(base, tl + ov)]    # (CK, TL + ov) — one aligned dynamic slice
    acc = jnp.zeros((c_out, tl), jnp.float32)
    for i, off in enumerate(offs):              # static unroll over (k/s)^2 taps
        acc = acc + jnp.dot(w_ref[i], xwin[:, off:off + tl],
                            preferred_element_type=jnp.float32)
    return acc


def _conv_in_kernel(x_ref, w_ref, m_ref, y_ref, stats_ref, *, offs, ov):
    # Pass 1 (norm == 'in'): raw conv tile + masked per-channel sum / sumsq accumulation.
    # Bias is omitted: InstanceNorm(affine=False) cancels a per-channel constant exactly.
    c_out, tl = y_ref.shape[1], y_ref.shape[2]
    acc = _conv_taps(x_ref, w_ref, offs, ov, c_out, tl)
    y_ref[0] = acc.astype(y_ref.dtype)

    m = m_ref[...]                                         # (1, TL) validity mask (f32)
    s1 = jnp.sum(acc * m, axis=1, keepdims=True)           # (C_out, 1) lane-axis reduce
    s2 = jnp.sum(acc * acc * m, axis=1, keepdims=True)

    t = pl.program_id(1)

    @pl.when(t == 0)
    def _():
        stats_ref[...] = jnp.zeros_like(stats_ref)

    stats_ref[...] += jnp.concatenate([s1, s2], axis=1)[None]


def _conv_act_kernel(x_ref, w_ref, b_ref, y_ref, *, offs, ov, activ):
    # Single-pass variant (norm == 'none'): conv + bias + activation.
    c_out, tl = y_ref.shape[1], y_ref.shape[2]
    acc = _conv_taps(x_ref, w_ref, offs, ov, c_out, tl)
    acc = acc + b_ref[...].astype(jnp.float32)             # (C_out, 1) broadcast over lanes
    y_ref[0] = _apply_act(acc, activ).astype(y_ref.dtype)


def _in_act_kernel(y_ref, stats_ref, o_ref, *, count, activ, eps=1e-5):
    # Pass 2 (norm == 'in'): normalize with full-extent stats + activation.
    x = y_ref[0].astype(jnp.float32)                       # (C_out, TL)
    st = stats_ref[0]                                      # (C_out, 2) f32 [sum, sumsq]
    inv = 1.0 / count
    mean = st[:, 0:1] * inv
    var = jnp.maximum(st[:, 1:2] * inv - mean * mean, 0.0)
    xn = (x - mean) * lax.rsqrt(var + eps)
    o_ref[0] = _apply_act(xn, activ).astype(o_ref.dtype)


def conv2d_block(x, w, b, stride, padding, norm='in', activ='relu',
                 pad_type='reflect', compute_dtype=jnp.bfloat16, tl_target=2048):
    """One Conv2dBlock: pad -> conv(k, stride) [+ bias] -> norm -> activation."""
    N, C, H, W = x.shape
    C_out, C_in, k, k2 = w.shape
    assert C == C_in and k == k2
    s, p = int(stride), int(padding)
    if k % s != 0:
        raise NotImplementedError("kernel size must be a multiple of the stride")
        # TODO(synk): general k/s via per-phase tap masks.
    if norm not in ('in', 'none'):
        raise NotImplementedError(norm)  # TODO(synk): 'ln'/'bn'/'adain'/'sn' not implemented.

    mode = {'reflect': 'reflect', 'replicate': 'edge', 'zero': 'constant'}[pad_type]
    xp = jnp.pad(x, ((0, 0), (0, 0), (p, p), (p, p)), mode=mode)
    Hp, Wp = H + 2 * p, W + 2 * p
    Ho = (Hp - k) // s + 1
    Wo = (Wp - k) // s + 1

    # Space-to-depth by the stride: a stride-s kxk conv becomes a stride-1
    # (k/s)x(k/s) conv over s*s*C channels, so every tap is a pure lane shift of
    # the flattened spatial axis. Host prep touches the input bytes exactly once.
    Hs, Ws = _cdiv(Hp, s), _cdiv(Wp, s)
    xp = jnp.pad(xp, ((0, 0), (0, 0), (0, Hs * s - Hp), (0, Ws * s - Wp)))
    xs = xp.reshape(N, C, Hs, s, Ws, s)
    xs = jnp.transpose(xs, (0, 3, 5, 1, 2, 4)).reshape(N, s * s * C, Hs * Ws)

    Ls = Hs * Ws
    TL = min(int(tl_target), _round_up(Ls, 128))   # lane-tile of the flattened output
    nt = _cdiv(Ls, TL)
    L_pad = nt * TL
    ks = k // s
    offs = tuple(ai * Ws + aj for ai in range(ks) for aj in range(ks))
    ov = _round_up(max(offs), 128)                 # halo (lane overlap) per tile
    W_ext = L_pad + ov
    xs = jnp.pad(xs, ((0, 0), (0, 0), (0, W_ext - Ls))).astype(compute_dtype)
    CK = s * s * C

    # Per-tap weight matrices: w2[ai*ks+aj, co, (pi*s+pj)*C + c] = w[co, c, s*ai+pi, s*aj+pj]
    w2 = jnp.transpose(w.reshape(C_out, C, ks, s, ks, s), (2, 4, 0, 3, 5, 1))
    w2 = w2.reshape(ks * ks, C_out, CK).astype(compute_dtype)

    # VMEM budget for the chosen tiles (2x pipeline buffers + f32 temporaries + headroom).
    isz = jnp.dtype(compute_dtype).itemsize
    est = (2 * CK * W_ext * isz + 2 * ks * ks * C_out * CK * isz
           + 4 * C_out * TL * isz + 8 * TL
           + 8 * C_out * TL + 4 * CK * (TL + ov) + (2 << 20))
    vmem_limit = int(min(64 << 20, max(32 << 20, 2 * est)))

    cp_red = pltpu.CompilerParams(dimension_semantics=("parallel", "arbitrary"),
                                  vmem_limit_bytes=vmem_limit)
    cp_par = pltpu.CompilerParams(dimension_semantics=("parallel", "parallel"),
                                  vmem_limit_bytes=vmem_limit)

    x_spec = pl.BlockSpec((1, CK, W_ext), lambda n, t: (n, 0, 0))   # fetched once per sample
    w_spec = pl.BlockSpec((ks * ks, C_out, CK), lambda n, t: (0, 0, 0))
    y_spec = pl.BlockSpec((1, C_out, TL), lambda n, t: (n, 0, t))   # lane-dense output tiles

    if norm == 'in':
        rows = (jnp.arange(L_pad) // Ws) < Ho
        cols = (jnp.arange(L_pad) % Ws) < Wo
        mask = (rows & cols).astype(jnp.float32).reshape(1, L_pad)

        kern_a = functools.partial(_conv_in_kernel, offs=offs, ov=ov)
        y_raw, stats = pl.pallas_call(
            kern_a,
            out_shape=(jax.ShapeDtypeStruct((N, C_out, L_pad), compute_dtype),
                       jax.ShapeDtypeStruct((N, C_out, 2), jnp.float32)),
            grid=(N, nt),
            in_specs=[x_spec, w_spec, pl.BlockSpec((1, TL), lambda n, t: (0, t))],
            out_specs=(y_spec, pl.BlockSpec((1, C_out, 2), lambda n, t: (n, 0, 0))),
            compiler_params=cp_red,
        )(xs, w2, mask)

        kern_b = functools.partial(_in_act_kernel, count=float(Ho * Wo), activ=activ)
        y = pl.pallas_call(
            kern_b,
            out_shape=jax.ShapeDtypeStruct((N, C_out, L_pad), compute_dtype),
            grid=(N, nt),
            in_specs=[y_spec, pl.BlockSpec((1, C_out, 2), lambda n, t: (n, 0, 0))],
            out_specs=y_spec,
            compiler_params=cp_par,
        )(y_raw, stats)
    else:
        b2 = b.reshape(C_out, 1).astype(jnp.float32)
        kern = functools.partial(_conv_act_kernel, offs=offs, ov=ov, activ=activ)
        y = pl.pallas_call(
            kern,
            out_shape=jax.ShapeDtypeStruct((N, C_out, L_pad), compute_dtype),
            grid=(N, nt),
            in_specs=[x_spec, w_spec, pl.BlockSpec((C_out, 1), lambda n, t: (0, 0))],
            out_specs=y_spec,
            compiler_params=cp_par,
        )(xs, w2, b2)

    # NCHW result: crop the valid region — reshape only, no transpose / extra HBM pass.
    y = y[:, :, :Ls].reshape(N, C_out, Hs, Ws)[:, :, :Ho, :Wo]
    return y


class DownSampleEnc:
    """Mirror of the PyTorch module: Conv2dBlock(in,dim,7,1,3) then n_downsample x Conv2dBlock(d,2d,4,2,1)."""

    def __init__(self, n_downsample, input_dim, dim, norm, activ, pad_type, key,
                 compute_dtype=jnp.bfloat16):
        self.norm, self.activ, self.pad_type = norm, activ, pad_type
        self.compute_dtype = compute_dtype
        layer_specs = [(input_dim, dim, 7, 1, 3)]
        d = dim
        for _ in range(n_downsample):
            layer_specs.append((d, 2 * d, 4, 2, 1))
            d *= 2
        self.output_dim = d
        self.params = []
        for i, (cin, cout, kk, ss, pp) in enumerate(layer_specs):
            kw, kb = jax.random.split(jax.random.fold_in(key, i))
            w = 0.02 * jax.random.normal(kw, (cout, cin, kk, kk), jnp.float32)
            b = 0.01 * jax.random.normal(kb, (cout,), jnp.float32)
            self.params.append((w, b, ss, pp))

    def __call__(self, x):
        # TODO(synk): fuse the small post-downsample layers into one pallas_call
        # (keep activations resident in VMEM) to skip inter-layer HBM round trips.
        for (w, b, s, p) in self.params:
            x = conv2d_block(x, w, b, s, p, self.norm, self.activ, self.pad_type,
                             compute_dtype=self.compute_dtype)
        return x


# ---- pure-JAX reference (for correctness check only) ----
def _ref_conv_block(x, w, b, stride, padding, norm, activ, pad_type):
    mode = {'reflect': 'reflect', 'replicate': 'edge', 'zero': 'constant'}[pad_type]
    xp = jnp.pad(x, ((0, 0), (0, 0), (padding, padding), (padding, padding)), mode=mode)
    y = lax.conv_general_dilated(xp, w, (stride, stride), 'VALID',
                                 dimension_numbers=('NCHW', 'OIHW', 'NCHW'))
    y = y + b.reshape(1, -1, 1, 1)
    if norm == 'in':
        mean = jnp.mean(y, axis=(2, 3), keepdims=True)
        var = jnp.mean((y - mean) ** 2, axis=(2, 3), keepdims=True)
        y = (y - mean) * lax.rsqrt(var + 1e-5)
    if activ == 'relu':
        y = jnp.maximum(y, 0.0)
    elif activ == 'lrelu':
        y = jnp.where(y >= 0, y, 0.2 * y)
    elif activ == 'tanh':
        y = jnp.tanh(y)
    return y


if __name__ == "__main__":
    key = jax.random.PRNGKey(0)
    x = jax.random.normal(jax.random.fold_in(key, 100), (2, 4, 16, 16), jnp.float32)

    # n_downsample=2, input_dim=4, dim=8, norm='in', activ='relu', pad_type='reflect'
    # f32 compute path: tight check of the kernel logic.
    enc_f32 = DownSampleEnc(2, 4, 8, 'in', 'relu', 'reflect',
                            jax.random.fold_in(key, 1), compute_dtype=jnp.float32)
    y32 = jax.block_until_ready(enc_f32(x))
    assert y32.shape == (2, enc_f32.output_dim, 4, 4), y32.shape  # 16->8->4 spatial, 8->16->32 ch

    y_ref = x
    for (w, b, s, p) in enc_f32.params:
        y_ref = _ref_conv_block(y_ref, w, b, s, p, enc_f32.norm, enc_f32.activ, enc_f32.pad_type)
    err32 = float(jnp.max(jnp.abs(y32.astype(jnp.float32) - y_ref)))
    assert err32 < 5e-4, err32

    # bf16 compute path (default / performance dtype): loose check.
    enc_bf16 = DownSampleEnc(2, 4, 8, 'in', 'relu', 'reflect',
                             jax.random.fold_in(key, 1), compute_dtype=jnp.bfloat16)
    y16 = jax.block_until_ready(enc_bf16(x))
    assert y16.shape == (2, enc_bf16.output_dim, 4, 4), y16.shape
    err16 = float(jnp.max(jnp.abs(y16.astype(jnp.float32) - y_ref)))
    assert err16 < 0.25, err16

    print("KERNEL_OK")
</pallas_src>

<mosaic_0001>
module attributes {stable_mosaic.version = 11 : i64} {
  func.func @_conv_in_kernel(%arg0: i32, %arg1: i32, %arg2: memref<1x4x768xf32, #tpu.memory_space<vmem>>, %arg3: memref<49x8x4xf32, #tpu.memory_space<vmem>>, %arg4: memref<1x512xf32, #tpu.memory_space<vmem>>, %arg5: memref<1x8x512xf32, #tpu.memory_space<vmem>>, %arg6: memref<1x8x2xf32, #tpu.memory_space<vmem>>) attributes {dimension_semantics = [#tpu.dimension_semantics<parallel>, #tpu.dimension_semantics<arbitrary>], iteration_bounds = array<i64: 2, 1>, scalar_prefetch = 0 : i64, scratch_operands = 0 : i64, tpu.core_type = #tpu.core_type<tc>, window_params = [{transform_indices = @transform_0, window_bounds = array<i64: 1, 4, 768>}, {pipeline_mode = #tpu.pipeline_mode<synchronous>, transform_indices = @transform_1, window_bounds = array<i64: 49, 8, 4>}, {transform_indices = @transform_2, window_bounds = array<i64: 1, 512>}, {transform_indices = @transform_3, window_bounds = array<i64: 1, 8, 512>}, {transform_indices = @transform_4, window_bounds = array<i64: 1, 8, 2>}]} {
    %c512_i32 = arith.constant 512 : i32
    %0 = arith.muli %arg1, %c512_i32 : i32
    %1 = tpu.assume_multiple %0, 128 : i32
    %c0 = arith.constant 0 : index
    %c0_0 = arith.constant 0 : index
    %2 = arith.index_cast %1 : i32 to index
    %3 = vector.load %arg2[%c0, %c0_0, %2] : memref<1x4x768xf32, #tpu.memory_space<vmem>>, vector<1x4x768xf32>
    %4 = vector.shape_cast %3 : vector<1x4x768xf32> to vector<4x768xf32>
    %cst = arith.constant 0.000000e+00 : f32
    %5 = vector.broadcast %cst : f32 to vector<8x512xf32>
    %c0_1 = arith.constant 0 : index
    %c0_2 = arith.constant 0 : index
    %c0_3 = arith.constant 0 : index
    %6 = vector.load %arg3[%c0_1, %c0_2, %c0_3] : memref<49x8x4xf32, #tpu.memory_space<vmem>>, vector<1x8x4xf32>
    %7 = vector.shape_cast %6 : vector<1x8x4xf32> to vector<8x4xf32>
    %8 = vector.extract_strided_slice %4 {offsets = [0, 0], sizes = [4, 512], strides = [1, 1]} : vector<4x768xf32> to vector<4x512xf32>
    %cst_4 = arith.constant dense<0.000000e+00> : vector<8x512xf32>
    %9 = tpu.matmul %7, %8, %cst_4 {dimension_numbers = #tpu.dot_dimension_numbers<[1], [0], [0], [1], [0, 0, 1, 1], [], []>} : vector<8x4xf32>, vector<4x512xf32>, vector<8x512xf32> -> vector<8x512xf32>
    %10 = arith.addf %5, %9 : vector<8x512xf32>
    %c1 = arith.constant 1 : index
    %c0_5 = arith.constant 0 : index
    %c0_6 = arith.constant 0 : index
    %11 = vector.load %arg3[%c1, %c0_5, %c0_6] : memref<49x8x4xf32, #tpu.memory_space<vmem>>, vector<1x8x4xf32>
    %12 = vector.shape_cast %11 : vector<1x8x4xf32> to vector<8x4xf32>
    %13 = vector.extract_strided_slice %4 {offsets = [0, 1], sizes = [4, 512], strides = [1, 1]} : vector<4x768xf32> to vector<4x512xf32>
    %cst_7 = arith.constant dense<0.000000e+00> : vector<8x512xf32>
    %14 = tpu.matmul %12, %13, %cst_7 {dimension_numbers = #tpu.dot_dimension_numbers<[1], [0], [0], [1], [0, 0, 1, 1], [], []>} : vector<8x4xf32>, vector<4x512xf32>, vector<8x512xf32> -> vector<8x512xf32>
    %15 = arith.addf %10, %14 : vector<8x512xf32>
    %c2 = arith.constant 2 : index
    %c0_8 = arith.constant 0 : index
    %c0_9 = arith.constant 0 : index
    %16 = vector.load %arg3[%c2, %c0_8, %c0_9] : memref<49x8x4xf32, #tpu.memory_space<vmem>>, vector<1x8x4xf32>
    %17 = vector.shape_cast %16 : vector<1x8x4xf32> to vector<8x4xf32>
    %18 = vector.extract_strided_slice %4 {offsets = [0, 2], sizes = [4, 512], strides = [1, 1]} : vector<4x768xf32> to vector<4x512xf32>
    %cst_10 = arith.constant dense<0.000000e+00> : vector<8x512xf32>
    %19 = tpu.matmul %17, %18, %cst_10 {dimension_numbers = #tpu.dot_dimension_numbers<[1], [0], [0], [1], [0, 0, 1, 1], [], []>} : vector<8x4xf32>, vector<4x512xf32>, vector<8x512xf32> -> vector<8x512xf32>
    %20 = arith.addf %15, %19 : vector<8x512xf32>
    %c3 = arith.constant 3 : index
    %c0_11 = arith.constant 0 : index
    %c0_12 = arith.constant 0 : index
    %21 = vector.load %arg3[%c3, %c0_11, %c0_12] : memref<49x8x4xf32, #tpu.memory_space<vmem>>, vector<1x8x4xf32>
    %22 = vector.shape_cast %21 : vector<1x8x4xf32> to vector<8x4xf32>
    %23 = vector.extract_strided_slice %4 {offsets = [0, 3], sizes = [4, 512], strides = [1, 1]} : vector<4x768xf32> to vector<4x512xf32>
    %cst_13 = arith.constant dense<0.000000e+00> : vector<8x512xf32>
    %24 = tpu.matmul %22, %23, %cst_13 {dimension_numbers = #tpu.dot_dimension_numbers<[1], [0], [0], [1], [0, 0, 1, 1], [], []>} : vector<8x4xf32>, vector<4x512xf32>, vector<8x512xf32> -> vector<8x512xf32>
    %25 = arith.addf %20, %24 : vector<8x512xf32>
    %c4 = arith.constant 4 : index
    %c0_14 = arith.constant 0 : index
    %c0_15 = arith.constant 0 : index
    %26 = vector.load %arg3[%c4, %c0_14, %c0_15] : memref<49x8x4xf32, #tpu.memory_space<vmem>>, vector<1x8x4xf32>
    %27 = vector.shape_cast %26 : vector<1x8x4xf32> to vector<8x4xf32>
    %28 = vector.extract_strided_slice %4 {offsets = [0, 4], sizes = [4, 512], strides = [1, 1]} : vector<4x768xf32> to vector<4x512xf32>
    %cst_16 = arith.constant dense<0.000000e+00> : vector<8x512xf32>
    %29 = tpu.matmul %27, %28, %cst_16 {dimension_numbers = #tpu.dot_dimension_numbers<[1], [0], [0], [1], [0, 0, 1, 1], [], []>} : vector<8x4xf32>, vector<4x512xf32>, vector<8x512xf32> -> vector<8x512xf32>
    %30 = arith.addf %25, %29 : vector<8x512xf32>
    %c5 = arith.constant 5 : index
    %c0_17 = arith.constant 0 : index
    %c0_18 = arith.constant 0 : index
    %31 = vector.load %arg3[%c5, %c0_17, %c0_18] : memref<49x8x4xf32, #tpu.memory_space<vmem>>, vector<1x8x4xf32>
    %32 = vector.shape_cast %31 : vector<1x8x4xf32> to vector<8x4xf32>
    %33 = vector.extract_strided_slice %4 {offsets = [0, 5], sizes = [4, 512], strides = [1, 1]} : vector<4x768xf32> to vector<4x512xf32>
    %cst_19 = arith.constant dense<0.000000e+00> : vector<8x512xf32>
    %34 = tpu.matmul %32, %33, %cst_19 {dimension_numbers = #tpu.dot_dimension_numbers<[1], [0], [0], [1], [0, 0, 1, 1], [], []>} : vector<8x4xf32>, vector<4x512xf32>, vector<8x512xf32> -> vector<8x512xf32>
    %35 = arith.addf %30, %34 : vector<8x512xf32>
    %c6 = arith.constant 6 : index
    %c0_20 = arith.constant 0 : index
    %c0_21 = arith.constant 0 : index
    %36 = vector.load %arg3[%c6, %c0_20, %c0_21] : memref<49x8x4xf32, #tpu.memory_space<vmem>>, vector<1x8x4xf32>
    %37 = vector.shape_cast %36 : vector<1x8x4xf32> to vector<8x4xf32>
    %38 = vector.extract_strided_slice %4 {offsets = [0, 6], sizes = [4, 512], strides = [1, 1]} : vector<4x768xf32> to vector<4x512xf32>
    %cst_22 = arith.constant dense<0.000000e+00> : vector<8x512xf32>
    %39 = tpu.matmul %37, %38, %cst_22 {dimension_numbers = #tpu.dot_dimension_numbers<[1], [0], [0], [1], [0, 0, 1, 1], [], []>} : vector<8x4xf32>, vector<4x512xf32>, vector<8x512xf32> -> vector<8x512xf32>
    %40 = arith.addf %35, %39 : vector<8x512xf32>
    %c7 = arith.constant 7 : index
    %c0_23 = arith.constant 0 : index
    %c0_24 = arith.constant 0 : index
    %41 = vector.load %arg3[%c7, %c0_23, %c0_24] : memref<49x8x4xf32, #tpu.memory_space<vmem>>, vector<1x8x4xf32>
    %42 = vector.shape_cast %41 : vector<1x8x4xf32> to vector<8x4xf32>
    %43 = vector.extract_strided_slice %4 {offsets = [0, 22], sizes = [4, 512], strides = [1, 1]} : vector<4x768xf32> to vector<4x512xf32>
    %cst_25 = arith.constant dense<0.000000e+00> : vector<8x512xf32>
    %44 = tpu.matmul %42, %43, %cst_25 {dimension_numbers = #tpu.dot_dimension_numbers<[1], [0], [0], [1], [0, 0, 1, 1], [], []>} : vector<8x4xf32>, vector<4x512xf32>, vector<8x512xf32> -> vector<8x512xf32>
    %45 = arith.addf %40, %44 : vector<8x512xf32>
    %c8 = arith.constant 8 : index
    %c0_26 = arith.constant 0 : index
    %c0_27 = arith.constant 0 : index
    %46 = vector.load %arg3[%c8, %c0_26, %c0_27] : memref<49x8x4xf32, #tpu.memory_space<vmem>>, vector<1x8x4xf32>
    %47 = vector.shape_cast %46 : vector<1x8x4xf32> to vector<8x4xf32>
    %48 = vector.extract_strided_slice %4 {offsets = [0, 23], sizes = [4, 512], strides = [1, 1]} : vector<4x768xf32> to vector<4x512xf32>
    %cst_28 = arith.constant dense<0.000000e+00> : vector<8x512xf32>
    %49 = tpu.matmul %47, %48, %cst_28 {dimension_numbers = #tpu.dot_dimension_numbers<[1], [0], [0], [1], [0, 0, 1, 1], [], []>} : vector<8x4xf32>, vector<4x512xf32>, vector<8x512xf32> -> vector<8x512xf32>
    %50 = arith.addf %45, %49 : vector<8x512xf32>
    %c9 = arith.constant 9 : index
    %c0_29 = arith.constant 0 : index
    %c0_30 = arith.constant 0 : index
    %51 = vector.load %arg3[%c9, %c0_29, %c0_30] : memref<49x8x4xf32, #tpu.memory_space<vmem>>, vector<1x8x4xf32>
    %52 = vector.shape_cast %51 : vector<1x8x4xf32> to vector<8x4xf32>
    %53 = vector.extract_strided_slice %4 {offsets = [0, 24], sizes = [4, 512], strides = [1, 1]} : vector<4x768xf32> to vector<4x512xf32>
    %cst_31 = arith.constant dense<0.000000e+00> : vector<8x512xf32>
    %54 = tpu.matmul %52, %53, %cst_31 {dimension_numbers = #tpu.dot_dimension_numbers<[1], [0], [0], [1], [0, 0, 1, 1], [], []>} : vector<8x4xf32>, vector<4x512xf32>, vector<8x512xf32> -> vector<8x512xf32>
    %55 = arith.addf %50, %54 : vector<8x512xf32>
    %c10 = arith.constant 10 : index
    %c0_32 = arith.constant 0 : index
    %c0_33 = arith.constant 0 : index
    %56 = vector.load %arg3[%c10, %c0_32, %c0_33] : memref<49x8x4xf32, #tpu.memory_space<vmem>>, vector<1x8x4xf32>
    %57 = vector.shape_cast %56 : vector<1x8x4xf32> to vector<8x4xf32>
    %58 = vector.extract_strided_slice %4 {offsets = [0, 25], sizes = [4, 512], strides = [1, 1]} : vector<4x768xf32> to vector<4x512xf32>
    %cst_34 = arith.constant dense<0.000000e+00> : vector<8x512xf32>
    %59 = tpu.matmul %57, %58, %cst_34 {dimension_numbers = #tpu.dot_dimension_numbers<[1], [0], [0], [1], [0, 0, 1, 1], [], []>} : vector<8x4xf32>, vector<4x512xf32>, vector<8x512xf32> -> vector<8x512xf32>
    %60 = arith.addf %55, %59 : vector<8x512xf32>
    %c11 = arith.constant 11 : index
    %c0_35 = arith.constant 0 : index
    %c0_36 = arith.constant 0 : index
    %61 = vector.load %arg3[%c11, %c0_35, %c0_36] : memref<49x8x4xf32, #tpu.memory_space<vmem>>, vector<1x8x4xf32>
    %62 = vector.shape_cast %61 : vector<1x8x4xf32> to vector<8x4xf32>
    %63 = vector.extract_strided_slice %4 {offsets = [0, 26], sizes = [4, 512], strides = [1, 1]} : vector<4x768xf32> to vector<4x512xf32>
    %cst_37 = arith.constant dense<0.000000e+00> : vector<8x512xf32>
    %64 = tpu.matmul %62, %63, %cst_37 {dimension_numbers = #tpu.dot_dimension_numbers<[1], [0], [0], [1], [0, 0, 1, 1], [], []>} : vector<8x4xf32>, vector<4x512xf32>, vector<8x512xf32> -> vector<8x512xf32>
    %65 = arith.addf %60, %64 : vector<8x512xf32>
    %c12 = arith.constant 12 : index
    %c0_38 = arith.constant 0 : index
    %c0_39 = arith.constant 0 : index
    %66 = vector.load %arg3[%c12, %c0_38, %c0_39] : memref<49x8x4xf32, #tpu.memory_space<vmem>>, vector<1x8x4xf32>
    %67 = vector.shape_cast %66 : vector<1x8x4xf32> to vector<8x4xf32>
    %68 = vector.extract_strided_slice %4 {offsets = [0, 27], sizes = [4, 512], strides = [1, 1]} : vector<4x768xf32> to vector<4x512xf32>
    %cst_40 = arith.constant dense<0.000000e+00> : vector<8x512xf32>
    %69 = tpu.matmul %67, %68, %cst_40 {dimension_numbers = #tpu.dot_dimension_numbers<[1], [0], [0], [1], [0, 0, 1, 1], [], []>} : vector<8x4xf32>, vector<4x512xf32>, vector<8x512xf32> -> vector<8x512xf32>
    %70 = arith.addf %65, %69 : vector<8x512xf32>
    %c13 = arith.constant 13 : index
    %c0_41 = arith.constant 0 : index
    %c0_42 = arith.constant 0 : index
    %71 = vector.load %arg3[%c13, %c0_41, %c0_42] : memref<49x8x4xf32, #tpu.memory_space<vmem>>, vector<1x8x4xf32>
    %72 = vector.shape_cast %71 : vector<1x8x4xf32> to vector<8x4xf32>
    %73 = vector.extract_strided_slice %4 {offsets = [0, 28], sizes = [4, 512], strides = [1, 1]} : vector<4x768xf32> to vector<4x512xf32>
    %cst_43 = arith.constant dense<0.000000e+00> : vector<8x512xf32>
    %74 = tpu.matmul %72, %73, %cst_43 {dimension_numbers = #tpu.dot_dimension_numbers<[1], [0], [0], [1], [0, 0, 1, 1], [], []>} : vector<8x4xf32>, vector<4x512xf32>, vector<8x512xf32> -> vector<8x512xf32>
    %75 = arith.addf %70, %74 : vector<8x512xf32>
    %c14 = arith.constant 14 : index
    %c0_44 = arith.constant 0 : index
    %c0_45 = arith.constant 0 : index
    %76 = vector.load %arg3[%c14, %c0_44, %c0_45] : memref<49x8x4xf32, #tpu.memory_space<vmem>>, vector<1x8x4xf32>
    %77 = vector.shape_cast %76 : vector<1x8x4xf32> to vector<8x4xf32>
    %78 = vector.extract_strided_slice %4 {offsets = [0, 44], sizes = [4, 512], strides = [1, 1]} : vector<4x768xf32> to vector<4x512xf32>
    %cst_46 = arith.constant dense<0.000000e+00> : vector<8x512xf32>
    %79 = tpu.matmul %77, %78, %cst_46 {dimension_numbers = #tpu.dot_dimension_numbers<[1], [0], [0], [1], [0, 0, 1, 1], [], []>} : vector<8x4xf32>, vector<4x512xf32>, vector<8x512xf32> -> vector<8x512xf32>
    %80 = arith.addf %75, %79 : vector<8x512xf32>
    %c15 = arith.constant 15 : index
    %c0_47 = arith.constant 0 : index
    %c0_48 = arith.constant 0 : index
    %81 = vector.load %arg3[%c15, %c0_47, %c0_48] : memref<49x8x4xf32, #tpu.memory_space<vmem>>, vector<1x8x4xf32>
    %82 = vector.shape_cast %81 : vector<1x8x4xf32> to vector<8x4xf32>
    %83 = vector.extract_strided_slice %4 {offsets = [0, 45], sizes = [4, 512], strides = [1, 1]} : vector<4x768xf32> to vector<4x512xf32>
    %cst_49 = arith.constant dense<0.000000e+00> : vector<8x512xf32>
    %84 = tpu.matmul %82, %83, %cst_49 {dimension_numbers = #tpu.dot_dimension_numbers<[1], [0], [0], [1], [0, 0, 1, 1], [], []>} : vector<8x4xf32>, vector<4x512xf32>, vector<8x512xf32> -> vector<8x512xf32>
    %85 = arith.addf %80, %84 : vector<8x512xf32>
    %c16 = arith.constant 16 : index
    %c0_50 = arith.constant 0 : index
    %c0_51 = arith.constant 0 : index
    %86 = vector.load %arg3[%c16, %c0_50, %c0_51] : memref<49x8x4xf32, #tpu.memory_space<vmem>>, vector<1x8x4xf32>
    %87 = vector.shape_cast %86 : vector<1x8x4xf32> to vector<8x4xf32>
    %88 = vector.extract_strided_slice %4 {offsets = [0, 46], sizes = [4, 512], strides = [1, 1]} : vector<4x768xf32> to vector<4x512xf32>
    %cst_52 = arith.constant dense<0.000000e+00> : vector<8x512xf32>
    %89 = tpu.matmul %87, %88, %cst_52 {dimension_numbers = #tpu.dot_dimension_numbers<[1], [0], [0], [1], [0, 0, 1, 1], [], []>} : vector<8x4xf32>, vector<4x512xf32>, vector<8x512xf32> -> vector<8x512xf32>
    %90 = arith.addf %85, %89 : vector<8x512xf32>
    %c17 = arith.constant 17 : index
    %c0_53 = arith.constant 0 : index
    %c0_54 = arith.constant 0 : index
    %91 = vector.load %arg3[%c17, %c0_53, %c0_54] : memref<49x8x4xf32, #tpu.memory_space<vmem>>, vector<1x8x4xf32>
    %92 = vector.shape_cast %91 : vector<1x8x4xf32> to vector<8x4xf32>
    %93 = vector.extract_strided_slice %4 {offsets = [0, 47], sizes = [4, 512], strides = [1, 1]} : vector<4x768xf32> to vector<4x512xf32>
    %cst_55 = arith.constant dense<0.000000e+00> : vector<8x512xf32>
    %94 = tpu.matmul %92, %93, %cst_55 {dimension_numbers = #tpu.dot_dimension_numbers<[1], [0], [0], [1], [0, 0, 1, 1], [], []>} : vector<8x4xf32>, vector<4x512xf32>, vector<8x512xf32> -> vector<8x512xf32>
    %95 = arith.addf %90, %94 : vector<8x512xf32>
    %c18 = arith.constant 18 : index
    %c0_56 = arith.constant 0 : index
    %c0_57 = arith.constant 0 : index
    %96 = vector.load %arg3[%c18, %c0_56, %c0_57] : memref<49x8x4xf32, #tpu.memory_space<vmem>>, vector<1x8x4xf32>
    %97 = vector.shape_cast %96 : vector<1x8x4xf32> to vector<8x4xf32>
    %98 = vector.extract_strided_slice %4 {offsets = [0, 48], sizes = [4, 512], strides = [1, 1]} : vector<4x768xf32> to vector<4x512xf32>
    %cst_58 = arith.constant dense<0.000000e+00> : vector<8x512xf32>
    %99 = tpu.matmul %97, %98, %cst_58 {dimension_numbers = #tpu.dot_dimension_numbers<[1], [0], [0], [1], [0, 0, 1, 1], [], []>} : vector<8x4xf32>, vector<4x512xf32>, vector<8x512xf32> -> vector<8x512xf32>
    %100 = arith.addf %95, %99 : vector<8x512xf32>
    %c19 = arith.constant 19 : index
    %c0_59 = arith.constant 0 : index
    %c0_60 = arith.constant 0 : index
    %101 = vector.load %arg3[%c19, %c0_59, %c0_60] : memref<49x8x4xf32, #tpu.memory_space<vmem>>, vector<1x8x4xf32>
    %102 = vector.shape_cast %101 : vector<1x8x4xf32> to vector<8x4xf32>
    %103 = vector.extract_strided_slice %4 {offsets = [0, 49], sizes = [4, 512], strides = [1, 1]} : vector<4x768xf32> to vector<4x512xf32>
    %cst_61 = arith.constant dense<0.000000e+00> : vector<8x512xf32>
    %104 = tpu.matmul %102, %103, %cst_61 {dimension_numbers = #tpu.dot_dimension_numbers<[1], [0], [0], [1], [0, 0, 1, 1], [], []>} : vector<8x4xf32>, vector<4x512xf32>, vector<8x512xf32> -> vector<8x512xf32>
    %105 = arith.addf %100, %104 : vector<8x512xf32>
    %c20 = arith.constant 20 : index
    %c0_62 = arith.constant 0 : index
    %c0_63 = arith.constant 0 : index
    %106 = vector.load %arg3[%c20, %c0_62, %c0_63] : memref<49x8x4xf32, #tpu.memory_space<vmem>>, vector<1x8x4xf32>
    %107 = vector.shape_cast %106 : vector<1x8x4xf32> to vector<8x4xf32>
    %108 = vector.extract_strided_slice %4 {offsets = [0, 50], sizes = [4, 512], strides = [1, 1]} : vector<4x768xf32> to vector<4x512xf32>
    %cst_64 = arith.constant dense<0.000000e+00> : vector<8x512xf32>
    %109 = tpu.matmul %107, %108, %cst_64 {dimension_numbers = #tpu.dot_dimension_numbers<[1], [0], [0], [1], [0, 0, 1, 1], [], []>} : vector<8x4xf32>, vector<4x512xf32>, vector<8x512xf32> -> vector<8x512xf32>
    %110 = arith.addf %105, %109 : vector<8x512xf32>
    %c21 = arith.constant 21 : index
    %c0_65 = arith.constant 0 : index
    %c0_66 = arith.constant 0 : index
    %111 = vector.load %arg3[%c21, %c0_65, %c0_66] : memref<49x8x4xf32, #tpu.memory_space<vmem>>, vector<1x8x4xf32>
    %112 = vector.shape_cast %111 : vector<1x8x4xf32> to vector<8x4xf32>
    %113 = vector.extract_strided_slice %4 {offsets = [0, 66], sizes = [4, 512], strides = [1, 1]} : vector<4x768xf32> to vector<4x512xf32>
    %cst_67 = arith.constant dense<0.000000e+00> : vector<8x512xf32>
    %114 = tpu.matmul %112, %113, %cst_67 {dimension_numbers = #tpu.dot_dimension_numbers<[1], [0], [0], [1], [0, 0, 1, 1], [], []>} : vector<8x4xf32>, vector<4x512xf32>, vector<8x512xf32> -> vector<8x512xf32>
    %115 = arith.addf %110, %114 : vector<8x512xf32>
    %c22 = arith.constant 22 : index
    %c0_68 = arith.constant 0 : index
    %c0_69 = arith.constant 0 : index
    %116 = vector.load %arg3[%c22, %c0_68, %c0_69] : memref<49x8x4xf32, #tpu.memory_space<vmem>>, vector<1x8x4xf32>
    %117 = vector.shape_cast %116 : vector<1x8x4xf32> to vector<8x4xf32>
    %118 = vector.extract_strided_slice %4 {offsets = [0, 67], sizes = [4, 512], strides = [1, 1]} : vector<4x768xf32> to vector<4x512xf32>
    %cst_70 = arith.constant dense<0.000000e+00> : vector<8x512xf32>
    %119 = tpu.matmul %117, %118, %cst_70 {dimension_numbers = #tpu.dot_dimension_numbers<[1], [0], [0], [1], [0, 0, 1, 1], [], []>} : vector<8x4xf32>, vector<4x512xf32>, vector<8x512xf32> -> vector<8x512xf32>
    %120 = arith.addf %115, %119 : vector<8x512xf32>
    %c23 = arith.constant 23 : index
    %c0_71 = arith.constant 0 : index
    %c0_72 = arith.constant 0 : index
    %121 = vector.load %arg3[%c23, %c0_71, %c0_72] : memref<49x8x4xf32, #tpu.memory_space<vmem>>, vector<1x8x4xf32>
    %122 = vector.shape_cast %121 : vector<1x8x4xf32> to vector<8x4xf32>
    %123 = vector.extract_strided_slice %4 {offsets = [0, 68], sizes = [4, 512], strides = [1, 1]} : vector<4x768xf32> to vector<4x512xf32>
    %cst_73 = arith.constant dense<0.000000e+00> : vector<8x512xf32>
    %124 = tpu.matmul %122, %123, %cst_73 {dimension_numbers = #tpu.dot_dimension_numbers<[1], [0], [0], [1], [0, 0, 1, 1], [], []>} : vector<8x4xf32>, vector<4x512xf32>, vector<8x512xf32> -> vector<8x512xf32>
    %125 = arith.addf %120, %124 : vector<8x512xf32>
    %c24 = arith.constant 24 : index
    %c0_74 = arith.constant 0 : index
    %c0_75 = arith.constant 0 : index
    %126 = vector.load %arg3[%c24, %c0_74, %c0_75] : memref<49x8x4xf32, #tpu.memory_space<vmem>>, vector<1x8x4xf32>
    %127 = vector.shape_cast %126 : vector<1x8x4xf32> to vector<8x4xf32>
    %128 = vector.extract_strided_slice %4 {offsets = [0, 69], sizes = [4, 512], strides = [1, 1]} : vector<4x768xf32> to vector<4x512xf32>
    %cst_76 = arith.constant dense<0.000000e+00> : vector<8x512xf32>
    %129 = tpu.matmul %127, %128, %cst_76 {dimension_numbers = #tpu.dot_dimension_numbers<[1], [0], [0], [1], [0, 0, 1, 1], [], []>} : vector<8x4xf32>, vector<4x512xf32>, vector<8x512xf32> -> vector<8x512xf32>
    %130 = arith.addf %125, %129 : vector<8x512xf32>
    %c25 = arith.constant 25 : index
    %c0_77 = arith.constant 0 : index
    %c0_78 = arith.constant 0 : index
    %131 = vector.load %arg3[%c25, %c0_77, %c0_78] : memref<49x8x4xf32, #tpu.memory_space<vmem>>, vector<1x8x4xf32>
    %132 = vector.shape_cast %131 : vector<1x8x4xf32> to vector<8x4xf32>
    %133 = vector.extract_strided_slice %4 {offsets = [0, 70], sizes = [4, 512], strides = [1, 1]} : vector<4x768xf32> to vector<4x512xf32>
    %cst_79 = arith.constant dense<0.000000e+00> : vector<8x512xf32>
    %134 = tpu.matmul %132, %133, %cst_79 {dimension_numbers = #tpu.dot_dimension_numbers<[1], [0], [0], [1], [0, 0, 1, 1], [], []>} : vector<8x4xf32>, vector<4x512xf32>, vector<8x512xf32> -> vector<8x512xf32>
    %135 = arith.addf %130, %134 : vector<8x512xf32>
    %c26 = arith.constant 26 : index
    %c0_80 = arith.constant 0 : index
    %c0_81 = arith.constant 0 : index
    %136 = vector.load %arg3[%c26, %c0_80, %c0_81] : memref<49x8x4xf32, #tpu.memory_space<vmem>>, vector<1x8x4xf32>
    %137 = vector.shape_cast %136 : vector<1x8x4xf32> to vector<8x4xf32>
    %138 = vector.extract_strided_slice %4 {offsets = [0, 71], sizes = [4, 512], strides = [1, 1]} : vector<4x768xf32> to vector<4x512xf32>
    %cst_82 = arith.constant dense<0.000000e+00> : vector<8x512xf32>
    %139 = tpu.matmul %137, %138, %cst_82 {dimension_numbers = #tpu.dot_dimension_numbers<[1], [0], [0], [1], [0, 0, 1, 1], [], []>} : vector<8x4xf32>, vector<4x512xf32>, vector<8x512xf32> -> vector<8x512xf32>
    %140 = arith.addf %135, %139 : vector<8x512xf32>
    %c27 = arith.constant 27 : index
    %c0_83 = arith.constant 0 : index
    %c0_84 = arith.constant 0 : index
    %141 = vector.load %arg3[%c27, %c0_83, %c0_84] : memref<49x8x4xf32, #tpu.memory_space<vmem>>, vector<1x8x4xf32>
    %142 = vector.shape_cast %141 : vector<1x8x4xf32> to vector<8x4xf32>
    %143 = vector.extract_strided_slice %4 {offsets = [0, 72], sizes = [4, 512], strides = [1, 1]} : vector<4x768xf32> to vector<4x512xf32>
    %cst_85 = arith.constant dense<0.000000e+00> : vector<8x512xf32>
    %144 = tpu.matmul %142, %143, %cst_85 {dimension_numbers = #tpu.dot_dimension_numbers<[1], [0], [0], [1], [0, 0, 1, 1], [], []>} : vector<8x4xf32>, vector<4x512xf32>, vector<8x512xf32> -> vector<8x512xf32>
    %145 = arith.addf %140, %144 : vector<8x512xf32>
    %c28 = arith.constant 28 : index
    %c0_86 = arith.constant 0 : index
    %c0_87 = arith.constant 0 : index
    %146 = vector.load %arg3[%c28, %c0_86, %c0_87] : memref<49x8x4xf32, #tpu.memory_space<vmem>>, vector<1x8x4xf32>
    %147 = vector.shape_cast %146 : vector<1x8x4xf32> to vector<8x4xf32>
    %148 = vector.extract_strided_slice %4 {offsets = [0, 88], sizes = [4, 512], strides = [1, 1]} : vector<4x768xf32> to vector<4x512xf32>
    %cst_88 = arith.constant dense<0.000000e+00> : vector<8x512xf32>
    %149 = tpu.matmul %147, %148, %cst_88 {dimension_numbers = #tpu.dot_dimension_numbers<[1], [0], [0], [1], [0, 0, 1, 1], [], []>} : vector<8x4xf32>, vector<4x512xf32>, vector<8x512xf32> -> vector<8x512xf32>
    %150 = arith.addf %145, %149 : vector<8x512xf32>
    %c29 = arith.constant 29 : index
    %c0_89 = arith.constant 0 : index
    %c0_90 = arith.constant 0 : index
    %151 = vector.load %arg3[%c29, %c0_89, %c0_90] : memref<49x8x4xf32, #tpu.memory_space<vmem>>, vector<1x8x4xf32>
    %152 = vector.shape_cast %151 : vector<1x8x4xf32> to vector<8x4xf32>
    %153 = vector.extract_strided_slice %4 {offsets = [0, 89], sizes = [4, 512], strides = [1, 1]} : vector<4x768xf32> to vector<4x512xf32>
    %cst_91 = arith.constant dense<0.000000e+00> : vector<8x512xf32>
    %154 = tpu.matmul %152, %153, %cst_91 {dimension_numbers = #tpu.dot_dimension_numbers<[1], [0], [0], [1], [0, 0, 1, 1], [], []>} : vector<8x4xf32>, vector<4x512xf32>, vector<8x512xf32> -> vector<8x512xf32>
    %155 = arith.addf %150, %154 : vector<8x512xf32>
    %c30 = arith.constant 30 : index
    %c0_92 = arith.constant 0 : index
    %c0_93 = arith.constant 0 : index
    %156 = vector.load %arg3[%c30, %c0_92, %c0_93] : memref<49x8x4xf32, #tpu.memory_space<vmem>>, vector<1x8x4xf32>
    %157 = vector.shape_cast %156 : vector<1x8x4xf32> to vector<8x4xf32>
    %158 = vector.extract_strided_slice %4 {offsets = [0, 90], sizes = [4, 512], strides = [1, 1]} : vector<4x768xf32> to vector<4x512xf32>
    %cst_94 = arith.constant dense<0.000000e+00> : vector<8x512xf32>
    %159 = tpu.matmul %157, %158, %cst_94 {dimension_numbers = #tpu.dot_dimension_numbers<[1], [0], [0], [1], [0, 0, 1, 1], [], []>} : vector<8x4xf32>, vector<4x512xf32>, vector<8x512xf32> -> vector<8x512xf32>
    %160 = arith.addf %155, %159 : vector<8x512xf32>
    %c31 = arith.constant 31 : index
    %c0_95 = arith.constant 0 : index
    %c0_96 = arith.constant 0 : index
    %161 = vector.load %arg3[%c31, %c0_95, %c0_96] : memref<49x8x4xf32, #tpu.memory_space<vmem>>, vector<1x8x4xf32>
    %162 = vector.shape_cast %161 : vector<1x8x4xf32> to vector<8x4xf32>
    %163 = vector.extract_strided_slice %4 {offsets = [0, 91], sizes = [4, 512], strides = [1, 1]} : vector<4x768xf32> to vector<4x512xf32>
    %cst_97 = arith.constant dense<0.000000e+00> : vector<8x512xf32>
    %164 = tpu.matmul %162, %163, %cst_97 {dimension_numbers = #tpu.dot_dimension_numbers<[1], [0], [0], [1], [0, 0, 1, 1], [], []>} : vector<8x4xf32>, vector<4x512xf32>, vector<8x512xf32> -> vector<8x512xf32>
    %165 = arith.addf %160, %164 : vector<8x512xf32>
    %c32 = arith.constant 32 : index
    %c0_98 = arith.constant 0 : index
    %c0_99 = arith.constant 0 : index
    %166 = vector.load %arg3[%c32, %c0_98, %c0_99] : memref<49x8x4xf32, #tpu.memory_space<vmem>>, vector<1x8x4xf32>
    %167 = vector.shape_cast %166 : vector<1x8x4xf32> to vector<8x4xf32>
    %168 = vector.extract_strided_slice %4 {offsets = [0, 92], sizes = [4, 512], strides = [1, 1]} : vector<4x768xf32> to vector<4x512xf32>
    %cst_100 = arith.constant dense<0.000000e+00> : vector<8x512xf32>
    %169 = tpu.matmul %167, %168, %cst_100 {dimension_numbers = #tpu.dot_dimension_numbers<[1], [0], [0], [1], [0, 0, 1, 1], [], []>} : vector<8x4xf32>, vector<4x512xf32>, vector<8x512xf32> -> vector<8x512xf32>
    %170 = arith.addf %165, %169 : vector<8x512xf32>
    %c33 = arith.constant 33 : index
    %c0_101 = arith.constant 0 : index
    %c0_102 = arith.constant 0 : index
    %171 = vector.load %arg3[%c33, %c0_101, %c0_102] : memref<49x8x4xf32, #tpu.memory_space<vmem>>, vector<1x8x4xf32>
    %172 = vector.shape_cast %171 : vector<1x8x4xf32> to vector<8x4xf32>
    %173 = vector.extract_strided_slice %4 {offsets = [0, 93], sizes = [4, 512], strides = [1, 1]} : vector<4x768xf32> to vector<4x512xf32>
    %cst_103 = arith.constant dense<0.000000e+00> : vector<8x512xf32>
    %174 = tpu.matmul %172, %173, %cst_103 {dimension_numbers = #tpu.dot_dimension_numbers<[1], [0], [0], [1], [0, 0, 1, 1], [], []>} : vector<8x4xf32>, vector<4x512xf32>, vector<8x512xf32> -> vector<8x512xf32>
    %175 = arith.addf %170, %174 : vector<8x512xf32>
    %c34 = arith.constant 34 : index
    %c0_104 = arith.constant 0 : index
    %c0_105 = arith.constant 0 : index
    %176 = vector.load %arg3[%c34, %c0_104, %c0_105] : memref<49x8x4xf32, #tpu.memory_space<vmem>>, vector<1x8x4xf32>
    %177 = vector.shape_cast %176 : vector<1x8x4xf32> to vector<8x4xf32>
    %178 = vector.extract_strided_slice %4 {offsets = [0, 94], sizes = [4, 512], strides = [1, 1]} : vector<4x768xf32> to vector<4x512xf32>
    %cst_106 = arith.constant dense<0.000000e+00> : vector<8x512xf32>
    %179 = tpu.matmul %177, %178, %cst_106 {dimension_numbers = #tpu.dot_dimension_numbers<[1], [0], [0], [1], [0, 0, 1, 1], [], []>} : vector<8x4xf32>, vector<4x512xf32>, vector<8x512xf32> -> vector<8x512xf32>
    %180 = arith.addf %175, %179 : vector<8x512xf32>
    %c35 = arith.constant 35 : index
    %c0_107 = arith.constant 0 : index
    %c0_108 = arith.constant 0 : index
    %181 = vector.load %arg3[%c35, %c0_107, %c0_108] : memref<49x8x4xf32, #tpu.memory_space<vmem>>, vector<1x8x4xf32>
    %182 = vector.shape_cast %181 : vector<1x8x4xf32> to vector<8x4xf32>
    %183 = vector.extract_strided_slice %4 {offsets = [0, 110], sizes = [4, 512], strides = [1, 1]} : vector<4x768xf32> to vector<4x512xf32>
    %cst_109 = arith.constant dense<0.000000e+00> : vector<8x512xf32>
    %184 = tpu.matmul %182, %183, %cst_109 {dimension_numbers = #tpu.dot_dimension_numbers<[1], [0], [0], [1], [0, 0, 1, 1], [], []>} : vector<8x4xf32>, vector<4x512xf32>, vector<8x512xf32> -> vector<8x512xf32>
    %185 = arith.addf %180, %184 : vector<8x512xf32>
    %c36 = arith.constant 36 : index
    %c0_110 = arith.constant 0 : index
    %c0_111 = arith.constant 0 : index
    %186 = vector.load %arg3[%c36, %c0_110, %c0_111] : memref<49x8x4xf32, #tpu.memory_space<vmem>>, vector<1x8x4xf32>
    %187 = vector.shape_cast %186 : vector<1x8x4xf32> to vector<8x4xf32>
    %188 = vector.extract_strided_slice %4 {offsets = [0, 111], sizes = [4, 512], strides = [1, 1]} : vector<4x768xf32> to vector<4x512xf32>
    %cst_112 = arith.constant dense<0.000000e+00> : vector<8x512xf32>
    %189 = tpu.matmul %187, %188, %cst_112 {dimension_numbers = #tpu.dot_dimension_numbers<[1], [0], [0], [1], [0, 0, 1, 1], [], []>} : vector<8x4xf32>, vector<4x512xf32>, vector<8x512xf32> -> vector<8x512xf32>
    %190 = arith.addf %185, %189 : vector<8x512xf32>
    %c37 = arith.constant 37 : index
    %c0_113 = arith.constant 0 : index
    %c0_114 = arith.constant 0 : index
    %191 = vector.load %arg3[%c37, %c0_113, %c0_114] : memref<49x8x4xf32, #tpu.memory_space<vmem>>, vector<1x8x4xf32>
    %192 = vector.shape_cast %191 : vector<1x8x4xf32> to vector<8x4xf32>
    %193 = vector.extract_strided_slice %4 {offsets = [0, 112], sizes = [4, 512], strides = [1, 1]} : vector<4x768xf32> to vector<4x512xf32>
    %cst_115 = arith.constant dense<0.000000e+00> : vector<8x512xf32>
    %194 = tpu.matmul %192, %193, %cst_115 {dimension_numbers = #tpu.dot_dimension_numbers<[1], [0], [0], [1], [0, 0, 1, 1], [], []>} : vector<8x4xf32>, vector<4x512xf32>, vector<8x512xf32> -> vector<8x512xf32>
    %195 = arith.addf %190, %194 : vector<8x512xf32>
    %c38 = arith.constant 38 : index
    %c0_116 = arith.constant 0 : index
    %c0_117 = arith.constant 0 : index
    %196 = vector.load %arg3[%c38, %c0_116, %c0_117] : memref<49x8x4xf32, #tpu.memory_space<vmem>>, vector<1x8x4xf32>
    %197 = vector.shape_cast %196 : vector<1x8x4xf32> to vector<8x4xf32>
    %198 = vector.extract_strided_slice %4 {offsets = [0, 113], sizes = [4, 512], strides = [1, 1]} : vector<4x768xf32> to vector<4x512xf32>
    %cst_118 = arith.constant dense<0.000000e+00> : vector<8x512xf32>
    %199 = tpu.matmul %197, %198, %cst_118 {dimension_numbers = #tpu.dot_dimension_numbers<[1], [0], [0], [1], [0, 0, 1, 1], [], []>} : vector<8x4xf32>, vector<4x512xf32>, vector<8x512xf32> -> vector<8x512xf32>
    %200 = arith.addf %195, %199 : vector<8x512xf32>
    %c39 = arith.constant 39 : index
    %c0_119 = arith.constant 0 : index
    %c0_120 = arith.constant 0 : index
    %201 = vector.load %arg3[%c39, %c0_119, %c0_120] : memref<49x8x4xf32, #tpu.memory_space<vmem>>, vector<1x8x4xf32>
    %202 = vector.shape_cast %201 : vector<1x8x4xf32> to vector<8x4xf32>
    %203 = vector.extract_strided_slice %4 {offsets = [0, 114], sizes = [4, 512], strides = [1, 1]} : vector<4x768xf32> to vector<4x512xf32>
    %cst_121 = arith.constant dense<0.000000e+00> : vector<8x512xf32>
    %204 = tpu.matmul %202, %203, %cst_121 {dimension_numbers = #tpu.dot_dimension_numbers<[1], [0], [0], [1], [0, 0, 1, 1], [], []>} : vector<8x4xf32>, vector<4x512xf32>, vector<8x512xf32> -> vector<8x512xf32>
    %205 = arith.addf %200, %204 : vector<8x512xf32>
    %c40 = arith.constant 40 : index
    %c0_122 = arith.constant 0 : index
    %c0_123 = arith.constant 0 : index
    %206 = vector.load %arg3[%c40, %c0_122, %c0_123] : memref<49x8x4xf32, #tpu.memory_space<vmem>>, vector<1x8x4xf32>
    %207 = vector.shape_cast %206 : vector<1x8x4xf32> to vector<8x4xf32>
    %208 = vector.extract_strided_slice %4 {offsets = [0, 115], sizes = [4, 512], strides = [1, 1]} : vector<4x768xf32> to vector<4x512xf32>
    %cst_124 = arith.constant dense<0.000000e+00> : vector<8x512xf32>
    %209 = tpu.matmul %207, %208, %cst_124 {dimension_numbers = #tpu.dot_dimension_numbers<[1], [0], [0], [1], [0, 0, 1, 1], [], []>} : vector<8x4xf32>, vector<4x512xf32>, vector<8x512xf32> -> vector<8x512xf32>
    %210 = arith.addf %205, %209 : vector<8x512xf32>
    %c41 = arith.constant 41 : index
    %c0_125 = arith.constant 0 : index
    %c0_126 = arith.constant 0 : index
    %211 = vector.load %arg3[%c41, %c0_125, %c0_126] : memref<49x8x4xf32, #tpu.memory_space<vmem>>, vector<1x8x4xf32>
    %212 = vector.shape_cast %211 : vector<1x8x4xf32> to vector<8x4xf32>
    %213 = vector.extract_strided_slice %4 {offsets = [0, 116], sizes = [4, 512], strides = [1, 1]} : vector<4x768xf32> to vector<4x512xf32>
    %cst_127 = arith.constant dense<0.000000e+00> : vector<8x512xf32>
    %214 = tpu.matmul %212, %213, %cst_127 {dimension_numbers = #tpu.dot_dimension_numbers<[1], [0], [0], [1], [0, 0, 1, 1], [], []>} : vector<8x4xf32>, vector<4x512xf32>, vector<8x512xf32> -> vector<8x512xf32>
    %215 = arith.addf %210, %214 : vector<8x512xf32>
    %c42 = arith.constant 42 : index
    %c0_128 = arith.constant 0 : index
    %c0_129 = arith.constant 0 : index
    %216 = vector.load %arg3[%c42, %c0_128, %c0_129] : memref<49x8x4xf32, #tpu.memory_space<vmem>>, vector<1x8x4xf32>
    %217 = vector.shape_cast %216 : vector<1x8x4xf32> to vector<8x4xf32>
    %218 = vector.extract_strided_slice %4 {offsets = [0, 132], sizes = [4, 512], strides = [1, 1]} : vector<4x768xf32> to vector<4x512xf32>
    %cst_130 = arith.constant dense<0.000000e+00> : vector<8x512xf32>
    %219 = tpu.matmul %217, %218, %cst_130 {dimension_numbers = #tpu.dot_dimension_numbers<[1], [0], [0], [1], [0, 0, 1, 1], [], []>} : vector<8x4xf32>, vector<4x512xf32>, vector<8x512xf32> -> vector<8x512xf32>
    %220 = arith.addf %215, %219 : vector<8x512xf32>
    %c43 = arith.constant 43 : index
    %c0_131 = arith.constant 0 : index
    %c0_132 = arith.constant 0 : index
    %221 = vector.load %arg3[%c43, %c0_131, %c0_132] : memref<49x8x4xf32, #tpu.memory_space<vmem>>, vector<1x8x4xf32>
    %222 = vector.shape_cast %221 : vector<1x8x4xf32> to vector<8x4xf32>
    %223 = vector.extract_strided_slice %4 {offsets = [0, 133], sizes = [4, 512], strides = [1, 1]} : vector<4x768xf32> to vector<4x512xf32>
    %cst_133 = arith.constant dense<0.000000e+00> : vector<8x512xf32>
    %224 = tpu.matmul %222, %223, %cst_133 {dimension_numbers = #tpu.dot_dimension_numbers<[1], [0], [0], [1], [0, 0, 1, 1], [], []>} : vector<8x4xf32>, vector<4x512xf32>, vector<8x512xf32> -> vector<8x512xf32>
    %225 = arith.addf %220, %224 : vector<8x512xf32>
    %c44 = arith.constant 44 : index
    %c0_134 = arith.constant 0 : index
    %c0_135 = arith.constant 0 : index
    %226 = vector.load %arg3[%c44, %c0_134, %c0_135] : memref<49x8x4xf32, #tpu.memory_space<vmem>>, vector<1x8x4xf32>
    %227 = vector.shape_cast %226 : vector<1x8x4xf32> to vector<8x4xf32>
    %228 = vector.extract_strided_slice %4 {offsets = [0, 134], sizes = [4, 512], strides = [1, 1]} : vector<4x768xf32> to vector<4x512xf32>
    %cst_136 = arith.constant dense<0.000000e+00> : vector<8x512xf32>
    %229 = tpu.matmul %227, %228, %cst_136 {dimension_numbers = #tpu.dot_dimension_numbers<[1], [0], [0], [1], [0, 0, 1, 1], [], []>} : vector<8x4xf32>, vector<4x512xf32>, vector<8x512xf32> -> vector<8x512xf32>
    %230 = arith.addf %225, %229 : vector<8x512xf32>
    %c45 = arith.constant 45 : index
    %c0_137 = arith.constant 0 : index
    %c0_138 = arith.constant 0 : index
    %231 = vector.load %arg3[%c45, %c0_137, %c0_138] : memref<49x8x4xf32, #tpu.memory_space<vmem>>, vector<1x8x4xf32>
    %232 = vector.shape_cast %231 : vector<1x8x4xf32> to vector<8x4xf32>
    %233 = vector.extract_strided_slice %4 {offsets = [0, 135], sizes = [4, 512], strides = [1, 1]} : vector<4x768xf32> to vector<4x512xf32>
    %cst_139 = arith.constant dense<0.000000e+00> : vector<8x512xf32>
    %234 = tpu.matmul %232, %233, %cst_139 {dimension_numbers = #tpu.dot_dimension_numbers<[1], [0], [0], [1], [0, 0, 1, 1], [], []>} : vector<8x4xf32>, vector<4x512xf32>, vector<8x512xf32> -> vector<8x512xf32>
    %235 = arith.addf %230, %234 : vector<8x512xf32>
    %c46 = arith.constant 46 : index
    %c0_140 = arith.constant 0 : index
    %c0_141 = arith.constant 0 : index
    %236 = vector.load %arg3[%c46, %c0_140, %c0_141] : memref<49x8x4xf32, #tpu.memory_space<vmem>>, vector<1x8x4xf32>
    %237 = vector.shape_cast %236 : vector<1x8x4xf32> to vector<8x4xf32>
    %238 = vector.extract_strided_slice %4 {offsets = [0, 136], sizes = [4, 512], strides = [1, 1]} : vector<4x768xf32> to vector<4x512xf32>
    %cst_142 = arith.constant dense<0.000000e+00> : vector<8x512xf32>
    %239 = tpu.matmul %237, %238, %cst_142 {dimension_numbers = #tpu.dot_dimension_numbers<[1], [0], [0], [1], [0, 0, 1, 1], [], []>} : vector<8x4xf32>, vector<4x512xf32>, vector<8x512xf32> -> vector<8x512xf32>
    %240 = arith.addf %235, %239 : vector<8x512xf32>
    %c47 = arith.constant 47 : index
    %c0_143 = arith.constant 0 : index
    %c0_144 = arith.constant 0 : index
    %241 = vector.load %arg3[%c47, %c0_143, %c0_144] : memref<49x8x4xf32, #tpu.memory_space<vmem>>, vector<1x8x4xf32>
    %242 = vector.shape_cast %241 : vector<1x8x4xf32> to vector<8x4xf32>
    %243 = vector.extract_strided_slice %4 {offsets = [0, 137], sizes = [4, 512], strides = [1, 1]} : vector<4x768xf32> to vector<4x512xf32>
    %cst_145 = arith.constant dense<0.000000e+00> : vector<8x512xf32>
    %244 = tpu.matmul %242, %243, %cst_145 {dimension_numbers = #tpu.dot_dimension_numbers<[1], [0], [0], [1], [0, 0, 1, 1], [], []>} : vector<8x4xf32>, vector<4x512xf32>, vector<8x512xf32> -> vector<8x512xf32>
    %245 = arith.addf %240, %244 : vector<8x512xf32>
    %c48 = arith.constant 48 : index
    %c0_146 = arith.constant 0 : index
    %c0_147 = arith.constant 0 : index
    %246 = vector.load %arg3[%c48, %c0_146, %c0_147] : memref<49x8x4xf32, #tpu.memory_space<vmem>>, vector<1x8x4xf32>
    %247 = vector.shape_cast %246 : vector<1x8x4xf32> to vector<8x4xf32>
    %248 = vector.extract_strided_slice %4 {offsets = [0, 138], sizes = [4, 512], strides = [1, 1]} : vector<4x768xf32> to vector<4x512xf32>
    %cst_148 = arith.constant dense<0.000000e+00> : vector<8x512xf32>
    %249 = tpu.matmul %247, %248, %cst_148 {dimension_numbers = #tpu.dot_dimension_numbers<[1], [0], [0], [1], [0, 0, 1, 1], [], []>} : vector<8x4xf32>, vector<4x512xf32>, vector<8x512xf32> -> vector<8x512xf32>
    %250 = arith.addf %245, %249 : vector<8x512xf32>
    %c0_149 = arith.constant 0 : index
    %c0_150 = arith.constant 0 : index
    %c0_151 = arith.constant 0 : index
    %251 = vector.load %arg5[%c0_149, %c0_150, %c0_151] : memref<1x8x512xf32, #tpu.memory_space<vmem>>, vector<1x8x512xf32>
    %252 = vector.shape_cast %251 : vector<1x8x512xf32> to vector<8x512xf32>
    %253 = vector.shape_cast %250 : vector<8x512xf32> to vector<1x8x512xf32>
    tpu.vector_store %arg5[%c0_149, %c0_150, %c0_151], %253 {strides = array<i32>} : memref<1x8x512xf32, #tpu.memory_space<vmem>>, vector<1x8x512xf32>,
    %c0_152 = arith.constant 0 : index
    %c0_153 = arith.constant 0 : index
    %254 = vector.load %arg4[%c0_152, %c0_153] : memref<1x512xf32, #tpu.memory_space<vmem>>, vector<1x512xf32>
    %255 = vector.broadcast %254 : vector<1x512xf32> to vector<8x512xf32>
    %256 = arith.mulf %250, %255 : vector<8x512xf32>
    %cst_154 = arith.constant dense<0.000000e+00> : vector<8xf32>
    %257 = vector.multi_reduction <add>, %256, %cst_154 [1] : vector<8x512xf32> to vector<8xf32>
    %258 = vector.shape_cast %257 : vector<8xf32> to vector<8x1xf32>
    %259 = arith.mulf %250, %250 : vector<8x512xf32>
    %260 = vector.broadcast %254 : vector<1x512xf32> to vector<8x512xf32>
    %261 = arith.mulf %259, %260 : vector<8x512xf32>
    %cst_155 = arith.constant dense<0.000000e+00> : vector<8xf32>
    %262 = vector.multi_reduction <add>, %261, %cst_155 [1] : vector<8x512xf32> to vector<8xf32>
    %263 = vector.shape_cast %262 : vector<8xf32> to vector<8x1xf32>
    %c0_i32 = arith.constant 0 : i32
    %264 = arith.cmpi eq, %arg1, %c0_i32 : i32
    %265 = arith.extui %264 : i1 to i32
    %c0_i32_156 = arith.constant 0 : i32
    %266 = arith.cmpi ne, %265, %c0_i32_156 : i32
    scf.if %266 {
      %cst_163 = arith.constant 0.000000e+00 : f32
      %272 = vector.broadcast %cst_163 : f32 to vector<1x8x2xf32>
      %c0_164 = arith.constant 0 : index
      %c0_165 = arith.constant 0 : index
      %c0_166 = arith.constant 0 : index
      %273 = vector.load %arg6[%c0_164, %c0_165, %c0_166] : memref<1x8x2xf32, #tpu.memory_space<vmem>>, vector<1x8x2xf32>
      tpu.vector_store %arg6[%c0_164, %c0_165, %c0_166], %272 {strides = array<i32>} : memref<1x8x2xf32, #tpu.memory_space<vmem>>, vector<1x8x2xf32>,
    } else {
    }
    %c0_157 = arith.constant 0 : index
    %c0_158 = arith.constant 0 : index
    %c0_159 = arith.constant 0 : index
    %267 = vector.load %arg6[%c0_157, %c0_158, %c0_159] : memref<1x8x2xf32, #tpu.memory_space<vmem>>, vector<1x8x2xf32>
    %268 = tpu.concatenate %258, %263 in 1 : vector<8x1xf32>, vector<8x1xf32> -> vector<8x2xf32>
    %269 = vector.shape_cast %268 : vector<8x2xf32> to vector<1x8x2xf32>
    %270 = arith.addf %267, %269 : vector<1x8x2xf32>
    %c0_160 = arith.constant 0 : index
    %c0_161 = arith.constant 0 : index
    %c0_162 = arith.constant 0 : index
    %271 = vector.load %arg6[%c0_160, %c0_161, %c0_162] : memref<1x8x2xf32, #tpu.memory_space<vmem>>, vector<1x8x2xf32>
    tpu.vector_store %arg6[%c0_160, %c0_161, %c0_162], %270 {strides = array<i32>} : memref<1x8x2xf32, #tpu.memory_space<vmem>>, vector<1x8x2xf32>,
    return
  }
  func.func @transform_0(%arg0: i32, %arg1: i32) -> (i32, i32, i32) {
    %c0_i32 = arith.constant 0 : i32
    %c0_i32_0 = arith.constant 0 : i32
    %c0_i32_1 = arith.constant 0 : i32
    return %arg0, %c0_i32, %c0_i32_0 : i32, i32, i32
  }
  func.func @transform_1(%arg0: i32, %arg1: i32) -> (i32, i32, i32) {
    %c0_i32 = arith.constant 0 : i32
    %c0_i32_0 = arith.constant 0 : i32
    %c0_i32_1 = arith.constant 0 : i32
    %c0_i32_2 = arith.constant 0 : i32
    return %c0_i32, %c0_i32_0, %c0_i32_1 : i32, i32, i32
  }
  func.func @transform_2(%arg0: i32, %arg1: i32) -> (i32, i32) {
    %c0_i32 = arith.constant 0 : i32
    %c0_i32_0 = arith.constant 0 : i32
    return %c0_i32, %arg1 : i32, i32
  }
  func.func @transform_3(%arg0: i32, %arg1: i32) -> (i32, i32, i32) {
    %c0_i32 = arith.constant 0 : i32
    %c0_i32_0 = arith.constant 0 : i32
    return %arg0, %c0_i32, %arg1 : i32, i32, i32
  }
  func.func @transform_4(%arg0: i32, %arg1: i32) -> (i32, i32, i32) {
    %c0_i32 = arith.constant 0 : i32
    %c0_i32_0 = arith.constant 0 : i32
    %c0_i32_1 = arith.constant 0 : i32
    return %arg0, %c0_i32, %c0_i32_0 : i32, i32, i32
  }
}

</mosaic_0001>

<llo_original>
// kernel: tpu_custom_call.1
$region0: #{tpu_custom_call.1}
  #allocation0 [shape = 'u32[]', space=smem, size = 0x4, offset = 0x4, fixed_abs, tag = 'smem constant byte address 0x4 - core index']
  #allocation1 [shape = 'u32[144,128]{1,0:T(1,128)}', space=vmem, size = 0x12000, scoped, tag = 'internal scratch']
  %s0 = inlined_call_operand.vmem [shape: f32[2,4,768], index: 0, kind: input, shape index: {}]
  %s1 = inlined_call_operand.vmem [shape: f32[49,8,4], index: 1, kind: input, shape index: {}]
  %s2 = inlined_call_operand.vmem [shape: f32[1,512], index: 2, kind: input, shape index: {}]
  %s3 = inlined_call_operand.hbm [shape: f32[2,8,512], index: 3, kind: output, shape index: {0}]
  %s4 = inlined_call_operand.vmem [shape: f32[2,8,2], index: 4, kind: output, shape index: {1}]
  %5 = xla_tuple %s3, %s4
  %s6 = sld [smem:[#allocation0]]
  $region57: #{tpu_custom_call.1} parent=0
    _
  %s8 = ssub.s32 1, %s6
  %s9 = scalar_select 0, %s8, %s6
  $region1: #{tpu_custom_call.1} parent=0
    #allocation2 [shape = 'u8[32768]{0}', space=vmem, size = 0x8000, scoped, tag = 'output window, operand 0']
    #allocation3 [shape = 's32[2]{0}', space=sflag, size = 0x8, scoped, tag = 'scoped memory for tpu_custom_call.1']
    %10 = vsyncpa [#allocation3], 0
    %s11 = scalar_lea.sflag [#allocation3], 1
    %12 = vsyncpa %s11, 0
    loop: start=0, step=1, limit=4
    $region2: #{tpu_custom_call.1} parent=1 // loop_pre_header
      _
    $region3: #{tpu_custom_call.1} parent=1 // loop_header
      %s14 = sphi 0, %s18
      %p15 = scmp.ge.s32.totalorder %s14, 4
      %s21 = sphi 0, %s33
      %s22 = sphi 0, %s29
      %s23 = sphi 0, %s21
      %s24 = sphi 0, %s22
      %s25 = sphi 0, %s23
      %s26 = sphi 0, %s24
      %s36 = sphi 0, %s38
      %s39 = sphi 0, %s36
      %s40 = sphi 0, %s39
      %s56 = sphi 0, %s40
      %s60 = sphi 0, %s60
      %s62 = sphi 0, %s60
      %s63 = sphi 0, %s62
      %s77 = sphi 0, %s63
      %s83 = sphi 0, %s85
      %s86 = sphi 0, %s83
      %s87 = sphi 0, %s86
      %s103 = sphi 0, %s87
      %s111 = sphi 0, %s113
      %s114 = sphi 0, %s111
      %s115 = sphi 0, %s114
      %s131 = sphi 0, %s115
      %s137 = sphi 0, %s139
      %s140 = sphi 0, %s137
      %s141 = sphi 0, %s140
      %s157 = sphi 0, %s141
    $region4: #{tpu_custom_call.1} parent=1 // loop_header_branch
      %17 = sbr.rel (%p15) target = $region8
    $region5: #{tpu_custom_call.1} parent=1 // loop_body
      %s19 = ssub.s32 %s14, 1
      %s20 = ssub.s32 %s14, 2
      %s27 = sadd.s32 1, %s22
      %p28 = scmp.ge.s32.totalorder %s27, 1
      %s29 = scalar_select %p28, 0, %s27
      %s30 = sadd.s32 1, %s21
      %s31 = scalar_select %p28, %s30, %s21
      %p32 = scmp.ge.s32.totalorder %s31, 2
      %s33 = scalar_select %p32, 0, %s31
      %s34 = ssub.s32 %s21, %s33
      %p35 = scmp.eq.s32.totalorder %s34, 0
      %s37 = sadd.s32 %s36, 1
      %s38 = scalar_select %p35, %s36, %s37
      %p41 = pneg %p35
      %p42 = scmp.eq.s32.totalorder %s14, 1
      %p43 = por %p41, %p42
      %p44 = scmp.ne.s32.totalorder %s36, %s39
      %p45 = scmp.eq.s32.totalorder %s14, 0
      %p46 = por %p44, %p45
      %p47 = scmp.ne.s32.totalorder %s36, %s39
      %p48 = scmp.eq.s32.totalorder %s19, 1
      %p49 = por %p47, %p48
      %p50 = scmp.ne.s32.totalorder %s39, %s40
      %p51 = scmp.eq.s32.totalorder %s19, 0
      %p52 = por %p50, %p51
      %p53 = scmp.ne.s32.totalorder %s39, %s40
      %p54 = scmp.eq.s32.totalorder %s20, 1
      %p55 = por %p53, %p54
      %p57 = scmp.ne.s32.totalorder %s40, %s56
      %p58 = scmp.eq.s32.totalorder %s20, 0
      %p59 = por %p57, %p58
      %s61 = sadd.s32 %s60, 1
      %p64 = scmp.eq.s32.totalorder %s14, 1
      %p65 = scmp.ne.s32.totalorder %s60, %s62
      %p66 = scmp.eq.s32.totalorder %s14, 0
      %p67 = por %p65, %p66
      %p68 = scmp.ne.s32.totalorder %s60, %s62
      %p69 = scmp.eq.s32.totalorder %s19, 1
      %p70 = por %p68, %p69
      %p71 = scmp.ne.s32.totalorder %s62, %s63
      %p72 = scmp.eq.s32.totalorder %s19, 0
      %p73 = por %p71, %p72
      %p74 = scmp.ne.s32.totalorder %s62, %s63
      %p75 = scmp.eq.s32.totalorder %s20, 1
      %p76 = por %p74, %p75
      %p78 = scmp.ne.s32.totalorder %s63, %s77
      %p79 = scmp.eq.s32.totalorder %s20, 0
      %p80 = por %p78, %p79
      %s81 = ssub.s32 %s22, %s29
      %p82 = scmp.eq.s32.totalorder %s81, 0
      %s84 = sadd.s32 %s83, 1
      %s85 = scalar_select %p82, %s83, %s84
      %p88 = pneg %p82
      %p89 = scmp.eq.s32.totalorder %s14, 1
      %p90 = por %p88, %p89
      %p91 = scmp.ne.s32.totalorder %s83, %s86
      %p92 = scmp.eq.s32.totalorder %s14, 0
      %p93 = por %p91, %p92
      %p94 = scmp.ne.s32.totalorder %s83, %s86
      %p95 = scmp.eq.s32.totalorder %s19, 1
      %p96 = por %p94, %p95
      %p97 = scmp.ne.s32.totalorder %s86, %s87
      %p98 = scmp.eq.s32.totalorder %s19, 0
      %p99 = por %p97, %p98
      %p100 = scmp.ne.s32.totalorder %s86, %s87
      %p101 = scmp.eq.s32.totalorder %s20, 1
      %p102 = por %p100, %p101
      %p104 = scmp.ne.s32.totalorder %s87, %s103
      %p105 = scmp.eq.s32.totalorder %s20, 0
      %p106 = por %p104, %p105
      %s107 = ssub.s32 %s21, %s33
      %s108 = ssub.s32 %s22, %s29
      %s109 = sor.u32 %s107, %s108
      %p110 = scmp.eq.s32.totalorder %s109, 0
      %s112 = sadd.s32 %s111, 1
      %s113 = scalar_select %p110, %s111, %s112
      %p116 = pneg %p110
      %p117 = scmp.eq.s32.totalorder %s14, 1
      %p118 = por %p116, %p117
      %p119 = scmp.ne.s32.totalorder %s111, %s114
      %p120 = scmp.eq.s32.totalorder %s14, 0
      %p121 = por %p119, %p120
      %p122 = scmp.ne.s32.totalorder %s111, %s114
      %p123 = scmp.eq.s32.totalorder %s19, 1
      %p124 = por %p122, %p123
      %p125 = scmp.ne.s32.totalorder %s114, %s115
      %p126 = scmp.eq.s32.totalorder %s19, 0
      %p127 = por %p125, %p126
      %p128 = scmp.ne.s32.totalorder %s114, %s115
      %p129 = scmp.eq.s32.totalorder %s20, 1
      %p130 = por %p128, %p129
      %p132 = scmp.ne.s32.totalorder %s115, %s131
      %p133 = scmp.eq.s32.totalorder %s20, 0
      %p134 = por %p132, %p133
      %s135 = ssub.s32 %s21, %s33
      %p136 = scmp.eq.s32.totalorder %s135, 0
      %s138 = sadd.s32 %s137, 1
      %s139 = scalar_select %p136, %s137, %s138
      %p142 = pneg %p136
      %p143 = scmp.eq.s32.totalorder %s14, 1
      %p144 = por %p142, %p143
      %p145 = scmp.ne.s32.totalorder %s137, %s140
      %p146 = scmp.eq.s32.totalorder %s14, 0
      %p147 = por %p145, %p146
      %p148 = scmp.ne.s32.totalorder %s137, %s140
      %p149 = scmp.eq.s32.totalorder %s19, 1
      %p150 = por %p148, %p149
      %p151 = scmp.ne.s32.totalorder %s140, %s141
      %p152 = scmp.eq.s32.totalorder %s19, 0
      %p153 = por %p151, %p152
      %p154 = scmp.ne.s32.totalorder %s140, %s141
      %p155 = scmp.eq.s32.totalorder %s20, 1
      %p156 = por %p154, %p155
      %p158 = scmp.ne.s32.totalorder %s141, %s157
      %p159 = scmp.eq.s32.totalorder %s20, 0
      %p160 = por %p158, %p159
      %p161 = scmp.le.s32.totalorder 1, %s14
      %p162 = scmp.lt.s32.totalorder %s14, 3
      %p163 = pnand %p161, %p162
      %p164 = pneg %p163
      // Predicated region
      $region9: #{tpu_custom_call.1} parent=5 // pred_check
        _
      $region10: #{tpu_custom_call.1} parent=5 // pred_check_branch
        %166 = sbr.rel (%p163) target = $region12
      $region11: #{tpu_custom_call.1} parent=5 // pred_region
        %s167 = ssub.s32 %s14, 1
        // Predicated region
        $region13: #{tpu_custom_call.1} parent=11 // pred_check
          %p168 = pneg %p73
        $region14: #{tpu_custom_call.1} parent=11 // pred_check_branch
          %170 = sbr.rel (%p168) target = $region16
        $region15: #{tpu_custom_call.1} parent=11 // pred_region
          _
        $region16: #{tpu_custom_call.1} parent=11 // pred_fallthru
          _
        // Predicated region
        $region17: #{tpu_custom_call.1} parent=11 // pred_check
          %p171 = pneg %p99
        $region18: #{tpu_custom_call.1} parent=11 // pred_check_branch
          %173 = sbr.rel (%p171) target = $region20
        $region19: #{tpu_custom_call.1} parent=11 // pred_region
          %s174 = smul.u32 4, %s24
          %p175 = scmp.lt.s32.totalorder %s174, 3
          %s176 = scalar_select %p175, %s174, 3
          %s177 = scalar_lea.vmem %s2, %s176
          %s178 = smul.u32 4, %s24
        $region20: #{tpu_custom_call.1} parent=11 // pred_fallthru
          _
      $region12: #{tpu_custom_call.1} parent=5 // pred_fallthru
        _
      %p179 = scmp.lt.s32.totalorder %s14, 2
      // Predicated region
      $region21: #{tpu_custom_call.1} parent=5 // pred_check
        %p180 = pneg %p179
      $region22: #{tpu_custom_call.1} parent=5 // pred_check_branch
        %182 = sbr.rel (%p180) target = $region24
      $region23: #{tpu_custom_call.1} parent=5 // pred_region
        // Predicated region
        $region25: #{tpu_custom_call.1} parent=23 // pred_check
          %p183 = pneg %p46
        $region26: #{tpu_custom_call.1} parent=23 // pred_check_branch
          %185 = sbr.rel (%p183) target = $region28
        $region27: #{tpu_custom_call.1} parent=23 // pred_region
          %p186 = scmp.lt.s32.totalorder %s21, 1
          %s187 = scalar_select %p186, %s21, 1
          %s188 = smul.addr %s187, 6
          %s189 = smul.addr %s188, 4
          %s190 = scalar_lea.vmem %s0, %s189
        $region28: #{tpu_custom_call.1} parent=23 // pred_fallthru
          _
      $region24: #{tpu_custom_call.1} parent=5 // pred_fallthru
        _
      %p191 = scmp.le.s32.totalorder 1, %s14
      %p192 = scmp.lt.s32.totalorder %s14, 3
      %p193 = pnand %p191, %p192
      %p194 = pneg %p193
      // Predicated region
      $region29: #{tpu_custom_call.1} parent=5 // pred_check
        _
      $region30: #{tpu_custom_call.1} parent=5 // pred_check_branch
        %196 = sbr.rel (%p193) target = $region32
      $region31: #{tpu_custom_call.1} parent=5 // pred_region
        %s197 = ssub.s32 %s14, 1
        %p198 = scmp.lt.s32.totalorder %s23, 1
        %s199 = scalar_select %p198, %s23, 1
        %s200 = smul.addr %s199, 6
        %s201 = smul.addr %s200, 4
        %s202 = scalar_lea.vmem %s0, %s201
        %p203 = pneg %p52
        %p204 = pneg %p49
        %p205 = pneg %p73
        %p206 = pneg %p70
        %s207 = smul.u32 4, %s24
        %p208 = scmp.lt.s32.totalorder %s207, 3
        %s209 = scalar_select %p208, %s207, 3
        %s210 = scalar_lea.vmem %s2, %s209
        %p211 = pneg %p99
        %p212 = pneg %p96
        %p213 = pneg %p127
        %p214 = pneg %p124
        %s215 = sand.u32 %s114, 1
        %s216 = scalar_lea.sflag [#allocation3], %s215
        %s217 = sand.u32 %s114, 1
        %s218 = smul.addr %s217, 32
        %s219 = scalar_lea.vmem [#allocation2], %s218
        %p220 = pneg %p153
        %p221 = pneg %p150
        %p222 = scmp.lt.s32.totalorder %s23, 1
        %s223 = scalar_select %p222, %s23, 1
        %s224 = smul.addr %s223, 8
        %s225 = scalar_lea.vmem %s4, %s224
        %p226 = scmp.lt.s32.totalorder %s23, 1
        %s227 = scalar_select %p226, %s23, 1
        %s228 = smul.addr %s227, 6
        %s229 = smul.addr %s228, 4
        %s230 = scalar_lea.vmem %s0, %s229
        %s231 = smul.u32 4, %s24
        %p232 = scmp.lt.s32.totalorder %s231, 3
        %s233 = scalar_select %p232, %s231, 3
        %s234 = scalar_lea.vmem %s2, %s233
        %s235 = smul.u32 4, %s24
        %s236 = smul.u32 4, %s24
        %p237 = scmp.lt.s32.totalorder %s23, 1
        %s238 = scalar_select %p237, %s23, 1
        %s239 = smul.addr %s238, 8
        %s240 = scalar_lea.vmem %s4, %s239
        %s241 = smul.u32 %s24, 512
        %s242 = sshra.s32 %s241, 7
        %s243 = sand.u32 %s241, 127
        %s244 = smul.addr %s242, 4
        %s245 = scalar_lea.vmem %s230, %s244
        %v246 = vld [vmem:[%s245] sm:$0xff]
        %v247 = vld [vmem:[%s245 + $0x8] sm:$0xff]
        %v248 = vld [vmem:[%s245 + $0x10] sm:$0xff]
        %v249 = vld [vmem:[%s1] sm:$0xff]
        %s250 = scalar_lea.vmem %s1, 8
        %v251 = vld [vmem:[%s250] sm:$0xff]
        %v255 = vcombine.high %v246, %v246
        %v256 = vcombine.high %v247, %v247
        %257 = vrot.lane.b32.xlu0 %v246, 127
        %v258 = vpop.permute.xlu0 %257
        %259 = vrot.lane.b32.xlu0 %v255, 127
        %v260 = vpop.permute.xlu0 %259
        %261 = vrot.lane.b32.xlu0 %v247, 127
        %v262 = vpop.permute.xlu0 %261
        %263 = vrot.lane.b32.xlu0 %v256, 127
        %v264 = vpop.permute.xlu0 %263
        %265 = vrot.lane.b32.xlu0 %v248, 127
        %v266 = vpop.permute.xlu0 %265
        %vm267 = vcmask 1039360
        %v268 = vsel %vm267, %v258, %v260
        %v269 = vsel %vm267, %v260, %v262
        %v270 = vsel %vm267, %v262, %v264
        %v271 = vsel %vm267, %v264, %v266
        %vm272 = vcmask 31744
        %v274 = vsel %vm272, %v251, 0
        %vm276 = vcmask 1043456
        %v277 = vsel %vm276, %v268, 0
        %v279 = vsel %vm276, %v269, 0
        %v281 = vsel %vm276, %v270, 0
        %v283 = vsel %vm276, %v271, 0
        %285 = vmatprep.subr.mxu0 %v279
        %286 = vmatpush1.msra.mxu0 %v277
        %287 = vmatprep.subr.mxu0 0.0
        %288 = vmatpush1.msra.mxu0 0.0
        %289 = vmatprep.subr.mxu0 0.0
        %290 = vmatpush1.msra.mxu0 0.0
        %291 = vmatprep.subr.mxu0 0.0
        %292 = vmatpush1.msra.mxu0 0.0
        %293 = vmatprep.subr.mxu0 0.0
        %294 = vmatpush1.msra.mxu0 0.0
        %295 = vmatprep.subr.mxu0 0.0
        %296 = vmatpush1.msra.mxu0 0.0
        %297 = vmatprep.subr.mxu0 0.0
        %298 = vmatpush1.msra.mxu0 0.0
        %299 = vmatprep.subr.mxu0 0.0
        %300 = vmatpush1.msra.mxu0 0.0
        %301 = vmatprep.subr.mxu0 0.0
        %302 = vmatpush1.msra.mxu0 0.0
        %303 = vmatprep.subr.mxu0 0.0
        %304 = vmatpush1.msra.mxu0 0.0
        %305 = vmatprep.subr.mxu0 0.0
        %306 = vmatpush1.msra.mxu0 0.0
        %307 = vmatprep.subr.mxu0 0.0
        %308 = vmatpush1.msra.mxu0 0.0
        %309 = vmatprep.subr.mxu0 0.0
        %310 = vmatpush1.msra.mxu0 0.0
        %311 = vmatprep.subr.mxu0 0.0
        %312 = vmatpush1.msra.mxu0 0.0
        %313 = vmatprep.subr.mxu0 0.0
        %314 = vmatpush1.msra.mxu0 0.0
        %315 = vmatprep.subr.mxu0 0.0
        %316 = vmatpush1.msra.mxu0 0.0
        %317 = vmatprep.subr.mxu0 0.0
        %318 = vmatpush1.msra.mxu0 0.0
        %319 = vmatprep.subr.mxu0 0.0
        %320 = vmatpush1.msra.mxu0 0.0
        %321 = vmatprep.subr.mxu0 0.0
        %322 = vmatpush1.msra.mxu0 0.0
        %323 = vmatprep.subr.mxu0 0.0
        %324 = vmatpush1.msra.mxu0 0.0
        %325 = vmatprep.subr.mxu0 0.0
        %326 = vmatpush1.msra.mxu0 0.0
        %327 = vmatprep.subr.mxu0 0.0
        %328 = vmatpush1.msra.mxu0 0.0
        %329 = vmatprep.subr.mxu0 0.0
        %330 = vmatpush1.msra.mxu0 0.0
        %331 = vmatprep.subr.mxu0 0.0
        %332 = vmatpush1.msra.mxu0 0.0
        %333 = vmatprep.subr.mxu0 0.0
        %334 = vmatpush1.msra.mxu0 0.0
        %335 = vmatprep.subr.mxu0 0.0
        %336 = vmatpush1.msra.mxu0 0.0
        %337 = vmatprep.subr.mxu0 0.0
        %338 = vmatpush1.msra.mxu0 0.0
        %339 = vmatprep.subr.mxu0 0.0
        %340 = vmatpush1.msra.mxu0 0.0
        %341 = vmatprep.subr.mxu0 0.0
        %342 = vmatpush1.msra.mxu0 0.0
        %343 = vmatprep.subr.mxu0 0.0
        %344 = vmatpush1.msra.mxu0 0.0
        %345 = vmatprep.subr.mxu0 0.0
        %346 = vmatpush1.msra.mxu0 0.0
        %347 = vmatprep.subr.mxu0 0.0
        %348 = vmatpush1.msra.mxu0 0.0
        %349 = vmatprep.mubr.f32.mxu0 0.0
        %350 = vmatmul.mubr.f32.gmra.mrb[0].mxu0 %v274
        %v351 = vpop.f32.mrb[0].mxu0
        %v352 = vadd.f32 0.0, %v351
        %v353 = vpop.f32.mrb[0].mxu0
        %v354 = vadd.f32 0.0, %v353
        %355 = vdwg.mxu0
        %356 = vmatprep.subr.mxu0 %v283
        %357 = vmatpush1.msra.mxu0 %v281
        %358 = vmatprep.subr.mxu0 0.0
        %359 = vmatpush1.msra.mxu0 0.0
        %360 = vmatprep.subr.mxu0 0.0
        %361 = vmatpush1.msra.mxu0 0.0
        %362 = vmatprep.subr.mxu0 0.0
        %363 = vmatpush1.msra.mxu0 0.0
        %364 = vmatprep.subr.mxu0 0.0
        %365 = vmatpush1.msra.mxu0 0.0
        %366 = vmatprep.subr.mxu0 0.0
        %367 = vmatpush1.msra.mxu0 0.0
        %368 = vmatprep.subr.mxu0 0.0
        %369 = vmatpush1.msra.mxu0 0.0
        %370 = vmatprep.subr.mxu0 0.0
        %371 = vmatpush1.msra.mxu0 0.0
        %372 = vmatprep.subr.mxu0 0.0
        %373 = vmatpush1.msra.mxu0 0.0
        %374 = vmatprep.subr.mxu0 0.0
        %375 = vmatpush1.msra.mxu0 0.0
        %376 = vmatprep.subr.mxu0 0.0
        %377 = vmatpush1.msra.mxu0 0.0
        %378 = vmatprep.subr.mxu0 0.0
        %379 = vmatpush1.msra.mxu0 0.0
        %380 = vmatprep.subr.mxu0 0.0
        %381 = vmatpush1.msra.mxu0 0.0
        %382 = vmatprep.subr.mxu0 0.0
        %383 = vmatpush1.msra.mxu0 0.0
        %384 = vmatprep.subr.mxu0 0.0
        %385 = vmatpush1.msra.mxu0 0.0
        %386 = vmatprep.subr.mxu0 0.0
        %387 = vmatpush1.msra.mxu0 0.0
        %388 = vmatprep.subr.mxu0 0.0
        %389 = vmatpush1.msra.mxu0 0.0
        %390 = vmatprep.subr.mxu0 0.0
        %391 = vmatpush1.msra.mxu0 0.0
        %392 = vmatprep.subr.mxu0 0.0
        %393 = vmatpush1.msra.mxu0 0.0
        %394 = vmatprep.subr.mxu0 0.0
        %395 = vmatpush1.msra.mxu0 0.0
        %396 = vmatprep.subr.mxu0 0.0
        %397 = vmatpush1.msra.mxu0 0.0
        %398 = vmatprep.subr.mxu0 0.0
        %399 = vmatpush1.msra.mxu0 0.0
        %400 = vmatprep.subr.mxu0 0.0
        %401 = vmatpush1.msra.mxu0 0.0
        %402 = vmatprep.subr.mxu0 0.0
        %403 = vmatpush1.msra.mxu0 0.0
        %404 = vmatprep.subr.mxu0 0.0
        %405 = vmatpush1.msra.mxu0 0.0
        %406 = vmatprep.subr.mxu0 0.0
        %407 = vmatpush1.msra.mxu0 0.0
        %408 = vmatprep.subr.mxu0 0.0
        %409 = vmatpush1.msra.mxu0 0.0
        %410 = vmatprep.subr.mxu0 0.0
        %411 = vmatpush1.msra.mxu0 0.0
        %412 = vmatprep.subr.mxu0 0.0
        %413 = vmatpush1.msra.mxu0 0.0
        %414 = vmatprep.subr.mxu0 0.0
        %415 = vmatpush1.msra.mxu0 0.0
        %416 = vmatprep.subr.mxu0 0.0
        %417 = vmatpush1.msra.mxu0 0.0
        %418 = vmatprep.subr.mxu0 0.0
        %419 = vmatpush1.msra.mxu0 0.0
        %420 = vmatprep.mubr.f32.mxu0 0.0
        %421 = vmatmul.mubr.f32.gmra.mrb[0].mxu0 %v274
        %v422 = vpop.f32.mrb[0].mxu0
        %v423 = vadd.f32 0.0, %v422
        %v424 = vpop.f32.mrb[0].mxu0
        %v425 = vadd.f32 0.0, %v424
        %426 = vdwg.mxu0
        %v428 = vsel %vm272, %v249, 0
        %v430 = vsel %vm276, %v246, 0
        %v432 = vsel %vm276, %v255, 0
        %v434 = vsel %vm276, %v247, 0
        %v436 = vsel %vm276, %v256, 0
        %438 = vmatprep.subr.mxu0 %v432
        %439 = vmatpush1.msra.mxu0 %v430
        %440 = vmatprep.subr.mxu0 0.0
        %441 = vmatpush1.msra.mxu0 0.0
        %442 = vmatprep.subr.mxu0 0.0
        %443 = vmatpush1.msra.mxu0 0.0
        %444 = vmatprep.subr.mxu0 0.0
        %445 = vmatpush1.msra.mxu0 0.0
        %446 = vmatprep.subr.mxu0 0.0
        %447 = vmatpush1.msra.mxu0 0.0
        %448 = vmatprep.subr.mxu0 0.0
        %449 = vmatpush1.msra.mxu0 0.0
        %450 = vmatprep.subr.mxu0 0.0
        %451 = vmatpush1.msra.mxu0 0.0
        %452 = vmatprep.subr.mxu0 0.0
        %453 = vmatpush1.msra.mxu0 0.0
        %454 = vmatprep.subr.mxu0 0.0
        %455 = vmatpush1.msra.mxu0 0.0
        %456 = vmatprep.subr.mxu0 0.0
        %457 = vmatpush1.msra.mxu0 0.0
        %458 = vmatprep.subr.mxu0 0.0
        %459 = vmatpush1.msra.mxu0 0.0
        %460 = vmatprep.subr.mxu0 0.0
        %461 = vmatpush1.msra.mxu0 0.0
        %462 = vmatprep.subr.mxu0 0.0
        %463 = vmatpush1.msra.mxu0 0.0
        %464 = vmatprep.subr.mxu0 0.0
        %465 = vmatpush1.msra.mxu0 0.0
        %466 = vmatprep.subr.mxu0 0.0
        %467 = vmatpush1.msra.mxu0 0.0
        %468 = vmatprep.subr.mxu0 0.0
        %469 = vmatpush1.msra.mxu0 0.0
        %470 = vmatprep.subr.mxu0 0.0
        %471 = vmatpush1.msra.mxu0 0.0
        %472 = vmatprep.subr.mxu0 0.0
        %473 = vmatpush1.msra.mxu0 0.0
        %474 = vmatprep.subr.mxu0 0.0
        %475 = vmatpush1.msra.mxu0 0.0
        %476 = vmatprep.subr.mxu0 0.0
        %477 = vmatpush1.msra.mxu0 0.0
        %478 = vmatprep.subr.mxu0 0.0
        %479 = vmatpush1.msra.mxu0 0.0
        %480 = vmatprep.subr.mxu0 0.0
        %481 = vmatpush1.msra.mxu0 0.0
        %482 = vmatprep.subr.mxu0 0.0
        %483 = vmatpush1.msra.mxu0 0.0
        %484 = vmatprep.subr.mxu0 0.0
        %485 = vmatpush1.msra.mxu0 0.0
        %486 = vmatprep.subr.mxu0 0.0
        %487 = vmatpush1.msra.mxu0 0.0
        %488 = vmatprep.subr.mxu0 0.0
        %489 = vmatpush1.msra.mxu0 0.0
        %490 = vmatprep.subr.mxu0 0.0
        %491 = vmatpush1.msra.mxu0 0.0
        %492 = vmatprep.subr.mxu0 0.0
        %493 = vmatpush1.msra.mxu0 0.0
        %494 = vmatprep.subr.mxu0 0.0
        %495 = vmatpush1.msra.mxu0 0.0
        %496 = vmatprep.subr.mxu0 0.0
        %497 = vmatpush1.msra.mxu0 0.0
        %498 = vmatprep.subr.mxu0 0.0
        %499 = vmatpush1.msra.mxu0 0.0
        %500 = vmatprep.subr.mxu0 0.0
        %501 = vmatpush1.msra.mxu0 0.0
        %502 = vmatprep.mubr.f32.mxu0 0.0
        %503 = vmatmul.mubr.f32.gmra.mrb[0].mxu0 %v428
        %v504 = vpop.f32.mrb[0].mxu0
        %v505 = vadd.f32 %v352, %v504
        %v506 = vpop.f32.mrb[0].mxu0
        %v507 = vadd.f32 %v354, %v506
        %508 = vdwg.mxu0
        %509 = vmatprep.subr.mxu0 %v436
        %510 = vmatpush1.msra.mxu0 %v434
        %511 = vmatprep.subr.mxu0 0.0
        %512 = vmatpush1.msra.mxu0 0.0
        %513 = vmatprep.subr.mxu0 0.0
        %514 = vmatpush1.msra.mxu0 0.0
        %515 = vmatprep.subr.mxu0 0.0
        %516 = vmatpush1.msra.mxu0 0.0
        %517 = vmatprep.subr.mxu0 0.0
        %518 = vmatpush1.msra.mxu0 0.0
        %519 = vmatprep.subr.mxu0 0.0
        %520 = vmatpush1.msra.mxu0 0.0
        %521 = vmatprep.subr.mxu0 0.0
        %522 = vmatpush1.msra.mxu0 0.0
        %523 = vmatprep.subr.mxu0 0.0
        %524 = vmatpush1.msra.mxu0 0.0
        %525 = vmatprep.subr.mxu0 0.0
        %526 = vmatpush1.msra.mxu0 0.0
        %527 = vmatprep.subr.mxu0 0.0
        %528 = vmatpush1.msra.mxu0 0.0
        %529 = vmatprep.subr.mxu0 0.0
        %530 = vmatpush1.msra.mxu0 0.0
        %531 = vmatprep.subr.mxu0 0.0
        %532 = vmatpush1.msra.mxu0 0.0
        %533 = vmatprep.subr.mxu0 0.0
        %534 = vmatpush1.msra.mxu0 0.0
        %535 = vmatprep.subr.mxu0 0.0
        %536 = vmatpush1.msra.mxu0 0.0
        %537 = vmatprep.subr.mxu0 0.0
        %538 = vmatpush1.msra.mxu0 0.0
        %539 = vmatprep.subr.mxu0 0.0
        %540 = vmatpush1.msra.mxu0 0.0
        %541 = vmatprep.subr.mxu0 0.0
        %542 = vmatpush1.msra.mxu0 0.0
        %543 = vmatprep.subr.mxu0 0.0
        %544 = vmatpush1.msra.mxu0 0.0
        %545 = vmatprep.subr.mxu0 0.0
        %546 = vmatpush1.msra.mxu0 0.0
        %547 = vmatprep.subr.mxu0 0.0
        %548 = vmatpush1.msra.mxu0 0.0
        %549 = vmatprep.subr.mxu0 0.0
        %550 = vmatpush1.msra.mxu0 0.0
        %551 = vmatprep.subr.mxu0 0.0
        %552 = vmatpush1.msra.mxu0 0.0
        %553 = vmatprep.subr.mxu0 0.0
        %554 = vmatpush1.msra.mxu0 0.0
        %555 = vmatprep.subr.mxu0 0.0
        %556 = vmatpush1.msra.mxu0 0.0
        %557 = vmatprep.subr.mxu0 0.0
        %558 = vmatpush1.msra.mxu0 0.0
        %559 = vmatprep.subr.mxu0 0.0
        %560 = vmatpush1.msra.mxu0 0.0
        %561 = vmatprep.subr.mxu0 0.0
        %562 = vmatpush1.msra.mxu0 0.0
        %563 = vmatprep.subr.mxu0 0.0
        %564 = vmatpush1.msra.mxu0 0.0
        %565 = vmatprep.subr.mxu0 0.0
        %566 = vmatpush1.msra.mxu0 0.0
        %567 = vmatprep.subr.mxu0 0.0
        %568 = vmatpush1.msra.mxu0 0.0
        %569 = vmatprep.subr.mxu0 0.0
        %570 = vmatpush1.msra.mxu0 0.0
        %571 = vmatprep.subr.mxu0 0.0
        %572 = vmatpush1.msra.mxu0 0.0
        %573 = vmatprep.mubr.f32.mxu0 0.0
        %574 = vmatmul.mubr.f32.gmra.mrb[0].mxu0 %v428
        %v575 = vpop.f32.mrb[0].mxu0
        %v576 = vadd.f32 %v423, %v575
        %v577 = vpop.f32.mrb[0].mxu0
        %v578 = vadd.f32 %v425, %v577
        %579 = vdwg.mxu0
        %s580 = scalar_lea.vmem %s1, 16
        %v581 = vld [vmem:[%s580] sm:$0xff]
        %582 = vrot.lane.b32.xlu0 %v246, 126
        %v583 = vpop.permute.xlu0 %582
        %584 = vrot.lane.b32.xlu0 %v255, 126
        %v585 = vpop.permute.xlu0 %584
        %586 = vrot.lane.b32.xlu0 %v247, 126
        %v587 = vpop.permute.xlu0 %586
        %588 = vrot.lane.b32.xlu0 %v256, 126
        %v589 = vpop.permute.xlu0 %588
        %590 = vrot.lane.b32.xlu0 %v248, 126
        %v591 = vpop.permute.xlu0 %590
        %vm592 = vcmask 1031168
        %v593 = vsel %vm592, %v583, %v585
        %v594 = vsel %vm592, %v585, %v587
        %v595 = vsel %vm592, %v587, %v589
        %v596 = vsel %vm592, %v589, %v591
        %v598 = vsel %vm272, %v581, 0
        %v600 = vsel %vm276, %v593, 0
        %v602 = vsel %vm276, %v594, 0
        %v604 = vsel %vm276, %v595, 0
        %v606 = vsel %vm276, %v596, 0
        %608 = vmatprep.subr.mxu0 %v602
        %609 = vmatpush1.msra.mxu0 %v600
        %610 = vmatprep.subr.mxu0 0.0
        %611 = vmatpush1.msra.mxu0 0.0
        %612 = vmatprep.subr.mxu0 0.0
        %613 = vmatpush1.msra.mxu0 0.0
        %614 = vmatprep.subr.mxu0 0.0
        %615 = vmatpush1.msra.mxu0 0.0
        %616 = vmatprep.subr.mxu0 0.0
        %617 = vmatpush1.msra.mxu0 0.0
        %618 = vmatprep.subr.mxu0 0.0
        %619 = vmatpush1.msra.mxu0 0.0
        %620 = vmatprep.subr.mxu0 0.0
        %621 = vmatpush1.msra.mxu0 0.0
        %622 = vmatprep.subr.mxu0 0.0
        %623 = vmatpush1.msra.mxu0 0.0
        %624 = vmatprep.subr.mxu0 0.0
        %625 = vmatpush1.msra.mxu0 0.0
        %626 = vmatprep.subr.mxu0 0.0
        %627 = vmatpush1.msra.mxu0 0.0
        %628 = vmatprep.subr.mxu0 0.0
        %629 = vmatpush1.msra.mxu0 0.0
        %630 = vmatprep.subr.mxu0 0.0
        %631 = vmatpush1.msra.mxu0 0.0
        %632 = vmatprep.subr.mxu0 0.0
        %633 = vmatpush1.msra.mxu0 0.0
        %634 = vmatprep.subr.mxu0 0.0
        %635 = vmatpush1.msra.mxu0 0.0
        %636 = vmatprep.subr.mxu0 0.0
        %637 = vmatpush1.msra.mxu0 0.0
        %638 = vmatprep.subr.mxu0 0.0
        %639 = vmatpush1.msra.mxu0 0.0
        %640 = vmatprep.subr.mxu0 0.0
        %641 = vmatpush1.msra.mxu0 0.0
        %642 = vmatprep.subr.mxu0 0.0
        %643 = vmatpush1.msra.mxu0 0.0
        %644 = vmatprep.subr.mxu0 0.0
        %645 = vmatpush1.msra.mxu0 0.0
        %646 = vmatprep.subr.mxu0 0.0
        %647 = vmatpush1.msra.mxu0 0.0
        %648 = vmatprep.subr.mxu0 0.0
        %649 = vmatpush1.msra.mxu0 0.0
        %650 = vmatprep.subr.mxu0 0.0
        %651 = vmatpush1.msra.mxu0 0.0
        %652 = vmatprep.subr.mxu0 0.0
        %653 = vmatpush1.msra.mxu0 0.0
        %654 = vmatprep.subr.mxu0 0.0
        %655 = vmatpush1.msra.mxu0 0.0
        %656 = vmatprep.subr.mxu0 0.0
        %657 = vmatpush1.msra.mxu0 0.0
        %658 = vmatprep.subr.mxu0 0.0
        %659 = vmatpush1.msra.mxu0 0.0
        %660 = vmatprep.subr.mxu0 0.0
        %661 = vmatpush1.msra.mxu0 0.0
        %662 = vmatprep.subr.mxu0 0.0
        %663 = vmatpush1.msra.mxu0 0.0
        %664 = vmatprep.subr.mxu0 0.0
        %665 = vmatpush1.msra.mxu0 0.0
        %666 = vmatprep.subr.mxu0 0.0
        %667 = vmatpush1.msra.mxu0 0.0
        %668 = vmatprep.subr.mxu0 0.0
        %669 = vmatpush1.msra.mxu0 0.0
        %670 = vmatprep.subr.mxu0 0.0
        %671 = vmatpush1.msra.mxu0 0.0
        %672 = vmatprep.mubr.f32.mxu0 0.0
        %673 = vmatmul.mubr.f32.gmra.mrb[0].mxu0 %v598
        %v674 = vpop.f32.mrb[0].mxu0
        %v675 = vadd.f32 0.0, %v674
        %v676 = vpop.f32.mrb[0].mxu0
        %v677 = vadd.f32 0.0, %v676
        %678 = vdwg.mxu0
        %679 = vmatprep.subr.mxu0 %v606
        %680 = vmatpush1.msra.mxu0 %v604
        %681 = vmatprep.subr.mxu0 0.0
        %682 = vmatpush1.msra.mxu0 0.0
        %683 = vmatprep.subr.mxu0 0.0
        %684 = vmatpush1.msra.mxu0 0.0
        %685 = vmatprep.subr.mxu0 0.0
        %686 = vmatpush1.msra.mxu0 0.0
        %687 = vmatprep.subr.mxu0 0.0
        %688 = vmatpush1.msra.mxu0 0.0
        %689 = vmatprep.subr.mxu0 0.0
        %690 = vmatpush1.msra.mxu0 0.0
        %691 = vmatprep.subr.mxu0 0.0
        %692 = vmatpush1.msra.mxu0 0.0
        %693 = vmatprep.subr.mxu0 0.0
        %694 = vmatpush1.msra.mxu0 0.0
        %695 = vmatprep.subr.mxu0 0.0
        %696 = vmatpush1.msra.mxu0 0.0
        %697 = vmatprep.subr.mxu0 0.0
        %698 = vmatpush1.msra.mxu0 0.0
        %699 = vmatprep.subr.mxu0 0.0
        %700 = vmatpush1.msra.mxu0 0.0
        %701 = vmatprep.subr.mxu0 0.0
        %702 = vmatpush1.msra.mxu0 0.0
        %703 = vmatprep.subr.mxu0 0.0
        %704 = vmatpush1.msra.mxu0 0.0
        %705 = vmatprep.subr.mxu0 0.0
        %706 = vmatpush1.msra.mxu0 0.0
        %707 = vmatprep.subr.mxu0 0.0
        %708 = vmatpush1.msra.mxu0 0.0
        %709 = vmatprep.subr.mxu0 0.0
        %710 = vmatpush1.msra.mxu0 0.0
        %711 = vmatprep.subr.mxu0 0.0
        %712 = vmatpush1.msra.mxu0 0.0
        %713 = vmatprep.subr.mxu0 0.0
        %714 = vmatpush1.msra.mxu0 0.0
        %715 = vmatprep.subr.mxu0 0.0
        %716 = vmatpush1.msra.mxu0 0.0
        %717 = vmatprep.subr.mxu0 0.0
        %718 = vmatpush1.msra.mxu0 0.0
        %719 = vmatprep.subr.mxu0 0.0
        %720 = vmatpush1.msra.mxu0 0.0
        %721 = vmatprep.subr.mxu0 0.0
        %722 = vmatpush1.msra.mxu0 0.0
        %723 = vmatprep.subr.mxu0 0.0
        %724 = vmatpush1.msra.mxu0 0.0
        %725 = vmatprep.subr.mxu0 0.0
        %726 = vmatpush1.msra.mxu0 0.0
        %727 = vmatprep.subr.mxu0 0.0
        %728 = vmatpush1.msra.mxu0 0.0
        %729 = vmatprep.subr.mxu0 0.0
        %730 = vmatpush1.msra.mxu0 0.0
        %731 = vmatprep.subr.mxu0 0.0
        %732 = vmatpush1.msra.mxu0 0.0
        %733 = vmatprep.subr.mxu0 0.0
        %734 = vmatpush1.msra.mxu0 0.0
        %735 = vmatprep.subr.mxu0 0.0
        %736 = vmatpush1.msra.mxu0 0.0
        %737 = vmatprep.subr.mxu0 0.0
        %738 = vmatpush1.msra.mxu0 0.0
        %739 = vmatprep.subr.mxu0 0.0
        %740 = vmatpush1.msra.mxu0 0.0
        %741 = vmatprep.subr.mxu0 0.0
        %742 = vmatpush1.msra.mxu0 0.0
        %743 = vmatprep.mubr.f32.mxu0 0.0
        %744 = vmatmul.mubr.f32.gmra.mrb[0].mxu0 %v598
        %v745 = vpop.f32.mrb[0].mxu0
        %v746 = vadd.f32 0.0, %v745
        %v747 = vpop.f32.mrb[0].mxu0
        %v748 = vadd.f32 0.0, %v747
        %749 = vdwg.mxu0
        %v750 = vadd.f32 %v505, %v675
        %v751 = vadd.f32 %v507, %v677
        %v752 = vadd.f32 %v576, %v746
        %v753 = vadd.f32 %v578, %v748
        %s754 = scalar_lea.vmem %s1, 24
        %v755 = vld [vmem:[%s754] sm:$0xff]
        %756 = vrot.lane.b32.xlu0 %v246, 125
        %v757 = vpop.permute.xlu0 %756
        %758 = vrot.lane.b32.xlu0 %v255, 125
        %v759 = vpop.permute.xlu0 %758
        %760 = vrot.lane.b32.xlu0 %v247, 125
        %v761 = vpop.permute.xlu0 %760
        %762 = vrot.lane.b32.xlu0 %v256, 125
        %v763 = vpop.permute.xlu0 %762
        %764 = vrot.lane.b32.xlu0 %v248, 125
        %v765 = vpop.permute.xlu0 %764
        %vm766 = vcmask 1022976
        %v767 = vsel %vm766, %v757, %v759
        %v768 = vsel %vm766, %v759, %v761
        %v769 = vsel %vm766, %v761, %v763
        %v770 = vsel %vm766, %v763, %v765
        %v772 = vsel %vm272, %v755, 0
        %v774 = vsel %vm276, %v767, 0
        %v776 = vsel %vm276, %v768, 0
        %v778 = vsel %vm276, %v769, 0
        %v780 = vsel %vm276, %v770, 0
        %782 = vmatprep.subr.mxu0 %v776
        %783 = vmatpush1.msra.mxu0 %v774
        %784 = vmatprep.subr.mxu0 0.0
        %785 = vmatpush1.msra.mxu0 0.0
        %786 = vmatprep.subr.mxu0 0.0
        %787 = vmatpush1.msra.mxu0 0.0
        %788 = vmatprep.subr.mxu0 0.0
        %789 = vmatpush1.msra.mxu0 0.0
        %790 = vmatprep.subr.mxu0 0.0
        %791 = vmatpush1.msra.mxu0 0.0
        %792 = vmatprep.subr.mxu0 0.0
        %793 = vmatpush1.msra.mxu0 0.0
        %794 = vmatprep.subr.mxu0 0.0
        %795 = vmatpush1.msra.mxu0 0.0
        %796 = vmatprep.subr.mxu0 0.0
        %797 = vmatpush1.msra.mxu0 0.0
        %798 = vmatprep.subr.mxu0 0.0
        %799 = vmatpush1.msra.mxu0 0.0
        %800 = vmatprep.subr.mxu0 0.0
        %801 = vmatpush1.msra.mxu0 0.0
        %802 = vmatprep.subr.mxu0 0.0
        %803 = vmatpush1.msra.mxu0 0.0
        %804 = vmatprep.subr.mxu0 0.0
        %805 = vmatpush1.msra.mxu0 0.0
        %806 = vmatprep.subr.mxu0 0.0
        %807 = vmatpush1.msra.mxu0 0.0
        %808 = vmatprep.subr.mxu0 0.0
        %809 = vmatpush1.msra.mxu0 0.0
        %810 = vmatprep.subr.mxu0 0.0
        %811 = vmatpush1.msra.mxu0 0.0
        %812 = vmatprep.subr.mxu0 0.0
        %813 = vmatpush1.msra.mxu0 0.0
        %814 = vmatprep.subr.mxu0 0.0
        %815 = vmatpush1.msra.mxu0 0.0
        %816 = vmatprep.subr.mxu0 0.0
        %817 = vmatpush1.msra.mxu0 0.0
        %818 = vmatprep.subr.mxu0 0.0
        %819 = vmatpush1.msra.mxu0 0.0
        %820 = vmatprep.subr.mxu0 0.0
        %821 = vmatpush1.msra.mxu0 0.0
        %822 = vmatprep.subr.mxu0 0.0
        %823 = vmatpush1.msra.mxu0 0.0
        %824 = vmatprep.subr.mxu0 0.0
        %825 = vmatpush1.msra.mxu0 0.0
        %826 = vmatprep.subr.mxu0 0.0
        %827 = vmatpush1.msra.mxu0 0.0
        %828 = vmatprep.subr.mxu0 0.0
        %829 = vmatpush1.msra.mxu0 0.0
        %830 = vmatprep.subr.mxu0 0.0
        %831 = vmatpush1.msra.mxu0 0.0
        %832 = vmatprep.subr.mxu0 0.0
        %833 = vmatpush1.msra.mxu0 0.0
        %834 = vmatprep.subr.mxu0 0.0
        %835 = vmatpush1.msra.mxu0 0.0
        %836 = vmatprep.subr.mxu0 0.0
        %837 = vmatpush1.msra.mxu0 0.0
        %838 = vmatprep.subr.mxu0 0.0
        %839 = vmatpush1.msra.mxu0 0.0
        %840 = vmatprep.subr.mxu0 0.0
        %841 = vmatpush1.msra.mxu0 0.0
        %842 = vmatprep.subr.mxu0 0.0
        %843 = vmatpush1.msra.mxu0 0.0
        %844 = vmatprep.subr.mxu0 0.0
        %845 = vmatpush1.msra.mxu0 0.0
        %846 = vmatprep.mubr.f32.mxu0 0.0
        %847 = vmatmul.mubr.f32.gmra.mrb[0].mxu0 %v772
        %v848 = vpop.f32.mrb[0].mxu0
        %v849 = vadd.f32 0.0, %v848
        %v850 = vpop.f32.mrb[0].mxu0
        %v851 = vadd.f32 0.0, %v850
        %852 = vdwg.mxu0
        %853 = vmatprep.subr.mxu0 %v780
        %854 = vmatpush1.msra.mxu0 %v778
        %855 = vmatprep.subr.mxu0 0.0
        %856 = vmatpush1.msra.mxu0 0.0
        %857 = vmatprep.subr.mxu0 0.0
        %858 = vmatpush1.msra.mxu0 0.0
        %859 = vmatprep.subr.mxu0 0.0
        %860 = vmatpush1.msra.mxu0 0.0
        %861 = vmatprep.subr.mxu0 0.0
        %862 = vmatpush1.msra.mxu0 0.0
        %863 = vmatprep.subr.mxu0 0.0
        %864 = vmatpush1.msra.mxu0 0.0
        %865 = vmatprep.subr.mxu0 0.0
        %866 = vmatpush1.msra.mxu0 0.0
        %867 = vmatprep.subr.mxu0 0.0
        %868 = vmatpush1.msra.mxu0 0.0
        %869 = vmatprep.subr.mxu0 0.0
        %870 = vmatpush1.msra.mxu0 0.0
        %871 = vmatprep.subr.mxu0 0.0
        %872 = vmatpush1.msra.mxu0 0.0
        %873 = vmatprep.subr.mxu0 0.0
        %874 = vmatpush1.msra.mxu0 0.0
        %875 = vmatprep.subr.mxu0 0.0
        %876 = vmatpush1.msra.mxu0 0.0
        %877 = vmatprep.subr.mxu0 0.0
        %878 = vmatpush1.msra.mxu0 0.0
        %879 = vmatprep.subr.mxu0 0.0
        %880 = vmatpush1.msra.mxu0 0.0
        %881 = vmatprep.subr.mxu0 0.0
        %882 = vmatpush1.msra.mxu0 0.0
        %883 = vmatprep.subr.mxu0 0.0
        %884 = vmatpush1.msra.mxu0 0.0
        %885 = vmatprep.subr.mxu0 0.0
        %886 = vmatpush1.msra.mxu0 0.0
        %887 = vmatprep.subr.mxu0 0.0
        %888 = vmatpush1.msra.mxu0 0.0
        %889 = vmatprep.subr.mxu0 0.0
        %890 = vmatpush1.msra.mxu0 0.0
        %891 = vmatprep.subr.mxu0 0.0
        %892 = vmatpush1.msra.mxu0 0.0
        %893 = vmatprep.subr.mxu0 0.0
        %894 = vmatpush1.msra.mxu0 0.0
        %895 = vmatprep.subr.mxu0 0.0
        %896 = vmatpush1.msra.mxu0 0.0
        %897 = vmatprep.subr.mxu0 0.0
        %898 = vmatpush1.msra.mxu0 0.0
        %899 = vmatprep.subr.mxu0 0.0
        %900 = vmatpush1.msra.mxu0 0.0
        %901 = vmatprep.subr.mxu0 0.0
        %902 = vmatpush1.msra.mxu0 0.0
        %903 = vmatprep.subr.mxu0 0.0
        %904 = vmatpush1.msra.mxu0 0.0
        %905 = vmatprep.subr.mxu0 0.0
        %906 = vmatpush1.msra.mxu0 0.0
        %907 = vmatprep.subr.mxu0 0.0
        %908 = vmatpush1.msra.mxu0 0.0
        %909 = vmatprep.subr.mxu0 0.0
        %910 = vmatpush1.msra.mxu0 0.0
        %911 = vmatprep.subr.mxu0 0.0
        %912 = vmatpush1.msra.mxu0 0.0
        %913 = vmatprep.subr.mxu0 0.0
        %914 = vmatpush1.msra.mxu0 0.0
        %915 = vmatprep.subr.mxu0 0.0
        %916 = vmatpush1.msra.mxu0 0.0
        %917 = vmatprep.mubr.f32.mxu0 0.0
        %918 = vmatmul.mubr.f32.gmra.mrb[0].mxu0 %v772
        %v919 = vpop.f32.mrb[0].mxu0
        %v920 = vadd.f32 0.0, %v919
        %v921 = vpop.f32.mrb[0].mxu0
        %v922 = vadd.f32 0.0, %v921
        %923 = vdwg.mxu0
        %v924 = vadd.f32 %v750, %v849
        %v925 = vadd.f32 %v751, %v851
        %v926 = vadd.f32 %v752, %v920
        %v927 = vadd.f32 %v753, %v922
        %s928 = scalar_lea.vmem %s1, 32
        %v929 = vld [vmem:[%s928] sm:$0xff]
        %930 = vrot.lane.b32.xlu0 %v246, 124
        %v931 = vpop.permute.xlu0 %930
        %932 = vrot.lane.b32.xlu0 %v255, 124
        %v933 = vpop.permute.xlu0 %932
        %934 = vrot.lane.b32.xlu0 %v247, 124
        %v935 = vpop.permute.xlu0 %934
        %936 = vrot.lane.b32.xlu0 %v256, 124
        %v937 = vpop.permute.xlu0 %936
        %938 = vrot.lane.b32.xlu0 %v248, 124
        %v939 = vpop.permute.xlu0 %938
        %vm940 = vcmask 1014784
        %v941 = vsel %vm940, %v931, %v933
        %v942 = vsel %vm940, %v933, %v935
        %v943 = vsel %vm940, %v935, %v937
        %v944 = vsel %vm940, %v937, %v939
        %v946 = vsel %vm272, %v929, 0
        %v948 = vsel %vm276, %v941, 0
        %v950 = vsel %vm276, %v942, 0
        %v952 = vsel %vm276, %v943, 0
        %v954 = vsel %vm276, %v944, 0
        %956 = vmatprep.subr.mxu0 %v950
        %957 = vmatpush1.msra.mxu0 %v948
        %958 = vmatprep.subr.mxu0 0.0
        %959 = vmatpush1.msra.mxu0 0.0
        %960 = vmatprep.subr.mxu0 0.0
        %961 = vmatpush1.msra.mxu0 0.0
        %962 = vmatprep.subr.mxu0 0.0
        %963 = vmatpush1.msra.mxu0 0.0
        %964 = vmatprep.subr.mxu0 0.0
        %965 = vmatpush1.msra.mxu0 0.0
        %966 = vmatprep.subr.mxu0 0.0
        %967 = vmatpush1.msra.mxu0 0.0
        %968 = vmatprep.subr.mxu0 0.0
        %969 = vmatpush1.msra.mxu0 0.0
        %970 = vmatprep.subr.mxu0 0.0
        %971 = vmatpush1.msra.mxu0 0.0
        %972 = vmatprep.subr.mxu0 0.0
        %973 = vmatpush1.msra.mxu0 0.0
        %974 = vmatprep.subr.mxu0 0.0
        %975 = vmatpush1.msra.mxu0 0.0
        %976 = vmatprep.subr.mxu0 0.0
        %977 = vmatpush1.msra.mxu0 0.0
        %978 = vmatprep.subr.mxu0 0.0
        %979 = vmatpush1.msra.mxu0 0.0
        %980 = vmatprep.subr.mxu0 0.0
        %981 = vmatpush1.msra.mxu0 0.0
        %982 = vmatprep.subr.mxu0 0.0
        %983 = vmatpush1.msra.mxu0 0.0
        %984 = vmatprep.subr.mxu0 0.0
        %985 = vmatpush1.msra.mxu0 0.0
        %986 = vmatprep.subr.mxu0 0.0
        %987 = vmatpush1.msra.mxu0 0.0
        %988 = vmatprep.subr.mxu0 0.0
        %989 = vmatpush1.msra.mxu0 0.0
        %990 = vmatprep.subr.mxu0 0.0
        %991 = vmatpush1.msra.mxu0 0.0
        %992 = vmatprep.subr.mxu0 0.0
        %993 = vmatpush1.msra.mxu0 0.0
        %994 = vmatprep.subr.mxu0 0.0
        %995 = vmatpush1.msra.mxu0 0.0
        %996 = vmatprep.subr.mxu0 0.0
        %997 = vmatpush1.msra.mxu0 0.0
        %998 = vmatprep.subr.mxu0 0.0
        %999 = vmatpush1.msra.mxu0 0.0
        %1000 = vmatprep.subr.mxu0 0.0
        %1001 = vmatpush1.msra.mxu0 0.0
        %1002 = vmatprep.subr.mxu0 0.0
        %1003 = vmatpush1.msra.mxu0 0.0
        %1004 = vmatprep.subr.mxu0 0.0
        %1005 = vmatpush1.msra.mxu0 0.0
        %1006 = vmatprep.subr.mxu0 0.0
        %1007 = vmatpush1.msra.mxu0 0.0
        %1008 = vmatprep.subr.mxu0 0.0
        %1009 = vmatpush1.msra.mxu0 0.0
        %1010 = vmatprep.subr.mxu0 0.0
        %1011 = vmatpush1.msra.mxu0 0.0
        %1012 = vmatprep.subr.mxu0 0.0
        %1013 = vmatpush1.msra.mxu0 0.0
        %1014 = vmatprep.subr.mxu0 0.0
        %1015 = vmatpush1.msra.mxu0 0.0
        %1016 = vmatprep.subr.mxu0 0.0
        %1017 = vmatpush1.msra.mxu0 0.0
        %1018 = vmatprep.subr.mxu0 0.0
        %1019 = vmatpush1.msra.mxu0 0.0
        %1020 = vmatprep.mubr.f32.mxu0 0.0
        %1021 = vmatmul.mubr.f32.gmra.mrb[0].mxu0 %v946
        %v1022 = vpop.f32.mrb[0].mxu0
        %v1023 = vadd.f32 0.0, %v1022
        %v1024 = vpop.f32.mrb[0].mxu0
        %v1025 = vadd.f32 0.0, %v1024
        %1026 = vdwg.mxu0
        %1027 = vmatprep.subr.mxu0 %v954
        %1028 = vmatpush1.msra.mxu0 %v952
        %1029 = vmatprep.subr.mxu0 0.0
        %1030 = vmatpush1.msra.mxu0 0.0
        %1031 = vmatprep.subr.mxu0 0.0
        %1032 = vmatpush1.msra.mxu0 0.0
        %1033 = vmatprep.subr.mxu0 0.0
        %1034 = vmatpush1.msra.mxu0 0.0
        %1035 = vmatprep.subr.mxu0 0.0
        %1036 = vmatpush1.msra.mxu0 0.0
        %1037 = vmatprep.subr.mxu0 0.0
        %1038 = vmatpush1.msra.mxu0 0.0
        %1039 = vmatprep.subr.mxu0 0.0
        %1040 = vmatpush1.msra.mxu0 0.0
        %1041 = vmatprep.subr.mxu0 0.0
        %1042 = vmatpush1.msra.mxu0 0.0
        %1043 = vmatprep.subr.mxu0 0.0
        %1044 = vmatpush1.msra.mxu0 0.0
        %1045 = vmatprep.subr.mxu0 0.0
        %1046 = vmatpush1.msra.mxu0 0.0
        %1047 = vmatprep.subr.mxu0 0.0
        %1048 = vmatpush1.msra.mxu0 0.0
        %1049 = vmatprep.subr.mxu0 0.0
        %1050 = vmatpush1.msra.mxu0 0.0
        %1051 = vmatprep.subr.mxu0 0.0
        %1052 = vmatpush1.msra.mxu0 0.0
        %1053 = vmatprep.subr.mxu0 0.0
        %1054 = vmatpush1.msra.mxu0 0.0
        %1055 = vmatprep.subr.mxu0 0.0
        %1056 = vmatpush1.msra.mxu0 0.0
        %1057 = vmatprep.subr.mxu0 0.0
        %1058 = vmatpush1.msra.mxu0 0.0
        %1059 = vmatprep.subr.mxu0 0.0
        %1060 = vmatpush1.msra.mxu0 0.0
        %1061 = vmatprep.subr.mxu0 0.0
        %1062 = vmatpush1.msra.mxu0 0.0
        %1063 = vmatprep.subr.mxu0 0.0
        %1064 = vmatpush1.msra.mxu0 0.0
        %1065 = vmatprep.subr.mxu0 0.0
        %1066 = vmatpush1.msra.mxu0 0.0
        %1067 = vmatprep.subr.mxu0 0.0
        %1068 = vmatpush1.msra.mxu0 0.0
        %1069 = vmatprep.subr.mxu0 0.0
        %1070 = vmatpush1.msra.mxu0 0.0
        %1071 = vmatprep.subr.mxu0 0.0
        %1072 = vmatpush1.msra.mxu0 0.0
        %1073 = vmatprep.subr.mxu0 0.0
        %1074 = vmatpush1.msra.mxu0 0.0
        %1075 = vmatprep.subr.mxu0 0.0
        %1076 = vmatpush1.msra.mxu0 0.0
        %1077 = vmatprep.subr.mxu0 0.0
        %1078 = vmatpush1.msra.mxu0 0.0
        %1079 = vmatprep.subr.mxu0 0.0
        %1080 = vmatpush1.msra.mxu0 0.0
        %1081 = vmatprep.subr.mxu0 0.0
        %1082 = vmatpush1.msra.mxu0 0.0
        %1083 = vmatprep.subr.mxu0 0.0
        %1084 = vmatpush1.msra.mxu0 0.0
        %1085 = vmatprep.subr.mxu0 0.0
        %1086 = vmatpush1.msra.mxu0 0.0
        %1087 = vmatprep.subr.mxu0 0.0
        %1088 = vmatpush1.msra.mxu0 0.0
        %1089 = vmatprep.subr.mxu0 0.0
        %1090 = vmatpush1.msra.mxu0 0.0
        %1091 = vmatprep.mubr.f32.mxu0 0.0
        %1092 = vmatmul.mubr.f32.gmra.mrb[0].mxu0 %v946
        %v1093 = vpop.f32.mrb[0].mxu0
        %v1094 = vadd.f32 0.0, %v1093
        %v1095 = vpop.f32.mrb[0].mxu0
        %v1096 = vadd.f32 0.0, %v1095
        %1097 = vdwg.mxu0
        %v1098 = vadd.f32 %v924, %v1023
        %v1099 = vadd.f32 %v925, %v1025
        %v1100 = vadd.f32 %v926, %v1094
        %v1101 = vadd.f32 %v927, %v1096
        %s1102 = scalar_lea.vmem %s1, 40
        %v1103 = vld [vmem:[%s1102] sm:$0xff]
        %1104 = vrot.lane.b32.xlu0 %v246, 123
        %v1105 = vpop.permute.xlu0 %1104
        %1106 = vrot.lane.b32.xlu0 %v255, 123
        %v1107 = vpop.permute.xlu0 %1106
        %1108 = vrot.lane.b32.xlu0 %v247, 123
        %v1109 = vpop.permute.xlu0 %1108
        %1110 = vrot.lane.b32.xlu0 %v256, 123
        %v1111 = vpop.permute.xlu0 %1110
        %1112 = vrot.lane.b32.xlu0 %v248, 123
        %v1113 = vpop.permute.xlu0 %1112
        %vm1114 = vcmask 1006592
        %v1115 = vsel %vm1114, %v1105, %v1107
        %v1116 = vsel %vm1114, %v1107, %v1109
        %v1117 = vsel %vm1114, %v1109, %v1111
        %v1118 = vsel %vm1114, %v1111, %v1113
        %v1120 = vsel %vm272, %v1103, 0
        %v1122 = vsel %vm276, %v1115, 0
        %v1124 = vsel %vm276, %v1116, 0
        %v1126 = vsel %vm276, %v1117, 0
        %v1128 = vsel %vm276, %v1118, 0
        %1130 = vmatprep.subr.mxu0 %v1124
        %1131 = vmatpush1.msra.mxu0 %v1122
        %1132 = vmatprep.subr.mxu0 0.0
        %1133 = vmatpush1.msra.mxu0 0.0
        %1134 = vmatprep.subr.mxu0 0.0
        %1135 = vmatpush1.msra.mxu0 0.0
        %1136 = vmatprep.subr.mxu0 0.0
        %1137 = vmatpush1.msra.mxu0 0.0
        %1138 = vmatprep.subr.mxu0 0.0
        %1139 = vmatpush1.msra.mxu0 0.0
        %1140 = vmatprep.subr.mxu0 0.0
        %1141 = vmatpush1.msra.mxu0 0.0
        %1142 = vmatprep.subr.mxu0 0.0
        %1143 = vmatpush1.msra.mxu0 0.0
        %1144 = vmatprep.subr.mxu0 0.0
        %1145 = vmatpush1.msra.mxu0 0.0
        %1146 = vmatprep.subr.mxu0 0.0
        %1147 = vmatpush1.msra.mxu0 0.0
        %1148 = vmatprep.subr.mxu0 0.0
        %1149 = vmatpush1.msra.mxu0 0.0
        %1150 = vmatprep.subr.mxu0 0.0
        %1151 = vmatpush1.msra.mxu0 0.0
        %1152 = vmatprep.subr.mxu0 0.0
        %1153 = vmatpush1.msra.mxu0 0.0
        %1154 = vmatprep.subr.mxu0 0.0
        %1155 = vmatpush1.msra.mxu0 0.0
        %1156 = vmatprep.subr.mxu0 0.0
        %1157 = vmatpush1.msra.mxu0 0.0
        %1158 = vmatprep.subr.mxu0 0.0
        %1159 = vmatpush1.msra.mxu0 0.0
        %1160 = vmatprep.subr.mxu0 0.0
        %1161 = vmatpush1.msra.mxu0 0.0
        %1162 = vmatprep.subr.mxu0 0.0
        %1163 = vmatpush1.msra.mxu0 0.0
        %1164 = vmatprep.subr.mxu0 0.0
        %1165 = vmatpush1.msra.mxu0 0.0
        %1166 = vmatprep.subr.mxu0 0.0
        %1167 = vmatpush1.msra.mxu0 0.0
        %1168 = vmatprep.subr.mxu0 0.0
        %1169 = vmatpush1.msra.mxu0 0.0
        %1170 = vmatprep.subr.mxu0 0.0
        %1171 = vmatpush1.msra.mxu0 0.0
        %1172 = vmatprep.subr.mxu0 0.0
        %1173 = vmatpush1.msra.mxu0 0.0
        %1174 = vmatprep.subr.mxu0 0.0
        %1175 = vmatpush1.msra.mxu0 0.0
        %1176 = vmatprep.subr.mxu0 0.0
        %1177 = vmatpush1.msra.mxu0 0.0
        %1178 = vmatprep.subr.mxu0 0.0
        %1179 = vmatpush1.msra.mxu0 0.0
        %1180 = vmatprep.subr.mxu0 0.0
        %1181 = vmatpush1.msra.mxu0 0.0
        %1182 = vmatprep.subr.mxu0 0.0
        %1183 = vmatpush1.msra.mxu0 0.0
        %1184 = vmatprep.subr.mxu0 0.0
        %1185 = vmatpush1.msra.mxu0 0.0
        %1186 = vmatprep.subr.mxu0 0.0
        %1187 = vmatpush1.msra.mxu0 0.0
        %1188 = vmatprep.subr.mxu0 0.0
        %1189 = vmatpush1.msra.mxu0 0.0
        %1190 = vmatprep.subr.mxu0 0.0
        %1191 = vmatpush1.msra.mxu0 0.0
        %1192 = vmatprep.subr.mxu0 0.0
        %1193 = vmatpush1.msra.mxu0 0.0
        %1194 = vmatprep.mubr.f32.mxu0 0.0
        %1195 = vmatmul.mubr.f32.gmra.mrb[0].mxu0 %v1120
        %v1196 = vpop.f32.mrb[0].mxu0
        %v1197 = vadd.f32 0.0, %v1196
        %v1198 = vpop.f32.mrb[0].mxu0
        %v1199 = vadd.f32 0.0, %v1198
        %1200 = vdwg.mxu0
        %1201 = vmatprep.subr.mxu0 %v1128
        %1202 = vmatpush1.msra.mxu0 %v1126
        %1203 = vmatprep.subr.mxu0 0.0
        %1204 = vmatpush1.msra.mxu0 0.0
        %1205 = vmatprep.subr.mxu0 0.0
        %1206 = vmatpush1.msra.mxu0 0.0
        %1207 = vmatprep.subr.mxu0 0.0
        %1208 = vmatpush1.msra.mxu0 0.0
        %1209 = vmatprep.subr.mxu0 0.0
        %1210 = vmatpush1.msra.mxu0 0.0
        %1211 = vmatprep.subr.mxu0 0.0
        %1212 = vmatpush1.msra.mxu0 0.0
        %1213 = vmatprep.subr.mxu0 0.0
        %1214 = vmatpush1.msra.mxu0 0.0
        %1215 = vmatprep.subr.mxu0 0.0
        %1216 = vmatpush1.msra.mxu0 0.0
        %1217 = vmatprep.subr.mxu0 0.0
        %1218 = vmatpush1.msra.mxu0 0.0
        %1219 = vmatprep.subr.mxu0 0.0
        %1220 = vmatpush1.msra.mxu0 0.0
        %1221 = vmatprep.subr.mxu0 0.0
        %1222 = vmatpush1.msra.mxu0 0.0
        %1223 = vmatprep.subr.mxu0 0.0
        %1224 = vmatpush1.msra.mxu0 0.0
        %1225 = vmatprep.subr.mxu0 0.0
        %1226 = vmatpush1.msra.mxu0 0.0
        %1227 = vmatprep.subr.mxu0 0.0
        %1228 = vmatpush1.msra.mxu0 0.0
        %1229 = vmatprep.subr.mxu0 0.0
        %1230 = vmatpush1.msra.mxu0 0.0
        %1231 = vmatprep.subr.mxu0 0.0
        %1232 = vmatpush1.msra.mxu0 0.0
        %1233 = vmatprep.subr.mxu0 0.0
        %1234 = vmatpush1.msra.mxu0 0.0
        %1235 = vmatprep.subr.mxu0 0.0
        %1236 = vmatpush1.msra.mxu0 0.0
        %1237 = vmatprep.subr.mxu0 0.0
        %1238 = vmatpush1.msra.mxu0 0.0
        %1239 = vmatprep.subr.mxu0 0.0
        %1240 = vmatpush1.msra.mxu0 0.0
        %1241 = vmatprep.subr.mxu0 0.0
        %1242 = vmatpush1.msra.mxu0 0.0
        %1243 = vmatprep.subr.mxu0 0.0
        %1244 = vmatpush1.msra.mxu0 0.0
        %1245 = vmatprep.subr.mxu0 0.0
        %1246 = vmatpush1.msra.mxu0 0.0
        %1247 = vmatprep.subr.mxu0 0.0
        %1248 = vmatpush1.msra.mxu0 0.0
        %1249 = vmatprep.subr.mxu0 0.0
        %1250 = vmatpush1.msra.mxu0 0.0
        %1251 = vmatprep.subr.mxu0 0.0
        %1252 = vmatpush1.msra.mxu0 0.0
        %1253 = vmatprep.subr.mxu0 0.0
        %1254 = vmatpush1.msra.mxu0 0.0
        %1255 = vmatprep.subr.mxu0 0.0
        %1256 = vmatpush1.msra.mxu0 0.0
        %1257 = vmatprep.subr.mxu0 0.0
        %1258 = vmatpush1.msra.mxu0 0.0
        %1259 = vmatprep.subr.mxu0 0.0
        %1260 = vmatpush1.msra.mxu0 0.0
        %1261 = vmatprep.subr.mxu0 0.0
        %1262 = vmatpush1.msra.mxu0 0.0
        %1263 = vmatprep.subr.mxu0 0.0
        %1264 = vmatpush1.msra.mxu0 0.0
        %1265 = vmatprep.mubr.f32.mxu0 0.0
        %1266 = vmatmul.mubr.f32.gmra.mrb[0].mxu0 %v1120
        %v1267 = vpop.f32.mrb[0].mxu0
        %v1268 = vadd.f32 0.0, %v1267
        %v1269 = vpop.f32.mrb[0].mxu0
        %v1270 = vadd.f32 0.0, %v1269
        %1271 = vdwg.mxu0
        %v1272 = vadd.f32 %v1098, %v1197
        %v1273 = vadd.f32 %v1099, %v1199
        %v1274 = vadd.f32 %v1100, %v1268
        %v1275 = vadd.f32 %v1101, %v1270
        %s1276 = scalar_lea.vmem %s1, 48
        %v1277 = vld [vmem:[%s1276] sm:$0xff]
        %1278 = vrot.lane.b32.xlu0 %v246, 122
        %v1279 = vpop.permute.xlu0 %1278
        %1280 = vrot.lane.b32.xlu0 %v255, 122
        %v1281 = vpop.permute.xlu0 %1280
        %1282 = vrot.lane.b32.xlu0 %v247, 122
        %v1283 = vpop.permute.xlu0 %1282
        %1284 = vrot.lane.b32.xlu0 %v256, 122
        %v1285 = vpop.permute.xlu0 %1284
        %1286 = vrot.lane.b32.xlu0 %v248, 122
        %v1287 = vpop.permute.xlu0 %1286
        %vm1288 = vcmask 998400
        %v1289 = vsel %vm1288, %v1279, %v1281
        %v1290 = vsel %vm1288, %v1281, %v1283
        %v1291 = vsel %vm1288, %v1283, %v1285
        %v1292 = vsel %vm1288, %v1285, %v1287
        %v1294 = vsel %vm272, %v1277, 0
        %v1296 = vsel %vm276, %v1289, 0
        %v1298 = vsel %vm276, %v1290, 0
        %v1300 = vsel %vm276, %v1291, 0
        %v1302 = vsel %vm276, %v1292, 0
        %1304 = vmatprep.subr.mxu0 %v1298
        %1305 = vmatpush1.msra.mxu0 %v1296
        %1306 = vmatprep.subr.mxu0 0.0
        %1307 = vmatpush1.msra.mxu0 0.0
        %1308 = vmatprep.subr.mxu0 0.0
        %1309 = vmatpush1.msra.mxu0 0.0
        %1310 = vmatprep.subr.mxu0 0.0
        %1311 = vmatpush1.msra.mxu0 0.0
        %1312 = vmatprep.subr.mxu0 0.0
        %1313 = vmatpush1.msra.mxu0 0.0
        %1314 = vmatprep.subr.mxu0 0.0
        %1315 = vmatpush1.msra.mxu0 0.0
        %1316 = vmatprep.subr.mxu0 0.0
        %1317 = vmatpush1.msra.mxu0 0.0
        %1318 = vmatprep.subr.mxu0 0.0
        %1319 = vmatpush1.msra.mxu0 0.0
        %1320 = vmatprep.subr.mxu0 0.0
        %1321 = vmatpush1.msra.mxu0 0.0
        %1322 = vmatprep.subr.mxu0 0.0
        %1323 = vmatpush1.msra.mxu0 0.0
        %1324 = vmatprep.subr.mxu0 0.0
        %1325 = vmatpush1.msra.mxu0 0.0
        %1326 = vmatprep.subr.mxu0 0.0
        %1327 = vmatpush1.msra.mxu0 0.0
        %1328 = vmatprep.subr.mxu0 0.0
        %1329 = vmatpush1.msra.mxu0 0.0
        %1330 = vmatprep.subr.mxu0 0.0
        %1331 = vmatpush1.msra.mxu0 0.0
        %1332 = vmatprep.subr.mxu0 0.0
        %1333 = vmatpush1.msra.mxu0 0.0
        %1334 = vmatprep.subr.mxu0 0.0
        %1335 = vmatpush1.msra.mxu0 0.0
        %1336 = vmatprep.subr.mxu0 0.0
        %1337 = vmatpush1.msra.mxu0 0.0
        %1338 = vmatprep.subr.mxu0 0.0
        %1339 = vmatpush1.msra.mxu0 0.0
        %1340 = vmatprep.subr.mxu0 0.0
        %1341 = vmatpush1.msra.mxu0 0.0
        %1342 = vmatprep.subr.mxu0 0.0
        %1343 = vmatpush1.msra.mxu0 0.0
        %1344 = vmatprep.subr.mxu0 0.0
        %1345 = vmatpush1.msra.mxu0 0.0
        %1346 = vmatprep.subr.mxu0 0.0
        %1347 = vmatpush1.msra.mxu0 0.0
        %1348 = vmatprep.subr.mxu0 0.0
        %1349 = vmatpush1.msra.mxu0 0.0
        %1350 = vmatprep.subr.mxu0 0.0
        %1351 = vmatpush1.msra.mxu0 0.0
        %1352 = vmatprep.subr.mxu0 0.0
        %1353 = vmatpush1.msra.mxu0 0.0
        %1354 = vmatprep.subr.mxu0 0.0
        %1355 = vmatpush1.msra.mxu0 0.0
        %1356 = vmatprep.subr.mxu0 0.0
        %1357 = vmatpush1.msra.mxu0 0.0
        %1358 = vmatprep.subr.mxu0 0.0
        %1359 = vmatpush1.msra.mxu0 0.0
        %1360 = vmatprep.subr.mxu0 0.0
        %1361 = vmatpush1.msra.mxu0 0.0
        %1362 = vmatprep.subr.mxu0 0.0
        %1363 = vmatpush1.msra.mxu0 0.0
        %1364 = vmatprep.subr.mxu0 0.0
        %1365 = vmatpush1.msra.mxu0 0.0
        %1366 = vmatprep.subr.mxu0 0.0
        %1367 = vmatpush1.msra.mxu0 0.0
        %1368 = vmatprep.mubr.f32.mxu0 0.0
        %1369 = vmatmul.mubr.f32.gmra.mrb[0].mxu0 %v1294
        %v1370 = vpop.f32.mrb[0].mxu0
        %v1371 = vadd.f32 0.0, %v1370
        %v1372 = vpop.f32.mrb[0].mxu0
        %v1373 = vadd.f32 0.0, %v1372
        %1374 = vdwg.mxu0
        %1375 = vmatprep.subr.mxu0 %v1302
        %1376 = vmatpush1.msra.mxu0 %v1300
        %1377 = vmatprep.subr.mxu0 0.0
        %1378 = vmatpush1.msra.mxu0 0.0
        %1379 = vmatprep.subr.mxu0 0.0
        %1380 = vmatpush1.msra.mxu0 0.0
        %1381 = vmatprep.subr.mxu0 0.0
        %1382 = vmatpush1.msra.mxu0 0.0
        %1383 = vmatprep.subr.mxu0 0.0
        %1384 = vmatpush1.msra.mxu0 0.0
        %1385 = vmatprep.subr.mxu0 0.0
        %1386 = vmatpush1.msra.mxu0 0.0
        %1387 = vmatprep.subr.mxu0 0.0
        %1388 = vmatpush1.msra.mxu0 0.0
        %1389 = vmatprep.subr.mxu0 0.0
        %1390 = vmatpush1.msra.mxu0 0.0
        %1391 = vmatprep.subr.mxu0 0.0
        %1392 = vmatpush1.msra.mxu0 0.0
        %1393 = vmatprep.subr.mxu0 0.0
        %1394 = vmatpush1.msra.mxu0 0.0
        %1395 = vmatprep.subr.mxu0 0.0
        %1396 = vmatpush1.msra.mxu0 0.0
        %1397 = vmatprep.subr.mxu0 0.0
        %1398 = vmatpush1.msra.mxu0 0.0
        %1399 = vmatprep.subr.mxu0 0.0
        %1400 = vmatpush1.msra.mxu0 0.0
        %1401 = vmatprep.subr.mxu0 0.0
        %1402 = vmatpush1.msra.mxu0 0.0
        %1403 = vmatprep.subr.mxu0 0.0
        %1404 = vmatpush1.msra.mxu0 0.0
        %1405 = vmatprep.subr.mxu0 0.0
        %1406 = vmatpush1.msra.mxu0 0.0
        %1407 = vmatprep.subr.mxu0 0.0
        %1408 = vmatpush1.msra.mxu0 0.0
        %1409 = vmatprep.subr.mxu0 0.0
        %1410 = vmatpush1.msra.mxu0 0.0
        %1411 = vmatprep.subr.mxu0 0.0
        %1412 = vmatpush1.msra.mxu0 0.0
        %1413 = vmatprep.subr.mxu0 0.0
        %1414 = vmatpush1.msra.mxu0 0.0
        %1415 = vmatprep.subr.mxu0 0.0
        %1416 = vmatpush1.msra.mxu0 0.0
        %1417 = vmatprep.subr.mxu0 0.0
        %1418 = vmatpush1.msra.mxu0 0.0
        %1419 = vmatprep.subr.mxu0 0.0
        %1420 = vmatpush1.msra.mxu0 0.0
        %1421 = vmatprep.subr.mxu0 0.0
        %1422 = vmatpush1.msra.mxu0 0.0
        %1423 = vmatprep.subr.mxu0 0.0
        %1424 = vmatpush1.msra.mxu0 0.0
        %1425 = vmatprep.subr.mxu0 0.0
        %1426 = vmatpush1.msra.mxu0 0.0
        %1427 = vmatprep.subr.mxu0 0.0
        %1428 = vmatpush1.msra.mxu0 0.0
        %1429 = vmatprep.subr.mxu0 0.0
        %1430 = vmatpush1.msra.mxu0 0.0
        %1431 = vmatprep.subr.mxu0 0.0
        %1432 = vmatpush1.msra.mxu0 0.0
        %1433 = vmatprep.subr.mxu0 0.0
        %1434 = vmatpush1.msra.mxu0 0.0
        %1435 = vmatprep.subr.mxu0 0.0
        %1436 = vmatpush1.msra.mxu0 0.0
        %1437 = vmatprep.subr.mxu0 0.0
        %1438 = vmatpush1.msra.mxu0 0.0
        %1439 = vmatprep.mubr.f32.mxu0 0.0
        %1440 = vmatmul.mubr.f32.gmra.mrb[0].mxu0 %v1294
        %v1441 = vpop.f32.mrb[0].mxu0
        %v1442 = vadd.f32 0.0, %v1441
        %v1443 = vpop.f32.mrb[0].mxu0
        %v1444 = vadd.f32 0.0, %v1443
        %1445 = vdwg.mxu0
        %v1446 = vadd.f32 %v1272, %v1371
        %v1447 = vadd.f32 %v1273, %v1373
        %v1448 = vadd.f32 %v1274, %v1442
        %v1449 = vadd.f32 %v1275, %v1444
        %s1450 = scalar_lea.vmem %s1, 56
        %v1451 = vld [vmem:[%s1450] sm:$0xff]
        %1452 = vrot.lane.b32.xlu0 %v246, 106
        %v1453 = vpop.permute.xlu0 %1452
        %1454 = vrot.lane.b32.xlu0 %v255, 106
        %v1455 = vpop.permute.xlu0 %1454
        %1456 = vrot.lane.b32.xlu0 %v247, 106
        %v1457 = vpop.permute.xlu0 %1456
        %1458 = vrot.lane.b32.xlu0 %v256, 106
        %v1459 = vpop.permute.xlu0 %1458
        %1460 = vrot.lane.b32.xlu0 %v248, 106
        %v1461 = vpop.permute.xlu0 %1460
        %vm1462 = vcmask 867328
        %v1463 = vsel %vm1462, %v1453, %v1455
        %v1464 = vsel %vm1462, %v1455, %v1457
        %v1465 = vsel %vm1462, %v1457, %v1459
        %v1466 = vsel %vm1462, %v1459, %v1461
        %v1468 = vsel %vm272, %v1451, 0
        %v1470 = vsel %vm276, %v1463, 0
        %v1472 = vsel %vm276, %v1464, 0
        %v1474 = vsel %vm276, %v1465, 0
        %v1476 = vsel %vm276, %v1466, 0
        %1478 = vmatprep.subr.mxu0 %v1472
        %1479 = vmatpush1.msra.mxu0 %v1470
        %1480 = vmatprep.subr.mxu0 0.0
        %1481 = vmatpush1.msra.mxu0 0.0
        %1482 = vmatprep.subr.mxu0 0.0
        %1483 = vmatpush1.msra.mxu0 0.0
        %1484 = vmatprep.subr.mxu0 0.0
        %1485 = vmatpush1.msra.mxu0 0.0
        %1486 = vmatprep.subr.mxu0 0.0
        %1487 = vmatpush1.msra.mxu0 0.0
        %1488 = vmatprep.subr.mxu0 0.0
        %1489 = vmatpush1.msra.mxu0 0.0
        %1490 = vmatprep.subr.mxu0 0.0
        %1491 = vmatpush1.msra.mxu0 0.0
        %1492 = vmatprep.subr.mxu0 0.0
        %1493 = vmatpush1.msra.mxu0 0.0
        %1494 = vmatprep.subr.mxu0 0.0
        %1495 = vmatpush1.msra.mxu0 0.0
        %1496 = vmatprep.subr.mxu0 0.0
        %1497 = vmatpush1.msra.mxu0 0.0
        %1498 = vmatprep.subr.mxu0 0.0
        %1499 = vmatpush1.msra.mxu0 0.0
        %1500 = vmatprep.subr.mxu0 0.0
        %1501 = vmatpush1.msra.mxu0 0.0
        %1502 = vmatprep.subr.mxu0 0.0
        %1503 = vmatpush1.msra.mxu0 0.0
        %1504 = vmatprep.subr.mxu0 0.0
        %1505 = vmatpush1.msra.mxu0 0.0
        %1506 = vmatprep.subr.mxu0 0.0
        %1507 = vmatpush1.msra.mxu0 0.0
        %1508 = vmatprep.subr.mxu0 0.0
        %1509 = vmatpush1.msra.mxu0 0.0
        %1510 = vmatprep.subr.mxu0 0.0
        %1511 = vmatpush1.msra.mxu0 0.0
        %1512 = vmatprep.subr.mxu0 0.0
        %1513 = vmatpush1.msra.mxu0 0.0
        %1514 = vmatprep.subr.mxu0 0.0
        %1515 = vmatpush1.msra.mxu0 0.0
        %1516 = vmatprep.subr.mxu0 0.0
        %1517 = vmatpush1.msra.mxu0 0.0
        %1518 = vmatprep.subr.mxu0 0.0
        %1519 = vmatpush1.msra.mxu0 0.0
        %1520 = vmatprep.subr.mxu0 0.0
        %1521 = vmatpush1.msra.mxu0 0.0
        %1522 = vmatprep.subr.mxu0 0.0
        %1523 = vmatpush1.msra.mxu0 0.0
        %1524 = vmatprep.subr.mxu0 0.0
        %1525 = vmatpush1.msra.mxu0 0.0
        %1526 = vmatprep.subr.mxu0 0.0
        %1527 = vmatpush1.msra.mxu0 0.0
        %1528 = vmatprep.subr.mxu0 0.0
        %1529 = vmatpush1.msra.mxu0 0.0
        %1530 = vmatprep.subr.mxu0 0.0
        %1531 = vmatpush1.msra.mxu0 0.0
        %1532 = vmatprep.subr.mxu0 0.0
        %1533 = vmatpush1.msra.mxu0 0.0
        %1534 = vmatprep.subr.mxu0 0.0
        %1535 = vmatpush1.msra.mxu0 0.0
        %1536 = vmatprep.subr.mxu0 0.0
        %1537 = vmatpush1.msra.mxu0 0.0
        %1538 = vmatprep.subr.mxu0 0.0
        %1539 = vmatpush1.msra.mxu0 0.0
        %1540 = vmatprep.subr.mxu0 0.0
        %1541 = vmatpush1.msra.mxu0 0.0
        %1542 = vmatprep.mubr.f32.mxu0 0.0
        %1543 = vmatmul.mubr.f32.gmra.mrb[0].mxu0 %v1468
        %v1544 = vpop.f32.mrb[0].mxu0
        %v1545 = vadd.f32 0.0, %v1544
        %v1546 = vpop.f32.mrb[0].mxu0
        %v1547 = vadd.f32 0.0, %v1546
        %1548 = vdwg.mxu0
        %1549 = vmatprep.subr.mxu0 %v1476
        %1550 = vmatpush1.msra.mxu0 %v1474
        %1551 = vmatprep.subr.mxu0 0.0
        %1552 = vmatpush1.msra.mxu0 0.0
        %1553 = vmatprep.subr.mxu0 0.0
        %1554 = vmatpush1.msra.mxu0 0.0
        %1555 = vmatprep.subr.mxu0 0.0
        %1556 = vmatpush1.msra.mxu0 0.0
        %1557 = vmatprep.subr.mxu0 0.0
        %1558 = vmatpush1.msra.mxu0 0.0
        %1559 = vmatprep.subr.mxu0 0.0
        %1560 = vmatpush1.msra.mxu0 0.0
        %1561 = vmatprep.subr.mxu0 0.0
        %1562 = vmatpush1.msra.mxu0 0.0
        %1563 = vmatprep.subr.mxu0 0.0
        %1564 = vmatpush1.msra.mxu0 0.0
        %1565 = vmatprep.subr.mxu0 0.0
        %1566 = vmatpush1.msra.mxu0 0.0
        %1567 = vmatprep.subr.mxu0 0.0
        %1568 = vmatpush1.msra.mxu0 0.0
        %1569 = vmatprep.subr.mxu0 0.0
        %1570 = vmatpush1.msra.mxu0 0.0
        %1571 = vmatprep.subr.mxu0 0.0
        %1572 = vmatpush1.msra.mxu0 0.0
        %1573 = vmatprep.subr.mxu0 0.0
        %1574 = vmatpush1.msra.mxu0 0.0
        %1575 = vmatprep.subr.mxu0 0.0
        %1576 = vmatpush1.msra.mxu0 0.0
        %1577 = vmatprep.subr.mxu0 0.0
        %1578 = vmatpush1.msra.mxu0 0.0
        %1579 = vmatprep.subr.mxu0 0.0
        %1580 = vmatpush1.msra.mxu0 0.0
        %1581 = vmatprep.subr.mxu0 0.0
        %1582 = vmatpush1.msra.mxu0 0.0
        %1583 = vmatprep.subr.mxu0 0.0
        %1584 = vmatpush1.msra.mxu0 0.0
        %1585 = vmatprep.subr.mxu0 0.0
        %1586 = vmatpush1.msra.mxu0 0.0
        %1587 = vmatprep.subr.mxu0 0.0
        %1588 = vmatpush1.msra.mxu0 0.0
        %1589 = vmatprep.subr.mxu0 0.0
        %1590 = vmatpush1.msra.mxu0 0.0
        %1591 = vmatprep.subr.mxu0 0.0
        %1592 = vmatpush1.msra.mxu0 0.0
        %1593 = vmatprep.subr.mxu0 0.0
        %1594 = vmatpush1.msra.mxu0 0.0
        %1595 = vmatprep.subr.mxu0 0.0
        %1596 = vmatpush1.msra.mxu0 0.0
        %1597 = vmatprep.subr.mxu0 0.0
        %1598 = vmatpush1.msra.mxu0 0.0
        %1599 = vmatprep.subr.mxu0 0.0
        %1600 = vmatpush1.msra.mxu0 0.0
        %1601 = vmatprep.subr.mxu0 0.0
        %1602 = vmatpush1.msra.mxu0 0.0
        %1603 = vmatprep.subr.mxu0 0.0
        %1604 = vmatpush1.msra.mxu0 0.0
        %1605 = vmatprep.subr.mxu0 0.0
        %1606 = vmatpush1.msra.mxu0 0.0
        %1607 = vmatprep.subr.mxu0 0.0
        %1608 = vmatpush1.msra.mxu0 0.0
        %1609 = vmatprep.subr.mxu0 0.0
        %1610 = vmatpush1.msra.mxu0 0.0
        %1611 = vmatprep.subr.mxu0 0.0
        %1612 = vmatpush1.msra.mxu0 0.0
        %1613 = vmatprep.mubr.f32.mxu0 0.0
        %1614 = vmatmul.mubr.f32.gmra.mrb[0].mxu0 %v1468
        %v1615 = vpop.f32.mrb[0].mxu0
        %v1616 = vadd.f32 0.0, %v1615
        %v1617 = vpop.f32.mrb[0].mxu0
        %v1618 = vadd.f32 0.0, %v1617
        %1619 = vdwg.mxu0
        %v1620 = vadd.f32 %v1446, %v1545
        %v1621 = vadd.f32 %v1447, %v1547
        %v1622 = vadd.f32 %v1448, %v1616
        %v1623 = vadd.f32 %v1449, %v1618
        %s1624 = scalar_lea.vmem %s1, 64
        %v1625 = vld [vmem:[%s1624] sm:$0xff]
        %1626 = vrot.lane.b32.xlu0 %v246, 105
        %v1627 = vpop.permute.xlu0 %1626
        %1628 = vrot.lane.b32.xlu0 %v255, 105
        %v1629 = vpop.permute.xlu0 %1628
        %1630 = vrot.lane.b32.xlu0 %v247, 105
        %v1631 = vpop.permute.xlu0 %1630
        %1632 = vrot.lane.b32.xlu0 %v256, 105
        %v1633 = vpop.permute.xlu0 %1632
        %1634 = vrot.lane.b32.xlu0 %v248, 105
        %v1635 = vpop.permute.xlu0 %1634
        %vm1636 = vcmask 859136
        %v1637 = vsel %vm1636, %v1627, %v1629
        %v1638 = vsel %vm1636, %v1629, %v1631
        %v1639 = vsel %vm1636, %v1631, %v1633
        %v1640 = vsel %vm1636, %v1633, %v1635
        %v1642 = vsel %vm272, %v1625, 0
        %v1644 = vsel %vm276, %v1637, 0
        %v1646 = vsel %vm276, %v1638, 0
        %v1648 = vsel %vm276, %v1639, 0
        %v1650 = vsel %vm276, %v1640, 0
        %1652 = vmatprep.subr.mxu0 %v1646
        %1653 = vmatpush1.msra.mxu0 %v1644
        %1654 = vmatprep.subr.mxu0 0.0
        %1655 = vmatpush1.msra.mxu0 0.0
        %1656 = vmatprep.subr.mxu0 0.0
        %1657 = vmatpush1.msra.mxu0 0.0
        %1658 = vmatprep.subr.mxu0 0.0
        %1659 = vmatpush1.msra.mxu0 0.0
        %1660 = vmatprep.subr.mxu0 0.0
        %1661 = vmatpush1.msra.mxu0 0.0
        %1662 = vmatprep.subr.mxu0 0.0
        %1663 = vmatpush1.msra.mxu0 0.0
        %1664 = vmatprep.subr.mxu0 0.0
        %1665 = vmatpush1.msra.mxu0 0.0
        %1666 = vmatprep.subr.mxu0 0.0
        %1667 = vmatpush1.msra.mxu0 0.0
        %1668 = vmatprep.subr.mxu0 0.0
        %1669 = vmatpush1.msra.mxu0 0.0
        %1670 = vmatprep.subr.mxu0 0.0
        %1671 = vmatpush1.msra.mxu0 0.0
        %1672 = vmatprep.subr.mxu0 0.0
        %1673 = vmatpush1.msra.mxu0 0.0
        %1674 = vmatprep.subr.mxu0 0.0
        %1675 = vmatpush1.msra.mxu0 0.0
        %1676 = vmatprep.subr.mxu0 0.0
        %1677 = vmatpush1.msra.mxu0 0.0
        %1678 = vmatprep.subr.mxu0 0.0
        %1679 = vmatpush1.msra.mxu0 0.0
        %1680 = vmatprep.subr.mxu0 0.0
        %1681 = vmatpush1.msra.mxu0 0.0
        %1682 = vmatprep.subr.mxu0 0.0
        %1683 = vmatpush1.msra.mxu0 0.0
        %1684 = vmatprep.subr.mxu0 0.0
        %1685 = vmatpush1.msra.mxu0 0.0
        %1686 = vmatprep.subr.mxu0 0.0
        %1687 = vmatpush1.msra.mxu0 0.0
        %1688 = vmatprep.subr.mxu0 0.0
        %1689 = vmatpush1.msra.mxu0 0.0
        %1690 = vmatprep.subr.mxu0 0.0
        %1691 = vmatpush1.msra.mxu0 0.0
        %1692 = vmatprep.subr.mxu0 0.0
        %1693 = vmatpush1.msra.mxu0 0.0
        %1694 = vmatprep.subr.mxu0 0.0
        %1695 = vmatpush1.msra.mxu0 0.0
        %1696 = vmatprep.subr.mxu0 0.0
        %1697 = vmatpush1.msra.mxu0 0.0
        %1698 = vmatprep.subr.mxu0 0.0
        %1699 = vmatpush1.msra.mxu0 0.0
        %1700 = vmatprep.subr.mxu0 0.0
        %1701 = vmatpush1.msra.mxu0 0.0
        %1702 = vmatprep.subr.mxu0 0.0
        %1703 = vmatpush1.msra.mxu0 0.0
        %1704 = vmatprep.subr.mxu0 0.0
        %1705 = vmatpush1.msra.mxu0 0.0
        %1706 = vmatprep.subr.mxu0 0.0
        %1707 = vmatpush1.msra.mxu0 0.0
        %1708 = vmatprep.subr.mxu0 0.0
        %1709 = vmatpush1.msra.mxu0 0.0
        %1710 = vmatprep.subr.mxu0 0.0
        %1711 = vmatpush1.msra.mxu0 0.0
        %1712 = vmatprep.subr.mxu0 0.0
        %1713 = vmatpush1.msra.mxu0 0.0
        %1714 = vmatprep.subr.mxu0 0.0
        %1715 = vmatpush1.msra.mxu0 0.0
        %1716 = vmatprep.mubr.f32.mxu0 0.0
        %1717 = vmatmul.mubr.f32.gmra.mrb[0].mxu0 %v1642
        %v1718 = vpop.f32.mrb[0].mxu0
        %v1719 = vadd.f32 0.0, %v1718
        %v1720 = vpop.f32.mrb[0].mxu0
        %v1721 = vadd.f32 0.0, %v1720
        %1722 = vdwg.mxu0
        %1723 = vmatprep.subr.mxu0 %v1650
        %1724 = vmatpush1.msra.mxu0 %v1648
        %1725 = vmatprep.subr.mxu0 0.0
        %1726 = vmatpush1.msra.mxu0 0.0
        %1727 = vmatprep.subr.mxu0 0.0
        %1728 = vmatpush1.msra.mxu0 0.0
        %1729 = vmatprep.subr.mxu0 0.0
        %1730 = vmatpush1.msra.mxu0 0.0
        %1731 = vmatprep.subr.mxu0 0.0
        %1732 = vmatpush1.msra.mxu0 0.0
        %1733 = vmatprep.subr.mxu0 0.0
        %1734 = vmatpush1.msra.mxu0 0.0
        %1735 = vmatprep.subr.mxu0 0.0
        %1736 = vmatpush1.msra.mxu0 0.0
        %1737 = vmatprep.subr.mxu0 0.0
        %1738 = vmatpush1.msra.mxu0 0.0
        %1739 = vmatprep.subr.mxu0 0.0
        %1740 = vmatpush1.msra.mxu0 0.0
        %1741 = vmatprep.subr.mxu0 0.0
        %1742 = vmatpush1.msra.mxu0 0.0
        %1743 = vmatprep.subr.mxu0 0.0
        %1744 = vmatpush1.msra.mxu0 0.0
        %1745 = vmatprep.subr.mxu0 0.0
        %1746 = vmatpush1.msra.mxu0 0.0
        %1747 = vmatprep.subr.mxu0 0.0
        %1748 = vmatpush1.msra.mxu0 0.0
        %1749 = vmatprep.subr.mxu0 0.0
        %1750 = vmatpush1.msra.mxu0 0.0
        %1751 = vmatprep.subr.mxu0 0.0
        %1752 = vmatpush1.msra.mxu0 0.0
        %1753 = vmatprep.subr.mxu0 0.0
        %1754 = vmatpush1.msra.mxu0 0.0
        %1755 = vmatprep.subr.mxu0 0.0
        %1756 = vmatpush1.msra.mxu0 0.0
        %1757 = vmatprep.subr.mxu0 0.0
        %1758 = vmatpush1.msra.mxu0 0.0
        %1759 = vmatprep.subr.mxu0 0.0
        %1760 = vmatpush1.msra.mxu0 0.0
        %1761 = vmatprep.subr.mxu0 0.0
        %1762 = vmatpush1.msra.mxu0 0.0
        %1763 = vmatprep.subr.mxu0 0.0
        %1764 = vmatpush1.msra.mxu0 0.0
        %1765 = vmatprep.subr.mxu0 0.0
        %1766 = vmatpush1.msra.mxu0 0.0
        %1767 = vmatprep.subr.mxu0 0.0
        %1768 = vmatpush1.msra.mxu0 0.0
        %1769 = vmatprep.subr.mxu0 0.0
        %1770 = vmatpush1.msra.mxu0 0.0
        %1771 = vmatprep.subr.mxu0 0.0
        %1772 = vmatpush1.msra.mxu0 0.0
        %1773 = vmatprep.subr.mxu0 0.0
        %1774 = vmatpush1.msra.mxu0 0.0
        %1775 = vmatprep.subr.mxu0 0.0
        %1776 = vmatpush1.msra.mxu0 0.0
        %1777 = vmatprep.subr.mxu0 0.0
        %1778 = vmatpush1.msra.mxu0 0.0
        %1779 = vmatprep.subr.mxu0 0.0
        %1780 = vmatpush1.msra.mxu0 0.0
        %1781 = vmatprep.subr.mxu0 0.0
        %1782 = vmatpush1.msra.mxu0 0.0
        %1783 = vmatprep.subr.mxu0 0.0
        %1784 = vmatpush1.msra.mxu0 0.0
        %1785 = vmatprep.subr.mxu0 0.0
        %1786 = vmatpush1.msra.mxu0 0.0
        %1787 = vmatprep.mubr.f32.mxu0 0.0
        %1788 = vmatmul.mubr.f32.gmra.mrb[0].mxu0 %v1642
        %v1789 = vpop.f32.mrb[0].mxu0
        %v1790 = vadd.f32 0.0, %v1789
        %v1791 = vpop.f32.mrb[0].mxu0
        %v1792 = vadd.f32 0.0, %v1791
        %1793 = vdwg.mxu0
        %v1794 = vadd.f32 %v1620, %v1719
        %v1795 = vadd.f32 %v1621, %v1721
        %v1796 = vadd.f32 %v1622, %v1790
        %v1797 = vadd.f32 %v1623, %v1792
        %s1798 = scalar_lea.vmem %s1, 72
        %v1799 = vld [vmem:[%s1798] sm:$0xff]
        %1800 = vrot.lane.b32.xlu0 %v246, 104
        %v1801 = vpop.permute.xlu0 %1800
        %1802 = vrot.lane.b32.xlu0 %v255, 104
        %v1803 = vpop.permute.xlu0 %1802
        %1804 = vrot.lane.b32.xlu0 %v247, 104
        %v1805 = vpop.permute.xlu0 %1804
        %1806 = vrot.lane.b32.xlu0 %v256, 104
        %v1807 = vpop.permute.xlu0 %1806
        %1808 = vrot.lane.b32.xlu0 %v248, 104
        %v1809 = vpop.permute.xlu0 %1808
        %vm1810 = vcmask 850944
        %v1811 = vsel %vm1810, %v1801, %v1803
        %v1812 = vsel %vm1810, %v1803, %v1805
        %v1813 = vsel %vm1810, %v1805, %v1807
        %v1814 = vsel %vm1810, %v1807, %v1809
        %v1816 = vsel %vm272, %v1799, 0
        %v1818 = vsel %vm276, %v1811, 0
        %v1820 = vsel %vm276, %v1812, 0
        %v1822 = vsel %vm276, %v1813, 0
        %v1824 = vsel %vm276, %v1814, 0
        %1826 = vmatprep.subr.mxu0 %v1820
        %1827 = vmatpush1.msra.mxu0 %v1818
        %1828 = vmatprep.subr.mxu0 0.0
        %1829 = vmatpush1.msra.mxu0 0.0
        %1830 = vmatprep.subr.mxu0 0.0
        %1831 = vmatpush1.msra.mxu0 0.0
        %1832 = vmatprep.subr.mxu0 0.0
        %1833 = vmatpush1.msra.mxu0 0.0
        %1834 = vmatprep.subr.mxu0 0.0
        %1835 = vmatpush1.msra.mxu0 0.0
        %1836 = vmatprep.subr.mxu0 0.0
        %1837 = vmatpush1.msra.mxu0 0.0
        %1838 = vmatprep.subr.mxu0 0.0
        %1839 = vmatpush1.msra.mxu0 0.0
        %1840 = vmatprep.subr.mxu0 0.0
        %1841 = vmatpush1.msra.mxu0 0.0
        %1842 = vmatprep.subr.mxu0 0.0
        %1843 = vmatpush1.msra.mxu0 0.0
        %1844 = vmatprep.subr.mxu0 0.0
        %1845 = vmatpush1.msra.mxu0 0.0
        %1846 = vmatprep.subr.mxu0 0.0
        %1847 = vmatpush1.msra.mxu0 0.0
        %1848 = vmatprep.subr.mxu0 0.0
        %1849 = vmatpush1.msra.mxu0 0.0
        %1850 = vmatprep.subr.mxu0 0.0
        %1851 = vmatpush1.msra.mxu0 0.0
        %1852 = vmatprep.subr.mxu0 0.0
        %1853 = vmatpush1.msra.mxu0 0.0
        %1854 = vmatprep.subr.mxu0 0.0
        %1855 = vmatpush1.msra.mxu0 0.0
        %1856 = vmatprep.subr.mxu0 0.0
        %1857 = vmatpush1.msra.mxu0 0.0
        %1858 = vmatprep.subr.mxu0 0.0
        %1859 = vmatpush1.msra.mxu0 0.0
        %1860 = vmatprep.subr.mxu0 0.0
        %1861 = vmatpush1.msra.mxu0 0.0
        %1862 = vmatprep.subr.mxu0 0.0
        %1863 = vmatpush1.msra.mxu0 0.0
        %1864 = vmatprep.subr.mxu0 0.0
        %1865 = vmatpush1.msra.mxu0 0.0
        %1866 = vmatprep.subr.mxu0 0.0
        %1867 = vmatpush1.msra.mxu0 0.0
        %1868 = vmatprep.subr.mxu0 0.0
        %1869 = vmatpush1.msra.mxu0 0.0
        %1870 = vmatprep.subr.mxu0 0.0
        %1871 = vmatpush1.msra.mxu0 0.0
        %1872 = vmatprep.subr.mxu0 0.0
        %1873 = vmatpush1.msra.mxu0 0.0
        %1874 = vmatprep.subr.mxu0 0.0
        %1875 = vmatpush1.msra.mxu0 0.0
        %1876 = vmatprep.subr.mxu0 0.0
        %1877 = vmatpush1.msra.mxu0 0.0
        %1878 = vmatprep.subr.mxu0 0.0
        %1879 = vmatpush1.msra.mxu0 0.0
        %1880 = vmatprep.subr.mxu0 0.0
        %1881 = vmatpush1.msra.mxu0 0.0
        %1882 = vmatprep.subr.mxu0 0.0
        %1883 = vmatpush1.msra.mxu0 0.0
        %1884 = vmatprep.subr.mxu0 0.0
        %1885 = vmatpush1.msra.mxu0 0.0
        %1886 = vmatprep.subr.mxu0 0.0
        %1887 = vmatpush1.msra.mxu0 0.0
        %1888 = vmatprep.subr.mxu0 0.0
        %1889 = vmatpush1.msra.mxu0 0.0
        %1890 = vmatprep.mubr.f32.mxu0 0.0
        %1891 = vmatmul.mubr.f32.gmra.mrb[0].mxu0 %v1816
        %v1892 = vpop.f32.mrb[0].mxu0
        %v1893 = vadd.f32 0.0, %v1892
        %v1894 = vpop.f32.mrb[0].mxu0
        %v1895 = vadd.f32 0.0, %v1894
        %1896 = vdwg.mxu0
        %1897 = vmatprep.subr.mxu0 %v1824
        %1898 = vmatpush1.msra.mxu0 %v1822
        %1899 = vmatprep.subr.mxu0 0.0
        %1900 = vmatpush1.msra.mxu0 0.0
        %1901 = vmatprep.subr.mxu0 0.0
        %1902 = vmatpush1.msra.mxu0 0.0
        %1903 = vmatprep.subr.mxu0 0.0
        %1904 = vmatpush1.msra.mxu0 0.0
        %1905 = vmatprep.subr.mxu0 0.0
        %1906 = vmatpush1.msra.mxu0 0.0
        %1907 = vmatprep.subr.mxu0 0.0
        %1908 = vmatpush1.msra.mxu0 0.0
        %1909 = vmatprep.subr.mxu0 0.0
        %1910 = vmatpush1.msra.mxu0 0.0
        %1911 = vmatprep.subr.mxu0 0.0
        %1912 = vmatpush1.msra.mxu0 0.0
        %1913 = vmatprep.subr.mxu0 0.0
        %1914 = vmatpush1.msra.mxu0 0.0
        %1915 = vmatprep.subr.mxu0 0.0
        %1916 = vmatpush1.msra.mxu0 0.0
        %1917 = vmatprep.subr.mxu0 0.0
        %1918 = vmatpush1.msra.mxu0 0.0
        %1919 = vmatprep.subr.mxu0 0.0
        %1920 = vmatpush1.msra.mxu0 0.0
        %1921 = vmatprep.subr.mxu0 0.0
        %1922 = vmatpush1.msra.mxu0 0.0
        %1923 = vmatprep.subr.mxu0 0.0
        %1924 = vmatpush1.msra.mxu0 0.0
        %1925 = vmatprep.subr.mxu0 0.0
        %1926 = vmatpush1.msra.mxu0 0.0
        %1927 = vmatprep.subr.mxu0 0.0
        %1928 = vmatpush1.msra.mxu0 0.0
        %1929 = vmatprep.subr.mxu0 0.0
        %1930 = vmatpush1.msra.mxu0 0.0
        %1931 = vmatprep.subr.mxu0 0.0
        %1932 = vmatpush1.msra.mxu0 0.0
        %1933 = vmatprep.subr.mxu0 0.0
        %1934 = vmatpush1.msra.mxu0 0.0
        %1935 = vmatprep.subr.mxu0 0.0
        %1936 = vmatpush1.msra.mxu0 0.0
        %1937 = vmatprep.subr.mxu0 0.0
        %1938 = vmatpush1.msra.mxu0 0.0
        %1939 = vmatprep.subr.mxu0 0.0
        %1940 = vmatpush1.msra.mxu0 0.0
        %1941 = vmatprep.subr.mxu0 0.0
        %1942 = vmatpush1.msra.mxu0 0.0
        %1943 = vmatprep.subr.mxu0 0.0
        %1944 = vmatpush1.msra.mxu0 0.0
        %1945 = vmatprep.subr.mxu0 0.0
        %1946 = vmatpush1.msra.mxu0 0.0
        %1947 = vmatprep.subr.mxu0 0.0
        %1948 = vmatpush1.msra.mxu0 0.0
        %1949 = vmatprep.subr.mxu0 0.0
        %1950 = vmatpush1.msra.mxu0 0.0
        %1951 = vmatprep.subr.mxu0 0.0
        %1952 = vmatpush1.msra.mxu0 0.0
        %1953 = vmatprep.subr.mxu0 0.0
        %1954 = vmatpush1.msra.mxu0 0.0
        %1955 = vmatprep.subr.mxu0 0.0
        %1956 = vmatpush1.msra.mxu0 0.0
        %1957 = vmatprep.subr.mxu0 0.0
        %1958 = vmatpush1.msra.mxu0 0.0
        %1959 = vmatprep.subr.mxu0 0.0
        %1960 = vmatpush1.msra.mxu0 0.0
        %1961 = vmatprep.mubr.f32.mxu0 0.0
        %1962 = vmatmul.mubr.f32.gmra.mrb[0].mxu0 %v1816
        %v1963 = vpop.f32.mrb[0].mxu0
        %v1964 = vadd.f32 0.0, %v1963
        %v1965 = vpop.f32.mrb[0].mxu0
        %v1966 = vadd.f32 0.0, %v1965
        %1967 = vdwg.mxu0
        %v1968 = vadd.f32 %v1794, %v1893
        %v1969 = vadd.f32 %v1795, %v1895
        %v1970 = vadd.f32 %v1796, %v1964
        %v1971 = vadd.f32 %v1797, %v1966
        %s1972 = scalar_lea.vmem %s1, 80
        %v1973 = vld [vmem:[%s1972] sm:$0xff]
        %1974 = vrot.lane.b32.xlu0 %v246, 103
        %v1975 = vpop.permute.xlu0 %1974
        %1976 = vrot.lane.b32.xlu0 %v255, 103
        %v1977 = vpop.permute.xlu0 %1976
        %1978 = vrot.lane.b32.xlu0 %v247, 103
        %v1979 = vpop.permute.xlu0 %1978
        %1980 = vrot.lane.b32.xlu0 %v256, 103
        %v1981 = vpop.permute.xlu0 %1980
        %1982 = vrot.lane.b32.xlu0 %v248, 103
        %v1983 = vpop.permute.xlu0 %1982
        %vm1984 = vcmask 842752
        %v1985 = vsel %vm1984, %v1975, %v1977
        %v1986 = vsel %vm1984, %v1977, %v1979
        %v1987 = vsel %vm1984, %v1979, %v1981
        %v1988 = vsel %vm1984, %v1981, %v1983
        %v1990 = vsel %vm272, %v1973, 0
        %v1992 = vsel %vm276, %v1985, 0
        %v1994 = vsel %vm276, %v1986, 0
        %v1996 = vsel %vm276, %v1987, 0
        %v1998 = vsel %vm276, %v1988, 0
        %2000 = vmatprep.subr.mxu0 %v1994
        %2001 = vmatpush1.msra.mxu0 %v1992
        %2002 = vmatprep.subr.mxu0 0.0
        %2003 = vmatpush1.msra.mxu0 0.0
        %2004 = vmatprep.subr.mxu0 0.0
        %2005 = vmatpush1.msra.mxu0 0.0
        %2006 = vmatprep.subr.mxu0 0.0
        %2007 = vmatpush1.msra.mxu0 0.0
        %2008 = vmatprep.subr.mxu0 0.0
        %2009 = vmatpush1.msra.mxu0 0.0
        %2010 = vmatprep.subr.mxu0 0.0
        %2011 = vmatpush1.msra.mxu0 0.0
        %2012 = vmatprep.subr.mxu0 0.0
        %2013 = vmatpush1.msra.mxu0 0.0
        %2014 = vmatprep.subr.mxu0 0.0
        %2015 = vmatpush1.msra.mxu0 0.0
        %2016 = vmatprep.subr.mxu0 0.0
        %2017 = vmatpush1.msra.mxu0 0.0
        %2018 = vmatprep.subr.mxu0 0.0
        %2019 = vmatpush1.msra.mxu0 0.0
        %2020 = vmatprep.subr.mxu0 0.0
        %2021 = vmatpush1.msra.mxu0 0.0
        %2022 = vmatprep.subr.mxu0 0.0
        %2023 = vmatpush1.msra.mxu0 0.0
        %2024 = vmatprep.subr.mxu0 0.0
        %2025 = vmatpush1.msra.mxu0 0.0
        %2026 = vmatprep.subr.mxu0 0.0
        %2027 = vmatpush1.msra.mxu0 0.0
        %2028 = vmatprep.subr.mxu0 0.0
        %2029 = vmatpush1.msra.mxu0 0.0
        %2030 = vmatprep.subr.mxu0 0.0
        %2031 = vmatpush1.msra.mxu0 0.0
        %2032 = vmatprep.subr.mxu0 0.0
        %2033 = vmatpush1.msra.mxu0 0.0
        %2034 = vmatprep.subr.mxu0 0.0
        %2035 = vmatpush1.msra.mxu0 0.0
        %2036 = vmatprep.subr.mxu0 0.0
        %2037 = vmatpush1.msra.mxu0 0.0
        %2038 = vmatprep.subr.mxu0 0.0
        %2039 = vmatpush1.msra.mxu0 0.0
        %2040 = vmatprep.subr.mxu0 0.0
        %2041 = vmatpush1.msra.mxu0 0.0
        %2042 = vmatprep.subr.mxu0 0.0
        %2043 = vmatpush1.msra.mxu0 0.0
        %2044 = vmatprep.subr.mxu0 0.0
        %2045 = vmatpush1.msra.mxu0 0.0
        %2046 = vmatprep.subr.mxu0 0.0
        %2047 = vmatpush1.msra.mxu0 0.0
        %2048 = vmatprep.subr.mxu0 0.0
        %2049 = vmatpush1.msra.mxu0 0.0
        %2050 = vmatprep.subr.mxu0 0.0
        %2051 = vmatpush1.msra.mxu0 0.0
        %2052 = vmatprep.subr.mxu0 0.0
        %2053 = vmatpush1.msra.mxu0 0.0
        %2054 = vmatprep.subr.mxu0 0.0
        %2055 = vmatpush1.msra.mxu0 0.0
        %2056 = vmatprep.subr.mxu0 0.0
        %2057 = vmatpush1.msra.mxu0 0.0
        %2058 = vmatprep.subr.mxu0 0.0
        %2059 = vmatpush1.msra.mxu0 0.0
        %2060 = vmatprep.subr.mxu0 0.0
        %2061 = vmatpush1.msra.mxu0 0.0
        %2062 = vmatprep.subr.mxu0 0.0
        %2063 = vmatpush1.msra.mxu0 0.0
        %2064 = vmatprep.mubr.f32.mxu0 0.0
        %2065 = vmatmul.mubr.f32.gmra.mrb[0].mxu0 %v1990
        %v2066 = vpop.f32.mrb[0].mxu0
        %v2067 = vadd.f32 0.0, %v2066
        %v2068 = vpop.f32.mrb[0].mxu0
        %v2069 = vadd.f32 0.0, %v2068
        %2070 = vdwg.mxu0
        %2071 = vmatprep.subr.mxu0 %v1998
        %2072 = vmatpush1.msra.mxu0 %v1996
        %2073 = vmatprep.subr.mxu0 0.0
        %2074 = vmatpush1.msra.mxu0 0.0
        %2075 = vmatprep.subr.mxu0 0.0
        %2076 = vmatpush1.msra.mxu0 0.0
        %2077 = vmatprep.subr.mxu0 0.0
        %2078 = vmatpush1.msra.mxu0 0.0
        %2079 = vmatprep.subr.mxu0 0.0
        %2080 = vmatpush1.msra.mxu0 0.0
        %2081 = vmatprep.subr.mxu0 0.0
        %2082 = vmatpush1.msra.mxu0 0.0
        %2083 = vmatprep.subr.mxu0 0.0
        %2084 = vmatpush1.msra.mxu0 0.0
        %2085 = vmatprep.subr.mxu0 0.0
        %2086 = vmatpush1.msra.mxu0 0.0
        %2087 = vmatprep.subr.mxu0 0.0
        %2088 = vmatpush1.msra.mxu0 0.0
        %2089 = vmatprep.subr.mxu0 0.0
        %2090 = vmatpush1.msra.mxu0 0.0
        %2091 = vmatprep.subr.mxu0 0.0
        %2092 = vmatpush1.msra.mxu0 0.0
        %2093 = vmatprep.subr.mxu0 0.0
        %2094 = vmatpush1.msra.mxu0 0.0
        %2095 = vmatprep.subr.mxu0 0.0
        %2096 = vmatpush1.msra.mxu0 0.0
        %2097 = vmatprep.subr.mxu0 0.0
        %2098 = vmatpush1.msra.mxu0 0.0
        %2099 = vmatprep.subr.mxu0 0.0
        %2100 = vmatpush1.msra.mxu0 0.0
        %2101 = vmatprep.subr.mxu0 0.0
        %2102 = vmatpush1.msra.mxu0 0.0
        %2103 = vmatprep.subr.mxu0 0.0
        %2104 = vmatpush1.msra.mxu0 0.0
        %2105 = vmatprep.subr.mxu0 0.0
        %2106 = vmatpush1.msra.mxu0 0.0
        %2107 = vmatprep.subr.mxu0 0.0
        %2108 = vmatpush1.msra.mxu0 0.0
        %2109 = vmatprep.subr.mxu0 0.0
        %2110 = vmatpush1.msra.mxu0 0.0
        %2111 = vmatprep.subr.mxu0 0.0
        %2112 = vmatpush1.msra.mxu0 0.0
        %2113 = vmatprep.subr.mxu0 0.0
        %2114 = vmatpush1.msra.mxu0 0.0
        %2115 = vmatprep.subr.mxu0 0.0
        %2116 = vmatpush1.msra.mxu0 0.0
        %2117 = vmatprep.subr.mxu0 0.0
        %2118 = vmatpush1.msra.mxu0 0.0
        %2119 = vmatprep.subr.mxu0 0.0
        %2120 = vmatpush1.msra.mxu0 0.0
        %2121 = vmatprep.subr.mxu0 0.0
        %2122 = vmatpush1.msra.mxu0 0.0
        %2123 = vmatprep.subr.mxu0 0.0
        %2124 = vmatpush1.msra.mxu0 0.0
        %2125 = vmatprep.subr.mxu0 0.0
        %2126 = vmatpush1.msra.mxu0 0.0
        %2127 = vmatprep.subr.mxu0 0.0
        %2128 = vmatpush1.msra.mxu0 0.0
        %2129 = vmatprep.subr.mxu0 0.0
        %2130 = vmatpush1.msra.mxu0 0.0
        %2131 = vmatprep.subr.mxu0 0.0
        %2132 = vmatpush1.msra.mxu0 0.0
        %2133 = vmatprep.subr.mxu0 0.0
        %2134 = vmatpush1.msra.mxu0 0.0
        %2135 = vmatprep.mubr.f32.mxu0 0.0
        %2136 = vmatmul.mubr.f32.gmra.mrb[0].mxu0 %v1990
        %v2137 = vpop.f32.mrb[0].mxu0
        %v2138 = vadd.f32 0.0, %v2137
        %v2139 = vpop.f32.mrb[0].mxu0
        %v2140 = vadd.f32 0.0, %v2139
        %2141 = vdwg.mxu0
        %v2142 = vadd.f32 %v1968, %v2067
        %v2143 = vadd.f32 %v1969, %v2069
        %v2144 = vadd.f32 %v1970, %v2138
        %v2145 = vadd.f32 %v1971, %v2140
        %s2146 = scalar_lea.vmem %s1, 88
        %v2147 = vld [vmem:[%s2146] sm:$0xff]
        %2148 = vrot.lane.b32.xlu0 %v246, 102
        %v2149 = vpop.permute.xlu0 %2148
        %2150 = vrot.lane.b32.xlu0 %v255, 102
        %v2151 = vpop.permute.xlu0 %2150
        %2152 = vrot.lane.b32.xlu0 %v247, 102
        %v2153 = vpop.permute.xlu0 %2152
        %2154 = vrot.lane.b32.xlu0 %v256, 102
        %v2155 = vpop.permute.xlu0 %2154
        %2156 = vrot.lane.b32.xlu0 %v248, 102
        %v2157 = vpop.permute.xlu0 %2156
        %vm2158 = vcmask 834560
        %v2159 = vsel %vm2158, %v2149, %v2151
        %v2160 = vsel %vm2158, %v2151, %v2153
        %v2161 = vsel %vm2158, %v2153, %v2155
        %v2162 = vsel %vm2158, %v2155, %v2157
        %v2164 = vsel %vm272, %v2147, 0
        %v2166 = vsel %vm276, %v2159, 0
        %v2168 = vsel %vm276, %v2160, 0
        %v2170 = vsel %vm276, %v2161, 0
        %v2172 = vsel %vm276, %v2162, 0
        %2174 = vmatprep.subr.mxu0 %v2168
        %2175 = vmatpush1.msra.mxu0 %v2166
        %2176 = vmatprep.subr.mxu0 0.0
        %2177 = vmatpush1.msra.mxu0 0.0
        %2178 = vmatprep.subr.mxu0 0.0
        %2179 = vmatpush1.msra.mxu0 0.0
        %2180 = vmatprep.subr.mxu0 0.0
        %2181 = vmatpush1.msra.mxu0 0.0
        %2182 = vmatprep.subr.mxu0 0.0
        %2183 = vmatpush1.msra.mxu0 0.0
        %2184 = vmatprep.subr.mxu0 0.0
        %2185 = vmatpush1.msra.mxu0 0.0
        %2186 = vmatprep.subr.mxu0 0.0
        %2187 = vmatpush1.msra.mxu0 0.0
        %2188 = vmatprep.subr.mxu0 0.0
        %2189 = vmatpush1.msra.mxu0 0.0
        %2190 = vmatprep.subr.mxu0 0.0
        %2191 = vmatpush1.msra.mxu0 0.0
        %2192 = vmatprep.subr.mxu0 0.0
        %2193 = vmatpush1.msra.mxu0 0.0
        %2194 = vmatprep.subr.mxu0 0.0
        %2195 = vmatpush1.msra.mxu0 0.0
        %2196 = vmatprep.subr.mxu0 0.0
        %2197 = vmatpush1.msra.mxu0 0.0
        %2198 = vmatprep.subr.mxu0 0.0
        %2199 = vmatpush1.msra.mxu0 0.0
        %2200 = vmatprep.subr.mxu0 0.0
        %2201 = vmatpush1.msra.mxu0 0.0
        %2202 = vmatprep.subr.mxu0 0.0
        %2203 = vmatpush1.msra.mxu0 0.0
        %2204 = vmatprep.subr.mxu0 0.0
        %2205 = vmatpush1.msra.mxu0 0.0
        %2206 = vmatprep.subr.mxu0 0.0
        %2207 = vmatpush1.msra.mxu0 0.0
        %2208 = vmatprep.subr.mxu0 0.0
        %2209 = vmatpush1.msra.mxu0 0.0
        %2210 = vmatprep.subr.mxu0 0.0
        %2211 = vmatpush1.msra.mxu0 0.0
        %2212 = vmatprep.subr.mxu0 0.0
        %2213 = vmatpush1.msra.mxu0 0.0
        %2214 = vmatprep.subr.mxu0 0.0
        %2215 = vmatpush1.msra.mxu0 0.0
        %2216 = vmatprep.subr.mxu0 0.0
        %2217 = vmatpush1.msra.mxu0 0.0
        %2218 = vmatprep.subr.mxu0 0.0
        %2219 = vmatpush1.msra.mxu0 0.0
        %2220 = vmatprep.subr.mxu0 0.0
        %2221 = vmatpush1.msra.mxu0 0.0
        %2222 = vmatprep.subr.mxu0 0.0
        %2223 = vmatpush1.msra.mxu0 0.0
        %2224 = vmatprep.subr.mxu0 0.0
        %2225 = vmatpush1.msra.mxu0 0.0
        %2226 = vmatprep.subr.mxu0 0.0
        %2227 = vmatpush1.msra.mxu0 0.0
        %2228 = vmatprep.subr.mxu0 0.0
        %2229 = vmatpush1.msra.mxu0 0.0
        %2230 = vmatprep.subr.mxu0 0.0
        %2231 = vmatpush1.msra.mxu0 0.0
        %2232 = vmatprep.subr.mxu0 0.0
        %2233 = vmatpush1.msra.mxu0 0.0
        %2234 = vmatprep.subr.mxu0 0.0
        %2235 = vmatpush1.msra.mxu0 0.0
        %2236 = vmatprep.subr.mxu0 0.0
        %2237 = vmatpush1.msra.mxu0 0.0
        %2238 = vmatprep.mubr.f32.mxu0 0.0
        %2239 = vmatmul.mubr.f32.gmra.mrb[0].mxu0 %v2164
        %v2240 = vpop.f32.mrb[0].mxu0
        %v2241 = vadd.f32 0.0, %v2240
        %v2242 = vpop.f32.mrb[0].mxu0
        %v2243 = vadd.f32 0.0, %v2242
        %2244 = vdwg.mxu0
        %2245 = vmatprep.subr.mxu0 %v2172
        %2246 = vmatpush1.msra.mxu0 %v2170
        %2247 = vmatprep.subr.mxu0 0.0
        %2248 = vmatpush1.msra.mxu0 0.0
        %2249 = vmatprep.subr.mxu0 0.0
        %2250 = vmatpush1.msra.mxu0 0.0
        %2251 = vmatprep.subr.mxu0 0.0
        %2252 = vmatpush1.msra.mxu0 0.0
        %2253 = vmatprep.subr.mxu0 0.0
        %2254 = vmatpush1.msra.mxu0 0.0
        %2255 = vmatprep.subr.mxu0 0.0
        %2256 = vmatpush1.msra.mxu0 0.0
        %2257 = vmatprep.subr.mxu0 0.0
        %2258 = vmatpush1.msra.mxu0 0.0
        %2259 = vmatprep.subr.mxu0 0.0
        %2260 = vmatpush1.msra.mxu0 0.0
        %2261 = vmatprep.subr.mxu0 0.0
        %2262 = vmatpush1.msra.mxu0 0.0
        %2263 = vmatprep.subr.mxu0 0.0
        %2264 = vmatpush1.msra.mxu0 0.0
        %2265 = vmatprep.subr.mxu0 0.0
        %2266 = vmatpush1.msra.mxu0 0.0
        %2267 = vmatprep.subr.mxu0 0.0
        %2268 = vmatpush1.msra.mxu0 0.0
        %2269 = vmatprep.subr.mxu0 0.0
        %2270 = vmatpush1.msra.mxu0 0.0
        %2271 = vmatprep.subr.mxu0 0.0
        %2272 = vmatpush1.msra.mxu0 0.0
        %2273 = vmatprep.subr.mxu0 0.0
        %2274 = vmatpush1.msra.mxu0 0.0
        %2275 = vmatprep.subr.mxu0 0.0
        %2276 = vmatpush1.msra.mxu0 0.0
        %2277 = vmatprep.subr.mxu0 0.0
        %2278 = vmatpush1.msra.mxu0 0.0
        %2279 = vmatprep.subr.mxu0 0.0
        %2280 = vmatpush1.msra.mxu0 0.0
        %2281 = vmatprep.subr.mxu0 0.0
        %2282 = vmatpush1.msra.mxu0 0.0
        %2283 = vmatprep.subr.mxu0 0.0
        %2284 = vmatpush1.msra.mxu0 0.0
        %2285 = vmatprep.subr.mxu0 0.0
        %2286 = vmatpush1.msra.mxu0 0.0
        %2287 = vmatprep.subr.mxu0 0.0
        %2288 = vmatpush1.msra.mxu0 0.0
        %2289 = vmatprep.subr.mxu0 0.0
        %2290 = vmatpush1.msra.mxu0 0.0
        %2291 = vmatprep.subr.mxu0 0.0
        %2292 = vmatpush1.msra.mxu0 0.0
        %2293 = vmatprep.subr.mxu0 0.0
        %2294 = vmatpush1.msra.mxu0 0.0
        %2295 = vmatprep.subr.mxu0 0.0
        %2296 = vmatpush1.msra.mxu0 0.0
        %2297 = vmatprep.subr.mxu0 0.0
        %2298 = vmatpush1.msra.mxu0 0.0
        %2299 = vmatprep.subr.mxu0 0.0
        %2300 = vmatpush1.msra.mxu0 0.0
        %2301 = vmatprep.subr.mxu0 0.0
        %2302 = vmatpush1.msra.mxu0 0.0
        %2303 = vmatprep.subr.mxu0 0.0
        %2304 = vmatpush1.msra.mxu0 0.0
        %2305 = vmatprep.subr.mxu0 0.0
        %2306 = vmatpush1.msra.mxu0 0.0
        %2307 = vmatprep.subr.mxu0 0.0
        %2308 = vmatpush1.msra.mxu0 0.0
        %2309 = vmatprep.mubr.f32.mxu0 0.0
        %2310 = vmatmul.mubr.f32.gmra.mrb[0].mxu0 %v2164
        %v2311 = vpop.f32.mrb[0].mxu0
        %v2312 = vadd.f32 0.0, %v2311
        %v2313 = vpop.f32.mrb[0].mxu0
        %v2314 = vadd.f32 0.0, %v2313
        %2315 = vdwg.mxu0
        %v2316 = vadd.f32 %v2142, %v2241
        %v2317 = vadd.f32 %v2143, %v2243
        %v2318 = vadd.f32 %v2144, %v2312
        %v2319 = vadd.f32 %v2145, %v2314
        %s2320 = scalar_lea.vmem %s1, 96
        %v2321 = vld [vmem:[%s2320] sm:$0xff]
        %2322 = vrot.lane.b32.xlu0 %v246, 101
        %v2323 = vpop.permute.xlu0 %2322
        %2324 = vrot.lane.b32.xlu0 %v255, 101
        %v2325 = vpop.permute.xlu0 %2324
        %2326 = vrot.lane.b32.xlu0 %v247, 101
        %v2327 = vpop.permute.xlu0 %2326
        %2328 = vrot.lane.b32.xlu0 %v256, 101
        %v2329 = vpop.permute.xlu0 %2328
        %2330 = vrot.lane.b32.xlu0 %v248, 101
        %v2331 = vpop.permute.xlu0 %2330
        %vm2332 = vcmask 826368
        %v2333 = vsel %vm2332, %v2323, %v2325
        %v2334 = vsel %vm2332, %v2325, %v2327
        %v2335 = vsel %vm2332, %v2327, %v2329
        %v2336 = vsel %vm2332, %v2329, %v2331
        %v2338 = vsel %vm272, %v2321, 0
        %v2340 = vsel %vm276, %v2333, 0
        %v2342 = vsel %vm276, %v2334, 0
        %v2344 = vsel %vm276, %v2335, 0
        %v2346 = vsel %vm276, %v2336, 0
        %2348 = vmatprep.subr.mxu0 %v2342
        %2349 = vmatpush1.msra.mxu0 %v2340
        %2350 = vmatprep.subr.mxu0 0.0
        %2351 = vmatpush1.msra.mxu0 0.0
        %2352 = vmatprep.subr.mxu0 0.0
        %2353 = vmatpush1.msra.mxu0 0.0
        %2354 = vmatprep.subr.mxu0 0.0
        %2355 = vmatpush1.msra.mxu0 0.0
        %2356 = vmatprep.subr.mxu0 0.0
        %2357 = vmatpush1.msra.mxu0 0.0
        %2358 = vmatprep.subr.mxu0 0.0
        %2359 = vmatpush1.msra.mxu0 0.0
        %2360 = vmatprep.subr.mxu0 0.0
        %2361 = vmatpush1.msra.mxu0 0.0
        %2362 = vmatprep.subr.mxu0 0.0
        %2363 = vmatpush1.msra.mxu0 0.0
        %2364 = vmatprep.subr.mxu0 0.0
        %2365 = vmatpush1.msra.mxu0 0.0
        %2366 = vmatprep.subr.mxu0 0.0
        %2367 = vmatpush1.msra.mxu0 0.0
        %2368 = vmatprep.subr.mxu0 0.0
        %2369 = vmatpush1.msra.mxu0 0.0
        %2370 = vmatprep.subr.mxu0 0.0
        %2371 = vmatpush1.msra.mxu0 0.0
        %2372 = vmatprep.subr.mxu0 0.0
        %2373 = vmatpush1.msra.mxu0 0.0
        %2374 = vmatprep.subr.mxu0 0.0
        %2375 = vmatpush1.msra.mxu0 0.0
        %2376 = vmatprep.subr.mxu0 0.0
        %2377 = vmatpush1.msra.mxu0 0.0
        %2378 = vmatprep.subr.mxu0 0.0
        %2379 = vmatpush1.msra.mxu0 0.0
        %2380 = vmatprep.subr.mxu0 0.0
        %2381 = vmatpush1.msra.mxu0 0.0
        %2382 = vmatprep.subr.mxu0 0.0
        %2383 = vmatpush1.msra.mxu0 0.0
        %2384 = vmatprep.subr.mxu0 0.0
        %2385 = vmatpush1.msra.mxu0 0.0
        %2386 = vmatprep.subr.mxu0 0.0
        %2387 = vmatpush1.msra.mxu0 0.0
        %2388 = vmatprep.subr.mxu0 0.0
        %2389 = vmatpush1.msra.mxu0 0.0
        %2390 = vmatprep.subr.mxu0 0.0
        %2391 = vmatpush1.msra.mxu0 0.0
        %2392 = vmatprep.subr.mxu0 0.0
        %2393 = vmatpush1.msra.mxu0 0.0
        %2394 = vmatprep.subr.mxu0 0.0
        %2395 = vmatpush1.msra.mxu0 0.0
        %2396 = vmatprep.subr.mxu0 0.0
        %2397 = vmatpush1.msra.mxu0 0.0
        %2398 = vmatprep.subr.mxu0 0.0
        %2399 = vmatpush1.msra.mxu0 0.0
        %2400 = vmatprep.subr.mxu0 0.0
        %2401 = vmatpush1.msra.mxu0 0.0
        %2402 = vmatprep.subr.mxu0 0.0
        %2403 = vmatpush1.msra.mxu0 0.0
        %2404 = vmatprep.subr.mxu0 0.0
        %2405 = vmatpush1.msra.mxu0 0.0
        %2406 = vmatprep.subr.mxu0 0.0
        %2407 = vmatpush1.msra.mxu0 0.0
        %2408 = vmatprep.subr.mxu0 0.0
        %2409 = vmatpush1.msra.mxu0 0.0
        %2410 = vmatprep.subr.mxu0 0.0
        %2411 = vmatpush1.msra.mxu0 0.0
        %2412 = vmatprep.mubr.f32.mxu0 0.0
        %2413 = vmatmul.mubr.f32.gmra.mrb[0].mxu0 %v2338
        %v2414 = vpop.f32.mrb[0].mxu0
        %v2415 = vadd.f32 0.0, %v2414
        %v2416 = vpop.f32.mrb[0].mxu0
        %v2417 = vadd.f32 0.0, %v2416
        %2418 = vdwg.mxu0
        %2419 = vmatprep.subr.mxu0 %v2346
        %2420 = vmatpush1.msra.mxu0 %v2344
        %2421 = vmatprep.subr.mxu0 0.0
        %2422 = vmatpush1.msra.mxu0 0.0
        %2423 = vmatprep.subr.mxu0 0.0
        %2424 = vmatpush1.msra.mxu0 0.0
        %2425 = vmatprep.subr.mxu0 0.0
        %2426 = vmatpush1.msra.mxu0 0.0
        %2427 = vmatprep.subr.mxu0 0.0
        %2428 = vmatpush1.msra.mxu0 0.0
        %2429 = vmatprep.subr.mxu0 0.0
        %2430 = vmatpush1.msra.mxu0 0.0
        %2431 = vmatprep.subr.mxu0 0.0
        %2432 = vmatpush1.msra.mxu0 0.0
        %2433 = vmatprep.subr.mxu0 0.0
        %2434 = vmatpush1.msra.mxu0 0.0
        %2435 = vmatprep.subr.mxu0 0.0
        %2436 = vmatpush1.msra.mxu0 0.0
        %2437 = vmatprep.subr.mxu0 0.0
        %2438 = vmatpush1.msra.mxu0 0.0
        %2439 = vmatprep.subr.mxu0 0.0
        %2440 = vmatpush1.msra.mxu0 0.0
        %2441 = vmatprep.subr.mxu0 0.0
        %2442 = vmatpush1.msra.mxu0 0.0
        %2443 = vmatprep.subr.mxu0 0.0
        %2444 = vmatpush1.msra.mxu0 0.0
        %2445 = vmatprep.subr.mxu0 0.0
        %2446 = vmatpush1.msra.mxu0 0.0
        %2447 = vmatprep.subr.mxu0 0.0
        %2448 = vmatpush1.msra.mxu0 0.0
        %2449 = vmatprep.subr.mxu0 0.0
        %2450 = vmatpush1.msra.mxu0 0.0
        %2451 = vmatprep.subr.mxu0 0.0
        %2452 = vmatpush1.msra.mxu0 0.0
        %2453 = vmatprep.subr.mxu0 0.0
        %2454 = vmatpush1.msra.mxu0 0.0
        %2455 = vmatprep.subr.mxu0 0.0
        %2456 = vmatpush1.msra.mxu0 0.0
        %2457 = vmatprep.subr.mxu0 0.0
        %2458 = vmatpush1.msra.mxu0 0.0
        %2459 = vmatprep.subr.mxu0 0.0
        %2460 = vmatpush1.msra.mxu0 0.0
        %2461 = vmatprep.subr.mxu0 0.0
        %2462 = vmatpush1.msra.mxu0 0.0
        %2463 = vmatprep.subr.mxu0 0.0
        %2464 = vmatpush1.msra.mxu0 0.0
        %2465 = vmatprep.subr.mxu0 0.0
        %2466 = vmatpush1.msra.mxu0 0.0
        %2467 = vmatprep.subr.mxu0 0.0
        %2468 = vmatpush1.msra.mxu0 0.0
        %2469 = vmatprep.subr.mxu0 0.0
        %2470 = vmatpush1.msra.mxu0 0.0
        %2471 = vmatprep.subr.mxu0 0.0
        %2472 = vmatpush1.msra.mxu0 0.0
        %2473 = vmatprep.subr.mxu0 0.0
        %2474 = vmatpush1.msra.mxu0 0.0
        %2475 = vmatprep.subr.mxu0 0.0
        %2476 = vmatpush1.msra.mxu0 0.0
        %2477 = vmatprep.subr.mxu0 0.0
        %2478 = vmatpush1.msra.mxu0 0.0
        %2479 = vmatprep.subr.mxu0 0.0
        %2480 = vmatpush1.msra.mxu0 0.0
        %2481 = vmatprep.subr.mxu0 0.0
        %2482 = vmatpush1.msra.mxu0 0.0
        %2483 = vmatprep.mubr.f32.mxu0 0.0
        %2484 = vmatmul.mubr.f32.gmra.mrb[0].mxu0 %v2338
        %v2485 = vpop.f32.mrb[0].mxu0
        %v2486 = vadd.f32 0.0, %v2485
        %v2487 = vpop.f32.mrb[0].mxu0
        %v2488 = vadd.f32 0.0, %v2487
        %2489 = vdwg.mxu0
        %v2490 = vadd.f32 %v2316, %v2415
        %v2491 = vadd.f32 %v2317, %v2417
        %v2492 = vadd.f32 %v2318, %v2486
        %v2493 = vadd.f32 %v2319, %v2488
        %s2494 = scalar_lea.vmem %s1, 104
        %v2495 = vld [vmem:[%s2494] sm:$0xff]
        %2496 = vrot.lane.b32.xlu0 %v246, 100
        %v2497 = vpop.permute.xlu0 %2496
        %2498 = vrot.lane.b32.xlu0 %v255, 100
        %v2499 = vpop.permute.xlu0 %2498
        %2500 = vrot.lane.b32.xlu0 %v247, 100
        %v2501 = vpop.permute.xlu0 %2500
        %2502 = vrot.lane.b32.xlu0 %v256, 100
        %v2503 = vpop.permute.xlu0 %2502
        %2504 = vrot.lane.b32.xlu0 %v248, 100
        %v2505 = vpop.permute.xlu0 %2504
        %vm2506 = vcmask 818176
        %v2507 = vsel %vm2506, %v2497, %v2499
        %v2508 = vsel %vm2506, %v2499, %v2501
        %v2509 = vsel %vm2506, %v2501, %v2503
        %v2510 = vsel %vm2506, %v2503, %v2505
        %v2512 = vsel %vm272, %v2495, 0
        %v2514 = vsel %vm276, %v2507, 0
        %v2516 = vsel %vm276, %v2508, 0
        %v2518 = vsel %vm276, %v2509, 0
        %v2520 = vsel %vm276, %v2510, 0
        %2522 = vmatprep.subr.mxu0 %v2516
        %2523 = vmatpush1.msra.mxu0 %v2514
        %2524 = vmatprep.subr.mxu0 0.0
        %2525 = vmatpush1.msra.mxu0 0.0
        %2526 = vmatprep.subr.mxu0 0.0
        %2527 = vmatpush1.msra.mxu0 0.0
        %2528 = vmatprep.subr.mxu0 0.0
        %2529 = vmatpush1.msra.mxu0 0.0
        %2530 = vmatprep.subr.mxu0 0.0
        %2531 = vmatpush1.msra.mxu0 0.0
        %2532 = vmatprep.subr.mxu0 0.0
        %2533 = vmatpush1.msra.mxu0 0.0
        %2534 = vmatprep.subr.mxu0 0.0
        %2535 = vmatpush1.msra.mxu0 0.0
        %2536 = vmatprep.subr.mxu0 0.0
        %2537 = vmatpush1.msra.mxu0 0.0
        %2538 = vmatprep.subr.mxu0 0.0
        %2539 = vmatpush1.msra.mxu0 0.0
        %2540 = vmatprep.subr.mxu0 0.0
        %2541 = vmatpush1.msra.mxu0 0.0
        %2542 = vmatprep.subr.mxu0 0.0
        %2543 = vmatpush1.msra.mxu0 0.0
        %2544 = vmatprep.subr.mxu0 0.0
        %2545 = vmatpush1.msra.mxu0 0.0
        %2546 = vmatprep.subr.mxu0 0.0
        %2547 = vmatpush1.msra.mxu0 0.0
        %2548 = vmatprep.subr.mxu0 0.0
        %2549 = vmatpush1.msra.mxu0 0.0
        %2550 = vmatprep.subr.mxu0 0.0
        %2551 = vmatpush1.msra.mxu0 0.0
        %2552 = vmatprep.subr.mxu0 0.0
        %2553 = vmatpush1.msra.mxu0 0.0
        %2554 = vmatprep.subr.mxu0 0.0
        %2555 = vmatpush1.msra.mxu0 0.0
        %2556 = vmatprep.subr.mxu0 0.0
        %2557 = vmatpush1.msra.mxu0 0.0
        %2558 = vmatprep.subr.mxu0 0.0
        %2559 = vmatpush1.msra.mxu0 0.0
        %2560 = vmatprep.subr.mxu0 0.0
        %2561 = vmatpush1.msra.mxu0 0.0
        %2562 = vmatprep.subr.mxu0 0.0
        %2563 = vmatpush1.msra.mxu0 0.0
        %2564 = vmatprep.subr.mxu0 0.0
        %2565 = vmatpush1.msra.mxu0 0.0
        %2566 = vmatprep.subr.mxu0 0.0
        %2567 = vmatpush1.msra.mxu0 0.0
        %2568 = vmatprep.subr.mxu0 0.0
        %2569 = vmatpush1.msra.mxu0 0.0
        %2570 = vmatprep.subr.mxu0 0.0
        %2571 = vmatpush1.msra.mxu0 0.0
        %2572 = vmatprep.subr.mxu0 0.0
        %2573 = vmatpush1.msra.mxu0 0.0
        %2574 = vmatprep.subr.mxu0 0.0
        %2575 = vmatpush1.msra.mxu0 0.0
        %2576 = vmatprep.subr.mxu0 0.0
        %2577 = vmatpush1.msra.mxu0 0.0
        %2578 = vmatprep.subr.mxu0 0.0
        %2579 = vmatpush1.msra.mxu0 0.0
        %2580 = vmatprep.subr.mxu0 0.0
        %2581 = vmatpush1.msra.mxu0 0.0
        %2582 = vmatprep.subr.mxu0 0.0
        %2583 = vmatpush1.msra.mxu0 0.0
        %2584 = vmatprep.subr.mxu0 0.0
        %2585 = vmatpush1.msra.mxu0 0.0
        %2586 = vmatprep.mubr.f32.mxu0 0.0
        %2587 = vmatmul.mubr.f32.gmra.mrb[0].mxu0 %v2512
        %v2588 = vpop.f32.mrb[0].mxu0
        %v2589 = vadd.f32 0.0, %v2588
        %v2590 = vpop.f32.mrb[0].mxu0
        %v2591 = vadd.f32 0.0, %v2590
        %2592 = vdwg.mxu0
        %2593 = vmatprep.subr.mxu0 %v2520
        %2594 = vmatpush1.msra.mxu0 %v2518
        %2595 = vmatprep.subr.mxu0 0.0
        %2596 = vmatpush1.msra.mxu0 0.0
        %2597 = vmatprep.subr.mxu0 0.0
        %2598 = vmatpush1.msra.mxu0 0.0
        %2599 = vmatprep.subr.mxu0 0.0
        %2600 = vmatpush1.msra.mxu0 0.0
        %2601 = vmatprep.subr.mxu0 0.0
        %2602 = vmatpush1.msra.mxu0 0.0
        %2603 = vmatprep.subr.mxu0 0.0
        %2604 = vmatpush1.msra.mxu0 0.0
        %2605 = vmatprep.subr.mxu0 0.0
        %2606 = vmatpush1.msra.mxu0 0.0
        %2607 = vmatprep.subr.mxu0 0.0
        %2608 = vmatpush1.msra.mxu0 0.0
        %2609 = vmatprep.subr.mxu0 0.0
        %2610 = vmatpush1.msra.mxu0 0.0
        %2611 = vmatprep.subr.mxu0 0.0
        %2612 = vmatpush1.msra.mxu0 0.0
        %2613 = vmatprep.subr.mxu0 0.0
        %2614 = vmatpush1.msra.mxu0 0.0
        %2615 = vmatprep.subr.mxu0 0.0
        %2616 = vmatpush1.msra.mxu0 0.0
        %2617 = vmatprep.subr.mxu0 0.0
        %2618 = vmatpush1.msra.mxu0 0.0
        %2619 = vmatprep.subr.mxu0 0.0
        %2620 = vmatpush1.msra.mxu0 0.0
        %2621 = vmatprep.subr.mxu0 0.0
        %2622 = vmatpush1.msra.mxu0 0.0
        %2623 = vmatprep.subr.mxu0 0.0
        %2624 = vmatpush1.msra.mxu0 0.0
        %2625 = vmatprep.subr.mxu0 0.0
        %2626 = vmatpush1.msra.mxu0 0.0
        %2627 = vmatprep.subr.mxu0 0.0
        %2628 = vmatpush1.msra.mxu0 0.0
        %2629 = vmatprep.subr.mxu0 0.0
        %2630 = vmatpush1.msra.mxu0 0.0
        %2631 = vmatprep.subr.mxu0 0.0
        %2632 = vmatpush1.msra.mxu0 0.0
        %2633 = vmatprep.subr.mxu0 0.0
        %2634 = vmatpush1.msra.mxu0 0.0
        %2635 = vmatprep.subr.mxu0 0.0
        %2636 = vmatpush1.msra.mxu0 0.0
        %2637 = vmatprep.subr.mxu0 0.0
        %2638 = vmatpush1.msra.mxu0 0.0
        %2639 = vmatprep.subr.mxu0 0.0
        %2640 = vmatpush1.msra.mxu0 0.0
        %2641 = vmatprep.subr.mxu0 0.0
        %2642 = vmatpush1.msra.mxu0 0.0
        %2643 = vmatprep.subr.mxu0 0.0
        %2644 = vmatpush1.msra.mxu0 0.0
        %2645 = vmatprep.subr.mxu0 0.0
        %2646 = vmatpush1.msra.mxu0 0.0
        %2647 = vmatprep.subr.mxu0 0.0
        %2648 = vmatpush1.msra.mxu0 0.0
        %2649 = vmatprep.subr.mxu0 0.0
        %2650 = vmatpush1.msra.mxu0 0.0
        %2651 = vmatprep.subr.mxu0 0.0
        %2652 = vmatpush1.msra.mxu0 0.0
        %2653 = vmatprep.subr.mxu0 0.0
        %2654 = vmatpush1.msra.mxu0 0.0
        %2655 = vmatprep.subr.mxu0 0.0
        %2656 = vmatpush1.msra.mxu0 0.0
        %2657 = vmatprep.mubr.f32.mxu0 0.0
        %2658 = vmatmul.mubr.f32.gmra.mrb[0].mxu0 %v2512
        %v2659 = vpop.f32.mrb[0].mxu0
        %v2660 = vadd.f32 0.0, %v2659
        %v2661 = vpop.f32.mrb[0].mxu0
        %v2662 = vadd.f32 0.0, %v2661
        %2663 = vdwg.mxu0
        %v2664 = vadd.f32 %v2490, %v2589
        %v2665 = vadd.f32 %v2491, %v2591
        %v2666 = vadd.f32 %v2492, %v2660
        %v2667 = vadd.f32 %v2493, %v2662
        %s2668 = scalar_lea.vmem %s1, 112
        %v2669 = vld [vmem:[%s2668] sm:$0xff]
        %2670 = vrot.lane.b32.xlu0 %v246, 84
        %v2671 = vpop.permute.xlu0 %2670
        %2672 = vrot.lane.b32.xlu0 %v255, 84
        %v2673 = vpop.permute.xlu0 %2672
        %2674 = vrot.lane.b32.xlu0 %v247, 84
        %v2675 = vpop.permute.xlu0 %2674
        %2676 = vrot.lane.b32.xlu0 %v256, 84
        %v2677 = vpop.permute.xlu0 %2676
        %2678 = vrot.lane.b32.xlu0 %v248, 84
        %v2679 = vpop.permute.xlu0 %2678
        %vm2680 = vcmask 687104
        %v2681 = vsel %vm2680, %v2671, %v2673
        %v2682 = vsel %vm2680, %v2673, %v2675
        %v2683 = vsel %vm2680, %v2675, %v2677
        %v2684 = vsel %vm2680, %v2677, %v2679
        %v2686 = vsel %vm272, %v2669, 0
        %v2688 = vsel %vm276, %v2681, 0
        %v2690 = vsel %vm276, %v2682, 0
        %v2692 = vsel %vm276, %v2683, 0
        %v2694 = vsel %vm276, %v2684, 0
        %2696 = vmatprep.subr.mxu0 %v2690
        %2697 = vmatpush1.msra.mxu0 %v2688
        %2698 = vmatprep.subr.mxu0 0.0
        %2699 = vmatpush1.msra.mxu0 0.0
        %2700 = vmatprep.subr.mxu0 0.0
        %2701 = vmatpush1.msra.mxu0 0.0
        %2702 = vmatprep.subr.mxu0 0.0
        %2703 = vmatpush1.msra.mxu0 0.0
        %2704 = vmatprep.subr.mxu0 0.0
        %2705 = vmatpush1.msra.mxu0 0.0
        %2706 = vmatprep.subr.mxu0 0.0
        %2707 = vmatpush1.msra.mxu0 0.0
        %2708 = vmatprep.subr.mxu0 0.0
        %2709 = vmatpush1.msra.mxu0 0.0
        %2710 = vmatprep.subr.mxu0 0.0
        %2711 = vmatpush1.msra.mxu0 0.0
        %2712 = vmatprep.subr.mxu0 0.0
        %2713 = vmatpush1.msra.mxu0 0.0
        %2714 = vmatprep.subr.mxu0 0.0
        %2715 = vmatpush1.msra.mxu0 0.0
        %2716 = vmatprep.subr.mxu0 0.0
        %2717 = vmatpush1.msra.mxu0 0.0
        %2718 = vmatprep.subr.mxu0 0.0
        %2719 = vmatpush1.msra.mxu0 0.0
        %2720 = vmatprep.subr.mxu0 0.0
        %2721 = vmatpush1.msra.mxu0 0.0
        %2722 = vmatprep.subr.mxu0 0.0
        %2723 = vmatpush1.msra.mxu0 0.0
        %2724 = vmatprep.subr.mxu0 0.0
        %2725 = vmatpush1.msra.mxu0 0.0
        %2726 = vmatprep.subr.mxu0 0.0
        %2727 = vmatpush1.msra.mxu0 0.0
        %2728 = vmatprep.subr.mxu0 0.0
        %2729 = vmatpush1.msra.mxu0 0.0
        %2730 = vmatprep.subr.mxu0 0.0
        %2731 = vmatpush1.msra.mxu0 0.0
        %2732 = vmatprep.subr.mxu0 0.0
        %2733 = vmatpush1.msra.mxu0 0.0
        %2734 = vmatprep.subr.mxu0 0.0
        %2735 = vmatpush1.msra.mxu0 0.0
        %2736 = vmatprep.subr.mxu0 0.0
        %2737 = vmatpush1.msra.mxu0 0.0
        %2738 = vmatprep.subr.mxu0 0.0
        %2739 = vmatpush1.msra.mxu0 0.0
        %2740 = vmatprep.subr.mxu0 0.0
        %2741 = vmatpush1.msra.mxu0 0.0
        %2742 = vmatprep.subr.mxu0 0.0
        %2743 = vmatpush1.msra.mxu0 0.0
        %2744 = vmatprep.subr.mxu0 0.0
        %2745 = vmatpush1.msra.mxu0 0.0
        %2746 = vmatprep.subr.mxu0 0.0
        %2747 = vmatpush1.msra.mxu0 0.0
        %2748 = vmatprep.subr.mxu0 0.0
        %2749 = vmatpush1.msra.mxu0 0.0
        %2750 = vmatprep.subr.mxu0 0.0
        %2751 = vmatpush1.msra.mxu0 0.0
        %2752 = vmatprep.subr.mxu0 0.0
        %2753 = vmatpush1.msra.mxu0 0.0
        %2754 = vmatprep.subr.mxu0 0.0
        %2755 = vmatpush1.msra.mxu0 0.0
        %2756 = vmatprep.subr.mxu0 0.0
        %2757 = vmatpush1.msra.mxu0 0.0
        %2758 = vmatprep.subr.mxu0 0.0
        %2759 = vmatpush1.msra.mxu0 0.0
        %2760 = vmatprep.mubr.f32.mxu0 0.0
        %2761 = vmatmul.mubr.f32.gmra.mrb[0].mxu0 %v2686
        %v2762 = vpop.f32.mrb[0].mxu0
        %v2763 = vadd.f32 0.0, %v2762
        %v2764 = vpop.f32.mrb[0].mxu0
        %v2765 = vadd.f32 0.0, %v2764
        %2766 = vdwg.mxu0
        %2767 = vmatprep.subr.mxu0 %v2694
        %2768 = vmatpush1.msra.mxu0 %v2692
        %2769 = vmatprep.subr.mxu0 0.0
        %2770 = vmatpush1.msra.mxu0 0.0
        %2771 = vmatprep.subr.mxu0 0.0
        %2772 = vmatpush1.msra.mxu0 0.0
        %2773 = vmatprep.subr.mxu0 0.0
        %2774 = vmatpush1.msra.mxu0 0.0
        %2775 = vmatprep.subr.mxu0 0.0
        %2776 = vmatpush1.msra.mxu0 0.0
        %2777 = vmatprep.subr.mxu0 0.0
        %2778 = vmatpush1.msra.mxu0 0.0
        %2779 = vmatprep.subr.mxu0 0.0
        %2780 = vmatpush1.msra.mxu0 0.0
        %2781 = vmatprep.subr.mxu0 0.0
        %2782 = vmatpush1.msra.mxu0 0.0
        %2783 = vmatprep.subr.mxu0 0.0
        %2784 = vmatpush1.msra.mxu0 0.0
        %2785 = vmatprep.subr.mxu0 0.0
        %2786 = vmatpush1.msra.mxu0 0.0
        %2787 = vmatprep.subr.mxu0 0.0
        %2788 = vmatpush1.msra.mxu0 0.0
        %2789 = vmatprep.subr.mxu0 0.0
        %2790 = vmatpush1.msra.mxu0 0.0
        %2791 = vmatprep.subr.mxu0 0.0
        %2792 = vmatpush1.msra.mxu0 0.0
        %2793 = vmatprep.subr.mxu0 0.0
        %2794 = vmatpush1.msra.mxu0 0.0
        %2795 = vmatprep.subr.mxu0 0.0
        %2796 = vmatpush1.msra.mxu0 0.0
        %2797 = vmatprep.subr.mxu0 0.0
        %2798 = vmatpush1.msra.mxu0 0.0
        %2799 = vmatprep.subr.mxu0 0.0
        %2800 = vmatpush1.msra.mxu0 0.0
        %2801 = vmatprep.subr.mxu0 0.0
        %2802 = vmatpush1.msra.mxu0 0.0
        %2803 = vmatprep.subr.mxu0 0.0
        %2804 = vmatpush1.msra.mxu0 0.0
        %2805 = vmatprep.subr.mxu0 0.0
        %2806 = vmatpush1.msra.mxu0 0.0
        %2807 = vmatprep.subr.mxu0 0.0
        %2808 = vmatpush1.msra.mxu0 0.0
        %2809 = vmatprep.subr.mxu0 0.0
        %2810 = vmatpush1.msra.mxu0 0.0
        %2811 = vmatprep.subr.mxu0 0.0
        %2812 = vmatpush1.msra.mxu0 0.0
        %2813 = vmatprep.subr.mxu0 0.0
        %2814 = vmatpush1.msra.mxu0 0.0
        %2815 = vmatprep.subr.mxu0 0.0
        %2816 = vmatpush1.msra.mxu0 0.0
        %2817 = vmatprep.subr.mxu0 0.0
        %2818 = vmatpush1.msra.mxu0 0.0
        %2819 = vmatprep.subr.mxu0 0.0
        %2820 = vmatpush1.msra.mxu0 0.0
        %2821 = vmatprep.subr.mxu0 0.0
        %2822 = vmatpush1.msra.mxu0 0.0
        %2823 = vmatprep.subr.mxu0 0.0
        %2824 = vmatpush1.msra.mxu0 0.0
        %2825 = vmatprep.subr.mxu0 0.0
        %2826 = vmatpush1.msra.mxu0 0.0
        %2827 = vmatprep.subr.mxu0 0.0
        %2828 = vmatpush1.msra.mxu0 0.0
        %2829 = vmatprep.subr.mxu0 0.0
        %2830 = vmatpush1.msra.mxu0 0.0
        %2831 = vmatprep.mubr.f32.mxu0 0.0
        %2832 = vmatmul.mubr.f32.gmra.mrb[0].mxu0 %v2686
        %v2833 = vpop.f32.mrb[0].mxu0
        %v2834 = vadd.f32 0.0, %v2833
        %v2835 = vpop.f32.mrb[0].mxu0
        %v2836 = vadd.f32 0.0, %v2835
        %2837 = vdwg.mxu0
        %v2838 = vadd.f32 %v2664, %v2763
        %v2839 = vadd.f32 %v2665, %v2765
        %v2840 = vadd.f32 %v2666, %v2834
        %v2841 = vadd.f32 %v2667, %v2836
        %s2842 = scalar_lea.vmem %s1, 120
        %v2843 = vld [vmem:[%s2842] sm:$0xff]
        %2844 = vrot.lane.b32.xlu0 %v246, 83
        %v2845 = vpop.permute.xlu0 %2844
        %2846 = vrot.lane.b32.xlu0 %v255, 83
        %v2847 = vpop.permute.xlu0 %2846
        %2848 = vrot.lane.b32.xlu0 %v247, 83
        %v2849 = vpop.permute.xlu0 %2848
        %2850 = vrot.lane.b32.xlu0 %v256, 83
        %v2851 = vpop.permute.xlu0 %2850
        %2852 = vrot.lane.b32.xlu0 %v248, 83
        %v2853 = vpop.permute.xlu0 %2852
        %vm2854 = vcmask 678912
        %v2855 = vsel %vm2854, %v2845, %v2847
        %v2856 = vsel %vm2854, %v2847, %v2849
        %v2857 = vsel %vm2854, %v2849, %v2851
        %v2858 = vsel %vm2854, %v2851, %v2853
        %v2860 = vsel %vm272, %v2843, 0
        %v2862 = vsel %vm276, %v2855, 0
        %v2864 = vsel %vm276, %v2856, 0
        %v2866 = vsel %vm276, %v2857, 0
        %v2868 = vsel %vm276, %v2858, 0
        %2870 = vmatprep.subr.mxu0 %v2864
        %2871 = vmatpush1.msra.mxu0 %v2862
        %2872 = vmatprep.subr.mxu0 0.0
        %2873 = vmatpush1.msra.mxu0 0.0
        %2874 = vmatprep.subr.mxu0 0.0
        %2875 = vmatpush1.msra.mxu0 0.0
        %2876 = vmatprep.subr.mxu0 0.0
        %2877 = vmatpush1.msra.mxu0 0.0
        %2878 = vmatprep.subr.mxu0 0.0
        %2879 = vmatpush1.msra.mxu0 0.0
        %2880 = vmatprep.subr.mxu0 0.0
        %2881 = vmatpush1.msra.mxu0 0.0
        %2882 = vmatprep.subr.mxu0 0.0
        %2883 = vmatpush1.msra.mxu0 0.0
        %2884 = vmatprep.subr.mxu0 0.0
        %2885 = vmatpush1.msra.mxu0 0.0
        %2886 = vmatprep.subr.mxu0 0.0
        %2887 = vmatpush1.msra.mxu0 0.0
        %2888 = vmatprep.subr.mxu0 0.0
        %2889 = vmatpush1.msra.mxu0 0.0
        %2890 = vmatprep.subr.mxu0 0.0
        %2891 = vmatpush1.msra.mxu0 0.0
        %2892 = vmatprep.subr.mxu0 0.0
        %2893 = vmatpush1.msra.mxu0 0.0
        %2894 = vmatprep.subr.mxu0 0.0
        %2895 = vmatpush1.msra.mxu0 0.0
        %2896 = vmatprep.subr.mxu0 0.0
        %2897 = vmatpush1.msra.mxu0 0.0
        %2898 = vmatprep.subr.mxu0 0.0
        %2899 = vmatpush1.msra.mxu0 0.0
        %2900 = vmatprep.subr.mxu0 0.0
        %2901 = vmatpush1.msra.mxu0 0.0
        %2902 = vmatprep.subr.mxu0 0.0
        %2903 = vmatpush1.msra.mxu0 0.0
        %2904 = vmatprep.subr.mxu0 0.0
        %2905 = vmatpush1.msra.mxu0 0.0
        %2906 = vmatprep.subr.mxu0 0.0
        %2907 = vmatpush1.msra.mxu0 0.0
        %2908 = vmatprep.subr.mxu0 0.0
        %2909 = vmatpush1.msra.mxu0 0.0
        %2910 = vmatprep.subr.mxu0 0.0
        %2911 = vmatpush1.msra.mxu0 0.0
        %2912 = vmatprep.subr.mxu0 0.0
        %2913 = vmatpush1.msra.mxu0 0.0
        %2914 = vmatprep.subr.mxu0 0.0
        %2915 = vmatpush1.msra.mxu0 0.0
        %2916 = vmatprep.subr.mxu0 0.0
        %2917 = vmatpush1.msra.mxu0 0.0
        %2918 = vmatprep.subr.mxu0 0.0
        %2919 = vmatpush1.msra.mxu0 0.0
        %2920 = vmatprep.subr.mxu0 0.0
        %2921 = vmatpush1.msra.mxu0 0.0
        %2922 = vmatprep.subr.mxu0 0.0
        %2923 = vmatpush1.msra.mxu0 0.0
        %2924 = vmatprep.subr.mxu0 0.0
        %2925 = vmatpush1.msra.mxu0 0.0
        %2926 = vmatprep.subr.mxu0 0.0
        %2927 = vmatpush1.msra.mxu0 0.0
        %2928 = vmatprep.subr.mxu0 0.0
        %2929 = vmatpush1.msra.mxu0 0.0
        %2930 = vmatprep.subr.mxu0 0.0
        %2931 = vmatpush1.msra.mxu0 0.0
        %2932 = vmatprep.subr.mxu0 0.0
        %2933 = vmatpush1.msra.mxu0 0.0
        %2934 = vmatprep.mubr.f32.mxu0 0.0
        %2935 = vmatmul.mubr.f32.gmra.mrb[0].mxu0 %v2860
        %v2936 = vpop.f32.mrb[0].mxu0
        %v2937 = vadd.f32 0.0, %v2936
        %v2938 = vpop.f32.mrb[0].mxu0
        %v2939 = vadd.f32 0.0, %v2938
        %2940 = vdwg.mxu0
        %2941 = vmatprep.subr.mxu0 %v2868
        %2942 = vmatpush1.msra.mxu0 %v2866
        %2943 = vmatprep.subr.mxu0 0.0
        %2944 = vmatpush1.msra.mxu0 0.0
        %2945 = vmatprep.subr.mxu0 0.0
        %2946 = vmatpush1.msra.mxu0 0.0
        %2947 = vmatprep.subr.mxu0 0.0
        %2948 = vmatpush1.msra.mxu0 0.0
        %2949 = vmatprep.subr.mxu0 0.0
        %2950 = vmatpush1.msra.mxu0 0.0
        %2951 = vmatprep.subr.mxu0 0.0
        %2952 = vmatpush1.msra.mxu0 0.0
        %2953 = vmatprep.subr.mxu0 0.0
        %2954 = vmatpush1.msra.mxu0 0.0
        %2955 = vmatprep.subr.mxu0 0.0
        %2956 = vmatpush1.msra.mxu0 0.0
        %2957 = vmatprep.subr.mxu0 0.0
        %2958 = vmatpush1.msra.mxu0 0.0
        %2959 = vmatprep.subr.mxu0 0.0
        %2960 = vmatpush1.msra.mxu0 0.0
        %2961 = vmatprep.subr.mxu0 0.0
        %2962 = vmatpush1.msra.mxu0 0.0
        %2963 = vmatprep.subr.mxu0 0.0
        %2964 = vmatpush1.msra.mxu0 0.0
        %2965 = vmatprep.subr.mxu0 0.0
        %2966 = vmatpush1.msra.mxu0 0.0
        %2967 = vmatprep.subr.mxu0 0.0
        %2968 = vmatpush1.msra.mxu0 0.0
        %2969 = vmatprep.subr.mxu0 0.0
        %2970 = vmatpush1.msra.mxu0 0.0
        %2971 = vmatprep.subr.mxu0 0.0
        %2972 = vmatpush1.msra.mxu0 0.0
        %2973 = vmatprep.subr.mxu0 0.0
        %2974 = vmatpush1.msra.mxu0 0.0
        %2975 = vmatprep.subr.mxu0 0.0
        %2976 = vmatpush1.msra.mxu0 0.0
        %2977 = vmatprep.subr.mxu0 0.0
        %2978 = vmatpush1.msra.mxu0 0.0
        %2979 = vmatprep.subr.mxu0 0.0
        %2980 = vmatpush1.msra.mxu0 0.0
        %2981 = vmatprep.subr.mxu0 0.0
        %2982 = vmatpush1.msra.mxu0 0.0
        %2983 = vmatprep.subr.mxu0 0.0
        %2984 = vmatpush1.msra.mxu0 0.0
        %2985 = vmatprep.subr.mxu0 0.0
        %2986 = vmatpush1.msra.mxu0 0.0
        %2987 = vmatprep.subr.mxu0 0.0
        %2988 = vmatpush1.msra.mxu0 0.0
        %2989 = vmatprep.subr.mxu0 0.0
        %2990 = vmatpush1.msra.mxu0 0.0
        %2991 = vmatprep.subr.mxu0 0.0
        %2992 = vmatpush1.msra.mxu0 0.0
        %2993 = vmatprep.subr.mxu0 0.0
        %2994 = vmatpush1.msra.mxu0 0.0
        %2995 = vmatprep.subr.mxu0 0.0
        %2996 = vmatpush1.msra.mxu0 0.0
        %2997 = vmatprep.subr.mxu0 0.0
        %2998 = vmatpush1.msra.mxu0 0.0
        %2999 = vmatprep.subr.mxu0 0.0
        %3000 = vmatpush1.msra.mxu0 0.0
        %3001 = vmatprep.subr.mxu0 0.0
        %3002 = vmatpush1.msra.mxu0 0.0
        %3003 = vmatprep.subr.mxu0 0.0
        %3004 = vmatpush1.msra.mxu0 0.0
        %3005 = vmatprep.mubr.f32.mxu0 0.0
        %3006 = vmatmul.mubr.f32.gmra.mrb[0].mxu0 %v2860
        %v3007 = vpop.f32.mrb[0].mxu0
        %v3008 = vadd.f32 0.0, %v3007
        %v3009 = vpop.f32.mrb[0].mxu0
        %v3010 = vadd.f32 0.0, %v3009
        %3011 = vdwg.mxu0
        %v3012 = vadd.f32 %v2838, %v2937
        %v3013 = vadd.f32 %v2839, %v2939
        %v3014 = vadd.f32 %v2840, %v3008
        %v3015 = vadd.f32 %v2841, %v3010
        %s3016 = scalar_lea.vmem %s1, 128
        %v3017 = vld [vmem:[%s3016] sm:$0xff]
        %3018 = vrot.lane.b32.xlu0 %v246, 82
        %v3019 = vpop.permute.xlu0 %3018
        %3020 = vrot.lane.b32.xlu0 %v255, 82
        %v3021 = vpop.permute.xlu0 %3020
        %3022 = vrot.lane.b32.xlu0 %v247, 82
        %v3023 = vpop.permute.xlu0 %3022
        %3024 = vrot.lane.b32.xlu0 %v256, 82
        %v3025 = vpop.permute.xlu0 %3024
        %3026 = vrot.lane.b32.xlu0 %v248, 82
        %v3027 = vpop.permute.xlu0 %3026
        %vm3028 = vcmask 670720
        %v3029 = vsel %vm3028, %v3019, %v3021
        %v3030 = vsel %vm3028, %v3021, %v3023
        %v3031 = vsel %vm3028, %v3023, %v3025
        %v3032 = vsel %vm3028, %v3025, %v3027
        %v3034 = vsel %vm272, %v3017, 0
        %v3036 = vsel %vm276, %v3029, 0
        %v3038 = vsel %vm276, %v3030, 0
        %v3040 = vsel %vm276, %v3031, 0
        %v3042 = vsel %vm276, %v3032, 0
        %3044 = vmatprep.subr.mxu0 %v3038
        %3045 = vmatpush1.msra.mxu0 %v3036
        %3046 = vmatprep.subr.mxu0 0.0
        %3047 = vmatpush1.msra.mxu0 0.0
        %3048 = vmatprep.subr.mxu0 0.0
        %3049 = vmatpush1.msra.mxu0 0.0
        %3050 = vmatprep.subr.mxu0 0.0
        %3051 = vmatpush1.msra.mxu0 0.0
        %3052 = vmatprep.subr.mxu0 0.0
        %3053 = vmatpush1.msra.mxu0 0.0
        %3054 = vmatprep.subr.mxu0 0.0
        %3055 = vmatpush1.msra.mxu0 0.0
        %3056 = vmatprep.subr.mxu0 0.0
        %3057 = vmatpush1.msra.mxu0 0.0
        %3058 = vmatprep.subr.mxu0 0.0
        %3059 = vmatpush1.msra.mxu0 0.0
        %3060 = vmatprep.subr.mxu0 0.0
        %3061 = vmatpush1.msra.mxu0 0.0
        %3062 = vmatprep.subr.mxu0 0.0
        %3063 = vmatpush1.msra.mxu0 0.0
        %3064 = vmatprep.subr.mxu0 0.0
        %3065 = vmatpush1.msra.mxu0 0.0
        %3066 = vmatprep.subr.mxu0 0.0
        %3067 = vmatpush1.msra.mxu0 0.0
        %3068 = vmatprep.subr.mxu0 0.0
        %3069 = vmatpush1.msra.mxu0 0.0
        %3070 = vmatprep.subr.mxu0 0.0
        %3071 = vmatpush1.msra.mxu0 0.0
        %3072 = vmatprep.subr.mxu0 0.0
        %3073 = vmatpush1.msra.mxu0 0.0
        %3074 = vmatprep.subr.mxu0 0.0
        %3075 = vmatpush1.msra.mxu0 0.0
        %3076 = vmatprep.subr.mxu0 0.0
        %3077 = vmatpush1.msra.mxu0 0.0
        %3078 = vmatprep.subr.mxu0 0.0
        %3079 = vmatpush1.msra.mxu0 0.0
        %3080 = vmatprep.subr.mxu0 0.0
        %3081 = vmatpush1.msra.mxu0 0.0
        %3082 = vmatprep.subr.mxu0 0.0
        %3083 = vmatpush1.msra.mxu0 0.0
        %3084 = vmatprep.subr.mxu0 0.0
        %3085 = vmatpush1.msra.mxu0 0.0
        %3086 = vmatprep.subr.mxu0 0.0
        %3087 = vmatpush1.msra.mxu0 0.0
        %3088 = vmatprep.subr.mxu0 0.0
        %3089 = vmatpush1.msra.mxu0 0.0
        %3090 = vmatprep.subr.mxu0 0.0
        %3091 = vmatpush1.msra.mxu0 0.0
        %3092 = vmatprep.subr.mxu0 0.0
        %3093 = vmatpush1.msra.mxu0 0.0
        %3094 = vmatprep.subr.mxu0 0.0
        %3095 = vmatpush1.msra.mxu0 0.0
        %3096 = vmatprep.subr.mxu0 0.0
        %3097 = vmatpush1.msra.mxu0 0.0
        %3098 = vmatprep.subr.mxu0 0.0
        %3099 = vmatpush1.msra.mxu0 0.0
        %3100 = vmatprep.subr.mxu0 0.0
        %3101 = vmatpush1.msra.mxu0 0.0
        %3102 = vmatprep.subr.mxu0 0.0
        %3103 = vmatpush1.msra.mxu0 0.0
        %3104 = vmatprep.subr.mxu0 0.0
        %3105 = vmatpush1.msra.mxu0 0.0
        %3106 = vmatprep.subr.mxu0 0.0
        %3107 = vmatpush1.msra.mxu0 0.0
        %3108 = vmatprep.mubr.f32.mxu0 0.0
        %3109 = vmatmul.mubr.f32.gmra.mrb[0].mxu0 %v3034
        %v3110 = vpop.f32.mrb[0].mxu0
        %v3111 = vadd.f32 0.0, %v3110
        %v3112 = vpop.f32.mrb[0].mxu0
        %v3113 = vadd.f32 0.0, %v3112
        %3114 = vdwg.mxu0
        %3115 = vmatprep.subr.mxu0 %v3042
        %3116 = vmatpush1.msra.mxu0 %v3040
        %3117 = vmatprep.subr.mxu0 0.0
        %3118 = vmatpush1.msra.mxu0 0.0
        %3119 = vmatprep.subr.mxu0 0.0
        %3120 = vmatpush1.msra.mxu0 0.0
        %3121 = vmatprep.subr.mxu0 0.0
        %3122 = vmatpush1.msra.mxu0 0.0
        %3123 = vmatprep.subr.mxu0 0.0
        %3124 = vmatpush1.msra.mxu0 0.0
        %3125 = vmatprep.subr.mxu0 0.0
        %3126 = vmatpush1.msra.mxu0 0.0
        %3127 = vmatprep.subr.mxu0 0.0
        %3128 = vmatpush1.msra.mxu0 0.0
        %3129 = vmatprep.subr.mxu0 0.0
        %3130 = vmatpush1.msra.mxu0 0.0
        %3131 = vmatprep.subr.mxu0 0.0
        %3132 = vmatpush1.msra.mxu0 0.0
        %3133 = vmatprep.subr.mxu0 0.0
        %3134 = vmatpush1.msra.mxu0 0.0
        %3135 = vmatprep.subr.mxu0 0.0
        %3136 = vmatpush1.msra.mxu0 0.0
        %3137 = vmatprep.subr.mxu0 0.0
        %3138 = vmatpush1.msra.mxu0 0.0
        %3139 = vmatprep.subr.mxu0 0.0
        %3140 = vmatpush1.msra.mxu0 0.0
        %3141 = vmatprep.subr.mxu0 0.0
        %3142 = vmatpush1.msra.mxu0 0.0
        %3143 = vmatprep.subr.mxu0 0.0
        %3144 = vmatpush1.msra.mxu0 0.0
        %3145 = vmatprep.subr.mxu0 0.0
        %3146 = vmatpush1.msra.mxu0 0.0
        %3147 = vmatprep.subr.mxu0 0.0
        %3148 = vmatpush1.msra.mxu0 0.0
        %3149 = vmatprep.subr.mxu0 0.0
        %3150 = vmatpush1.msra.mxu0 0.0
        %3151 = vmatprep.subr.mxu0 0.0
        %3152 = vmatpush1.msra.mxu0 0.0
        %3153 = vmatprep.subr.mxu0 0.0
        %3154 = vmatpush1.msra.mxu0 0.0
        %3155 = vmatprep.subr.mxu0 0.0
        %3156 = vmatpush1.msra.mxu0 0.0
        %3157 = vmatprep.subr.mxu0 0.0
        %3158 = vmatpush1.msra.mxu0 0.0
        %3159 = vmatprep.subr.mxu0 0.0
        %3160 = vmatpush1.msra.mxu0 0.0
        %3161 = vmatprep.subr.mxu0 0.0
        %3162 = vmatpush1.msra.mxu0 0.0
        %3163 = vmatprep.subr.mxu0 0.0
        %3164 = vmatpush1.msra.mxu0 0.0
        %3165 = vmatprep.subr.mxu0 0.0
        %3166 = vmatpush1.msra.mxu0 0.0
        %3167 = vmatprep.subr.mxu0 0.0
        %3168 = vmatpush1.msra.mxu0 0.0
        %3169 = vmatprep.subr.mxu0 0.0
        %3170 = vmatpush1.msra.mxu0 0.0
        %3171 = vmatprep.subr.mxu0 0.0
        %3172 = vmatpush1.msra.mxu0 0.0
        %3173 = vmatprep.subr.mxu0 0.0
        %3174 = vmatpush1.msra.mxu0 0.0
        %3175 = vmatprep.subr.mxu0 0.0
        %3176 = vmatpush1.msra.mxu0 0.0
        %3177 = vmatprep.subr.mxu0 0.0
        %3178 = vmatpush1.msra.mxu0 0.0
        %3179 = vmatprep.mubr.f32.mxu0 0.0
        %3180 = vmatmul.mubr.f32.gmra.mrb[0].mxu0 %v3034
        %v3181 = vpop.f32.mrb[0].mxu0
        %v3182 = vadd.f32 0.0, %v3181
        %v3183 = vpop.f32.mrb[0].mxu0
        %v3184 = vadd.f32 0.0, %v3183
        %3185 = vdwg.mxu0
        %v3186 = vadd.f32 %v3012, %v3111
        %v3187 = vadd.f32 %v3013, %v3113
        %v3188 = vadd.f32 %v3014, %v3182
        %v3189 = vadd.f32 %v3015, %v3184
        %s3190 = scalar_lea.vmem %s1, 136
        %v3191 = vld [vmem:[%s3190] sm:$0xff]
        %3192 = vrot.lane.b32.xlu0 %v246, 81
        %v3193 = vpop.permute.xlu0 %3192
        %3194 = vrot.lane.b32.xlu0 %v255, 81
        %v3195 = vpop.permute.xlu0 %3194
        %3196 = vrot.lane.b32.xlu0 %v247, 81
        %v3197 = vpop.permute.xlu0 %3196
        %3198 = vrot.lane.b32.xlu0 %v256, 81
        %v3199 = vpop.permute.xlu0 %3198
        %3200 = vrot.lane.b32.xlu0 %v248, 81
        %v3201 = vpop.permute.xlu0 %3200
        %vm3202 = vcmask 662528
        %v3203 = vsel %vm3202, %v3193, %v3195
        %v3204 = vsel %vm3202, %v3195, %v3197
        %v3205 = vsel %vm3202, %v3197, %v3199
        %v3206 = vsel %vm3202, %v3199, %v3201
        %v3208 = vsel %vm272, %v3191, 0
        %v3210 = vsel %vm276, %v3203, 0
        %v3212 = vsel %vm276, %v3204, 0
        %v3214 = vsel %vm276, %v3205, 0
        %v3216 = vsel %vm276, %v3206, 0
        %3218 = vmatprep.subr.mxu0 %v3212
        %3219 = vmatpush1.msra.mxu0 %v3210
        %3220 = vmatprep.subr.mxu0 0.0
        %3221 = vmatpush1.msra.mxu0 0.0
        %3222 = vmatprep.subr.mxu0 0.0
        %3223 = vmatpush1.msra.mxu0 0.0
        %3224 = vmatprep.subr.mxu0 0.0
        %3225 = vmatpush1.msra.mxu0 0.0
        %3226 = vmatprep.subr.mxu0 0.0
        %3227 = vmatpush1.msra.mxu0 0.0
        %3228 = vmatprep.subr.mxu0 0.0
        %3229 = vmatpush1.msra.mxu0 0.0
        %3230 = vmatprep.subr.mxu0 0.0
        %3231 = vmatpush1.msra.mxu0 0.0
        %3232 = vmatprep.subr.mxu0 0.0
        %3233 = vmatpush1.msra.mxu0 0.0
        %3234 = vmatprep.subr.mxu0 0.0
        %3235 = vmatpush1.msra.mxu0 0.0
        %3236 = vmatprep.subr.mxu0 0.0
        %3237 = vmatpush1.msra.mxu0 0.0
        %3238 = vmatprep.subr.mxu0 0.0
        %3239 = vmatpush1.msra.mxu0 0.0
        %3240 = vmatprep.subr.mxu0 0.0
        %3241 = vmatpush1.msra.mxu0 0.0
        %3242 = vmatprep.subr.mxu0 0.0
        %3243 = vmatpush1.msra.mxu0 0.0
        %3244 = vmatprep.subr.mxu0 0.0
        %3245 = vmatpush1.msra.mxu0 0.0
        %3246 = vmatprep.subr.mxu0 0.0
        %3247 = vmatpush1.msra.mxu0 0.0
        %3248 = vmatprep.subr.mxu0 0.0
        %3249 = vmatpush1.msra.mxu0 0.0
        %3250 = vmatprep.subr.mxu0 0.0
        %3251 = vmatpush1.msra.mxu0 0.0
        %3252 = vmatprep.subr.mxu0 0.0
        %3253 = vmatpush1.msra.mxu0 0.0
        %3254 = vmatprep.subr.mxu0 0.0
        %3255 = vmatpush1.msra.mxu0 0.0
        %3256 = vmatprep.subr.mxu0 0.0
        %3257 = vmatpush1.msra.mxu0 0.0
        %3258 = vmatprep.subr.mxu0 0.0
        %3259 = vmatpush1.msra.mxu0 0.0
        %3260 = vmatprep.subr.mxu0 0.0
        %3261 = vmatpush1.msra.mxu0 0.0
        %3262 = vmatprep.subr.mxu0 0.0
        %3263 = vmatpush1.msra.mxu0 0.0
        %3264 = vmatprep.subr.mxu0 0.0
        %3265 = vmatpush1.msra.mxu0 0.0
        %3266 = vmatprep.subr.mxu0 0.0
        %3267 = vmatpush1.msra.mxu0 0.0
        %3268 = vmatprep.subr.mxu0 0.0
        %3269 = vmatpush1.msra.mxu0 0.0
        %3270 = vmatprep.subr.mxu0 0.0
        %3271 = vmatpush1.msra.mxu0 0.0
        %3272 = vmatprep.subr.mxu0 0.0
        %3273 = vmatpush1.msra.mxu0 0.0
        %3274 = vmatprep.subr.mxu0 0.0
        %3275 = vmatpush1.msra.mxu0 0.0
        %3276 = vmatprep.subr.mxu0 0.0
        %3277 = vmatpush1.msra.mxu0 0.0
        %3278 = vmatprep.subr.mxu0 0.0
        %3279 = vmatpush1.msra.mxu0 0.0
        %3280 = vmatprep.subr.mxu0 0.0
        %3281 = vmatpush1.msra.mxu0 0.0
        %3282 = vmatprep.mubr.f32.mxu0 0.0
        %3283 = vmatmul.mubr.f32.gmra.mrb[0].mxu0 %v3208
        %v3284 = vpop.f32.mrb[0].mxu0
        %v3285 = vadd.f32 0.0, %v3284
        %v3286 = vpop.f32.mrb[0].mxu0
        %v3287 = vadd.f32 0.0, %v3286
        %3288 = vdwg.mxu0
        %3289 = vmatprep.subr.mxu0 %v3216
        %3290 = vmatpush1.msra.mxu0 %v3214
        %3291 = vmatprep.subr.mxu0 0.0
        %3292 = vmatpush1.msra.mxu0 0.0
        %3293 = vmatprep.subr.mxu0 0.0
        %3294 = vmatpush1.msra.mxu0 0.0
        %3295 = vmatprep.subr.mxu0 0.0
        %3296 = vmatpush1.msra.mxu0 0.0
        %3297 = vmatprep.subr.mxu0 0.0
        %3298 = vmatpush1.msra.mxu0 0.0
        %3299 = vmatprep.subr.mxu0 0.0
        %3300 = vmatpush1.msra.mxu0 0.0
        %3301 = vmatprep.subr.mxu0 0.0
        %3302 = vmatpush1.msra.mxu0 0.0
        %3303 = vmatprep.subr.mxu0 0.0
        %3304 = vmatpush1.msra.mxu0 0.0
        %3305 = vmatprep.subr.mxu0 0.0
        %3306 = vmatpush1.msra.mxu0 0.0
        %3307 = vmatprep.subr.mxu0 0.0
        %3308 = vmatpush1.msra.mxu0 0.0
        %3309 = vmatprep.subr.mxu0 0.0
        %3310 = vmatpush1.msra.mxu0 0.0
        %3311 = vmatprep.subr.mxu0 0.0
        %3312 = vmatpush1.msra.mxu0 0.0
        %3313 = vmatprep.subr.mxu0 0.0
        %3314 = vmatpush1.msra.mxu0 0.0
        %3315 = vmatprep.subr.mxu0 0.0
        %3316 = vmatpush1.msra.mxu0 0.0
        %3317 = vmatprep.subr.mxu0 0.0
        %3318 = vmatpush1.msra.mxu0 0.0
        %3319 = vmatprep.subr.mxu0 0.0
        %3320 = vmatpush1.msra.mxu0 0.0
        %3321 = vmatprep.subr.mxu0 0.0
        %3322 = vmatpush1.msra.mxu0 0.0
        %3323 = vmatprep.subr.mxu0 0.0
        %3324 = vmatpush1.msra.mxu0 0.0
        %3325 = vmatprep.subr.mxu0 0.0
        %3326 = vmatpush1.msra.mxu0 0.0
        %3327 = vmatprep.subr.mxu0 0.0
        %3328 = vmatpush1.msra.mxu0 0.0
        %3329 = vmatprep.subr.mxu0 0.0
        %3330 = vmatpush1.msra.mxu0 0.0
        %3331 = vmatprep.subr.mxu0 0.0
        %3332 = vmatpush1.msra.mxu0 0.0
        %3333 = vmatprep.subr.mxu0 0.0
        %3334 = vmatpush1.msra.mxu0 0.0
        %3335 = vmatprep.subr.mxu0 0.0
        %3336 = vmatpush1.msra.mxu0 0.0
        %3337 = vmatprep.subr.mxu0 0.0
        %3338 = vmatpush1.msra.mxu0 0.0
        %3339 = vmatprep.subr.mxu0 0.0
        %3340 = vmatpush1.msra.mxu0 0.0
        %3341 = vmatprep.subr.mxu0 0.0
        %3342 = vmatpush1.msra.mxu0 0.0
        %3343 = vmatprep.subr.mxu0 0.0
        %3344 = vmatpush1.msra.mxu0 0.0
        %3345 = vmatprep.subr.mxu0 0.0
        %3346 = vmatpush1.msra.mxu0 0.0
        %3347 = vmatprep.subr.mxu0 0.0
        %3348 = vmatpush1.msra.mxu0 0.0
        %3349 = vmatprep.subr.mxu0 0.0
        %3350 = vmatpush1.msra.mxu0 0.0
        %3351 = vmatprep.subr.mxu0 0.0
        %3352 = vmatpush1.msra.mxu0 0.0
        %3353 = vmatprep.mubr.f32.mxu0 0.0
        %3354 = vmatmul.mubr.f32.gmra.mrb[0].mxu0 %v3208
        %v3355 = vpop.f32.mrb[0].mxu0
        %v3356 = vadd.f32 0.0, %v3355
        %v3357 = vpop.f32.mrb[0].mxu0
        %v3358 = vadd.f32 0.0, %v3357
        %3359 = vdwg.mxu0
        %v3360 = vadd.f32 %v3186, %v3285
        %v3361 = vadd.f32 %v3187, %v3287
        %v3362 = vadd.f32 %v3188, %v3356
        %v3363 = vadd.f32 %v3189, %v3358
        %s3364 = scalar_lea.vmem %s1, 144
        %v3365 = vld [vmem:[%s3364] sm:$0xff]
        %3366 = vrot.lane.b32.xlu0 %v246, 80
        %v3367 = vpop.permute.xlu0 %3366
        %3368 = vrot.lane.b32.xlu0 %v255, 80
        %v3369 = vpop.permute.xlu0 %3368
        %3370 = vrot.lane.b32.xlu0 %v247, 80
        %v3371 = vpop.permute.xlu0 %3370
        %3372 = vrot.lane.b32.xlu0 %v256, 80
        %v3373 = vpop.permute.xlu0 %3372
        %3374 = vrot.lane.b32.xlu0 %v248, 80
        %v3375 = vpop.permute.xlu0 %3374
        %vm3376 = vcmask 654336
        %v3377 = vsel %vm3376, %v3367, %v3369
        %v3378 = vsel %vm3376, %v3369, %v3371
        %v3379 = vsel %vm3376, %v3371, %v3373
        %v3380 = vsel %vm3376, %v3373, %v3375
        %v3382 = vsel %vm272, %v3365, 0
        %v3384 = vsel %vm276, %v3377, 0
        %v3386 = vsel %vm276, %v3378, 0
        %v3388 = vsel %vm276, %v3379, 0
        %v3390 = vsel %vm276, %v3380, 0
        %3392 = vmatprep.subr.mxu0 %v3386
        %3393 = vmatpush1.msra.mxu0 %v3384
        %3394 = vmatprep.subr.mxu0 0.0
        %3395 = vmatpush1.msra.mxu0 0.0
        %3396 = vmatprep.subr.mxu0 0.0
        %3397 = vmatpush1.msra.mxu0 0.0
        %3398 = vmatprep.subr.mxu0 0.0
        %3399 = vmatpush1.msra.mxu0 0.0
        %3400 = vmatprep.subr.mxu0 0.0
        %3401 = vmatpush1.msra.mxu0 0.0
        %3402 = vmatprep.subr.mxu0 0.0
        %3403 = vmatpush1.msra.mxu0 0.0
        %3404 = vmatprep.subr.mxu0 0.0
        %3405 = vmatpush1.msra.mxu0 0.0
        %3406 = vmatprep.subr.mxu0 0.0
        %3407 = vmatpush1.msra.mxu0 0.0
        %3408 = vmatprep.subr.mxu0 0.0
        %3409 = vmatpush1.msra.mxu0 0.0
        %3410 = vmatprep.subr.mxu0 0.0
        %3411 = vmatpush1.msra.mxu0 0.0
        %3412 = vmatprep.subr.mxu0 0.0
        %3413 = vmatpush1.msra.mxu0 0.0
        %3414 = vmatprep.subr.mxu0 0.0
        %3415 = vmatpush1.msra.mxu0 0.0
        %3416 = vmatprep.subr.mxu0 0.0
        %3417 = vmatpush1.msra.mxu0 0.0
        %3418 = vmatprep.subr.mxu0 0.0
        %3419 = vmatpush1.msra.mxu0 0.0
        %3420 = vmatprep.subr.mxu0 0.0
        %3421 = vmatpush1.msra.mxu0 0.0
        %3422 = vmatprep.subr.mxu0 0.0
        %3423 = vmatpush1.msra.mxu0 0.0
        %3424 = vmatprep.subr.mxu0 0.0
        %3425 = vmatpush1.msra.mxu0 0.0
        %3426 = vmatprep.subr.mxu0 0.0
        %3427 = vmatpush1.msra.mxu0 0.0
        %3428 = vmatprep.subr.mxu0 0.0
        %3429 = vmatpush1.msra.mxu0 0.0
        %3430 = vmatprep.subr.mxu0 0.0
        %3431 = vmatpush1.msra.mxu0 0.0
        %3432 = vmatprep.subr.mxu0 0.0
        %3433 = vmatpush1.msra.mxu0 0.0
        %3434 = vmatprep.subr.mxu0 0.0
        %3435 = vmatpush1.msra.mxu0 0.0
        %3436 = vmatprep.subr.mxu0 0.0
        %3437 = vmatpush1.msra.mxu0 0.0
        %3438 = vmatprep.subr.mxu0 0.0
        %3439 = vmatpush1.msra.mxu0 0.0
        %3440 = vmatprep.subr.mxu0 0.0
        %3441 = vmatpush1.msra.mxu0 0.0
        %3442 = vmatprep.subr.mxu0 0.0
        %3443 = vmatpush1.msra.mxu0 0.0
        %3444 = vmatprep.subr.mxu0 0.0
        %3445 = vmatpush1.msra.mxu0 0.0
        %3446 = vmatprep.subr.mxu0 0.0
        %3447 = vmatpush1.msra.mxu0 0.0
        %3448 = vmatprep.subr.mxu0 0.0
        %3449 = vmatpush1.msra.mxu0 0.0
        %3450 = vmatprep.subr.mxu0 0.0
        %3451 = vmatpush1.msra.mxu0 0.0
        %3452 = vmatprep.subr.mxu0 0.0
        %3453 = vmatpush1.msra.mxu0 0.0
        %3454 = vmatprep.subr.mxu0 0.0
        %3455 = vmatpush1.msra.mxu0 0.0
        %3456 = vmatprep.mubr.f32.mxu0 0.0
        %3457 = vmatmul.mubr.f32.gmra.mrb[0].mxu0 %v3382
        %v3458 = vpop.f32.mrb[0].mxu0
        %v3459 = vadd.f32 0.0, %v3458
        %v3460 = vpop.f32.mrb[0].mxu0
        %v3461 = vadd.f32 0.0, %v3460
        %3462 = vdwg.mxu0
        %3463 = vmatprep.subr.mxu0 %v3390
        %3464 = vmatpush1.msra.mxu0 %v3388
        %3465 = vmatprep.subr.mxu0 0.0
        %3466 = vmatpush1.msra.mxu0 0.0
        %3467 = vmatprep.subr.mxu0 0.0
        %3468 = vmatpush1.msra.mxu0 0.0
        %3469 = vmatprep.subr.mxu0 0.0
        %3470 = vmatpush1.msra.mxu0 0.0
        %3471 = vmatprep.subr.mxu0 0.0
        %3472 = vmatpush1.msra.mxu0 0.0
        %3473 = vmatprep.subr.mxu0 0.0
        %3474 = vmatpush1.msra.mxu0 0.0
        %3475 = vmatprep.subr.mxu0 0.0
        %3476 = vmatpush1.msra.mxu0 0.0
        %3477 = vmatprep.subr.mxu0 0.0
        %3478 = vmatpush1.msra.mxu0 0.0
        %3479 = vmatprep.subr.mxu0 0.0
        %3480 = vmatpush1.msra.mxu0 0.0
        %3481 = vmatprep.subr.mxu0 0.0
        %3482 = vmatpush1.msra.mxu0 0.0
        %3483 = vmatprep.subr.mxu0 0.0
        %3484 = vmatpush1.msra.mxu0 0.0
        %3485 = vmatprep.subr.mxu0 0.0
        %3486 = vmatpush1.msra.mxu0 0.0
        %3487 = vmatprep.subr.mxu0 0.0
        %3488 = vmatpush1.msra.mxu0 0.0
        %3489 = vmatprep.subr.mxu0 0.0
        %3490 = vmatpush1.msra.mxu0 0.0
        %3491 = vmatprep.subr.mxu0 0.0
        %3492 = vmatpush1.msra.mxu0 0.0
        %3493 = vmatprep.subr.mxu0 0.0
        %3494 = vmatpush1.msra.mxu0 0.0
        %3495 = vmatprep.subr.mxu0 0.0
        %3496 = vmatpush1.msra.mxu0 0.0
        %3497 = vmatprep.subr.mxu0 0.0
        %3498 = vmatpush1.msra.mxu0 0.0
        %3499 = vmatprep.subr.mxu0 0.0
        %3500 = vmatpush1.msra.mxu0 0.0
        %3501 = vmatprep.subr.mxu0 0.0
        %3502 = vmatpush1.msra.mxu0 0.0
        %3503 = vmatprep.subr.mxu0 0.0
        %3504 = vmatpush1.msra.mxu0 0.0
        %3505 = vmatprep.subr.mxu0 0.0
        %3506 = vmatpush1.msra.mxu0 0.0
        %3507 = vmatprep.subr.mxu0 0.0
        %3508 = vmatpush1.msra.mxu0 0.0
        %3509 = vmatprep.subr.mxu0 0.0
        %3510 = vmatpush1.msra.mxu0 0.0
        %3511 = vmatprep.subr.mxu0 0.0
        %3512 = vmatpush1.msra.mxu0 0.0
        %3513 = vmatprep.subr.mxu0 0.0
        %3514 = vmatpush1.msra.mxu0 0.0
        %3515 = vmatprep.subr.mxu0 0.0
        %3516 = vmatpush1.msra.mxu0 0.0
        %3517 = vmatprep.subr.mxu0 0.0
        %3518 = vmatpush1.msra.mxu0 0.0
        %3519 = vmatprep.subr.mxu0 0.0
        %3520 = vmatpush1.msra.mxu0 0.0
        %3521 = vmatprep.subr.mxu0 0.0
        %3522 = vmatpush1.msra.mxu0 0.0
        %3523 = vmatprep.subr.mxu0 0.0
        %3524 = vmatpush1.msra.mxu0 0.0
        %3525 = vmatprep.subr.mxu0 0.0
        %3526 = vmatpush1.msra.mxu0 0.0
        %3527 = vmatprep.mubr.f32.mxu0 0.0
        %3528 = vmatmul.mubr.f32.gmra.mrb[0].mxu0 %v3382
        %v3529 = vpop.f32.mrb[0].mxu0
        %v3530 = vadd.f32 0.0, %v3529
        %v3531 = vpop.f32.mrb[0].mxu0
        %v3532 = vadd.f32 0.0, %v3531
        %3533 = vdwg.mxu0
        %v3534 = vadd.f32 %v3360, %v3459
        %v3535 = vadd.f32 %v3361, %v3461
        %v3536 = vadd.f32 %v3362, %v3530
        %v3537 = vadd.f32 %v3363, %v3532
        %s3538 = scalar_lea.vmem %s1, 152
        %v3539 = vld [vmem:[%s3538] sm:$0xff]
        %3540 = vrot.lane.b32.xlu0 %v246, 79
        %v3541 = vpop.permute.xlu0 %3540
        %3542 = vrot.lane.b32.xlu0 %v255, 79
        %v3543 = vpop.permute.xlu0 %3542
        %3544 = vrot.lane.b32.xlu0 %v247, 79
        %v3545 = vpop.permute.xlu0 %3544
        %3546 = vrot.lane.b32.xlu0 %v256, 79
        %v3547 = vpop.permute.xlu0 %3546
        %3548 = vrot.lane.b32.xlu0 %v248, 79
        %v3549 = vpop.permute.xlu0 %3548
        %vm3550 = vcmask 646144
        %v3551 = vsel %vm3550, %v3541, %v3543
        %v3552 = vsel %vm3550, %v3543, %v3545
        %v3553 = vsel %vm3550, %v3545, %v3547
        %v3554 = vsel %vm3550, %v3547, %v3549
        %v3556 = vsel %vm272, %v3539, 0
        %v3558 = vsel %vm276, %v3551, 0
        %v3560 = vsel %vm276, %v3552, 0
        %v3562 = vsel %vm276, %v3553, 0
        %v3564 = vsel %vm276, %v3554, 0
        %3566 = vmatprep.subr.mxu0 %v3560
        %3567 = vmatpush1.msra.mxu0 %v3558
        %3568 = vmatprep.subr.mxu0 0.0
        %3569 = vmatpush1.msra.mxu0 0.0
        %3570 = vmatprep.subr.mxu0 0.0
        %3571 = vmatpush1.msra.mxu0 0.0
        %3572 = vmatprep.subr.mxu0 0.0
        %3573 = vmatpush1.msra.mxu0 0.0
        %3574 = vmatprep.subr.mxu0 0.0
        %3575 = vmatpush1.msra.mxu0 0.0
        %3576 = vmatprep.subr.mxu0 0.0
        %3577 = vmatpush1.msra.mxu0 0.0
        %3578 = vmatprep.subr.mxu0 0.0
        %3579 = vmatpush1.msra.mxu0 0.0
        %3580 = vmatprep.subr.mxu0 0.0
        %3581 = vmatpush1.msra.mxu0 0.0
        %3582 = vmatprep.subr.mxu0 0.0
        %3583 = vmatpush1.msra.mxu0 0.0
        %3584 = vmatprep.subr.mxu0 0.0
        %3585 = vmatpush1.msra.mxu0 0.0
        %3586 = vmatprep.subr.mxu0 0.0
        %3587 = vmatpush1.msra.mxu0 0.0
        %3588 = vmatprep.subr.mxu0 0.0
        %3589 = vmatpush1.msra.mxu0 0.0
        %3590 = vmatprep.subr.mxu0 0.0
        %3591 = vmatpush1.msra.mxu0 0.0
        %3592 = vmatprep.subr.mxu0 0.0
        %3593 = vmatpush1.msra.mxu0 0.0
        %3594 = vmatprep.subr.mxu0 0.0
        %3595 = vmatpush1.msra.mxu0 0.0
        %3596 = vmatprep.subr.mxu0 0.0
        %3597 = vmatpush1.msra.mxu0 0.0
        %3598 = vmatprep.subr.mxu0 0.0
        %3599 = vmatpush1.msra.mxu0 0.0
        %3600 = vmatprep.subr.mxu0 0.0
        %3601 = vmatpush1.msra.mxu0 0.0
        %3602 = vmatprep.subr.mxu0 0.0
        %3603 = vmatpush1.msra.mxu0 0.0
        %3604 = vmatprep.subr.mxu0 0.0
        %3605 = vmatpush1.msra.mxu0 0.0
        %3606 = vmatprep.subr.mxu0 0.0
        %3607 = vmatpush1.msra.mxu0 0.0
        %3608 = vmatprep.subr.mxu0 0.0
        %3609 = vmatpush1.msra.mxu0 0.0
        %3610 = vmatprep.subr.mxu0 0.0
        %3611 = vmatpush1.msra.mxu0 0.0
        %3612 = vmatprep.subr.mxu0 0.0
        %3613 = vmatpush1.msra.mxu0 0.0
        %3614 = vmatprep.subr.mxu0 0.0
        %3615 = vmatpush1.msra.mxu0 0.0
        %3616 = vmatprep.subr.mxu0 0.0
        %3617 = vmatpush1.msra.mxu0 0.0
        %3618 = vmatprep.subr.mxu0 0.0
        %3619 = vmatpush1.msra.mxu0 0.0
        %3620 = vmatprep.subr.mxu0 0.0
        %3621 = vmatpush1.msra.mxu0 0.0
        %3622 = vmatprep.subr.mxu0 0.0
        %3623 = vmatpush1.msra.mxu0 0.0
        %3624 = vmatprep.subr.mxu0 0.0
        %3625 = vmatpush1.msra.mxu0 0.0
        %3626 = vmatprep.subr.mxu0 0.0
        %3627 = vmatpush1.msra.mxu0 0.0
        %3628 = vmatprep.subr.mxu0 0.0
        %3629 = vmatpush1.msra.mxu0 0.0
        %3630 = vmatprep.mubr.f32.mxu0 0.0
        %3631 = vmatmul.mubr.f32.gmra.mrb[0].mxu0 %v3556
        %v3632 = vpop.f32.mrb[0].mxu0
        %v3633 = vadd.f32 0.0, %v3632
        %v3634 = vpop.f32.mrb[0].mxu0
        %v3635 = vadd.f32 0.0, %v3634
        %3636 = vdwg.mxu0
        %3637 = vmatprep.subr.mxu0 %v3564
        %3638 = vmatpush1.msra.mxu0 %v3562
        %3639 = vmatprep.subr.mxu0 0.0
        %3640 = vmatpush1.msra.mxu0 0.0
        %3641 = vmatprep.subr.mxu0 0.0
        %3642 = vmatpush1.msra.mxu0 0.0
        %3643 = vmatprep.subr.mxu0 0.0
        %3644 = vmatpush1.msra.mxu0 0.0
        %3645 = vmatprep.subr.mxu0 0.0
        %3646 = vmatpush1.msra.mxu0 0.0
        %3647 = vmatprep.subr.mxu0 0.0
        %3648 = vmatpush1.msra.mxu0 0.0
        %3649 = vmatprep.subr.mxu0 0.0
        %3650 = vmatpush1.msra.mxu0 0.0
        %3651 = vmatprep.subr.mxu0 0.0
        %3652 = vmatpush1.msra.mxu0 0.0
        %3653 = vmatprep.subr.mxu0 0.0
        %3654 = vmatpush1.msra.mxu0 0.0
        %3655 = vmatprep.subr.mxu0 0.0
        %3656 = vmatpush1.msra.mxu0 0.0
        %3657 = vmatprep.subr.mxu0 0.0
        %3658 = vmatpush1.msra.mxu0 0.0
        %3659 = vmatprep.subr.mxu0 0.0
        %3660 = vmatpush1.msra.mxu0 0.0
        %3661 = vmatprep.subr.mxu0 0.0
        %3662 = vmatpush1.msra.mxu0 0.0
        %3663 = vmatprep.subr.mxu0 0.0
        %3664 = vmatpush1.msra.mxu0 0.0
        %3665 = vmatprep.subr.mxu0 0.0
        %3666 = vmatpush1.msra.mxu0 0.0
        %3667 = vmatprep.subr.mxu0 0.0
        %3668 = vmatpush1.msra.mxu0 0.0
        %3669 = vmatprep.subr.mxu0 0.0
        %3670 = vmatpush1.msra.mxu0 0.0
        %3671 = vmatprep.subr.mxu0 0.0
        %3672 = vmatpush1.msra.mxu0 0.0
        %3673 = vmatprep.subr.mxu0 0.0
        %3674 = vmatpush1.msra.mxu0 0.0
        %3675 = vmatprep.subr.mxu0 0.0
        %3676 = vmatpush1.msra.mxu0 0.0
        %3677 = vmatprep.subr.mxu0 0.0
        %3678 = vmatpush1.msra.mxu0 0.0
        %3679 = vmatprep.subr.mxu0 0.0
        %3680 = vmatpush1.msra.mxu0 0.0
        %3681 = vmatprep.subr.mxu0 0.0
        %3682 = vmatpush1.msra.mxu0 0.0
        %3683 = vmatprep.subr.mxu0 0.0
        %3684 = vmatpush1.msra.mxu0 0.0
        %3685 = vmatprep.subr.mxu0 0.0
        %3686 = vmatpush1.msra.mxu0 0.0
        %3687 = vmatprep.subr.mxu0 0.0
        %3688 = vmatpush1.msra.mxu0 0.0
        %3689 = vmatprep.subr.mxu0 0.0
        %3690 = vmatpush1.msra.mxu0 0.0
        %3691 = vmatprep.subr.mxu0 0.0
        %3692 = vmatpush1.msra.mxu0 0.0
        %3693 = vmatprep.subr.mxu0 0.0
        %3694 = vmatpush1.msra.mxu0 0.0
        %3695 = vmatprep.subr.mxu0 0.0
        %3696 = vmatpush1.msra.mxu0 0.0
        %3697 = vmatprep.subr.mxu0 0.0
        %3698 = vmatpush1.msra.mxu0 0.0
        %3699 = vmatprep.subr.mxu0 0.0
        %3700 = vmatpush1.msra.mxu0 0.0
        %3701 = vmatprep.mubr.f32.mxu0 0.0
        %3702 = vmatmul.mubr.f32.gmra.mrb[0].mxu0 %v3556
        %v3703 = vpop.f32.mrb[0].mxu0
        %v3704 = vadd.f32 0.0, %v3703
        %v3705 = vpop.f32.mrb[0].mxu0
        %v3706 = vadd.f32 0.0, %v3705
        %3707 = vdwg.mxu0
        %v3708 = vadd.f32 %v3534, %v3633
        %v3709 = vadd.f32 %v3535, %v3635
        %v3710 = vadd.f32 %v3536, %v3704
        %v3711 = vadd.f32 %v3537, %v3706
        %s3712 = scalar_lea.vmem %s1, 160
        %v3713 = vld [vmem:[%s3712] sm:$0xff]
        %3714 = vrot.lane.b32.xlu0 %v246, 78
        %v3715 = vpop.permute.xlu0 %3714
        %3716 = vrot.lane.b32.xlu0 %v255, 78
        %v3717 = vpop.permute.xlu0 %3716
        %3718 = vrot.lane.b32.xlu0 %v247, 78
        %v3719 = vpop.permute.xlu0 %3718
        %3720 = vrot.lane.b32.xlu0 %v256, 78
        %v3721 = vpop.permute.xlu0 %3720
        %3722 = vrot.lane.b32.xlu0 %v248, 78
        %v3723 = vpop.permute.xlu0 %3722
        %vm3724 = vcmask 637952
        %v3725 = vsel %vm3724, %v3715, %v3717
        %v3726 = vsel %vm3724, %v3717, %v3719
        %v3727 = vsel %vm3724, %v3719, %v3721
        %v3728 = vsel %vm3724, %v3721, %v3723
        %v3730 = vsel %vm272, %v3713, 0
        %v3732 = vsel %vm276, %v3725, 0
        %v3734 = vsel %vm276, %v3726, 0
        %v3736 = vsel %vm276, %v3727, 0
        %v3738 = vsel %vm276, %v3728, 0
        %3740 = vmatprep.subr.mxu0 %v3734
        %3741 = vmatpush1.msra.mxu0 %v3732
        %3742 = vmatprep.subr.mxu0 0.0
        %3743 = vmatpush1.msra.mxu0 0.0
        %3744 = vmatprep.subr.mxu0 0.0
        %3745 = vmatpush1.msra.mxu0 0.0
        %3746 = vmatprep.subr.mxu0 0.0
        %3747 = vmatpush1.msra.mxu0 0.0
        %3748 = vmatprep.subr.mxu0 0.0
        %3749 = vmatpush1.msra.mxu0 0.0
        %3750 = vmatprep.subr.mxu0 0.0
        %3751 = vmatpush1.msra.mxu0 0.0
        %3752 = vmatprep.subr.mxu0 0.0
        %3753 = vmatpush1.msra.mxu0 0.0
        %3754 = vmatprep.subr.mxu0 0.0
        %3755 = vmatpush1.msra.mxu0 0.0
        %3756 = vmatprep.subr.mxu0 0.0
        %3757 = vmatpush1.msra.mxu0 0.0
        %3758 = vmatprep.subr.mxu0 0.0
        %3759 = vmatpush1.msra.mxu0 0.0
        %3760 = vmatprep.subr.mxu0 0.0
        %3761 = vmatpush1.msra.mxu0 0.0
        %3762 = vmatprep.subr.mxu0 0.0
        %3763 = vmatpush1.msra.mxu0 0.0
        %3764 = vmatprep.subr.mxu0 0.0
        %3765 = vmatpush1.msra.mxu0 0.0
        %3766 = vmatprep.subr.mxu0 0.0
        %3767 = vmatpush1.msra.mxu0 0.0
        %3768 = vmatprep.subr.mxu0 0.0
        %3769 = vmatpush1.msra.mxu0 0.0
        %3770 = vmatprep.subr.mxu0 0.0
        %3771 = vmatpush1.msra.mxu0 0.0
        %3772 = vmatprep.subr.mxu0 0.0
        %3773 = vmatpush1.msra.mxu0 0.0
        %3774 = vmatprep.subr.mxu0 0.0
        %3775 = vmatpush1.msra.mxu0 0.0
        %3776 = vmatprep.subr.mxu0 0.0
        %3777 = vmatpush1.msra.mxu0 0.0
        %3778 = vmatprep.subr.mxu0 0.0
        %3779 = vmatpush1.msra.mxu0 0.0
        %3780 = vmatprep.subr.mxu0 0.0
        %3781 = vmatpush1.msra.mxu0 0.0
        %3782 = vmatprep.subr.mxu0 0.0
        %3783 = vmatpush1.msra.mxu0 0.0
        %3784 = vmatprep.subr.mxu0 0.0
        %3785 = vmatpush1.msra.mxu0 0.0
        %3786 = vmatprep.subr.mxu0 0.0
        %3787 = vmatpush1.msra.mxu0 0.0
        %3788 = vmatprep.subr.mxu0 0.0
        %3789 = vmatpush1.msra.mxu0 0.0
        %3790 = vmatprep.subr.mxu0 0.0
        %3791 = vmatpush1.msra.mxu0 0.0
        %3792 = vmatprep.subr.mxu0 0.0
        %3793 = vmatpush1.msra.mxu0 0.0
        %3794 = vmatprep.subr.mxu0 0.0
        %3795 = vmatpush1.msra.mxu0 0.0
        %3796 = vmatprep.subr.mxu0 0.0
        %3797 = vmatpush1.msra.mxu0 0.0
        %3798 = vmatprep.subr.mxu0 0.0
        %3799 = vmatpush1.msra.mxu0 0.0
        %3800 = vmatprep.subr.mxu0 0.0
        %3801 = vmatpush1.msra.mxu0 0.0
        %3802 = vmatprep.subr.mxu0 0.0
        %3803 = vmatpush1.msra.mxu0 0.0
        %3804 = vmatprep.mubr.f32.mxu0 0.0
        %3805 = vmatmul.mubr.f32.gmra.mrb[0].mxu0 %v3730
        %v3806 = vpop.f32.mrb[0].mxu0
        %v3807 = vadd.f32 0.0, %v3806
        %v3808 = vpop.f32.mrb[0].mxu0
        %v3809 = vadd.f32 0.0, %v3808
        %3810 = vdwg.mxu0
        %3811 = vmatprep.subr.mxu0 %v3738
        %3812 = vmatpush1.msra.mxu0 %v3736
        %3813 = vmatprep.subr.mxu0 0.0
        %3814 = vmatpush1.msra.mxu0 0.0
        %3815 = vmatprep.subr.mxu0 0.0
        %3816 = vmatpush1.msra.mxu0 0.0
        %3817 = vmatprep.subr.mxu0 0.0
        %3818 = vmatpush1.msra.mxu0 0.0
        %3819 = vmatprep.subr.mxu0 0.0
        %3820 = vmatpush1.msra.mxu0 0.0
        %3821 = vmatprep.subr.mxu0 0.0
        %3822 = vmatpush1.msra.mxu0 0.0
        %3823 = vmatprep.subr.mxu0 0.0
        %3824 = vmatpush1.msra.mxu0 0.0
        %3825 = vmatprep.subr.mxu0 0.0
        %3826 = vmatpush1.msra.mxu0 0.0
        %3827 = vmatprep.subr.mxu0 0.0
        %3828 = vmatpush1.msra.mxu0 0.0
        %3829 = vmatprep.subr.mxu0 0.0
        %3830 = vmatpush1.msra.mxu0 0.0
        %3831 = vmatprep.subr.mxu0 0.0
        %3832 = vmatpush1.msra.mxu0 0.0
        %3833 = vmatprep.subr.mxu0 0.0
        %3834 = vmatpush1.msra.mxu0 0.0
        %3835 = vmatprep.subr.mxu0 0.0
        %3836 = vmatpush1.msra.mxu0 0.0
        %3837 = vmatprep.subr.mxu0 0.0
        %3838 = vmatpush1.msra.mxu0 0.0
        %3839 = vmatprep.subr.mxu0 0.0
        %3840 = vmatpush1.msra.mxu0 0.0
        %3841 = vmatprep.subr.mxu0 0.0
        %3842 = vmatpush1.msra.mxu0 0.0
        %3843 = vmatprep.subr.mxu0 0.0
        %3844 = vmatpush1.msra.mxu0 0.0
        %3845 = vmatprep.subr.mxu0 0.0
        %3846 = vmatpush1.msra.mxu0 0.0
        %3847 = vmatprep.subr.mxu0 0.0
        %3848 = vmatpush1.msra.mxu0 0.0
        %3849 = vmatprep.subr.mxu0 0.0
        %3850 = vmatpush1.msra.mxu0 0.0
        %3851 = vmatprep.subr.mxu0 0.0
        %3852 = vmatpush1.msra.mxu0 0.0
        %3853 = vmatprep.subr.mxu0 0.0
        %3854 = vmatpush1.msra.mxu0 0.0
        %3855 = vmatprep.subr.mxu0 0.0
        %3856 = vmatpush1.msra.mxu0 0.0
        %3857 = vmatprep.subr.mxu0 0.0
        %3858 = vmatpush1.msra.mxu0 0.0
        %3859 = vmatprep.subr.mxu0 0.0
        %3860 = vmatpush1.msra.mxu0 0.0
        %3861 = vmatprep.subr.mxu0 0.0
        %3862 = vmatpush1.msra.mxu0 0.0
        %3863 = vmatprep.subr.mxu0 0.0
        %3864 = vmatpush1.msra.mxu0 0.0
        %3865 = vmatprep.subr.mxu0 0.0
        %3866 = vmatpush1.msra.mxu0 0.0
        %3867 = vmatprep.subr.mxu0 0.0
        %3868 = vmatpush1.msra.mxu0 0.0
        %3869 = vmatprep.subr.mxu0 0.0
        %3870 = vmatpush1.msra.mxu0 0.0
        %3871 = vmatprep.subr.mxu0 0.0
        %3872 = vmatpush1.msra.mxu0 0.0
        %3873 = vmatprep.subr.mxu0 0.0
        %3874 = vmatpush1.msra.mxu0 0.0
        %3875 = vmatprep.mubr.f32.mxu0 0.0
        %3876 = vmatmul.mubr.f32.gmra.mrb[0].mxu0 %v3730
        %v3877 = vpop.f32.mrb[0].mxu0
        %v3878 = vadd.f32 0.0, %v3877
        %v3879 = vpop.f32.mrb[0].mxu0
        %v3880 = vadd.f32 0.0, %v3879
        %3881 = vdwg.mxu0
        %v3882 = vadd.f32 %v3708, %v3807
        %v3883 = vadd.f32 %v3709, %v3809
        %v3884 = vadd.f32 %v3710, %v3878
        %v3885 = vadd.f32 %v3711, %v3880
        %s3886 = scalar_lea.vmem %s1, 168
        %v3887 = vld [vmem:[%s3886] sm:$0xff]
        %3888 = vrot.lane.b32.xlu0 %v246, 62
        %v3889 = vpop.permute.xlu0 %3888
        %3890 = vrot.lane.b32.xlu0 %v255, 62
        %v3891 = vpop.permute.xlu0 %3890
        %3892 = vrot.lane.b32.xlu0 %v247, 62
        %v3893 = vpop.permute.xlu0 %3892
        %3894 = vrot.lane.b32.xlu0 %v256, 62
        %v3895 = vpop.permute.xlu0 %3894
        %3896 = vrot.lane.b32.xlu0 %v248, 62
        %v3897 = vpop.permute.xlu0 %3896
        %vm3898 = vcmask 506880
        %v3899 = vsel %vm3898, %v3889, %v3891
        %v3900 = vsel %vm3898, %v3891, %v3893
        %v3901 = vsel %vm3898, %v3893, %v3895
        %v3902 = vsel %vm3898, %v3895, %v3897
        %v3904 = vsel %vm272, %v3887, 0
        %v3906 = vsel %vm276, %v3899, 0
        %v3908 = vsel %vm276, %v3900, 0
        %v3910 = vsel %vm276, %v3901, 0
        %v3912 = vsel %vm276, %v3902, 0
        %3914 = vmatprep.subr.mxu0 %v3908
        %3915 = vmatpush1.msra.mxu0 %v3906
        %3916 = vmatprep.subr.mxu0 0.0
        %3917 = vmatpush1.msra.mxu0 0.0
        %3918 = vmatprep.subr.mxu0 0.0
        %3919 = vmatpush1.msra.mxu0 0.0
        %3920 = vmatprep.subr.mxu0 0.0
        %3921 = vmatpush1.msra.mxu0 0.0
        %3922 = vmatprep.subr.mxu0 0.0
        %3923 = vmatpush1.msra.mxu0 0.0
        %3924 = vmatprep.subr.mxu0 0.0
        %3925 = vmatpush1.msra.mxu0 0.0
        %3926 = vmatprep.subr.mxu0 0.0
        %3927 = vmatpush1.msra.mxu0 0.0
        %3928 = vmatprep.subr.mxu0 0.0
        %3929 = vmatpush1.msra.mxu0 0.0
        %3930 = vmatprep.subr.mxu0 0.0
        %3931 = vmatpush1.msra.mxu0 0.0
        %3932 = vmatprep.subr.mxu0 0.0
        %3933 = vmatpush1.msra.mxu0 0.0
        %3934 = vmatprep.subr.mxu0 0.0
        %3935 = vmatpush1.msra.mxu0 0.0
        %3936 = vmatprep.subr.mxu0 0.0
        %3937 = vmatpush1.msra.mxu0 0.0
        %3938 = vmatprep.subr.mxu0 0.0
        %3939 = vmatpush1.msra.mxu0 0.0
        %3940 = vmatprep.subr.mxu0 0.0
        %3941 = vmatpush1.msra.mxu0 0.0
        %3942 = vmatprep.subr.mxu0 0.0
        %3943 = vmatpush1.msra.mxu0 0.0
        %3944 = vmatprep.subr.mxu0 0.0
        %3945 = vmatpush1.msra.mxu0 0.0
        %3946 = vmatprep.subr.mxu0 0.0
        %3947 = vmatpush1.msra.mxu0 0.0
        %3948 = vmatprep.subr.mxu0 0.0
        %3949 = vmatpush1.msra.mxu0 0.0
        %3950 = vmatprep.subr.mxu0 0.0
        %3951 = vmatpush1.msra.mxu0 0.0
        %3952 = vmatprep.subr.mxu0 0.0
        %3953 = vmatpush1.msra.mxu0 0.0
        %3954 = vmatprep.subr.mxu0 0.0
        %3955 = vmatpush1.msra.mxu0 0.0
        %3956 = vmatprep.subr.mxu0 0.0
        %3957 = vmatpush1.msra.mxu0 0.0
        %3958 = vmatprep.subr.mxu0 0.0
        %3959 = vmatpush1.msra.mxu0 0.0
        %3960 = vmatprep.subr.mxu0 0.0
        %3961 = vmatpush1.msra.mxu0 0.0
        %3962 = vmatprep.subr.mxu0 0.0
        %3963 = vmatpush1.msra.mxu0 0.0
        %3964 = vmatprep.subr.mxu0 0.0
        %3965 = vmatpush1.msra.mxu0 0.0
        %3966 = vmatprep.subr.mxu0 0.0
        %3967 = vmatpush1.msra.mxu0 0.0
        %3968 = vmatprep.subr.mxu0 0.0
        %3969 = vmatpush1.msra.mxu0 0.0
        %3970 = vmatprep.subr.mxu0 0.0
        %3971 = vmatpush1.msra.mxu0 0.0
        %3972 = vmatprep.subr.mxu0 0.0
        %3973 = vmatpush1.msra.mxu0 0.0
        %3974 = vmatprep.subr.mxu0 0.0
        %3975 = vmatpush1.msra.mxu0 0.0
        %3976 = vmatprep.subr.mxu0 0.0
        %3977 = vmatpush1.msra.mxu0 0.0
        %3978 = vmatprep.mubr.f32.mxu0 0.0
        %3979 = vmatmul.mubr.f32.gmra.mrb[0].mxu0 %v3904
        %v3980 = vpop.f32.mrb[0].mxu0
        %v3981 = vadd.f32 0.0, %v3980
        %v3982 = vpop.f32.mrb[0].mxu0
        %v3983 = vadd.f32 0.0, %v3982
        %3984 = vdwg.mxu0
        %3985 = vmatprep.subr.mxu0 %v3912
        %3986 = vmatpush1.msra.mxu0 %v3910
        %3987 = vmatprep.subr.mxu0 0.0
        %3988 = vmatpush1.msra.mxu0 0.0
        %3989 = vmatprep.subr.mxu0 0.0
        %3990 = vmatpush1.msra.mxu0 0.0
        %3991 = vmatprep.subr.mxu0 0.0
        %3992 = vmatpush1.msra.mxu0 0.0
        %3993 = vmatprep.subr.mxu0 0.0
        %3994 = vmatpush1.msra.mxu0 0.0
        %3995 = vmatprep.subr.mxu0 0.0
        %3996 = vmatpush1.msra.mxu0 0.0
        %3997 = vmatprep.subr.mxu0 0.0
        %3998 = vmatpush1.msra.mxu0 0.0
        %3999 = vmatprep.subr.mxu0 0.0
        %4000 = vmatpush1.msra.mxu0 0.0
        %4001 = vmatprep.subr.mxu0 0.0
        %4002 = vmatpush1.msra.mxu0 0.0
        %4003 = vmatprep.subr.mxu0 0.0
        %4004 = vmatpush1.msra.mxu0 0.0
        %4005 = vmatprep.subr.mxu0 0.0
        %4006 = vmatpush1.msra.mxu0 0.0
        %4007 = vmatprep.subr.mxu0 0.0
        %4008 = vmatpush1.msra.mxu0 0.0
        %4009 = vmatprep.subr.mxu0 0.0
        %4010 = vmatpush1.msra.mxu0 0.0
        %4011 = vmatprep.subr.mxu0 0.0
        %4012 = vmatpush1.msra.mxu0 0.0
        %4013 = vmatprep.subr.mxu0 0.0
        %4014 = vmatpush1.msra.mxu0 0.0
        %4015 = vmatprep.subr.mxu0 0.0
        %4016 = vmatpush1.msra.mxu0 0.0
        %4017 = vmatprep.subr.mxu0 0.0
        %4018 = vmatpush1.msra.mxu0 0.0
        %4019 = vmatprep.subr.mxu0 0.0
        %4020 = vmatpush1.msra.mxu0 0.0
        %4021 = vmatprep.subr.mxu0 0.0
        %4022 = vmatpush1.msra.mxu0 0.0
        %4023 = vmatprep.subr.mxu0 0.0
        %4024 = vmatpush1.msra.mxu0 0.0
        %4025 = vmatprep.subr.mxu0 0.0
        %4026 = vmatpush1.msra.mxu0 0.0
        %4027 = vmatprep.subr.mxu0 0.0
        %4028 = vmatpush1.msra.mxu0 0.0
        %4029 = vmatprep.subr.mxu0 0.0
        %4030 = vmatpush1.msra.mxu0 0.0
        %4031 = vmatprep.subr.mxu0 0.0
        %4032 = vmatpush1.msra.mxu0 0.0
        %4033 = vmatprep.subr.mxu0 0.0
        %4034 = vmatpush1.msra.mxu0 0.0
        %4035 = vmatprep.subr.mxu0 0.0
        %4036 = vmatpush1.msra.mxu0 0.0
        %4037 = vmatprep.subr.mxu0 0.0
        %4038 = vmatpush1.msra.mxu0 0.0
        %4039 = vmatprep.subr.mxu0 0.0
        %4040 = vmatpush1.msra.mxu0 0.0
        %4041 = vmatprep.subr.mxu0 0.0
        %4042 = vmatpush1.msra.mxu0 0.0
        %4043 = vmatprep.subr.mxu0 0.0
        %4044 = vmatpush1.msra.mxu0 0.0
        %4045 = vmatprep.subr.mxu0 0.0
        %4046 = vmatpush1.msra.mxu0 0.0
        %4047 = vmatprep.subr.mxu0 0.0
        %4048 = vmatpush1.msra.mxu0 0.0
        %4049 = vmatprep.mubr.f32.mxu0 0.0
        %4050 = vmatmul.mubr.f32.gmra.mrb[0].mxu0 %v3904
        %v4051 = vpop.f32.mrb[0].mxu0
        %v4052 = vadd.f32 0.0, %v4051
        %v4053 = vpop.f32.mrb[0].mxu0
        %v4054 = vadd.f32 0.0, %v4053
        %4055 = vdwg.mxu0
        %v4056 = vadd.f32 %v3882, %v3981
        %v4057 = vadd.f32 %v3883, %v3983
        %v4058 = vadd.f32 %v3884, %v4052
        %v4059 = vadd.f32 %v3885, %v4054
        %s4060 = scalar_lea.vmem %s1, 176
        %v4061 = vld [vmem:[%s4060] sm:$0xff]
        %4062 = vrot.lane.b32.xlu0 %v246, 61
        %v4063 = vpop.permute.xlu0 %4062
        %4064 = vrot.lane.b32.xlu0 %v255, 61
        %v4065 = vpop.permute.xlu0 %4064
        %4066 = vrot.lane.b32.xlu0 %v247, 61
        %v4067 = vpop.permute.xlu0 %4066
        %4068 = vrot.lane.b32.xlu0 %v256, 61
        %v4069 = vpop.permute.xlu0 %4068
        %4070 = vrot.lane.b32.xlu0 %v248, 61
        %v4071 = vpop.permute.xlu0 %4070
        %vm4072 = vcmask 498688
        %v4073 = vsel %vm4072, %v4063, %v4065
        %v4074 = vsel %vm4072, %v4065, %v4067
        %v4075 = vsel %vm4072, %v4067, %v4069
        %v4076 = vsel %vm4072, %v4069, %v4071
        %v4078 = vsel %vm272, %v4061, 0
        %v4080 = vsel %vm276, %v4073, 0
        %v4082 = vsel %vm276, %v4074, 0
        %v4084 = vsel %vm276, %v4075, 0
        %v4086 = vsel %vm276, %v4076, 0
        %4088 = vmatprep.subr.mxu0 %v4082
        %4089 = vmatpush1.msra.mxu0 %v4080
        %4090 = vmatprep.subr.mxu0 0.0
        %4091 = vmatpush1.msra.mxu0 0.0
        %4092 = vmatprep.subr.mxu0 0.0
        %4093 = vmatpush1.msra.mxu0 0.0
        %4094 = vmatprep.subr.mxu0 0.0
        %4095 = vmatpush1.msra.mxu0 0.0
        %4096 = vmatprep.subr.mxu0 0.0
        %4097 = vmatpush1.msra.mxu0 0.0
        %4098 = vmatprep.subr.mxu0 0.0
        %4099 = vmatpush1.msra.mxu0 0.0
        %4100 = vmatprep.subr.mxu0 0.0
        %4101 = vmatpush1.msra.mxu0 0.0
        %4102 = vmatprep.subr.mxu0 0.0
        %4103 = vmatpush1.msra.mxu0 0.0
        %4104 = vmatprep.subr.mxu0 0.0
        %4105 = vmatpush1.msra.mxu0 0.0
        %4106 = vmatprep.subr.mxu0 0.0
        %4107 = vmatpush1.msra.mxu0 0.0
        %4108 = vmatprep.subr.mxu0 0.0
        %4109 = vmatpush1.msra.mxu0 0.0
        %4110 = vmatprep.subr.mxu0 0.0
        %4111 = vmatpush1.msra.mxu0 0.0
        %4112 = vmatprep.subr.mxu0 0.0
        %4113 = vmatpush1.msra.mxu0 0.0
        %4114 = vmatprep.subr.mxu0 0.0
        %4115 = vmatpush1.msra.mxu0 0.0
        %4116 = vmatprep.subr.mxu0 0.0
        %4117 = vmatpush1.msra.mxu0 0.0
        %4118 = vmatprep.subr.mxu0 0.0
        %4119 = vmatpush1.msra.mxu0 0.0
        %4120 = vmatprep.subr.mxu0 0.0
        %4121 = vmatpush1.msra.mxu0 0.0
        %4122 = vmatprep.subr.mxu0 0.0
        %4123 = vmatpush1.msra.mxu0 0.0
        %4124 = vmatprep.subr.mxu0 0.0
        %4125 = vmatpush1.msra.mxu0 0.0
        %4126 = vmatprep.subr.mxu0 0.0
        %4127 = vmatpush1.msra.mxu0 0.0
        %4128 = vmatprep.subr.mxu0 0.0
        %4129 = vmatpush1.msra.mxu0 0.0
        %4130 = vmatprep.subr.mxu0 0.0
        %4131 = vmatpush1.msra.mxu0 0.0
        %4132 = vmatprep.subr.mxu0 0.0
        %4133 = vmatpush1.msra.mxu0 0.0
        %4134 = vmatprep.subr.mxu0 0.0
        %4135 = vmatpush1.msra.mxu0 0.0
        %4136 = vmatprep.subr.mxu0 0.0
        %4137 = vmatpush1.msra.mxu0 0.0
        %4138 = vmatprep.subr.mxu0 0.0
        %4139 = vmatpush1.msra.mxu0 0.0
        %4140 = vmatprep.subr.mxu0 0.0
        %4141 = vmatpush1.msra.mxu0 0.0
        %4142 = vmatprep.subr.mxu0 0.0
        %4143 = vmatpush1.msra.mxu0 0.0
        %4144 = vmatprep.subr.mxu0 0.0
        %4145 = vmatpush1.msra.mxu0 0.0
        %4146 = vmatprep.subr.mxu0 0.0
        %4147 = vmatpush1.msra.mxu0 0.0
        %4148 = vmatprep.subr.mxu0 0.0
        %4149 = vmatpush1.msra.mxu0 0.0
        %4150 = vmatprep.subr.mxu0 0.0
        %4151 = vmatpush1.msra.mxu0 0.0
        %4152 = vmatprep.mubr.f32.mxu0 0.0
        %4153 = vmatmul.mubr.f32.gmra.mrb[0].mxu0 %v4078
        %v4154 = vpop.f32.mrb[0].mxu0
        %v4155 = vadd.f32 0.0, %v4154
        %v4156 = vpop.f32.mrb[0].mxu0
        %v4157 = vadd.f32 0.0, %v4156
        %4158 = vdwg.mxu0
        %4159 = vmatprep.subr.mxu0 %v4086
        %4160 = vmatpush1.msra.mxu0 %v4084
        %4161 = vmatprep.subr.mxu0 0.0
        %4162 = vmatpush1.msra.mxu0 0.0
        %4163 = vmatprep.subr.mxu0 0.0
        %4164 = vmatpush1.msra.mxu0 0.0
        %4165 = vmatprep.subr.mxu0 0.0
        %4166 = vmatpush1.msra.mxu0 0.0
        %4167 = vmatprep.subr.mxu0 0.0
        %4168 = vmatpush1.msra.mxu0 0.0
        %4169 = vmatprep.subr.mxu0 0.0
        %4170 = vmatpush1.msra.mxu0 0.0
        %4171 = vmatprep.subr.mxu0 0.0
        %4172 = vmatpush1.msra.mxu0 0.0
        %4173 = vmatprep.subr.mxu0 0.0
        %4174 = vmatpush1.msra.mxu0 0.0
        %4175 = vmatprep.subr.mxu0 0.0
        %4176 = vmatpush1.msra.mxu0 0.0
        %4177 = vmatprep.subr.mxu0 0.0
        %4178 = vmatpush1.msra.mxu0 0.0
        %4179 = vmatprep.subr.mxu0 0.0
        %4180 = vmatpush1.msra.mxu0 0.0
        %4181 = vmatprep.subr.mxu0 0.0
        %4182 = vmatpush1.msra.mxu0 0.0
        %4183 = vmatprep.subr.mxu0 0.0
        %4184 = vmatpush1.msra.mxu0 0.0
        %4185 = vmatprep.subr.mxu0 0.0
        %4186 = vmatpush1.msra.mxu0 0.0
        %4187 = vmatprep.subr.mxu0 0.0
        %4188 = vmatpush1.msra.mxu0 0.0
        %4189 = vmatprep.subr.mxu0 0.0
        %4190 = vmatpush1.msra.mxu0 0.0
        %4191 = vmatprep.subr.mxu0 0.0
        %4192 = vmatpush1.msra.mxu0 0.0
        %4193 = vmatprep.subr.mxu0 0.0
        %4194 = vmatpush1.msra.mxu0 0.0
        %4195 = vmatprep.subr.mxu0 0.0
        %4196 = vmatpush1.msra.mxu0 0.0
        %4197 = vmatprep.subr.mxu0 0.0
        %4198 = vmatpush1.msra.mxu0 0.0
        %4199 = vmatprep.subr.mxu0 0.0
        %4200 = vmatpush1.msra.mxu0 0.0
        %4201 = vmatprep.subr.mxu0 0.0
        %4202 = vmatpush1.msra.mxu0 0.0
        %4203 = vmatprep.subr.mxu0 0.0
        %4204 = vmatpush1.msra.mxu0 0.0
        %4205 = vmatprep.subr.mxu0 0.0
        %4206 = vmatpush1.msra.mxu0 0.0
        %4207 = vmatprep.subr.mxu0 0.0
        %4208 = vmatpush1.msra.mxu0 0.0
        %4209 = vmatprep.subr.mxu0 0.0
        %4210 = vmatpush1.msra.mxu0 0.0
        %4211 = vmatprep.subr.mxu0 0.0
        %4212 = vmatpush1.msra.mxu0 0.0
        %4213 = vmatprep.subr.mxu0 0.0
        %4214 = vmatpush1.msra.mxu0 0.0
        %4215 = vmatprep.subr.mxu0 0.0
        %4216 = vmatpush1.msra.mxu0 0.0
        %4217 = vmatprep.subr.mxu0 0.0
        %4218 = vmatpush1.msra.mxu0 0.0
        %4219 = vmatprep.subr.mxu0 0.0
        %4220 = vmatpush1.msra.mxu0 0.0
        %4221 = vmatprep.subr.mxu0 0.0
        %4222 = vmatpush1.msra.mxu0 0.0
        %4223 = vmatprep.mubr.f32.mxu0 0.0
        %4224 = vmatmul.mubr.f32.gmra.mrb[0].mxu0 %v4078
        %v4225 = vpop.f32.mrb[0].mxu0
        %v4226 = vadd.f32 0.0, %v4225
        %v4227 = vpop.f32.mrb[0].mxu0
        %v4228 = vadd.f32 0.0, %v4227
        %4229 = vdwg.mxu0
        %v4230 = vadd.f32 %v4056, %v4155
        %v4231 = vadd.f32 %v4057, %v4157
        %v4232 = vadd.f32 %v4058, %v4226
        %v4233 = vadd.f32 %v4059, %v4228
        %s4234 = scalar_lea.vmem %s1, 184
        %v4235 = vld [vmem:[%s4234] sm:$0xff]
        %4236 = vrot.lane.b32.xlu0 %v246, 60
        %v4237 = vpop.permute.xlu0 %4236
        %4238 = vrot.lane.b32.xlu0 %v255, 60
        %v4239 = vpop.permute.xlu0 %4238
        %4240 = vrot.lane.b32.xlu0 %v247, 60
        %v4241 = vpop.permute.xlu0 %4240
        %4242 = vrot.lane.b32.xlu0 %v256, 60
        %v4243 = vpop.permute.xlu0 %4242
        %4244 = vrot.lane.b32.xlu0 %v248, 60
        %v4245 = vpop.permute.xlu0 %4244
        %vm4246 = vcmask 490496
        %v4247 = vsel %vm4246, %v4237, %v4239
        %v4248 = vsel %vm4246, %v4239, %v4241
        %v4249 = vsel %vm4246, %v4241, %v4243
        %v4250 = vsel %vm4246, %v4243, %v4245
        %v4252 = vsel %vm272, %v4235, 0
        %v4254 = vsel %vm276, %v4247, 0
        %v4256 = vsel %vm276, %v4248, 0
        %v4258 = vsel %vm276, %v4249, 0
        %v4260 = vsel %vm276, %v4250, 0
        %4262 = vmatprep.subr.mxu0 %v4256
        %4263 = vmatpush1.msra.mxu0 %v4254
        %4264 = vmatprep.subr.mxu0 0.0
        %4265 = vmatpush1.msra.mxu0 0.0
        %4266 = vmatprep.subr.mxu0 0.0
        %4267 = vmatpush1.msra.mxu0 0.0
        %4268 = vmatprep.subr.mxu0 0.0
        %4269 = vmatpush1.msra.mxu0 0.0
        %4270 = vmatprep.subr.mxu0 0.0
        %4271 = vmatpush1.msra.mxu0 0.0
        %4272 = vmatprep.subr.mxu0 0.0
        %4273 = vmatpush1.msra.mxu0 0.0
        %4274 = vmatprep.subr.mxu0 0.0
        %4275 = vmatpush1.msra.mxu0 0.0
        %4276 = vmatprep.subr.mxu0 0.0
        %4277 = vmatpush1.msra.mxu0 0.0
        %4278 = vmatprep.subr.mxu0 0.0
        %4279 = vmatpush1.msra.mxu0 0.0
        %4280 = vmatprep.subr.mxu0 0.0
        %4281 = vmatpush1.msra.mxu0 0.0
        %4282 = vmatprep.subr.mxu0 0.0
        %4283 = vmatpush1.msra.mxu0 0.0
        %4284 = vmatprep.subr.mxu0 0.0
        %4285 = vmatpush1.msra.mxu0 0.0
        %4286 = vmatprep.subr.mxu0 0.0
        %4287 = vmatpush1.msra.mxu0 0.0
        %4288 = vmatprep.subr.mxu0 0.0
        %4289 = vmatpush1.msra.mxu0 0.0
        %4290 = vmatprep.subr.mxu0 0.0
        %4291 = vmatpush1.msra.mxu0 0.0
        %4292 = vmatprep.subr.mxu0 0.0
        %4293 = vmatpush1.msra.mxu0 0.0
        %4294 = vmatprep.subr.mxu0 0.0
        %4295 = vmatpush1.msra.mxu0 0.0
        %4296 = vmatprep.subr.mxu0 0.0
        %4297 = vmatpush1.msra.mxu0 0.0
        %4298 = vmatprep.subr.mxu0 0.0
        %4299 = vmatpush1.msra.mxu0 0.0
        %4300 = vmatprep.subr.mxu0 0.0
        %4301 = vmatpush1.msra.mxu0 0.0
        %4302 = vmatprep.subr.mxu0 0.0
        %4303 = vmatpush1.msra.mxu0 0.0
        %4304 = vmatprep.subr.mxu0 0.0
        %4305 = vmatpush1.msra.mxu0 0.0
        %4306 = vmatprep.subr.mxu0 0.0
        %4307 = vmatpush1.msra.mxu0 0.0
        %4308 = vmatprep.subr.mxu0 0.0
        %4309 = vmatpush1.msra.mxu0 0.0
        %4310 = vmatprep.subr.mxu0 0.0
        %4311 = vmatpush1.msra.mxu0 0.0
        %4312 = vmatprep.subr.mxu0 0.0
        %4313 = vmatpush1.msra.mxu0 0.0
        %4314 = vmatprep.subr.mxu0 0.0
        %4315 = vmatpush1.msra.mxu0 0.0
        %4316 = vmatprep.subr.mxu0 0.0
        %4317 = vmatpush1.msra.mxu0 0.0
        %4318 = vmatprep.subr.mxu0 0.0
        %4319 = vmatpush1.msra.mxu0 0.0
        %4320 = vmatprep.subr.mxu0 0.0
        %4321 = vmatpush1.msra.mxu0 0.0
        %4322 = vmatprep.subr.mxu0 0.0
        %4323 = vmatpush1.msra.mxu0 0.0
        %4324 = vmatprep.subr.mxu0 0.0
        %4325 = vmatpush1.msra.mxu0 0.0
        %4326 = vmatprep.mubr.f32.mxu0 0.0
        %4327 = vmatmul.mubr.f32.gmra.mrb[0].mxu0 %v4252
        %v4328 = vpop.f32.mrb[0].mxu0
        %v4329 = vadd.f32 0.0, %v4328
        %v4330 = vpop.f32.mrb[0].mxu0
        %v4331 = vadd.f32 0.0, %v4330
        %4332 = vdwg.mxu0
        %4333 = vmatprep.subr.mxu0 %v4260
        %4334 = vmatpush1.msra.mxu0 %v4258
        %4335 = vmatprep.subr.mxu0 0.0
        %4336 = vmatpush1.msra.mxu0 0.0
        %4337 = vmatprep.subr.mxu0 0.0
        %4338 = vmatpush1.msra.mxu0 0.0
        %4339 = vmatprep.subr.mxu0 0.0
        %4340 = vmatpush1.msra.mxu0 0.0
        %4341 = vmatprep.subr.mxu0 0.0
        %4342 = vmatpush1.msra.mxu0 0.0
        %4343 = vmatprep.subr.mxu0 0.0
        %4344 = vmatpush1.msra.mxu0 0.0
        %4345 = vmatprep.subr.mxu0 0.0
        %4346 = vmatpush1.msra.mxu0 0.0
        %4347 = vmatprep.subr.mxu0 0.0
        %4348 = vmatpush1.msra.mxu0 0.0
        %4349 = vmatprep.subr.mxu0 0.0
        %4350 = vmatpush1.msra.mxu0 0.0
        %4351 = vmatprep.subr.mxu0 0.0
        %4352 = vmatpush1.msra.mxu0 0.0
        %4353 = vmatprep.subr.mxu0 0.0
        %4354 = vmatpush1.msra.mxu0 0.0
        %4355 = vmatprep.subr.mxu0 0.0
        %4356 = vmatpush1.msra.mxu0 0.0
        %4357 = vmatprep.subr.mxu0 0.0
        %4358 = vmatpush1.msra.mxu0 0.0
        %4359 = vmatprep.subr.mxu0 0.0
        %4360 = vmatpush1.msra.mxu0 0.0
        %4361 = vmatprep.subr.mxu0 0.0
        %4362 = vmatpush1.msra.mxu0 0.0
        %4363 = vmatprep.subr.mxu0 0.0
        %4364 = vmatpush1.msra.mxu0 0.0
        %4365 = vmatprep.subr.mxu0 0.0
        %4366 = vmatpush1.msra.mxu0 0.0
        %4367 = vmatprep.subr.mxu0 0.0
        %4368 = vmatpush1.msra.mxu0 0.0
        %4369 = vmatprep.subr.mxu0 0.0
        %4370 = vmatpush1.msra.mxu0 0.0
        %4371 = vmatprep.subr.mxu0 0.0
        %4372 = vmatpush1.msra.mxu0 0.0
        %4373 = vmatprep.subr.mxu0 0.0
        %4374 = vmatpush1.msra.mxu0 0.0
        %4375 = vmatprep.subr.mxu0 0.0
        %4376 = vmatpush1.msra.mxu0 0.0
        %4377 = vmatprep.subr.mxu0 0.0
        %4378 = vmatpush1.msra.mxu0 0.0
        %4379 = vmatprep.subr.mxu0 0.0
        %4380 = vmatpush1.msra.mxu0 0.0
        %4381 = vmatprep.subr.mxu0 0.0
        %4382 = vmatpush1.msra.mxu0 0.0
        %4383 = vmatprep.subr.mxu0 0.0
        %4384 = vmatpush1.msra.mxu0 0.0
        %4385 = vmatprep.subr.mxu0 0.0
        %4386 = vmatpush1.msra.mxu0 0.0
        %4387 = vmatprep.subr.mxu0 0.0
        %4388 = vmatpush1.msra.mxu0 0.0
        %4389 = vmatprep.subr.mxu0 0.0
        %4390 = vmatpush1.msra.mxu0 0.0
        %4391 = vmatprep.subr.mxu0 0.0
        %4392 = vmatpush1.msra.mxu0 0.0
        %4393 = vmatprep.subr.mxu0 0.0
        %4394 = vmatpush1.msra.mxu0 0.0
        %4395 = vmatprep.subr.mxu0 0.0
        %4396 = vmatpush1.msra.mxu0 0.0
        %4397 = vmatprep.mubr.f32.mxu0 0.0
        %4398 = vmatmul.mubr.f32.gmra.mrb[0].mxu0 %v4252
        %v4399 = vpop.f32.mrb[0].mxu0
        %v4400 = vadd.f32 0.0, %v4399
        %v4401 = vpop.f32.mrb[0].mxu0
        %v4402 = vadd.f32 0.0, %v4401
        %4403 = vdwg.mxu0
        %v4404 = vadd.f32 %v4230, %v4329
        %v4405 = vadd.f32 %v4231, %v4331
        %v4406 = vadd.f32 %v4232, %v4400
        %v4407 = vadd.f32 %v4233, %v4402
        %s4408 = scalar_lea.vmem %s1, 192
        %v4409 = vld [vmem:[%s4408] sm:$0xff]
        %4410 = vrot.lane.b32.xlu0 %v246, 59
        %v4411 = vpop.permute.xlu0 %4410
        %4412 = vrot.lane.b32.xlu0 %v255, 59
        %v4413 = vpop.permute.xlu0 %4412
        %4414 = vrot.lane.b32.xlu0 %v247, 59
        %v4415 = vpop.permute.xlu0 %4414
        %4416 = vrot.lane.b32.xlu0 %v256, 59
        %v4417 = vpop.permute.xlu0 %4416
        %4418 = vrot.lane.b32.xlu0 %v248, 59
        %v4419 = vpop.permute.xlu0 %4418
        %vm4420 = vcmask 482304
        %v4421 = vsel %vm4420, %v4411, %v4413
        %v4422 = vsel %vm4420, %v4413, %v4415
        %v4423 = vsel %vm4420, %v4415, %v4417
        %v4424 = vsel %vm4420, %v4417, %v4419
        %v4426 = vsel %vm272, %v4409, 0
        %v4428 = vsel %vm276, %v4421, 0
        %v4430 = vsel %vm276, %v4422, 0
        %v4432 = vsel %vm276, %v4423, 0
        %v4434 = vsel %vm276, %v4424, 0
        %4436 = vmatprep.subr.mxu0 %v4430
        %4437 = vmatpush1.msra.mxu0 %v4428
        %4438 = vmatprep.subr.mxu0 0.0
        %4439 = vmatpush1.msra.mxu0 0.0
        %4440 = vmatprep.subr.mxu0 0.0
        %4441 = vmatpush1.msra.mxu0 0.0
        %4442 = vmatprep.subr.mxu0 0.0
        %4443 = vmatpush1.msra.mxu0 0.0
        %4444 = vmatprep.subr.mxu0 0.0
        %4445 = vmatpush1.msra.mxu0 0.0
        %4446 = vmatprep.subr.mxu0 0.0
        %4447 = vmatpush1.msra.mxu0 0.0
        %4448 = vmatprep.subr.mxu0 0.0
        %4449 = vmatpush1.msra.mxu0 0.0
        %4450 = vmatprep.subr.mxu0 0.0
        %4451 = vmatpush1.msra.mxu0 0.0
        %4452 = vmatprep.subr.mxu0 0.0
        %4453 = vmatpush1.msra.mxu0 0.0
        %4454 = vmatprep.subr.mxu0 0.0
        %4455 = vmatpush1.msra.mxu0 0.0
        %4456 = vmatprep.subr.mxu0 0.0
        %4457 = vmatpush1.msra.mxu0 0.0
        %4458 = vmatprep.subr.mxu0 0.0
        %4459 = vmatpush1.msra.mxu0 0.0
        %4460 = vmatprep.subr.mxu0 0.0
        %4461 = vmatpush1.msra.mxu0 0.0
        %4462 = vmatprep.subr.mxu0 0.0
        %4463 = vmatpush1.msra.mxu0 0.0
        %4464 = vmatprep.subr.mxu0 0.0
        %4465 = vmatpush1.msra.mxu0 0.0
        %4466 = vmatprep.subr.mxu0 0.0
        %4467 = vmatpush1.msra.mxu0 0.0
        %4468 = vmatprep.subr.mxu0 0.0
        %4469 = vmatpush1.msra.mxu0 0.0
        %4470 = vmatprep.subr.mxu0 0.0
        %4471 = vmatpush1.msra.mxu0 0.0
        %4472 = vmatprep.subr.mxu0 0.0
        %4473 = vmatpush1.msra.mxu0 0.0
        %4474 = vmatprep.subr.mxu0 0.0
        %4475 = vmatpush1.msra.mxu0 0.0
        %4476 = vmatprep.subr.mxu0 0.0
        %4477 = vmatpush1.msra.mxu0 0.0
        %4478 = vmatprep.subr.mxu0 0.0
        %4479 = vmatpush1.msra.mxu0 0.0
        %4480 = vmatprep.subr.mxu0 0.0
        %4481 = vmatpush1.msra.mxu0 0.0
        %4482 = vmatprep.subr.mxu0 0.0
        %4483 = vmatpush1.msra.mxu0 0.0
        %4484 = vmatprep.subr.mxu0 0.0
        %4485 = vmatpush1.msra.mxu0 0.0
        %4486 = vmatprep.subr.mxu0 0.0
        %4487 = vmatpush1.msra.mxu0 0.0
        %4488 = vmatprep.subr.mxu0 0.0
        %4489 = vmatpush1.msra.mxu0 0.0
        %4490 = vmatprep.subr.mxu0 0.0
        %4491 = vmatpush1.msra.mxu0 0.0
        %4492 = vmatprep.subr.mxu0 0.0
        %4493 = vmatpush1.msra.mxu0 0.0
        %4494 = vmatprep.subr.mxu0 0.0
        %4495 = vmatpush1.msra.mxu0 0.0
        %4496 = vmatprep.subr.mxu0 0.0
        %4497 = vmatpush1.msra.mxu0 0.0
        %4498 = vmatprep.subr.mxu0 0.0
        %4499 = vmatpush1.msra.mxu0 0.0
        %4500 = vmatprep.mubr.f32.mxu0 0.0
        %4501 = vmatmul.mubr.f32.gmra.mrb[0].mxu0 %v4426
        %v4502 = vpop.f32.mrb[0].mxu0
        %v4503 = vadd.f32 0.0, %v4502
        %v4504 = vpop.f32.mrb[0].mxu0
        %v4505 = vadd.f32 0.0, %v4504
        %4506 = vdwg.mxu0
        %4507 = vmatprep.subr.mxu0 %v4434
        %4508 = vmatpush1.msra.mxu0 %v4432
        %4509 = vmatprep.subr.mxu0 0.0
        %4510 = vmatpush1.msra.mxu0 0.0
        %4511 = vmatprep.subr.mxu0 0.0
        %4512 = vmatpush1.msra.mxu0 0.0
        %4513 = vmatprep.subr.mxu0 0.0
        %4514 = vmatpush1.msra.mxu0 0.0
        %4515 = vmatprep.subr.mxu0 0.0
        %4516 = vmatpush1.msra.mxu0 0.0
        %4517 = vmatprep.subr.mxu0 0.0
        %4518 = vmatpush1.msra.mxu0 0.0
        %4519 = vmatprep.subr.mxu0 0.0
        %4520 = vmatpush1.msra.mxu0 0.0
        %4521 = vmatprep.subr.mxu0 0.0
        %4522 = vmatpush1.msra.mxu0 0.0
        %4523 = vmatprep.subr.mxu0 0.0
        %4524 = vmatpush1.msra.mxu0 0.0
        %4525 = vmatprep.subr.mxu0 0.0
        %4526 = vmatpush1.msra.mxu0 0.0
        %4527 = vmatprep.subr.mxu0 0.0
        %4528 = vmatpush1.msra.mxu0 0.0
        %4529 = vmatprep.subr.mxu0 0.0
        %4530 = vmatpush1.msra.mxu0 0.0
        %4531 = vmatprep.subr.mxu0 0.0
        %4532 = vmatpush1.msra.mxu0 0.0
        %4533 = vmatprep.subr.mxu0 0.0
        %4534 = vmatpush1.msra.mxu0 0.0
        %4535 = vmatprep.subr.mxu0 0.0
        %4536 = vmatpush1.msra.mxu0 0.0
        %4537 = vmatprep.subr.mxu0 0.0
        %4538 = vmatpush1.msra.mxu0 0.0
        %4539 = vmatprep.subr.mxu0 0.0
        %4540 = vmatpush1.msra.mxu0 0.0
        %4541 = vmatprep.subr.mxu0 0.0
        %4542 = vmatpush1.msra.mxu0 0.0
        %4543 = vmatprep.subr.mxu0 0.0
        %4544 = vmatpush1.msra.mxu0 0.0
        %4545 = vmatprep.subr.mxu0 0.0
        %4546 = vmatpush1.msra.mxu0 0.0
        %4547 = vmatprep.subr.mxu0 0.0
        %4548 = vmatpush1.msra.mxu0 0.0
        %4549 = vmatprep.subr.mxu0 0.0
        %4550 = vmatpush1.msra.mxu0 0.0
        %4551 = vmatprep.subr.mxu0 0.0
        %4552 = vmatpush1.msra.mxu0 0.0
        %4553 = vmatprep.subr.mxu0 0.0
        %4554 = vmatpush1.msra.mxu0 0.0
        %4555 = vmatprep.subr.mxu0 0.0
        %4556 = vmatpush1.msra.mxu0 0.0
        %4557 = vmatprep.subr.mxu0 0.0
        %4558 = vmatpush1.msra.mxu0 0.0
        %4559 = vmatprep.subr.mxu0 0.0
        %4560 = vmatpush1.msra.mxu0 0.0
        %4561 = vmatprep.subr.mxu0 0.0
        %4562 = vmatpush1.msra.mxu0 0.0
        %4563 = vmatprep.subr.mxu0 0.0
        %4564 = vmatpush1.msra.mxu0 0.0
        %4565 = vmatprep.subr.mxu0 0.0
        %4566 = vmatpush1.msra.mxu0 0.0
        %4567 = vmatprep.subr.mxu0 0.0
        %4568 = vmatpush1.msra.mxu0 0.0
        %4569 = vmatprep.subr.mxu0 0.0
        %4570 = vmatpush1.msra.mxu0 0.0
        %4571 = vmatprep.mubr.f32.mxu0 0.0
        %4572 = vmatmul.mubr.f32.gmra.mrb[0].mxu0 %v4426
        %v4573 = vpop.f32.mrb[0].mxu0
        %v4574 = vadd.f32 0.0, %v4573
        %v4575 = vpop.f32.mrb[0].mxu0
        %v4576 = vadd.f32 0.0, %v4575
        %4577 = vdwg.mxu0
        %v4578 = vadd.f32 %v4404, %v4503
        %v4579 = vadd.f32 %v4405, %v4505
        %v4580 = vadd.f32 %v4406, %v4574
        %v4581 = vadd.f32 %v4407, %v4576
        %s4582 = scalar_lea.vmem %s1, 200
        %v4583 = vld [vmem:[%s4582] sm:$0xff]
        %4584 = vrot.lane.b32.xlu0 %v246, 58
        %v4585 = vpop.permute.xlu0 %4584
        %4586 = vrot.lane.b32.xlu0 %v255, 58
        %v4587 = vpop.permute.xlu0 %4586
        %4588 = vrot.lane.b32.xlu0 %v247, 58
        %v4589 = vpop.permute.xlu0 %4588
        %4590 = vrot.lane.b32.xlu0 %v256, 58
        %v4591 = vpop.permute.xlu0 %4590
        %4592 = vrot.lane.b32.xlu0 %v248, 58
        %v4593 = vpop.permute.xlu0 %4592
        %vm4594 = vcmask 474112
        %v4595 = vsel %vm4594, %v4585, %v4587
        %v4596 = vsel %vm4594, %v4587, %v4589
        %v4597 = vsel %vm4594, %v4589, %v4591
        %v4598 = vsel %vm4594, %v4591, %v4593
        %v4600 = vsel %vm272, %v4583, 0
        %v4602 = vsel %vm276, %v4595, 0
        %v4604 = vsel %vm276, %v4596, 0
        %v4606 = vsel %vm276, %v4597, 0
        %v4608 = vsel %vm276, %v4598, 0
        %4610 = vmatprep.subr.mxu0 %v4604
        %4611 = vmatpush1.msra.mxu0 %v4602
        %4612 = vmatprep.subr.mxu0 0.0
        %4613 = vmatpush1.msra.mxu0 0.0
        %4614 = vmatprep.subr.mxu0 0.0
        %4615 = vmatpush1.msra.mxu0 0.0
        %4616 = vmatprep.subr.mxu0 0.0
        %4617 = vmatpush1.msra.mxu0 0.0
        %4618 = vmatprep.subr.mxu0 0.0
        %4619 = vmatpush1.msra.mxu0 0.0
        %4620 = vmatprep.subr.mxu0 0.0
        %4621 = vmatpush1.msra.mxu0 0.0
        %4622 = vmatprep.subr.mxu0 0.0
        %4623 = vmatpush1.msra.mxu0 0.0
        %4624 = vmatprep.subr.mxu0 0.0
        %4625 = vmatpush1.msra.mxu0 0.0
        %4626 = vmatprep.subr.mxu0 0.0
        %4627 = vmatpush1.msra.mxu0 0.0
        %4628 = vmatprep.subr.mxu0 0.0
        %4629 = vmatpush1.msra.mxu0 0.0
        %4630 = vmatprep.subr.mxu0 0.0
        %4631 = vmatpush1.msra.mxu0 0.0
        %4632 = vmatprep.subr.mxu0 0.0
        %4633 = vmatpush1.msra.mxu0 0.0
        %4634 = vmatprep.subr.mxu0 0.0
        %4635 = vmatpush1.msra.mxu0 0.0
        %4636 = vmatprep.subr.mxu0 0.0
        %4637 = vmatpush1.msra.mxu0 0.0
        %4638 = vmatprep.subr.mxu0 0.0
        %4639 = vmatpush1.msra.mxu0 0.0
        %4640 = vmatprep.subr.mxu0 0.0
        %4641 = vmatpush1.msra.mxu0 0.0
        %4642 = vmatprep.subr.mxu0 0.0
        %4643 = vmatpush1.msra.mxu0 0.0
        %4644 = vmatprep.subr.mxu0 0.0
        %4645 = vmatpush1.msra.mxu0 0.0
        %4646 = vmatprep.subr.mxu0 0.0
        %4647 = vmatpush1.msra.mxu0 0.0
        %4648 = vmatprep.subr.mxu0 0.0
        %4649 = vmatpush1.msra.mxu0 0.0
        %4650 = vmatprep.subr.mxu0 0.0
        %4651 = vmatpush1.msra.mxu0 0.0
        %4652 = vmatprep.subr.mxu0 0.0
        %4653 = vmatpush1.msra.mxu0 0.0
        %4654 = vmatprep.subr.mxu0 0.0
        %4655 = vmatpush1.msra.mxu0 0.0
        %4656 = vmatprep.subr.mxu0 0.0
        %4657 = vmatpush1.msra.mxu0 0.0
        %4658 = vmatprep.subr.mxu0 0.0
        %4659 = vmatpush1.msra.mxu0 0.0
        %4660 = vmatprep.subr.mxu0 0.0
        %4661 = vmatpush1.msra.mxu0 0.0
        %4662 = vmatprep.subr.mxu0 0.0
        %4663 = vmatpush1.msra.mxu0 0.0
        %4664 = vmatprep.subr.mxu0 0.0
        %4665 = vmatpush1.msra.mxu0 0.0
        %4666 = vmatprep.subr.mxu0 0.0
        %4667 = vmatpush1.msra.mxu0 0.0
        %4668 = vmatprep.subr.mxu0 0.0
        %4669 = vmatpush1.msra.mxu0 0.0
        %4670 = vmatprep.subr.mxu0 0.0
        %4671 = vmatpush1.msra.mxu0 0.0
        %4672 = vmatprep.subr.mxu0 0.0
        %4673 = vmatpush1.msra.mxu0 0.0
        %4674 = vmatprep.mubr.f32.mxu0 0.0
        %4675 = vmatmul.mubr.f32.gmra.mrb[0].mxu0 %v4600
        %v4676 = vpop.f32.mrb[0].mxu0
        %v4677 = vadd.f32 0.0, %v4676
        %v4678 = vpop.f32.mrb[0].mxu0
        %v4679 = vadd.f32 0.0, %v4678
        %4680 = vdwg.mxu0
        %4681 = vmatprep.subr.mxu0 %v4608
        %4682 = vmatpush1.msra.mxu0 %v4606
        %4683 = vmatprep.subr.mxu0 0.0
        %4684 = vmatpush1.msra.mxu0 0.0
        %4685 = vmatprep.subr.mxu0 0.0
        %4686 = vmatpush1.msra.mxu0 0.0
        %4687 = vmatprep.subr.mxu0 0.0
        %4688 = vmatpush1.msra.mxu0 0.0
        %4689 = vmatprep.subr.mxu0 0.0
        %4690 = vmatpush1.msra.mxu0 0.0
        %4691 = vmatprep.subr.mxu0 0.0
        %4692 = vmatpush1.msra.mxu0 0.0
        %4693 = vmatprep.subr.mxu0 0.0
        %4694 = vmatpush1.msra.mxu0 0.0
        %4695 = vmatprep.subr.mxu0 0.0
        %4696 = vmatpush1.msra.mxu0 0.0
        %4697 = vmatprep.subr.mxu0 0.0
        %4698 = vmatpush1.msra.mxu0 0.0
        %4699 = vmatprep.subr.mxu0 0.0
        %4700 = vmatpush1.msra.mxu0 0.0
        %4701 = vmatprep.subr.mxu0 0.0
        %4702 = vmatpush1.msra.mxu0 0.0
        %4703 = vmatprep.subr.mxu0 0.0
        %4704 = vmatpush1.msra.mxu0 0.0
        %4705 = vmatprep.subr.mxu0 0.0
        %4706 = vmatpush1.msra.mxu0 0.0
        %4707 = vmatprep.subr.mxu0 0.0
        %4708 = vmatpush1.msra.mxu0 0.0
        %4709 = vmatprep.subr.mxu0 0.0
        %4710 = vmatpush1.msra.mxu0 0.0
        %4711 = vmatprep.subr.mxu0 0.0
        %4712 = vmatpush1.msra.mxu0 0.0
        %4713 = vmatprep.subr.mxu0 0.0
        %4714 = vmatpush1.msra.mxu0 0.0
        %4715 = vmatprep.subr.mxu0 0.0
        %4716 = vmatpush1.msra.mxu0 0.0
        %4717 = vmatprep.subr.mxu0 0.0
        %4718 = vmatpush1.msra.mxu0 0.0
        %4719 = vmatprep.subr.mxu0 0.0
        %4720 = vmatpush1.msra.mxu0 0.0
        %4721 = vmatprep.subr.mxu0 0.0
        %4722 = vmatpush1.msra.mxu0 0.0
        %4723 = vmatprep.subr.mxu0 0.0
        %4724 = vmatpush1.msra.mxu0 0.0
        %4725 = vmatprep.subr.mxu0 0.0
        %4726 = vmatpush1.msra.mxu0 0.0
        %4727 = vmatprep.subr.mxu0 0.0
        %4728 = vmatpush1.msra.mxu0 0.0
        %4729 = vmatprep.subr.mxu0 0.0
        %4730 = vmatpush1.msra.mxu0 0.0
        %4731 = vmatprep.subr.mxu0 0.0
        %4732 = vmatpush1.msra.mxu0 0.0
        %4733 = vmatprep.subr.mxu0 0.0
        %4734 = vmatpush1.msra.mxu0 0.0
        %4735 = vmatprep.subr.mxu0 0.0
        %4736 = vmatpush1.msra.mxu0 0.0
        %4737 = vmatprep.subr.mxu0 0.0
        %4738 = vmatpush1.msra.mxu0 0.0
        %4739 = vmatprep.subr.mxu0 0.0
        %4740 = vmatpush1.msra.mxu0 0.0
        %4741 = vmatprep.subr.mxu0 0.0
        %4742 = vmatpush1.msra.mxu0 0.0
        %4743 = vmatprep.subr.mxu0 0.0
        %4744 = vmatpush1.msra.mxu0 0.0
        %4745 = vmatprep.mubr.f32.mxu0 0.0
        %4746 = vmatmul.mubr.f32.gmra.mrb[0].mxu0 %v4600
        %v4747 = vpop.f32.mrb[0].mxu0
        %v4748 = vadd.f32 0.0, %v4747
        %v4749 = vpop.f32.mrb[0].mxu0
        %v4750 = vadd.f32 0.0, %v4749
        %4751 = vdwg.mxu0
        %v4752 = vadd.f32 %v4578, %v4677
        %v4753 = vadd.f32 %v4579, %v4679
        %v4754 = vadd.f32 %v4580, %v4748
        %v4755 = vadd.f32 %v4581, %v4750
        %s4756 = scalar_lea.vmem %s1, 208
        %v4757 = vld [vmem:[%s4756] sm:$0xff]
        %4758 = vrot.lane.b32.xlu0 %v246, 57
        %v4759 = vpop.permute.xlu0 %4758
        %4760 = vrot.lane.b32.xlu0 %v255, 57
        %v4761 = vpop.permute.xlu0 %4760
        %4762 = vrot.lane.b32.xlu0 %v247, 57
        %v4763 = vpop.permute.xlu0 %4762
        %4764 = vrot.lane.b32.xlu0 %v256, 57
        %v4765 = vpop.permute.xlu0 %4764
        %4766 = vrot.lane.b32.xlu0 %v248, 57
        %v4767 = vpop.permute.xlu0 %4766
        %vm4768 = vcmask 465920
        %v4769 = vsel %vm4768, %v4759, %v4761
        %v4770 = vsel %vm4768, %v4761, %v4763
        %v4771 = vsel %vm4768, %v4763, %v4765
        %v4772 = vsel %vm4768, %v4765, %v4767
        %v4774 = vsel %vm272, %v4757, 0
        %v4776 = vsel %vm276, %v4769, 0
        %v4778 = vsel %vm276, %v4770, 0
        %v4780 = vsel %vm276, %v4771, 0
        %v4782 = vsel %vm276, %v4772, 0
        %4784 = vmatprep.subr.mxu0 %v4778
        %4785 = vmatpush1.msra.mxu0 %v4776
        %4786 = vmatprep.subr.mxu0 0.0
        %4787 = vmatpush1.msra.mxu0 0.0
        %4788 = vmatprep.subr.mxu0 0.0
        %4789 = vmatpush1.msra.mxu0 0.0
        %4790 = vmatprep.subr.mxu0 0.0
        %4791 = vmatpush1.msra.mxu0 0.0
        %4792 = vmatprep.subr.mxu0 0.0
        %4793 = vmatpush1.msra.mxu0 0.0
        %4794 = vmatprep.subr.mxu0 0.0
        %4795 = vmatpush1.msra.mxu0 0.0
        %4796 = vmatprep.subr.mxu0 0.0
        %4797 = vmatpush1.msra.mxu0 0.0
        %4798 = vmatprep.subr.mxu0 0.0
        %4799 = vmatpush1.msra.mxu0 0.0
        %4800 = vmatprep.subr.mxu0 0.0
        %4801 = vmatpush1.msra.mxu0 0.0
        %4802 = vmatprep.subr.mxu0 0.0
        %4803 = vmatpush1.msra.mxu0 0.0
        %4804 = vmatprep.subr.mxu0 0.0
        %4805 = vmatpush1.msra.mxu0 0.0
        %4806 = vmatprep.subr.mxu0 0.0
        %4807 = vmatpush1.msra.mxu0 0.0
        %4808 = vmatprep.subr.mxu0 0.0
        %4809 = vmatpush1.msra.mxu0 0.0
        %4810 = vmatprep.subr.mxu0 0.0
        %4811 = vmatpush1.msra.mxu0 0.0
        %4812 = vmatprep.subr.mxu0 0.0
        %4813 = vmatpush1.msra.mxu0 0.0
        %4814 = vmatprep.subr.mxu0 0.0
        %4815 = vmatpush1.msra.mxu0 0.0
        %4816 = vmatprep.subr.mxu0 0.0
        %4817 = vmatpush1.msra.mxu0 0.0
        %4818 = vmatprep.subr.mxu0 0.0
        %4819 = vmatpush1.msra.mxu0 0.0
        %4820 = vmatprep.subr.mxu0 0.0
        %4821 = vmatpush1.msra.mxu0 0.0
        %4822 = vmatprep.subr.mxu0 0.0
        %4823 = vmatpush1.msra.mxu0 0.0
        %4824 = vmatprep.subr.mxu0 0.0
        %4825 = vmatpush1.msra.mxu0 0.0
        %4826 = vmatprep.subr.mxu0 0.0
        %4827 = vmatpush1.msra.mxu0 0.0
        %4828 = vmatprep.subr.mxu0 0.0
        %4829 = vmatpush1.msra.mxu0 0.0
        %4830 = vmatprep.subr.mxu0 0.0
        %4831 = vmatpush1.msra.mxu0 0.0
        %4832 = vmatprep.subr.mxu0 0.0
        %4833 = vmatpush1.msra.mxu0 0.0
        %4834 = vmatprep.subr.mxu0 0.0
        %4835 = vmatpush1.msra.mxu0 0.0
        %4836 = vmatprep.subr.mxu0 0.0
        %4837 = vmatpush1.msra.mxu0 0.0
        %4838 = vmatprep.subr.mxu0 0.0
        %4839 = vmatpush1.msra.mxu0 0.0
        %4840 = vmatprep.subr.mxu0 0.0
        %4841 = vmatpush1.msra.mxu0 0.0
        %4842 = vmatprep.subr.mxu0 0.0
        %4843 = vmatpush1.msra.mxu0 0.0
        %4844 = vmatprep.subr.mxu0 0.0
        %4845 = vmatpush1.msra.mxu0 0.0
        %4846 = vmatprep.subr.mxu0 0.0
        %4847 = vmatpush1.msra.mxu0 0.0
        %4848 = vmatprep.mubr.f32.mxu0 0.0
        %4849 = vmatmul.mubr.f32.gmra.mrb[0].mxu0 %v4774
        %v4850 = vpop.f32.mrb[0].mxu0
        %v4851 = vadd.f32 0.0, %v4850
        %v4852 = vpop.f32.mrb[0].mxu0
        %v4853 = vadd.f32 0.0, %v4852
        %4854 = vdwg.mxu0
        %4855 = vmatprep.subr.mxu0 %v4782
        %4856 = vmatpush1.msra.mxu0 %v4780
        %4857 = vmatprep.subr.mxu0 0.0
        %4858 = vmatpush1.msra.mxu0 0.0
        %4859 = vmatprep.subr.mxu0 0.0
        %4860 = vmatpush1.msra.mxu0 0.0
        %4861 = vmatprep.subr.mxu0 0.0
        %4862 = vmatpush1.msra.mxu0 0.0
        %4863 = vmatprep.subr.mxu0 0.0
        %4864 = vmatpush1.msra.mxu0 0.0
        %4865 = vmatprep.subr.mxu0 0.0
        %4866 = vmatpush1.msra.mxu0 0.0
        %4867 = vmatprep.subr.mxu0 0.0
        %4868 = vmatpush1.msra.mxu0 0.0
        %4869 = vmatprep.subr.mxu0 0.0
        %4870 = vmatpush1.msra.mxu0 0.0
        %4871 = vmatprep.subr.mxu0 0.0
        %4872 = vmatpush1.msra.mxu0 0.0
        %4873 = vmatprep.subr.mxu0 0.0
        %4874 = vmatpush1.msra.mxu0 0.0
        %4875 = vmatprep.subr.mxu0 0.0
        %4876 = vmatpush1.msra.mxu0 0.0
        %4877 = vmatprep.subr.mxu0 0.0
        %4878 = vmatpush1.msra.mxu0 0.0
        %4879 = vmatprep.subr.mxu0 0.0
        %4880 = vmatpush1.msra.mxu0 0.0
        %4881 = vmatprep.subr.mxu0 0.0
        %4882 = vmatpush1.msra.mxu0 0.0
        %4883 = vmatprep.subr.mxu0 0.0
        %4884 = vmatpush1.msra.mxu0 0.0
        %4885 = vmatprep.subr.mxu0 0.0
        %4886 = vmatpush1.msra.mxu0 0.0
        %4887 = vmatprep.subr.mxu0 0.0
        %4888 = vmatpush1.msra.mxu0 0.0
        %4889 = vmatprep.subr.mxu0 0.0
        %4890 = vmatpush1.msra.mxu0 0.0
        %4891 = vmatprep.subr.mxu0 0.0
        %4892 = vmatpush1.msra.mxu0 0.0
        %4893 = vmatprep.subr.mxu0 0.0
        %4894 = vmatpush1.msra.mxu0 0.0
        %4895 = vmatprep.subr.mxu0 0.0
        %4896 = vmatpush1.msra.mxu0 0.0
        %4897 = vmatprep.subr.mxu0 0.0
        %4898 = vmatpush1.msra.mxu0 0.0
        %4899 = vmatprep.subr.mxu0 0.0
        %4900 = vmatpush1.msra.mxu0 0.0
        %4901 = vmatprep.subr.mxu0 0.0
        %4902 = vmatpush1.msra.mxu0 0.0
        %4903 = vmatprep.subr.mxu0 0.0
        %4904 = vmatpush1.msra.mxu0 0.0
        %4905 = vmatprep.subr.mxu0 0.0
        %4906 = vmatpush1.msra.mxu0 0.0
        %4907 = vmatprep.subr.mxu0 0.0
        %4908 = vmatpush1.msra.mxu0 0.0
        %4909 = vmatprep.subr.mxu0 0.0
        %4910 = vmatpush1.msra.mxu0 0.0
        %4911 = vmatprep.subr.mxu0 0.0
        %4912 = vmatpush1.msra.mxu0 0.0
        %4913 = vmatprep.subr.mxu0 0.0
        %4914 = vmatpush1.msra.mxu0 0.0
        %4915 = vmatprep.subr.mxu0 0.0
        %4916 = vmatpush1.msra.mxu0 0.0
        %4917 = vmatprep.subr.mxu0 0.0
        %4918 = vmatpush1.msra.mxu0 0.0
        %4919 = vmatprep.mubr.f32.mxu0 0.0
        %4920 = vmatmul.mubr.f32.gmra.mrb[0].mxu0 %v4774
        %v4921 = vpop.f32.mrb[0].mxu0
        %v4922 = vadd.f32 0.0, %v4921
        %v4923 = vpop.f32.mrb[0].mxu0
        %v4924 = vadd.f32 0.0, %v4923
        %4925 = vdwg.mxu0
        %v4926 = vadd.f32 %v4752, %v4851
        %v4927 = vadd.f32 %v4753, %v4853
        %v4928 = vadd.f32 %v4754, %v4922
        %v4929 = vadd.f32 %v4755, %v4924
        %s4930 = scalar_lea.vmem %s1, 216
        %v4931 = vld [vmem:[%s4930] sm:$0xff]
        %4932 = vrot.lane.b32.xlu0 %v246, 56
        %v4933 = vpop.permute.xlu0 %4932
        %4934 = vrot.lane.b32.xlu0 %v255, 56
        %v4935 = vpop.permute.xlu0 %4934
        %4936 = vrot.lane.b32.xlu0 %v247, 56
        %v4937 = vpop.permute.xlu0 %4936
        %4938 = vrot.lane.b32.xlu0 %v256, 56
        %v4939 = vpop.permute.xlu0 %4938
        %4940 = vrot.lane.b32.xlu0 %v248, 56
        %v4941 = vpop.permute.xlu0 %4940
        %vm4942 = vcmask 457728
        %v4943 = vsel %vm4942, %v4933, %v4935
        %v4944 = vsel %vm4942, %v4935, %v4937
        %v4945 = vsel %vm4942, %v4937, %v4939
        %v4946 = vsel %vm4942, %v4939, %v4941
        %v4948 = vsel %vm272, %v4931, 0
        %v4950 = vsel %vm276, %v4943, 0
        %v4952 = vsel %vm276, %v4944, 0
        %v4954 = vsel %vm276, %v4945, 0
        %v4956 = vsel %vm276, %v4946, 0
        %4958 = vmatprep.subr.mxu0 %v4952
        %4959 = vmatpush1.msra.mxu0 %v4950
        %4960 = vmatprep.subr.mxu0 0.0
        %4961 = vmatpush1.msra.mxu0 0.0
        %4962 = vmatprep.subr.mxu0 0.0
        %4963 = vmatpush1.msra.mxu0 0.0
        %4964 = vmatprep.subr.mxu0 0.0
        %4965 = vmatpush1.msra.mxu0 0.0
        %4966 = vmatprep.subr.mxu0 0.0
        %4967 = vmatpush1.msra.mxu0 0.0
        %4968 = vmatprep.subr.mxu0 0.0
        %4969 = vmatpush1.msra.mxu0 0.0
        %4970 = vmatprep.subr.mxu0 0.0
        %4971 = vmatpush1.msra.mxu0 0.0
        %4972 = vmatprep.subr.mxu0 0.0
        %4973 = vmatpush1.msra.mxu0 0.0
        %4974 = vmatprep.subr.mxu0 0.0
        %4975 = vmatpush1.msra.mxu0 0.0
        %4976 = vmatprep.subr.mxu0 0.0
        %4977 = vmatpush1.msra.mxu0 0.0
        %4978 = vmatprep.subr.mxu0 0.0
        %4979 = vmatpush1.msra.mxu0 0.0
        %4980 = vmatprep.subr.mxu0 0.0
        %4981 = vmatpush1.msra.mxu0 0.0
        %4982 = vmatprep.subr.mxu0 0.0
        %4983 = vmatpush1.msra.mxu0 0.0
        %4984 = vmatprep.subr.mxu0 0.0
        %4985 = vmatpush1.msra.mxu0 0.0
        %4986 = vmatprep.subr.mxu0 0.0
        %4987 = vmatpush1.msra.mxu0 0.0
        %4988 = vmatprep.subr.mxu0 0.0
        %4989 = vmatpush1.msra.mxu0 0.0
        %4990 = vmatprep.subr.mxu0 0.0
        %4991 = vmatpush1.msra.mxu0 0.0
        %4992 = vmatprep.subr.mxu0 0.0
        %4993 = vmatpush1.msra.mxu0 0.0
        %4994 = vmatprep.subr.mxu0 0.0
        %4995 = vmatpush1.msra.mxu0 0.0
        %4996 = vmatprep.subr.mxu0 0.0
        %4997 = vmatpush1.msra.mxu0 0.0
        %4998 = vmatprep.subr.mxu0 0.0
        %4999 = vmatpush1.msra.mxu0 0.0
        %5000 = vmatprep.subr.mxu0 0.0
        %5001 = vmatpush1.msra.mxu0 0.0
        %5002 = vmatprep.subr.mxu0 0.0
        %5003 = vmatpush1.msra.mxu0 0.0
        %5004 = vmatprep.subr.mxu0 0.0
        %5005 = vmatpush1.msra.mxu0 0.0
        %5006 = vmatprep.subr.mxu0 0.0
        %5007 = vmatpush1.msra.mxu0 0.0
        %5008 = vmatprep.subr.mxu0 0.0
        %5009 = vmatpush1.msra.mxu0 0.0
        %5010 = vmatprep.subr.mxu0 0.0
        %5011 = vmatpush1.msra.mxu0 0.0
        %5012 = vmatprep.subr.mxu0 0.0
        %5013 = vmatpush1.msra.mxu0 0.0
        %5014 = vmatprep.subr.mxu0 0.0
        %5015 = vmatpush1.msra.mxu0 0.0
        %5016 = vmatprep.subr.mxu0 0.0
        %5017 = vmatpush1.msra.mxu0 0.0
        %5018 = vmatprep.subr.mxu0 0.0
        %5019 = vmatpush1.msra.mxu0 0.0
        %5020 = vmatprep.subr.mxu0 0.0
        %5021 = vmatpush1.msra.mxu0 0.0
        %5022 = vmatprep.mubr.f32.mxu0 0.0
        %5023 = vmatmul.mubr.f32.gmra.mrb[0].mxu0 %v4948
        %v5024 = vpop.f32.mrb[0].mxu0
        %v5025 = vadd.f32 0.0, %v5024
        %v5026 = vpop.f32.mrb[0].mxu0
        %v5027 = vadd.f32 0.0, %v5026
        %5028 = vdwg.mxu0
        %5029 = vmatprep.subr.mxu0 %v4956
        %5030 = vmatpush1.msra.mxu0 %v4954
        %5031 = vmatprep.subr.mxu0 0.0
        %5032 = vmatpush1.msra.mxu0 0.0
        %5033 = vmatprep.subr.mxu0 0.0
        %5034 = vmatpush1.msra.mxu0 0.0
        %5035 = vmatprep.subr.mxu0 0.0
        %5036 = vmatpush1.msra.mxu0 0.0
        %5037 = vmatprep.subr.mxu0 0.0
        %5038 = vmatpush1.msra.mxu0 0.0
        %5039 = vmatprep.subr.mxu0 0.0
        %5040 = vmatpush1.msra.mxu0 0.0
        %5041 = vmatprep.subr.mxu0 0.0
        %5042 = vmatpush1.msra.mxu0 0.0
        %5043 = vmatprep.subr.mxu0 0.0
        %5044 = vmatpush1.msra.mxu0 0.0
        %5045 = vmatprep.subr.mxu0 0.0
        %5046 = vmatpush1.msra.mxu0 0.0
        %5047 = vmatprep.subr.mxu0 0.0
        %5048 = vmatpush1.msra.mxu0 0.0
        %5049 = vmatprep.subr.mxu0 0.0
        %5050 = vmatpush1.msra.mxu0 0.0
        %5051 = vmatprep.subr.mxu0 0.0
        %5052 = vmatpush1.msra.mxu0 0.0
        %5053 = vmatprep.subr.mxu0 0.0
        %5054 = vmatpush1.msra.mxu0 0.0
        %5055 = vmatprep.subr.mxu0 0.0
        %5056 = vmatpush1.msra.mxu0 0.0
        %5057 = vmatprep.subr.mxu0 0.0
        %5058 = vmatpush1.msra.mxu0 0.0
        %5059 = vmatprep.subr.mxu0 0.0
        %5060 = vmatpush1.msra.mxu0 0.0
        %5061 = vmatprep.subr.mxu0 0.0
        %5062 = vmatpush1.msra.mxu0 0.0
        %5063 = vmatprep.subr.mxu0 0.0
        %5064 = vmatpush1.msra.mxu0 0.0
        %5065 = vmatprep.subr.mxu0 0.0
        %5066 = vmatpush1.msra.mxu0 0.0
        %5067 = vmatprep.subr.mxu0 0.0
        %5068 = vmatpush1.msra.mxu0 0.0
        %5069 = vmatprep.subr.mxu0 0.0
        %5070 = vmatpush1.msra.mxu0 0.0
        %5071 = vmatprep.subr.mxu0 0.0
        %5072 = vmatpush1.msra.mxu0 0.0
        %5073 = vmatprep.subr.mxu0 0.0
        %5074 = vmatpush1.msra.mxu0 0.0
        %5075 = vmatprep.subr.mxu0 0.0
        %5076 = vmatpush1.msra.mxu0 0.0
        %5077 = vmatprep.subr.mxu0 0.0
        %5078 = vmatpush1.msra.mxu0 0.0
        %5079 = vmatprep.subr.mxu0 0.0
        %5080 = vmatpush1.msra.mxu0 0.0
        %5081 = vmatprep.subr.mxu0 0.0
        %5082 = vmatpush1.msra.mxu0 0.0
        %5083 = vmatprep.subr.mxu0 0.0
        %5084 = vmatpush1.msra.mxu0 0.0
        %5085 = vmatprep.subr.mxu0 0.0
        %5086 = vmatpush1.msra.mxu0 0.0
        %5087 = vmatprep.subr.mxu0 0.0
        %5088 = vmatpush1.msra.mxu0 0.0
        %5089 = vmatprep.subr.mxu0 0.0
        %5090 = vmatpush1.msra.mxu0 0.0
        %5091 = vmatprep.subr.mxu0 0.0
        %5092 = vmatpush1.msra.mxu0 0.0
        %5093 = vmatprep.mubr.f32.mxu0 0.0
        %5094 = vmatmul.mubr.f32.gmra.mrb[0].mxu0 %v4948
        %v5095 = vpop.f32.mrb[0].mxu0
        %v5096 = vadd.f32 0.0, %v5095
        %v5097 = vpop.f32.mrb[0].mxu0
        %v5098 = vadd.f32 0.0, %v5097
        %5099 = vdwg.mxu0
        %v5100 = vadd.f32 %v4926, %v5025
        %v5101 = vadd.f32 %v4927, %v5027
        %v5102 = vadd.f32 %v4928, %v5096
        %v5103 = vadd.f32 %v4929, %v5098
        %s5104 = scalar_lea.vmem %s1, 224
        %v5105 = vld [vmem:[%s5104] sm:$0xff]
        %5106 = vrot.lane.b32.xlu0 %v246, 40
        %v5107 = vpop.permute.xlu0 %5106
        %5108 = vrot.lane.b32.xlu0 %v255, 40
        %v5109 = vpop.permute.xlu0 %5108
        %5110 = vrot.lane.b32.xlu0 %v247, 40
        %v5111 = vpop.permute.xlu0 %5110
        %5112 = vrot.lane.b32.xlu0 %v256, 40
        %v5113 = vpop.permute.xlu0 %5112
        %5114 = vrot.lane.b32.xlu0 %v248, 40
        %v5115 = vpop.permute.xlu0 %5114
        %vm5116 = vcmask 326656
        %v5117 = vsel %vm5116, %v5107, %v5109
        %v5118 = vsel %vm5116, %v5109, %v5111
        %v5119 = vsel %vm5116, %v5111, %v5113
        %v5120 = vsel %vm5116, %v5113, %v5115
        %v5122 = vsel %vm272, %v5105, 0
        %v5124 = vsel %vm276, %v5117, 0
        %v5126 = vsel %vm276, %v5118, 0
        %v5128 = vsel %vm276, %v5119, 0
        %v5130 = vsel %vm276, %v5120, 0
        %5132 = vmatprep.subr.mxu0 %v5126
        %5133 = vmatpush1.msra.mxu0 %v5124
        %5134 = vmatprep.subr.mxu0 0.0
        %5135 = vmatpush1.msra.mxu0 0.0
        %5136 = vmatprep.subr.mxu0 0.0
        %5137 = vmatpush1.msra.mxu0 0.0
        %5138 = vmatprep.subr.mxu0 0.0
        %5139 = vmatpush1.msra.mxu0 0.0
        %5140 = vmatprep.subr.mxu0 0.0
        %5141 = vmatpush1.msra.mxu0 0.0
        %5142 = vmatprep.subr.mxu0 0.0
        %5143 = vmatpush1.msra.mxu0 0.0
        %5144 = vmatprep.subr.mxu0 0.0
        %5145 = vmatpush1.msra.mxu0 0.0
        %5146 = vmatprep.subr.mxu0 0.0
        %5147 = vmatpush1.msra.mxu0 0.0
        %5148 = vmatprep.subr.mxu0 0.0
        %5149 = vmatpush1.msra.mxu0 0.0
        %5150 = vmatprep.subr.mxu0 0.0
        %5151 = vmatpush1.msra.mxu0 0.0
        %5152 = vmatprep.subr.mxu0 0.0
        %5153 = vmatpush1.msra.mxu0 0.0
        %5154 = vmatprep.subr.mxu0 0.0
        %5155 = vmatpush1.msra.mxu0 0.0
        %5156 = vmatprep.subr.mxu0 0.0
        %5157 = vmatpush1.msra.mxu0 0.0
        %5158 = vmatprep.subr.mxu0 0.0
        %5159 = vmatpush1.msra.mxu0 0.0
        %5160 = vmatprep.subr.mxu0 0.0
        %5161 = vmatpush1.msra.mxu0 0.0
        %5162 = vmatprep.subr.mxu0 0.0
        %5163 = vmatpush1.msra.mxu0 0.0
        %5164 = vmatprep.subr.mxu0 0.0
        %5165 = vmatpush1.msra.mxu0 0.0
        %5166 = vmatprep.subr.mxu0 0.0
        %5167 = vmatpush1.msra.mxu0 0.0
        %5168 = vmatprep.subr.mxu0 0.0
        %5169 = vmatpush1.msra.mxu0 0.0
        %5170 = vmatprep.subr.mxu0 0.0
        %5171 = vmatpush1.msra.mxu0 0.0
        %5172 = vmatprep.subr.mxu0 0.0
        %5173 = vmatpush1.msra.mxu0 0.0
        %5174 = vmatprep.subr.mxu0 0.0
        %5175 = vmatpush1.msra.mxu0 0.0
        %5176 = vmatprep.subr.mxu0 0.0
        %5177 = vmatpush1.msra.mxu0 0.0
        %5178 = vmatprep.subr.mxu0 0.0
        %5179 = vmatpush1.msra.mxu0 0.0
        %5180 = vmatprep.subr.mxu0 0.0
        %5181 = vmatpush1.msra.mxu0 0.0
        %5182 = vmatprep.subr.mxu0 0.0
        %5183 = vmatpush1.msra.mxu0 0.0
        %5184 = vmatprep.subr.mxu0 0.0
        %5185 = vmatpush1.msra.mxu0 0.0
        %5186 = vmatprep.subr.mxu0 0.0
        %5187 = vmatpush1.msra.mxu0 0.0
        %5188 = vmatprep.subr.mxu0 0.0
        %5189 = vmatpush1.msra.mxu0 0.0
        %5190 = vmatprep.subr.mxu0 0.0
        %5191 = vmatpush1.msra.mxu0 0.0
        %5192 = vmatprep.subr.mxu0 0.0
        %5193 = vmatpush1.msra.mxu0 0.0
        %5194 = vmatprep.subr.mxu0 0.0
        %5195 = vmatpush1.msra.mxu0 0.0
        %5196 = vmatprep.mubr.f32.mxu0 0.0
        %5197 = vmatmul.mubr.f32.gmra.mrb[0].mxu0 %v5122
        %v5198 = vpop.f32.mrb[0].mxu0
        %v5199 = vadd.f32 0.0, %v5198
        %v5200 = vpop.f32.mrb[0].mxu0
        %v5201 = vadd.f32 0.0, %v5200
        %5202 = vdwg.mxu0
        %5203 = vmatprep.subr.mxu0 %v5130
        %5204 = vmatpush1.msra.mxu0 %v5128
        %5205 = vmatprep.subr.mxu0 0.0
        %5206 = vmatpush1.msra.mxu0 0.0
        %5207 = vmatprep.subr.mxu0 0.0
        %5208 = vmatpush1.msra.mxu0 0.0
        %5209 = vmatprep.subr.mxu0 0.0
        %5210 = vmatpush1.msra.mxu0 0.0
        %5211 = vmatprep.subr.mxu0 0.0
        %5212 = vmatpush1.msra.mxu0 0.0
        %5213 = vmatprep.subr.mxu0 0.0
        %5214 = vmatpush1.msra.mxu0 0.0
        %5215 = vmatprep.subr.mxu0 0.0
        %5216 = vmatpush1.msra.mxu0 0.0
        %5217 = vmatprep.subr.mxu0 0.0
        %5218 = vmatpush1.msra.mxu0 0.0
        %5219 = vmatprep.subr.mxu0 0.0
        %5220 = vmatpush1.msra.mxu0 0.0
        %5221 = vmatprep.subr.mxu0 0.0
        %5222 = vmatpush1.msra.mxu0 0.0
        %5223 = vmatprep.subr.mxu0 0.0
        %5224 = vmatpush1.msra.mxu0 0.0
        %5225 = vmatprep.subr.mxu0 0.0
        %5226 = vmatpush1.msra.mxu0 0.0
        %5227 = vmatprep.subr.mxu0 0.0
        %5228 = vmatpush1.msra.mxu0 0.0
        %5229 = vmatprep.subr.mxu0 0.0
        %5230 = vmatpush1.msra.mxu0 0.0
        %5231 = vmatprep.subr.mxu0 0.0
        %5232 = vmatpush1.msra.mxu0 0.0
        %5233 = vmatprep.subr.mxu0 0.0
        %5234 = vmatpush1.msra.mxu0 0.0
        %5235 = vmatprep.subr.mxu0 0.0
        %5236 = vmatpush1.msra.mxu0 0.0
        %5237 = vmatprep.subr.mxu0 0.0
        %5238 = vmatpush1.msra.mxu0 0.0
        %5239 = vmatprep.subr.mxu0 0.0
        %5240 = vmatpush1.msra.mxu0 0.0
        %5241 = vmatprep.subr.mxu0 0.0
        %5242 = vmatpush1.msra.mxu0 0.0
        %5243 = vmatprep.subr.mxu0 0.0
        %5244 = vmatpush1.msra.mxu0 0.0
        %5245 = vmatprep.subr.mxu0 0.0
        %5246 = vmatpush1.msra.mxu0 0.0
        %5247 = vmatprep.subr.mxu0 0.0
        %5248 = vmatpush1.msra.mxu0 0.0
        %5249 = vmatprep.subr.mxu0 0.0
        %5250 = vmatpush1.msra.mxu0 0.0
        %5251 = vmatprep.subr.mxu0 0.0
        %5252 = vmatpush1.msra.mxu0 0.0
        %5253 = vmatprep.subr.mxu0 0.0
        %5254 = vmatpush1.msra.mxu0 0.0
        %5255 = vmatprep.subr.mxu0 0.0
        %5256 = vmatpush1.msra.mxu0 0.0
        %5257 = vmatprep.subr.mxu0 0.0
        %5258 = vmatpush1.msra.mxu0 0.0
        %5259 = vmatprep.subr.mxu0 0.0
        %5260 = vmatpush1.msra.mxu0 0.0
        %5261 = vmatprep.subr.mxu0 0.0
        %5262 = vmatpush1.msra.mxu0 0.0
        %5263 = vmatprep.subr.mxu0 0.0
        %5264 = vmatpush1.msra.mxu0 0.0
        %5265 = vmatprep.subr.mxu0 0.0
        %5266 = vmatpush1.msra.mxu0 0.0
        %5267 = vmatprep.mubr.f32.mxu0 0.0
        %5268 = vmatmul.mubr.f32.gmra.mrb[0].mxu0 %v5122
        %v5269 = vpop.f32.mrb[0].mxu0
        %v5270 = vadd.f32 0.0, %v5269
        %v5271 = vpop.f32.mrb[0].mxu0
        %v5272 = vadd.f32 0.0, %v5271
        %5273 = vdwg.mxu0
        %v5274 = vadd.f32 %v5100, %v5199
        %v5275 = vadd.f32 %v5101, %v5201
        %v5276 = vadd.f32 %v5102, %v5270
        %v5277 = vadd.f32 %v5103, %v5272
        %s5278 = scalar_lea.vmem %s1, 232
        %v5279 = vld [vmem:[%s5278] sm:$0xff]
        %5280 = vrot.lane.b32.xlu0 %v246, 39
        %v5281 = vpop.permute.xlu0 %5280
        %5282 = vrot.lane.b32.xlu0 %v255, 39
        %v5283 = vpop.permute.xlu0 %5282
        %5284 = vrot.lane.b32.xlu0 %v247, 39
        %v5285 = vpop.permute.xlu0 %5284
        %5286 = vrot.lane.b32.xlu0 %v256, 39
        %v5287 = vpop.permute.xlu0 %5286
        %5288 = vrot.lane.b32.xlu0 %v248, 39
        %v5289 = vpop.permute.xlu0 %5288
        %vm5290 = vcmask 318464
        %v5291 = vsel %vm5290, %v5281, %v5283
        %v5292 = vsel %vm5290, %v5283, %v5285
        %v5293 = vsel %vm5290, %v5285, %v5287
        %v5294 = vsel %vm5290, %v5287, %v5289
        %v5296 = vsel %vm272, %v5279, 0
        %v5298 = vsel %vm276, %v5291, 0
        %v5300 = vsel %vm276, %v5292, 0
        %v5302 = vsel %vm276, %v5293, 0
        %v5304 = vsel %vm276, %v5294, 0
        %5306 = vmatprep.subr.mxu0 %v5300
        %5307 = vmatpush1.msra.mxu0 %v5298
        %5308 = vmatprep.subr.mxu0 0.0
        %5309 = vmatpush1.msra.mxu0 0.0
        %5310 = vmatprep.subr.mxu0 0.0
        %5311 = vmatpush1.msra.mxu0 0.0
        %5312 = vmatprep.subr.mxu0 0.0
        %5313 = vmatpush1.msra.mxu0 0.0
        %5314 = vmatprep.subr.mxu0 0.0
        %5315 = vmatpush1.msra.mxu0 0.0
        %5316 = vmatprep.subr.mxu0 0.0
        %5317 = vmatpush1.msra.mxu0 0.0
        %5318 = vmatprep.subr.mxu0 0.0
        %5319 = vmatpush1.msra.mxu0 0.0
        %5320 = vmatprep.subr.mxu0 0.0
        %5321 = vmatpush1.msra.mxu0 0.0
        %5322 = vmatprep.subr.mxu0 0.0
        %5323 = vmatpush1.msra.mxu0 0.0
        %5324 = vmatprep.subr.mxu0 0.0
        %5325 = vmatpush1.msra.mxu0 0.0
        %5326 = vmatprep.subr.mxu0 0.0
        %5327 = vmatpush1.msra.mxu0 0.0
        %5328 = vmatprep.subr.mxu0 0.0
        %5329 = vmatpush1.msra.mxu0 0.0
        %5330 = vmatprep.subr.mxu0 0.0
        %5331 = vmatpush1.msra.mxu0 0.0
        %5332 = vmatprep.subr.mxu0 0.0
        %5333 = vmatpush1.msra.mxu0 0.0
        %5334 = vmatprep.subr.mxu0 0.0
        %5335 = vmatpush1.msra.mxu0 0.0
        %5336 = vmatprep.subr.mxu0 0.0
        %5337 = vmatpush1.msra.mxu0 0.0
        %5338 = vmatprep.subr.mxu0 0.0
        %5339 = vmatpush1.msra.mxu0 0.0
        %5340 = vmatprep.subr.mxu0 0.0
        %5341 = vmatpush1.msra.mxu0 0.0
        %5342 = vmatprep.subr.mxu0 0.0
        %5343 = vmatpush1.msra.mxu0 0.0
        %5344 = vmatprep.subr.mxu0 0.0
        %5345 = vmatpush1.msra.mxu0 0.0
        %5346 = vmatprep.subr.mxu0 0.0
        %5347 = vmatpush1.msra.mxu0 0.0
        %5348 = vmatprep.subr.mxu0 0.0
        %5349 = vmatpush1.msra.mxu0 0.0
        %5350 = vmatprep.subr.mxu0 0.0
        %5351 = vmatpush1.msra.mxu0 0.0
        %5352 = vmatprep.subr.mxu0 0.0
        %5353 = vmatpush1.msra.mxu0 0.0
        %5354 = vmatprep.subr.mxu0 0.0
        %5355 = vmatpush1.msra.mxu0 0.0
        %5356 = vmatprep.subr.mxu0 0.0
        %5357 = vmatpush1.msra.mxu0 0.0
        %5358 = vmatprep.subr.mxu0 0.0
        %5359 = vmatpush1.msra.mxu0 0.0
        %5360 = vmatprep.subr.mxu0 0.0
        %5361 = vmatpush1.msra.mxu0 0.0
        %5362 = vmatprep.subr.mxu0 0.0
        %5363 = vmatpush1.msra.mxu0 0.0
        %5364 = vmatprep.subr.mxu0 0.0
        %5365 = vmatpush1.msra.mxu0 0.0
        %5366 = vmatprep.subr.mxu0 0.0
        %5367 = vmatpush1.msra.mxu0 0.0
        %5368 = vmatprep.subr.mxu0 0.0
        %5369 = vmatpush1.msra.mxu0 0.0
        %5370 = vmatprep.mubr.f32.mxu0 0.0
        %5371 = vmatmul.mubr.f32.gmra.mrb[0].mxu0 %v5296
        %v5372 = vpop.f32.mrb[0].mxu0
        %v5373 = vadd.f32 0.0, %v5372
        %v5374 = vpop.f32.mrb[0].mxu0
        %v5375 = vadd.f32 0.0, %v5374
        %5376 = vdwg.mxu0
        %5377 = vmatprep.subr.mxu0 %v5304
        %5378 = vmatpush1.msra.mxu0 %v5302
        %5379 = vmatprep.subr.mxu0 0.0
        %5380 = vmatpush1.msra.mxu0 0.0
        %5381 = vmatprep.subr.mxu0 0.0
        %5382 = vmatpush1.msra.mxu0 0.0
        %5383 = vmatprep.subr.mxu0 0.0
        %5384 = vmatpush1.msra.mxu0 0.0
        %5385 = vmatprep.subr.mxu0 0.0
        %5386 = vmatpush1.msra.mxu0 0.0
        %5387 = vmatprep.subr.mxu0 0.0
        %5388 = vmatpush1.msra.mxu0 0.0
        %5389 = vmatprep.subr.mxu0 0.0
        %5390 = vmatpush1.msra.mxu0 0.0
        %5391 = vmatprep.subr.mxu0 0.0
        %5392 = vmatpush1.msra.mxu0 0.0
        %5393 = vmatprep.subr.mxu0 0.0
        %5394 = vmatpush1.msra.mxu0 0.0
        %5395 = vmatprep.subr.mxu0 0.0
        %5396 = vmatpush1.msra.mxu0 0.0
        %5397 = vmatprep.subr.mxu0 0.0
        %5398 = vmatpush1.msra.mxu0 0.0
        %5399 = vmatprep.subr.mxu0 0.0
        %5400 = vmatpush1.msra.mxu0 0.0
        %5401 = vmatprep.subr.mxu0 0.0
        %5402 = vmatpush1.msra.mxu0 0.0
        %5403 = vmatprep.subr.mxu0 0.0
        %5404 = vmatpush1.msra.mxu0 0.0
        %5405 = vmatprep.subr.mxu0 0.0
        %5406 = vmatpush1.msra.mxu0 0.0
        %5407 = vmatprep.subr.mxu0 0.0
        %5408 = vmatpush1.msra.mxu0 0.0
        %5409 = vmatprep.subr.mxu0 0.0
        %5410 = vmatpush1.msra.mxu0 0.0
        %5411 = vmatprep.subr.mxu0 0.0
        %5412 = vmatpush1.msra.mxu0 0.0
        %5413 = vmatprep.subr.mxu0 0.0
        %5414 = vmatpush1.msra.mxu0 0.0
        %5415 = vmatprep.subr.mxu0 0.0
        %5416 = vmatpush1.msra.mxu0 0.0
        %5417 = vmatprep.subr.mxu0 0.0
        %5418 = vmatpush1.msra.mxu0 0.0
        %5419 = vmatprep.subr.mxu0 0.0
        %5420 = vmatpush1.msra.mxu0 0.0
        %5421 = vmatprep.subr.mxu0 0.0
        %5422 = vmatpush1.msra.mxu0 0.0
        %5423 = vmatprep.subr.mxu0 0.0
        %5424 = vmatpush1.msra.mxu0 0.0
        %5425 = vmatprep.subr.mxu0 0.0
        %5426 = vmatpush1.msra.mxu0 0.0
        %5427 = vmatprep.subr.mxu0 0.0
        %5428 = vmatpush1.msra.mxu0 0.0
        %5429 = vmatprep.subr.mxu0 0.0
        %5430 = vmatpush1.msra.mxu0 0.0
        %5431 = vmatprep.subr.mxu0 0.0
        %5432 = vmatpush1.msra.mxu0 0.0
        %5433 = vmatprep.subr.mxu0 0.0
        %5434 = vmatpush1.msra.mxu0 0.0
        %5435 = vmatprep.subr.mxu0 0.0
        %5436 = vmatpush1.msra.mxu0 0.0
        %5437 = vmatprep.subr.mxu0 0.0
        %5438 = vmatpush1.msra.mxu0 0.0
        %5439 = vmatprep.subr.mxu0 0.0
        %5440 = vmatpush1.msra.mxu0 0.0
        %5441 = vmatprep.mubr.f32.mxu0 0.0
        %5442 = vmatmul.mubr.f32.gmra.mrb[0].mxu0 %v5296
        %v5443 = vpop.f32.mrb[0].mxu0
        %v5444 = vadd.f32 0.0, %v5443
        %v5445 = vpop.f32.mrb[0].mxu0
        %v5446 = vadd.f32 0.0, %v5445
        %5447 = vdwg.mxu0
        %v5448 = vadd.f32 %v5274, %v5373
        %v5449 = vadd.f32 %v5275, %v5375
        %v5450 = vadd.f32 %v5276, %v5444
        %v5451 = vadd.f32 %v5277, %v5446
        %s5452 = scalar_lea.vmem %s1, 240
        %v5453 = vld [vmem:[%s5452] sm:$0xff]
        %5454 = vrot.lane.b32.xlu0 %v246, 38
        %v5455 = vpop.permute.xlu0 %5454
        %5456 = vrot.lane.b32.xlu0 %v255, 38
        %v5457 = vpop.permute.xlu0 %5456
        %5458 = vrot.lane.b32.xlu0 %v247, 38
        %v5459 = vpop.permute.xlu0 %5458
        %5460 = vrot.lane.b32.xlu0 %v256, 38
        %v5461 = vpop.permute.xlu0 %5460
        %5462 = vrot.lane.b32.xlu0 %v248, 38
        %v5463 = vpop.permute.xlu0 %5462
        %vm5464 = vcmask 310272
        %v5465 = vsel %vm5464, %v5455, %v5457
        %v5466 = vsel %vm5464, %v5457, %v5459
        %v5467 = vsel %vm5464, %v5459, %v5461
        %v5468 = vsel %vm5464, %v5461, %v5463
        %v5470 = vsel %vm272, %v5453, 0
        %v5472 = vsel %vm276, %v5465, 0
        %v5474 = vsel %vm276, %v5466, 0
        %v5476 = vsel %vm276, %v5467, 0
        %v5478 = vsel %vm276, %v5468, 0
        %5480 = vmatprep.subr.mxu0 %v5474
        %5481 = vmatpush1.msra.mxu0 %v5472
        %5482 = vmatprep.subr.mxu0 0.0
        %5483 = vmatpush1.msra.mxu0 0.0
        %5484 = vmatprep.subr.mxu0 0.0
        %5485 = vmatpush1.msra.mxu0 0.0
        %5486 = vmatprep.subr.mxu0 0.0
        %5487 = vmatpush1.msra.mxu0 0.0
        %5488 = vmatprep.subr.mxu0 0.0
        %5489 = vmatpush1.msra.mxu0 0.0
        %5490 = vmatprep.subr.mxu0 0.0
        %5491 = vmatpush1.msra.mxu0 0.0
        %5492 = vmatprep.subr.mxu0 0.0
        %5493 = vmatpush1.msra.mxu0 0.0
        %5494 = vmatprep.subr.mxu0 0.0
        %5495 = vmatpush1.msra.mxu0 0.0
        %5496 = vmatprep.subr.mxu0 0.0
        %5497 = vmatpush1.msra.mxu0 0.0
        %5498 = vmatprep.subr.mxu0 0.0
        %5499 = vmatpush1.msra.mxu0 0.0
        %5500 = vmatprep.subr.mxu0 0.0
        %5501 = vmatpush1.msra.mxu0 0.0
        %5502 = vmatprep.subr.mxu0 0.0
        %5503 = vmatpush1.msra.mxu0 0.0
        %5504 = vmatprep.subr.mxu0 0.0
        %5505 = vmatpush1.msra.mxu0 0.0
        %5506 = vmatprep.subr.mxu0 0.0
        %5507 = vmatpush1.msra.mxu0 0.0
        %5508 = vmatprep.subr.mxu0 0.0
        %5509 = vmatpush1.msra.mxu0 0.0
        %5510 = vmatprep.subr.mxu0 0.0
        %5511 = vmatpush1.msra.mxu0 0.0
        %5512 = vmatprep.subr.mxu0 0.0
        %5513 = vmatpush1.msra.mxu0 0.0
        %5514 = vmatprep.subr.mxu0 0.0
        %5515 = vmatpush1.msra.mxu0 0.0
        %5516 = vmatprep.subr.mxu0 0.0
        %5517 = vmatpush1.msra.mxu0 0.0
        %5518 = vmatprep.subr.mxu0 0.0
        %5519 = vmatpush1.msra.mxu0 0.0
        %5520 = vmatprep.subr.mxu0 0.0
        %5521 = vmatpush1.msra.mxu0 0.0
        %5522 = vmatprep.subr.mxu0 0.0
        %5523 = vmatpush1.msra.mxu0 0.0
        %5524 = vmatprep.subr.mxu0 0.0
        %5525 = vmatpush1.msra.mxu0 0.0
        %5526 = vmatprep.subr.mxu0 0.0
        %5527 = vmatpush1.msra.mxu0 0.0
        %5528 = vmatprep.subr.mxu0 0.0
        %5529 = vmatpush1.msra.mxu0 0.0
        %5530 = vmatprep.subr.mxu0 0.0
        %5531 = vmatpush1.msra.mxu0 0.0
        %5532 = vmatprep.subr.mxu0 0.0
        %5533 = vmatpush1.msra.mxu0 0.0
        %5534 = vmatprep.subr.mxu0 0.0
        %5535 = vmatpush1.msra.mxu0 0.0
        %5536 = vmatprep.subr.mxu0 0.0
        %5537 = vmatpush1.msra.mxu0 0.0
        %5538 = vmatprep.subr.mxu0 0.0
        %5539 = vmatpush1.msra.mxu0 0.0
        %5540 = vmatprep.subr.mxu0 0.0
        %5541 = vmatpush1.msra.mxu0 0.0
        %5542 = vmatprep.subr.mxu0 0.0
        %5543 = vmatpush1.msra.mxu0 0.0
        %5544 = vmatprep.mubr.f32.mxu0 0.0
        %5545 = vmatmul.mubr.f32.gmra.mrb[0].mxu0 %v5470
        %v5546 = vpop.f32.mrb[0].mxu0
        %v5547 = vadd.f32 0.0, %v5546
        %v5548 = vpop.f32.mrb[0].mxu0
        %v5549 = vadd.f32 0.0, %v5548
        %5550 = vdwg.mxu0
        %5551 = vmatprep.subr.mxu0 %v5478
        %5552 = vmatpush1.msra.mxu0 %v5476
        %5553 = vmatprep.subr.mxu0 0.0
        %5554 = vmatpush1.msra.mxu0 0.0
        %5555 = vmatprep.subr.mxu0 0.0
        %5556 = vmatpush1.msra.mxu0 0.0
        %5557 = vmatprep.subr.mxu0 0.0
        %5558 = vmatpush1.msra.mxu0 0.0
        %5559 = vmatprep.subr.mxu0 0.0
        %5560 = vmatpush1.msra.mxu0 0.0
        %5561 = vmatprep.subr.mxu0 0.0
        %5562 = vmatpush1.msra.mxu0 0.0
        %5563 = vmatprep.subr.mxu0 0.0
        %5564 = vmatpush1.msra.mxu0 0.0
        %5565 = vmatprep.subr.mxu0 0.0
        %5566 = vmatpush1.msra.mxu0 0.0
        %5567 = vmatprep.subr.mxu0 0.0
        %5568 = vmatpush1.msra.mxu0 0.0
        %5569 = vmatprep.subr.mxu0 0.0
        %5570 = vmatpush1.msra.mxu0 0.0
        %5571 = vmatprep.subr.mxu0 0.0
        %5572 = vmatpush1.msra.mxu0 0.0
        %5573 = vmatprep.subr.mxu0 0.0
        %5574 = vmatpush1.msra.mxu0 0.0
        %5575 = vmatprep.subr.mxu0 0.0
        %5576 = vmatpush1.msra.mxu0 0.0
        %5577 = vmatprep.subr.mxu0 0.0
        %5578 = vmatpush1.msra.mxu0 0.0
        %5579 = vmatprep.subr.mxu0 0.0
        %5580 = vmatpush1.msra.mxu0 0.0
        %5581 = vmatprep.subr.mxu0 0.0
        %5582 = vmatpush1.msra.mxu0 0.0
        %5583 = vmatprep.subr.mxu0 0.0
        %5584 = vmatpush1.msra.mxu0 0.0
        %5585 = vmatprep.subr.mxu0 0.0
        %5586 = vmatpush1.msra.mxu0 0.0
        %5587 = vmatprep.subr.mxu0 0.0
        %5588 = vmatpush1.msra.mxu0 0.0
        %5589 = vmatprep.subr.mxu0 0.0
        %5590 = vmatpush1.msra.mxu0 0.0
        %5591 = vmatprep.subr.mxu0 0.0
        %5592 = vmatpush1.msra.mxu0 0.0
        %5593 = vmatprep.subr.mxu0 0.0
        %5594 = vmatpush1.msra.mxu0 0.0
        %5595 = vmatprep.subr.mxu0 0.0
        %5596 = vmatpush1.msra.mxu0 0.0
        %5597 = vmatprep.subr.mxu0 0.0
        %5598 = vmatpush1.msra.mxu0 0.0
        %5599 = vmatprep.subr.mxu0 0.0
        %5600 = vmatpush1.msra.mxu0 0.0
        %5601 = vmatprep.subr.mxu0 0.0
        %5602 = vmatpush1.msra.mxu0 0.0
        %5603 = vmatprep.subr.mxu0 0.0
        %5604 = vmatpush1.msra.mxu0 0.0
        %5605 = vmatprep.subr.mxu0 0.0
        %5606 = vmatpush1.msra.mxu0 0.0
        %5607 = vmatprep.subr.mxu0 0.0
        %5608 = vmatpush1.msra.mxu0 0.0
        %5609 = vmatprep.subr.mxu0 0.0
        %5610 = vmatpush1.msra.mxu0 0.0
        %5611 = vmatprep.subr.mxu0 0.0
        %5612 = vmatpush1.msra.mxu0 0.0
        %5613 = vmatprep.subr.mxu0 0.0
        %5614 = vmatpush1.msra.mxu0 0.0
        %5615 = vmatprep.mubr.f32.mxu0 0.0
        %5616 = vmatmul.mubr.f32.gmra.mrb[0].mxu0 %v5470
        %v5617 = vpop.f32.mrb[0].mxu0
        %v5618 = vadd.f32 0.0, %v5617
        %v5619 = vpop.f32.mrb[0].mxu0
        %v5620 = vadd.f32 0.0, %v5619
        %5621 = vdwg.mxu0
        %v5622 = vadd.f32 %v5448, %v5547
        %v5623 = vadd.f32 %v5449, %v5549
        %v5624 = vadd.f32 %v5450, %v5618
        %v5625 = vadd.f32 %v5451, %v5620
        %s5626 = scalar_lea.vmem %s1, 248
        %v5627 = vld [vmem:[%s5626] sm:$0xff]
        %5628 = vrot.lane.b32.xlu0 %v246, 37
        %v5629 = vpop.permute.xlu0 %5628
        %5630 = vrot.lane.b32.xlu0 %v255, 37
        %v5631 = vpop.permute.xlu0 %5630
        %5632 = vrot.lane.b32.xlu0 %v247, 37
        %v5633 = vpop.permute.xlu0 %5632
        %5634 = vrot.lane.b32.xlu0 %v256, 37
        %v5635 = vpop.permute.xlu0 %5634
        %5636 = vrot.lane.b32.xlu0 %v248, 37
        %v5637 = vpop.permute.xlu0 %5636
        %vm5638 = vcmask 302080
        %v5639 = vsel %vm5638, %v5629, %v5631
        %v5640 = vsel %vm5638, %v5631, %v5633
        %v5641 = vsel %vm5638, %v5633, %v5635
        %v5642 = vsel %vm5638, %v5635, %v5637
        %v5644 = vsel %vm272, %v5627, 0
        %v5646 = vsel %vm276, %v5639, 0
        %v5648 = vsel %vm276, %v5640, 0
        %v5650 = vsel %vm276, %v5641, 0
        %v5652 = vsel %vm276, %v5642, 0
        %5654 = vmatprep.subr.mxu0 %v5648
        %5655 = vmatpush1.msra.mxu0 %v5646
        %5656 = vmatprep.subr.mxu0 0.0
        %5657 = vmatpush1.msra.mxu0 0.0
        %5658 = vmatprep.subr.mxu0 0.0
        %5659 = vmatpush1.msra.mxu0 0.0
        %5660 = vmatprep.subr.mxu0 0.0
        %5661 = vmatpush1.msra.mxu0 0.0
        %5662 = vmatprep.subr.mxu0 0.0
        %5663 = vmatpush1.msra.mxu0 0.0
        %5664 = vmatprep.subr.mxu0 0.0
        %5665 = vmatpush1.msra.mxu0 0.0
        %5666 = vmatprep.subr.mxu0 0.0
        %5667 = vmatpush1.msra.mxu0 0.0
        %5668 = vmatprep.subr.mxu0 0.0
        %5669 = vmatpush1.msra.mxu0 0.0
        %5670 = vmatprep.subr.mxu0 0.0
        %5671 = vmatpush1.msra.mxu0 0.0
        %5672 = vmatprep.subr.mxu0 0.0
        %5673 = vmatpush1.msra.mxu0 0.0
        %5674 = vmatprep.subr.mxu0 0.0
        %5675 = vmatpush1.msra.mxu0 0.0
        %5676 = vmatprep.subr.mxu0 0.0
        %5677 = vmatpush1.msra.mxu0 0.0
        %5678 = vmatprep.subr.mxu0 0.0
        %5679 = vmatpush1.msra.mxu0 0.0
        %5680 = vmatprep.subr.mxu0 0.0
        %5681 = vmatpush1.msra.mxu0 0.0
        %5682 = vmatprep.subr.mxu0 0.0
        %5683 = vmatpush1.msra.mxu0 0.0
        %5684 = vmatprep.subr.mxu0 0.0
        %5685 = vmatpush1.msra.mxu0 0.0
        %5686 = vmatprep.subr.mxu0 0.0
        %5687 = vmatpush1.msra.mxu0 0.0
        %5688 = vmatprep.subr.mxu0 0.0
        %5689 = vmatpush1.msra.mxu0 0.0
        %5690 = vmatprep.subr.mxu0 0.0
        %5691 = vmatpush1.msra.mxu0 0.0
        %5692 = vmatprep.subr.mxu0 0.0
        %5693 = vmatpush1.msra.mxu0 0.0
        %5694 = vmatprep.subr.mxu0 0.0
        %5695 = vmatpush1.msra.mxu0 0.0
        %5696 = vmatprep.subr.mxu0 0.0
        %5697 = vmatpush1.msra.mxu0 0.0
        %5698 = vmatprep.subr.mxu0 0.0
        %5699 = vmatpush1.msra.mxu0 0.0
        %5700 = vmatprep.subr.mxu0 0.0
        %5701 = vmatpush1.msra.mxu0 0.0
        %5702 = vmatprep.subr.mxu0 0.0
        %5703 = vmatpush1.msra.mxu0 0.0
        %5704 = vmatprep.subr.mxu0 0.0
        %5705 = vmatpush1.msra.mxu0 0.0
        %5706 = vmatprep.subr.mxu0 0.0
        %5707 = vmatpush1.msra.mxu0 0.0
        %5708 = vmatprep.subr.mxu0 0.0
        %5709 = vmatpush1.msra.mxu0 0.0
        %5710 = vmatprep.subr.mxu0 0.0
        %5711 = vmatpush1.msra.mxu0 0.0
        %5712 = vmatprep.subr.mxu0 0.0
        %5713 = vmatpush1.msra.mxu0 0.0
        %5714 = vmatprep.subr.mxu0 0.0
        %5715 = vmatpush1.msra.mxu0 0.0
        %5716 = vmatprep.subr.mxu0 0.0
        %5717 = vmatpush1.msra.mxu0 0.0
        %5718 = vmatprep.mubr.f32.mxu0 0.0
        %5719 = vmatmul.mubr.f32.gmra.mrb[0].mxu0 %v5644
        %v5720 = vpop.f32.mrb[0].mxu0
        %v5721 = vadd.f32 0.0, %v5720
        %v5722 = vpop.f32.mrb[0].mxu0
        %v5723 = vadd.f32 0.0, %v5722
        %5724 = vdwg.mxu0
        %5725 = vmatprep.subr.mxu0 %v5652
        %5726 = vmatpush1.msra.mxu0 %v5650
        %5727 = vmatprep.subr.mxu0 0.0
        %5728 = vmatpush1.msra.mxu0 0.0
        %5729 = vmatprep.subr.mxu0 0.0
        %5730 = vmatpush1.msra.mxu0 0.0
        %5731 = vmatprep.subr.mxu0 0.0
        %5732 = vmatpush1.msra.mxu0 0.0
        %5733 = vmatprep.subr.mxu0 0.0
        %5734 = vmatpush1.msra.mxu0 0.0
        %5735 = vmatprep.subr.mxu0 0.0
        %5736 = vmatpush1.msra.mxu0 0.0
        %5737 = vmatprep.subr.mxu0 0.0
        %5738 = vmatpush1.msra.mxu0 0.0
        %5739 = vmatprep.subr.mxu0 0.0
        %5740 = vmatpush1.msra.mxu0 0.0
        %5741 = vmatprep.subr.mxu0 0.0
        %5742 = vmatpush1.msra.mxu0 0.0
        %5743 = vmatprep.subr.mxu0 0.0
        %5744 = vmatpush1.msra.mxu0 0.0
        %5745 = vmatprep.subr.mxu0 0.0
        %5746 = vmatpush1.msra.mxu0 0.0
        %5747 = vmatprep.subr.mxu0 0.0
        %5748 = vmatpush1.msra.mxu0 0.0
        %5749 = vmatprep.subr.mxu0 0.0
        %5750 = vmatpush1.msra.mxu0 0.0
        %5751 = vmatprep.subr.mxu0 0.0
        %5752 = vmatpush1.msra.mxu0 0.0
        %5753 = vmatprep.subr.mxu0 0.0
        %5754 = vmatpush1.msra.mxu0 0.0
        %5755 = vmatprep.subr.mxu0 0.0
        %5756 = vmatpush1.msra.mxu0 0.0
        %5757 = vmatprep.subr.mxu0 0.0
        %5758 = vmatpush1.msra.mxu0 0.0
        %5759 = vmatprep.subr.mxu0 0.0
        %5760 = vmatpush1.msra.mxu0 0.0
        %5761 = vmatprep.subr.mxu0 0.0
        %5762 = vmatpush1.msra.mxu0 0.0
        %5763 = vmatprep.subr.mxu0 0.0
        %5764 = vmatpush1.msra.mxu0 0.0
        %5765 = vmatprep.subr.mxu0 0.0
        %5766 = vmatpush1.msra.mxu0 0.0
        %5767 = vmatprep.subr.mxu0 0.0
        %5768 = vmatpush1.msra.mxu0 0.0
        %5769 = vmatprep.subr.mxu0 0.0
        %5770 = vmatpush1.msra.mxu0 0.0
        %5771 = vmatprep.subr.mxu0 0.0
        %5772 = vmatpush1.msra.mxu0 0.0
        %5773 = vmatprep.subr.mxu0 0.0
        %5774 = vmatpush1.msra.mxu0 0.0
        %5775 = vmatprep.subr.mxu0 0.0
        %5776 = vmatpush1.msra.mxu0 0.0
        %5777 = vmatprep.subr.mxu0 0.0
        %5778 = vmatpush1.msra.mxu0 0.0
        %5779 = vmatprep.subr.mxu0 0.0
        %5780 = vmatpush1.msra.mxu0 0.0
        %5781 = vmatprep.subr.mxu0 0.0
        %5782 = vmatpush1.msra.mxu0 0.0
        %5783 = vmatprep.subr.mxu0 0.0
        %5784 = vmatpush1.msra.mxu0 0.0
        %5785 = vmatprep.subr.mxu0 0.0
        %5786 = vmatpush1.msra.mxu0 0.0
        %5787 = vmatprep.subr.mxu0 0.0
        %5788 = vmatpush1.msra.mxu0 0.0
        %5789 = vmatprep.mubr.f32.mxu0 0.0
        %5790 = vmatmul.mubr.f32.gmra.mrb[0].mxu0 %v5644
        %v5791 = vpop.f32.mrb[0].mxu0
        %v5792 = vadd.f32 0.0, %v5791
        %v5793 = vpop.f32.mrb[0].mxu0
        %v5794 = vadd.f32 0.0, %v5793
        %5795 = vdwg.mxu0
        %v5796 = vadd.f32 %v5622, %v5721
        %v5797 = vadd.f32 %v5623, %v5723
        %v5798 = vadd.f32 %v5624, %v5792
        %v5799 = vadd.f32 %v5625, %v5794
        %s5800 = scalar_lea.vmem %s1, 256
        %v5801 = vld [vmem:[%s5800] sm:$0xff]
        %5802 = vrot.lane.b32.xlu0 %v246, 36
        %v5803 = vpop.permute.xlu0 %5802
        %5804 = vrot.lane.b32.xlu0 %v255, 36
        %v5805 = vpop.permute.xlu0 %5804
        %5806 = vrot.lane.b32.xlu0 %v247, 36
        %v5807 = vpop.permute.xlu0 %5806
        %5808 = vrot.lane.b32.xlu0 %v256, 36
        %v5809 = vpop.permute.xlu0 %5808
        %5810 = vrot.lane.b32.xlu0 %v248, 36
        %v5811 = vpop.permute.xlu0 %5810
        %vm5812 = vcmask 293888
        %v5813 = vsel %vm5812, %v5803, %v5805
        %v5814 = vsel %vm5812, %v5805, %v5807
        %v5815 = vsel %vm5812, %v5807, %v5809
        %v5816 = vsel %vm5812, %v5809, %v5811
        %v5818 = vsel %vm272, %v5801, 0
        %v5820 = vsel %vm276, %v5813, 0
        %v5822 = vsel %vm276, %v5814, 0
        %v5824 = vsel %vm276, %v5815, 0
        %v5826 = vsel %vm276, %v5816, 0
        %5828 = vmatprep.subr.mxu0 %v5822
        %5829 = vmatpush1.msra.mxu0 %v5820
        %5830 = vmatprep.subr.mxu0 0.0
        %5831 = vmatpush1.msra.mxu0 0.0
        %5832 = vmatprep.subr.mxu0 0.0
        %5833 = vmatpush1.msra.mxu0 0.0
        %5834 = vmatprep.subr.mxu0 0.0
        %5835 = vmatpush1.msra.mxu0 0.0
        %5836 = vmatprep.subr.mxu0 0.0
        %5837 = vmatpush1.msra.mxu0 0.0
        %5838 = vmatprep.subr.mxu0 0.0
        %5839 = vmatpush1.msra.mxu0 0.0
        %5840 = vmatprep.subr.mxu0 0.0
        %5841 = vmatpush1.msra.mxu0 0.0
        %5842 = vmatprep.subr.mxu0 0.0
        %5843 = vmatpush1.msra.mxu0 0.0
        %5844 = vmatprep.subr.mxu0 0.0
        %5845 = vmatpush1.msra.mxu0 0.0
        %5846 = vmatprep.subr.mxu0 0.0
        %5847 = vmatpush1.msra.mxu0 0.0
        %5848 = vmatprep.subr.mxu0 0.0
        %5849 = vmatpush1.msra.mxu0 0.0
        %5850 = vmatprep.subr.mxu0 0.0
        %5851 = vmatpush1.msra.mxu0 0.0
        %5852 = vmatprep.subr.mxu0 0.0
        %5853 = vmatpush1.msra.mxu0 0.0
        %5854 = vmatprep.subr.mxu0 0.0
        %5855 = vmatpush1.msra.mxu0 0.0
        %5856 = vmatprep.subr.mxu0 0.0
        %5857 = vmatpush1.msra.mxu0 0.0
        %5858 = vmatprep.subr.mxu0 0.0
        %5859 = vmatpush1.msra.mxu0 0.0
        %5860 = vmatprep.subr.mxu0 0.0
        %5861 = vmatpush1.msra.mxu0 0.0
        %5862 = vmatprep.subr.mxu0 0.0
        %5863 = vmatpush1.msra.mxu0 0.0
        %5864 = vmatprep.subr.mxu0 0.0
        %5865 = vmatpush1.msra.mxu0 0.0
        %5866 = vmatprep.subr.mxu0 0.0
        %5867 = vmatpush1.msra.mxu0 0.0
        %5868 = vmatprep.subr.mxu0 0.0
        %5869 = vmatpush1.msra.mxu0 0.0
        %5870 = vmatprep.subr.mxu0 0.0
        %5871 = vmatpush1.msra.mxu0 0.0
        %5872 = vmatprep.subr.mxu0 0.0
        %5873 = vmatpush1.msra.mxu0 0.0
        %5874 = vmatprep.subr.mxu0 0.0
        %5875 = vmatpush1.msra.mxu0 0.0
        %5876 = vmatprep.subr.mxu0 0.0
        %5877 = vmatpush1.msra.mxu0 0.0
        %5878 = vmatprep.subr.mxu0 0.0
        %5879 = vmatpush1.msra.mxu0 0.0
        %5880 = vmatprep.subr.mxu0 0.0
        %5881 = vmatpush1.msra.mxu0 0.0
        %5882 = vmatprep.subr.mxu0 0.0
        %5883 = vmatpush1.msra.mxu0 0.0
        %5884 = vmatprep.subr.mxu0 0.0
        %5885 = vmatpush1.msra.mxu0 0.0
        %5886 = vmatprep.subr.mxu0 0.0
        %5887 = vmatpush1.msra.mxu0 0.0
        %5888 = vmatprep.subr.mxu0 0.0
        %5889 = vmatpush1.msra.mxu0 0.0
        %5890 = vmatprep.subr.mxu0 0.0
        %5891 = vmatpush1.msra.mxu0 0.0
        %5892 = vmatprep.mubr.f32.mxu0 0.0
        %5893 = vmatmul.mubr.f32.gmra.mrb[0].mxu0 %v5818
        %v5894 = vpop.f32.mrb[0].mxu0
        %v5895 = vadd.f32 0.0, %v5894
        %v5896 = vpop.f32.mrb[0].mxu0
        %v5897 = vadd.f32 0.0, %v5896
        %5898 = vdwg.mxu0
        %5899 = vmatprep.subr.mxu0 %v5826
        %5900 = vmatpush1.msra.mxu0 %v5824
        %5901 = vmatprep.subr.mxu0 0.0
        %5902 = vmatpush1.msra.mxu0 0.0
        %5903 = vmatprep.subr.mxu0 0.0
        %5904 = vmatpush1.msra.mxu0 0.0
        %5905 = vmatprep.subr.mxu0 0.0
        %5906 = vmatpush1.msra.mxu0 0.0
        %5907 = vmatprep.subr.mxu0 0.0
        %5908 = vmatpush1.msra.mxu0 0.0
        %5909 = vmatprep.subr.mxu0 0.0
        %5910 = vmatpush1.msra.mxu0 0.0
        %5911 = vmatprep.subr.mxu0 0.0
        %5912 = vmatpush1.msra.mxu0 0.0
        %5913 = vmatprep.subr.mxu0 0.0
        %5914 = vmatpush1.msra.mxu0 0.0
        %5915 = vmatprep.subr.mxu0 0.0
        %5916 = vmatpush1.msra.mxu0 0.0
        %5917 = vmatprep.subr.mxu0 0.0
        %5918 = vmatpush1.msra.mxu0 0.0
        %5919 = vmatprep.subr.mxu0 0.0
        %5920 = vmatpush1.msra.mxu0 0.0
        %5921 = vmatprep.subr.mxu0 0.0
        %5922 = vmatpush1.msra.mxu0 0.0
        %5923 = vmatprep.subr.mxu0 0.0
        %5924 = vmatpush1.msra.mxu0 0.0
        %5925 = vmatprep.subr.mxu0 0.0
        %5926 = vmatpush1.msra.mxu0 0.0
        %5927 = vmatprep.subr.mxu0 0.0
        %5928 = vmatpush1.msra.mxu0 0.0
        %5929 = vmatprep.subr.mxu0 0.0
        %5930 = vmatpush1.msra.mxu0 0.0
        %5931 = vmatprep.subr.mxu0 0.0
        %5932 = vmatpush1.msra.mxu0 0.0
        %5933 = vmatprep.subr.mxu0 0.0
        %5934 = vmatpush1.msra.mxu0 0.0
        %5935 = vmatprep.subr.mxu0 0.0
        %5936 = vmatpush1.msra.mxu0 0.0
        %5937 = vmatprep.subr.mxu0 0.0
        %5938 = vmatpush1.msra.mxu0 0.0
        %5939 = vmatprep.subr.mxu0 0.0
        %5940 = vmatpush1.msra.mxu0 0.0
        %5941 = vmatprep.subr.mxu0 0.0
        %5942 = vmatpush1.msra.mxu0 0.0
        %5943 = vmatprep.subr.mxu0 0.0
        %5944 = vmatpush1.msra.mxu0 0.0
        %5945 = vmatprep.subr.mxu0 0.0
        %5946 = vmatpush1.msra.mxu0 0.0
        %5947 = vmatprep.subr.mxu0 0.0
        %5948 = vmatpush1.msra.mxu0 0.0
        %5949 = vmatprep.subr.mxu0 0.0
        %5950 = vmatpush1.msra.mxu0 0.0
        %5951 = vmatprep.subr.mxu0 0.0
        %5952 = vmatpush1.msra.mxu0 0.0
        %5953 = vmatprep.subr.mxu0 0.0
        %5954 = vmatpush1.msra.mxu0 0.0
        %5955 = vmatprep.subr.mxu0 0.0
        %5956 = vmatpush1.msra.mxu0 0.0
        %5957 = vmatprep.subr.mxu0 0.0
        %5958 = vmatpush1.msra.mxu0 0.0
        %5959 = vmatprep.subr.mxu0 0.0
        %5960 = vmatpush1.msra.mxu0 0.0
        %5961 = vmatprep.subr.mxu0 0.0
        %5962 = vmatpush1.msra.mxu0 0.0
        %5963 = vmatprep.mubr.f32.mxu0 0.0
        %5964 = vmatmul.mubr.f32.gmra.mrb[0].mxu0 %v5818
        %v5965 = vpop.f32.mrb[0].mxu0
        %v5966 = vadd.f32 0.0, %v5965
        %v5967 = vpop.f32.mrb[0].mxu0
        %v5968 = vadd.f32 0.0, %v5967
        %5969 = vdwg.mxu0
        %v5970 = vadd.f32 %v5796, %v5895
        %v5971 = vadd.f32 %v5797, %v5897
        %v5972 = vadd.f32 %v5798, %v5966
        %v5973 = vadd.f32 %v5799, %v5968
        %s5974 = scalar_lea.vmem %s1, 264
        %v5975 = vld [vmem:[%s5974] sm:$0xff]
        %5976 = vrot.lane.b32.xlu0 %v246, 35
        %v5977 = vpop.permute.xlu0 %5976
        %5978 = vrot.lane.b32.xlu0 %v255, 35
        %v5979 = vpop.permute.xlu0 %5978
        %5980 = vrot.lane.b32.xlu0 %v247, 35
        %v5981 = vpop.permute.xlu0 %5980
        %5982 = vrot.lane.b32.xlu0 %v256, 35
        %v5983 = vpop.permute.xlu0 %5982
        %5984 = vrot.lane.b32.xlu0 %v248, 35
        %v5985 = vpop.permute.xlu0 %5984
        %vm5986 = vcmask 285696
        %v5987 = vsel %vm5986, %v5977, %v5979
        %v5988 = vsel %vm5986, %v5979, %v5981
        %v5989 = vsel %vm5986, %v5981, %v5983
        %v5990 = vsel %vm5986, %v5983, %v5985
        %v5992 = vsel %vm272, %v5975, 0
        %v5994 = vsel %vm276, %v5987, 0
        %v5996 = vsel %vm276, %v5988, 0
        %v5998 = vsel %vm276, %v5989, 0
        %v6000 = vsel %vm276, %v5990, 0
        %6002 = vmatprep.subr.mxu0 %v5996
        %6003 = vmatpush1.msra.mxu0 %v5994
        %6004 = vmatprep.subr.mxu0 0.0
        %6005 = vmatpush1.msra.mxu0 0.0
        %6006 = vmatprep.subr.mxu0 0.0
        %6007 = vmatpush1.msra.mxu0 0.0
        %6008 = vmatprep.subr.mxu0 0.0
        %6009 = vmatpush1.msra.mxu0 0.0
        %6010 = vmatprep.subr.mxu0 0.0
        %6011 = vmatpush1.msra.mxu0 0.0
        %6012 = vmatprep.subr.mxu0 0.0
        %6013 = vmatpush1.msra.mxu0 0.0
        %6014 = vmatprep.subr.mxu0 0.0
        %6015 = vmatpush1.msra.mxu0 0.0
        %6016 = vmatprep.subr.mxu0 0.0
        %6017 = vmatpush1.msra.mxu0 0.0
        %6018 = vmatprep.subr.mxu0 0.0
        %6019 = vmatpush1.msra.mxu0 0.0
        %6020 = vmatprep.subr.mxu0 0.0
        %6021 = vmatpush1.msra.mxu0 0.0
        %6022 = vmatprep.subr.mxu0 0.0
        %6023 = vmatpush1.msra.mxu0 0.0
        %6024 = vmatprep.subr.mxu0 0.0
        %6025 = vmatpush1.msra.mxu0 0.0
        %6026 = vmatprep.subr.mxu0 0.0
        %6027 = vmatpush1.msra.mxu0 0.0
        %6028 = vmatprep.subr.mxu0 0.0
        %6029 = vmatpush1.msra.mxu0 0.0
        %6030 = vmatprep.subr.mxu0 0.0
        %6031 = vmatpush1.msra.mxu0 0.0
        %6032 = vmatprep.subr.mxu0 0.0
        %6033 = vmatpush1.msra.mxu0 0.0
        %6034 = vmatprep.subr.mxu0 0.0
        %6035 = vmatpush1.msra.mxu0 0.0
        %6036 = vmatprep.subr.mxu0 0.0
        %6037 = vmatpush1.msra.mxu0 0.0
        %6038 = vmatprep.subr.mxu0 0.0
        %6039 = vmatpush1.msra.mxu0 0.0
        %6040 = vmatprep.subr.mxu0 0.0
        %6041 = vmatpush1.msra.mxu0 0.0
        %6042 = vmatprep.subr.mxu0 0.0
        %6043 = vmatpush1.msra.mxu0 0.0
        %6044 = vmatprep.subr.mxu0 0.0
        %6045 = vmatpush1.msra.mxu0 0.0
        %6046 = vmatprep.subr.mxu0 0.0
        %6047 = vmatpush1.msra.mxu0 0.0
        %6048 = vmatprep.subr.mxu0 0.0
        %6049 = vmatpush1.msra.mxu0 0.0
        %6050 = vmatprep.subr.mxu0 0.0
        %6051 = vmatpush1.msra.mxu0 0.0
        %6052 = vmatprep.subr.mxu0 0.0
        %6053 = vmatpush1.msra.mxu0 0.0
        %6054 = vmatprep.subr.mxu0 0.0
        %6055 = vmatpush1.msra.mxu0 0.0
        %6056 = vmatprep.subr.mxu0 0.0
        %6057 = vmatpush1.msra.mxu0 0.0
        %6058 = vmatprep.subr.mxu0 0.0
        %6059 = vmatpush1.msra.mxu0 0.0
        %6060 = vmatprep.subr.mxu0 0.0
        %6061 = vmatpush1.msra.mxu0 0.0
        %6062 = vmatprep.subr.mxu0 0.0
        %6063 = vmatpush1.msra.mxu0 0.0
        %6064 = vmatprep.subr.mxu0 0.0
        %6065 = vmatpush1.msra.mxu0 0.0
        %6066 = vmatprep.mubr.f32.mxu0 0.0
        %6067 = vmatmul.mubr.f32.gmra.mrb[0].mxu0 %v5992
        %v6068 = vpop.f32.mrb[0].mxu0
        %v6069 = vadd.f32 0.0, %v6068
        %v6070 = vpop.f32.mrb[0].mxu0
        %v6071 = vadd.f32 0.0, %v6070
        %6072 = vdwg.mxu0
        %6073 = vmatprep.subr.mxu0 %v6000
        %6074 = vmatpush1.msra.mxu0 %v5998
        %6075 = vmatprep.subr.mxu0 0.0
        %6076 = vmatpush1.msra.mxu0 0.0
        %6077 = vmatprep.subr.mxu0 0.0
        %6078 = vmatpush1.msra.mxu0 0.0
        %6079 = vmatprep.subr.mxu0 0.0
        %6080 = vmatpush1.msra.mxu0 0.0
        %6081 = vmatprep.subr.mxu0 0.0
        %6082 = vmatpush1.msra.mxu0 0.0
        %6083 = vmatprep.subr.mxu0 0.0
        %6084 = vmatpush1.msra.mxu0 0.0
        %6085 = vmatprep.subr.mxu0 0.0
        %6086 = vmatpush1.msra.mxu0 0.0
        %6087 = vmatprep.subr.mxu0 0.0
        %6088 = vmatpush1.msra.mxu0 0.0
        %6089 = vmatprep.subr.mxu0 0.0
        %6090 = vmatpush1.msra.mxu0 0.0
        %6091 = vmatprep.subr.mxu0 0.0
        %6092 = vmatpush1.msra.mxu0 0.0
        %6093 = vmatprep.subr.mxu0 0.0
        %6094 = vmatpush1.msra.mxu0 0.0
        %6095 = vmatprep.subr.mxu0 0.0
        %6096 = vmatpush1.msra.mxu0 0.0
        %6097 = vmatprep.subr.mxu0 0.0
        %6098 = vmatpush1.msra.mxu0 0.0
        %6099 = vmatprep.subr.mxu0 0.0
        %6100 = vmatpush1.msra.mxu0 0.0
        %6101 = vmatprep.subr.mxu0 0.0
        %6102 = vmatpush1.msra.mxu0 0.0
        %6103 = vmatprep.subr.mxu0 0.0
        %6104 = vmatpush1.msra.mxu0 0.0
        %6105 = vmatprep.subr.mxu0 0.0
        %6106 = vmatpush1.msra.mxu0 0.0
        %6107 = vmatprep.subr.mxu0 0.0
        %6108 = vmatpush1.msra.mxu0 0.0
        %6109 = vmatprep.subr.mxu0 0.0
        %6110 = vmatpush1.msra.mxu0 0.0
        %6111 = vmatprep.subr.mxu0 0.0
        %6112 = vmatpush1.msra.mxu0 0.0
        %6113 = vmatprep.subr.mxu0 0.0
        %6114 = vmatpush1.msra.mxu0 0.0
        %6115 = vmatprep.subr.mxu0 0.0
        %6116 = vmatpush1.msra.mxu0 0.0
        %6117 = vmatprep.subr.mxu0 0.0
        %6118 = vmatpush1.msra.mxu0 0.0
        %6119 = vmatprep.subr.mxu0 0.0
        %6120 = vmatpush1.msra.mxu0 0.0
        %6121 = vmatprep.subr.mxu0 0.0
        %6122 = vmatpush1.msra.mxu0 0.0
        %6123 = vmatprep.subr.mxu0 0.0
        %6124 = vmatpush1.msra.mxu0 0.0
        %6125 = vmatprep.subr.mxu0 0.0
        %6126 = vmatpush1.msra.mxu0 0.0
        %6127 = vmatprep.subr.mxu0 0.0
        %6128 = vmatpush1.msra.mxu0 0.0
        %6129 = vmatprep.subr.mxu0 0.0
        %6130 = vmatpush1.msra.mxu0 0.0
        %6131 = vmatprep.subr.mxu0 0.0
        %6132 = vmatpush1.msra.mxu0 0.0
        %6133 = vmatprep.subr.mxu0 0.0
        %6134 = vmatpush1.msra.mxu0 0.0
        %6135 = vmatprep.subr.mxu0 0.0
        %6136 = vmatpush1.msra.mxu0 0.0
        %6137 = vmatprep.mubr.f32.mxu0 0.0
        %6138 = vmatmul.mubr.f32.gmra.mrb[0].mxu0 %v5992
        %v6139 = vpop.f32.mrb[0].mxu0
        %v6140 = vadd.f32 0.0, %v6139
        %v6141 = vpop.f32.mrb[0].mxu0
        %v6142 = vadd.f32 0.0, %v6141
        %6143 = vdwg.mxu0
        %v6144 = vadd.f32 %v5970, %v6069
        %v6145 = vadd.f32 %v5971, %v6071
        %v6146 = vadd.f32 %v5972, %v6140
        %v6147 = vadd.f32 %v5973, %v6142
        %s6148 = scalar_lea.vmem %s1, 272
        %v6149 = vld [vmem:[%s6148] sm:$0xff]
        %6150 = vrot.lane.b32.xlu0 %v246, 34
        %v6151 = vpop.permute.xlu0 %6150
        %6152 = vrot.lane.b32.xlu0 %v255, 34
        %v6153 = vpop.permute.xlu0 %6152
        %6154 = vrot.lane.b32.xlu0 %v247, 34
        %v6155 = vpop.permute.xlu0 %6154
        %6156 = vrot.lane.b32.xlu0 %v256, 34
        %v6157 = vpop.permute.xlu0 %6156
        %6158 = vrot.lane.b32.xlu0 %v248, 34
        %v6159 = vpop.permute.xlu0 %6158
        %vm6160 = vcmask 277504
        %v6161 = vsel %vm6160, %v6151, %v6153
        %v6162 = vsel %vm6160, %v6153, %v6155
        %v6163 = vsel %vm6160, %v6155, %v6157
        %v6164 = vsel %vm6160, %v6157, %v6159
        %v6166 = vsel %vm272, %v6149, 0
        %v6168 = vsel %vm276, %v6161, 0
        %v6170 = vsel %vm276, %v6162, 0
        %v6172 = vsel %vm276, %v6163, 0
        %v6174 = vsel %vm276, %v6164, 0
        %6176 = vmatprep.subr.mxu0 %v6170
        %6177 = vmatpush1.msra.mxu0 %v6168
        %6178 = vmatprep.subr.mxu0 0.0
        %6179 = vmatpush1.msra.mxu0 0.0
        %6180 = vmatprep.subr.mxu0 0.0
        %6181 = vmatpush1.msra.mxu0 0.0
        %6182 = vmatprep.subr.mxu0 0.0
        %6183 = vmatpush1.msra.mxu0 0.0
        %6184 = vmatprep.subr.mxu0 0.0
        %6185 = vmatpush1.msra.mxu0 0.0
        %6186 = vmatprep.subr.mxu0 0.0
        %6187 = vmatpush1.msra.mxu0 0.0
        %6188 = vmatprep.subr.mxu0 0.0
        %6189 = vmatpush1.msra.mxu0 0.0
        %6190 = vmatprep.subr.mxu0 0.0
        %6191 = vmatpush1.msra.mxu0 0.0
        %6192 = vmatprep.subr.mxu0 0.0
        %6193 = vmatpush1.msra.mxu0 0.0
        %6194 = vmatprep.subr.mxu0 0.0
        %6195 = vmatpush1.msra.mxu0 0.0
        %6196 = vmatprep.subr.mxu0 0.0
        %6197 = vmatpush1.msra.mxu0 0.0
        %6198 = vmatprep.subr.mxu0 0.0
        %6199 = vmatpush1.msra.mxu0 0.0
        %6200 = vmatprep.subr.mxu0 0.0
        %6201 = vmatpush1.msra.mxu0 0.0
        %6202 = vmatprep.subr.mxu0 0.0
        %6203 = vmatpush1.msra.mxu0 0.0
        %6204 = vmatprep.subr.mxu0 0.0
        %6205 = vmatpush1.msra.mxu0 0.0
        %6206 = vmatprep.subr.mxu0 0.0
        %6207 = vmatpush1.msra.mxu0 0.0
        %6208 = vmatprep.subr.mxu0 0.0
        %6209 = vmatpush1.msra.mxu0 0.0
        %6210 = vmatprep.subr.mxu0 0.0
        %6211 = vmatpush1.msra.mxu0 0.0
        %6212 = vmatprep.subr.mxu0 0.0
        %6213 = vmatpush1.msra.mxu0 0.0
        %6214 = vmatprep.subr.mxu0 0.0
        %6215 = vmatpush1.msra.mxu0 0.0
        %6216 = vmatprep.subr.mxu0 0.0
        %6217 = vmatpush1.msra.mxu0 0.0
        %6218 = vmatprep.subr.mxu0 0.0
        %6219 = vmatpush1.msra.mxu0 0.0
        %6220 = vmatprep.subr.mxu0 0.0
        %6221 = vmatpush1.msra.mxu0 0.0
        %6222 = vmatprep.subr.mxu0 0.0
        %6223 = vmatpush1.msra.mxu0 0.0
        %6224 = vmatprep.subr.mxu0 0.0
        %6225 = vmatpush1.msra.mxu0 0.0
        %6226 = vmatprep.subr.mxu0 0.0
        %6227 = vmatpush1.msra.mxu0 0.0
        %6228 = vmatprep.subr.mxu0 0.0
        %6229 = vmatpush1.msra.mxu0 0.0
        %6230 = vmatprep.subr.mxu0 0.0
        %6231 = vmatpush1.msra.mxu0 0.0
        %6232 = vmatprep.subr.mxu0 0.0
        %6233 = vmatpush1.msra.mxu0 0.0
        %6234 = vmatprep.subr.mxu0 0.0
        %6235 = vmatpush1.msra.mxu0 0.0
        %6236 = vmatprep.subr.mxu0 0.0
        %6237 = vmatpush1.msra.mxu0 0.0
        %6238 = vmatprep.subr.mxu0 0.0
        %6239 = vmatpush1.msra.mxu0 0.0
        %6240 = vmatprep.mubr.f32.mxu0 0.0
        %6241 = vmatmul.mubr.f32.gmra.mrb[0].mxu0 %v6166
        %v6242 = vpop.f32.mrb[0].mxu0
        %v6243 = vadd.f32 0.0, %v6242
        %v6244 = vpop.f32.mrb[0].mxu0
        %v6245 = vadd.f32 0.0, %v6244
        %6246 = vdwg.mxu0
        %6247 = vmatprep.subr.mxu0 %v6174
        %6248 = vmatpush1.msra.mxu0 %v6172
        %6249 = vmatprep.subr.mxu0 0.0
        %6250 = vmatpush1.msra.mxu0 0.0
        %6251 = vmatprep.subr.mxu0 0.0
        %6252 = vmatpush1.msra.mxu0 0.0
        %6253 = vmatprep.subr.mxu0 0.0
        %6254 = vmatpush1.msra.mxu0 0.0
        %6255 = vmatprep.subr.mxu0 0.0
        %6256 = vmatpush1.msra.mxu0 0.0
        %6257 = vmatprep.subr.mxu0 0.0
        %6258 = vmatpush1.msra.mxu0 0.0
        %6259 = vmatprep.subr.mxu0 0.0
        %6260 = vmatpush1.msra.mxu0 0.0
        %6261 = vmatprep.subr.mxu0 0.0
        %6262 = vmatpush1.msra.mxu0 0.0
        %6263 = vmatprep.subr.mxu0 0.0
        %6264 = vmatpush1.msra.mxu0 0.0
        %6265 = vmatprep.subr.mxu0 0.0
        %6266 = vmatpush1.msra.mxu0 0.0
        %6267 = vmatprep.subr.mxu0 0.0
        %6268 = vmatpush1.msra.mxu0 0.0
        %6269 = vmatprep.subr.mxu0 0.0
        %6270 = vmatpush1.msra.mxu0 0.0
        %6271 = vmatprep.subr.mxu0 0.0
        %6272 = vmatpush1.msra.mxu0 0.0
        %6273 = vmatprep.subr.mxu0 0.0
        %6274 = vmatpush1.msra.mxu0 0.0
        %6275 = vmatprep.subr.mxu0 0.0
        %6276 = vmatpush1.msra.mxu0 0.0
        %6277 = vmatprep.subr.mxu0 0.0
        %6278 = vmatpush1.msra.mxu0 0.0
        %6279 = vmatprep.subr.mxu0 0.0
        %6280 = vmatpush1.msra.mxu0 0.0
        %6281 = vmatprep.subr.mxu0 0.0
        %6282 = vmatpush1.msra.mxu0 0.0
        %6283 = vmatprep.subr.mxu0 0.0
        %6284 = vmatpush1.msra.mxu0 0.0
        %6285 = vmatprep.subr.mxu0 0.0
        %6286 = vmatpush1.msra.mxu0 0.0
        %6287 = vmatprep.subr.mxu0 0.0
        %6288 = vmatpush1.msra.mxu0 0.0
        %6289 = vmatprep.subr.mxu0 0.0
        %6290 = vmatpush1.msra.mxu0 0.0
        %6291 = vmatprep.subr.mxu0 0.0
        %6292 = vmatpush1.msra.mxu0 0.0
        %6293 = vmatprep.subr.mxu0 0.0
        %6294 = vmatpush1.msra.mxu0 0.0
        %6295 = vmatprep.subr.mxu0 0.0
        %6296 = vmatpush1.msra.mxu0 0.0
        %6297 = vmatprep.subr.mxu0 0.0
        %6298 = vmatpush1.msra.mxu0 0.0
        %6299 = vmatprep.subr.mxu0 0.0
        %6300 = vmatpush1.msra.mxu0 0.0
        %6301 = vmatprep.subr.mxu0 0.0
        %6302 = vmatpush1.msra.mxu0 0.0
        %6303 = vmatprep.subr.mxu0 0.0
        %6304 = vmatpush1.msra.mxu0 0.0
        %6305 = vmatprep.subr.mxu0 0.0
        %6306 = vmatpush1.msra.mxu0 0.0
        %6307 = vmatprep.subr.mxu0 0.0
        %6308 = vmatpush1.msra.mxu0 0.0
        %6309 = vmatprep.subr.mxu0 0.0
        %6310 = vmatpush1.msra.mxu0 0.0
        %6311 = vmatprep.mubr.f32.mxu0 0.0
        %6312 = vmatmul.mubr.f32.gmra.mrb[0].mxu0 %v6166
        %v6313 = vpop.f32.mrb[0].mxu0
        %v6314 = vadd.f32 0.0, %v6313
        %v6315 = vpop.f32.mrb[0].mxu0
        %v6316 = vadd.f32 0.0, %v6315
        %6317 = vdwg.mxu0
        %v6318 = vadd.f32 %v6144, %v6243
        %v6319 = vadd.f32 %v6145, %v6245
        %v6320 = vadd.f32 %v6146, %v6314
        %v6321 = vadd.f32 %v6147, %v6316
        %s6322 = scalar_lea.vmem %s1, 280
        %v6323 = vld [vmem:[%s6322] sm:$0xff]
        %6324 = vrot.lane.b32.xlu0 %v246, 18
        %v6325 = vpop.permute.xlu0 %6324
        %6326 = vrot.lane.b32.xlu0 %v255, 18
        %v6327 = vpop.permute.xlu0 %6326
        %6328 = vrot.lane.b32.xlu0 %v247, 18
        %v6329 = vpop.permute.xlu0 %6328
        %6330 = vrot.lane.b32.xlu0 %v256, 18
        %v6331 = vpop.permute.xlu0 %6330
        %6332 = vrot.lane.b32.xlu0 %v248, 18
        %v6333 = vpop.permute.xlu0 %6332
        %vm6334 = vcmask 146432
        %v6335 = vsel %vm6334, %v6325, %v6327
        %v6336 = vsel %vm6334, %v6327, %v6329
        %v6337 = vsel %vm6334, %v6329, %v6331
        %v6338 = vsel %vm6334, %v6331, %v6333
        %v6340 = vsel %vm272, %v6323, 0
        %v6342 = vsel %vm276, %v6335, 0
        %v6344 = vsel %vm276, %v6336, 0
        %v6346 = vsel %vm276, %v6337, 0
        %v6348 = vsel %vm276, %v6338, 0
        %6350 = vmatprep.subr.mxu0 %v6344
        %6351 = vmatpush1.msra.mxu0 %v6342
        %6352 = vmatprep.subr.mxu0 0.0
        %6353 = vmatpush1.msra.mxu0 0.0
        %6354 = vmatprep.subr.mxu0 0.0
        %6355 = vmatpush1.msra.mxu0 0.0
        %6356 = vmatprep.subr.mxu0 0.0
        %6357 = vmatpush1.msra.mxu0 0.0
        %6358 = vmatprep.subr.mxu0 0.0
        %6359 = vmatpush1.msra.mxu0 0.0
        %6360 = vmatprep.subr.mxu0 0.0
        %6361 = vmatpush1.msra.mxu0 0.0
        %6362 = vmatprep.subr.mxu0 0.0
        %6363 = vmatpush1.msra.mxu0 0.0
        %6364 = vmatprep.subr.mxu0 0.0
        %6365 = vmatpush1.msra.mxu0 0.0
        %6366 = vmatprep.subr.mxu0 0.0
        %6367 = vmatpush1.msra.mxu0 0.0
        %6368 = vmatprep.subr.mxu0 0.0
        %6369 = vmatpush1.msra.mxu0 0.0
        %6370 = vmatprep.subr.mxu0 0.0
        %6371 = vmatpush1.msra.mxu0 0.0
        %6372 = vmatprep.subr.mxu0 0.0
        %6373 = vmatpush1.msra.mxu0 0.0
        %6374 = vmatprep.subr.mxu0 0.0
        %6375 = vmatpush1.msra.mxu0 0.0
        %6376 = vmatprep.subr.mxu0 0.0
        %6377 = vmatpush1.msra.mxu0 0.0
        %6378 = vmatprep.subr.mxu0 0.0
        %6379 = vmatpush1.msra.mxu0 0.0
        %6380 = vmatprep.subr.mxu0 0.0
        %6381 = vmatpush1.msra.mxu0 0.0
        %6382 = vmatprep.subr.mxu0 0.0
        %6383 = vmatpush1.msra.mxu0 0.0
        %6384 = vmatprep.subr.mxu0 0.0
        %6385 = vmatpush1.msra.mxu0 0.0
        %6386 = vmatprep.subr.mxu0 0.0
        %6387 = vmatpush1.msra.mxu0 0.0
        %6388 = vmatprep.subr.mxu0 0.0
        %6389 = vmatpush1.msra.mxu0 0.0
        %6390 = vmatprep.subr.mxu0 0.0
        %6391 = vmatpush1.msra.mxu0 0.0
        %6392 = vmatprep.subr.mxu0 0.0
        %6393 = vmatpush1.msra.mxu0 0.0
        %6394 = vmatprep.subr.mxu0 0.0
        %6395 = vmatpush1.msra.mxu0 0.0
        %6396 = vmatprep.subr.mxu0 0.0
        %6397 = vmatpush1.msra.mxu0 0.0
        %6398 = vmatprep.subr.mxu0 0.0
        %6399 = vmatpush1.msra.mxu0 0.0
        %6400 = vmatprep.subr.mxu0 0.0
        %6401 = vmatpush1.msra.mxu0 0.0
        %6402 = vmatprep.subr.mxu0 0.0
        %6403 = vmatpush1.msra.mxu0 0.0
        %6404 = vmatprep.subr.mxu0 0.0
        %6405 = vmatpush1.msra.mxu0 0.0
        %6406 = vmatprep.subr.mxu0 0.0
        %6407 = vmatpush1.msra.mxu0 0.0
        %6408 = vmatprep.subr.mxu0 0.0
        %6409 = vmatpush1.msra.mxu0 0.0
        %6410 = vmatprep.subr.mxu0 0.0
        %6411 = vmatpush1.msra.mxu0 0.0
        %6412 = vmatprep.subr.mxu0 0.0
        %6413 = vmatpush1.msra.mxu0 0.0
        %6414 = vmatprep.mubr.f32.mxu0 0.0
        %6415 = vmatmul.mubr.f32.gmra.mrb[0].mxu0 %v6340
        %v6416 = vpop.f32.mrb[0].mxu0
        %v6417 = vadd.f32 0.0, %v6416
        %v6418 = vpop.f32.mrb[0].mxu0
        %v6419 = vadd.f32 0.0, %v6418
        %6420 = vdwg.mxu0
        %6421 = vmatprep.subr.mxu0 %v6348
        %6422 = vmatpush1.msra.mxu0 %v6346
        %6423 = vmatprep.subr.mxu0 0.0
        %6424 = vmatpush1.msra.mxu0 0.0
        %6425 = vmatprep.subr.mxu0 0.0
        %6426 = vmatpush1.msra.mxu0 0.0
        %6427 = vmatprep.subr.mxu0 0.0
        %6428 = vmatpush1.msra.mxu0 0.0
        %6429 = vmatprep.subr.mxu0 0.0
        %6430 = vmatpush1.msra.mxu0 0.0
        %6431 = vmatprep.subr.mxu0 0.0
        %6432 = vmatpush1.msra.mxu0 0.0
        %6433 = vmatprep.subr.mxu0 0.0
        %6434 = vmatpush1.msra.mxu0 0.0
        %6435 = vmatprep.subr.mxu0 0.0
        %6436 = vmatpush1.msra.mxu0 0.0
        %6437 = vmatprep.subr.mxu0 0.0
        %6438 = vmatpush1.msra.mxu0 0.0
        %6439 = vmatprep.subr.mxu0 0.0
        %6440 = vmatpush1.msra.mxu0 0.0
        %6441 = vmatprep.subr.mxu0 0.0
        %6442 = vmatpush1.msra.mxu0 0.0
        %6443 = vmatprep.subr.mxu0 0.0
        %6444 = vmatpush1.msra.mxu0 0.0
        %6445 = vmatprep.subr.mxu0 0.0
        %6446 = vmatpush1.msra.mxu0 0.0
        %6447 = vmatprep.subr.mxu0 0.0
        %6448 = vmatpush1.msra.mxu0 0.0
        %6449 = vmatprep.subr.mxu0 0.0
        %6450 = vmatpush1.msra.mxu0 0.0
        %6451 = vmatprep.subr.mxu0 0.0
        %6452 = vmatpush1.msra.mxu0 0.0
        %6453 = vmatprep.subr.mxu0 0.0
        %6454 = vmatpush1.msra.mxu0 0.0
        %6455 = vmatprep.subr.mxu0 0.0
        %6456 = vmatpush1.msra.mxu0 0.0
        %6457 = vmatprep.subr.mxu0 0.0
        %6458 = vmatpush1.msra.mxu0 0.0
        %6459 = vmatprep.subr.mxu0 0.0
        %6460 = vmatpush1.msra.mxu0 0.0
        %6461 = vmatprep.subr.mxu0 0.0
        %6462 = vmatpush1.msra.mxu0 0.0
        %6463 = vmatprep.subr.mxu0 0.0
        %6464 = vmatpush1.msra.mxu0 0.0
        %6465 = vmatprep.subr.mxu0 0.0
        %6466 = vmatpush1.msra.mxu0 0.0
        %6467 = vmatprep.subr.mxu0 0.0
        %6468 = vmatpush1.msra.mxu0 0.0
        %6469 = vmatprep.subr.mxu0 0.0
        %6470 = vmatpush1.msra.mxu0 0.0
        %6471 = vmatprep.subr.mxu0 0.0
        %6472 = vmatpush1.msra.mxu0 0.0
        %6473 = vmatprep.subr.mxu0 0.0
        %6474 = vmatpush1.msra.mxu0 0.0
        %6475 = vmatprep.subr.mxu0 0.0
        %6476 = vmatpush1.msra.mxu0 0.0
        %6477 = vmatprep.subr.mxu0 0.0
        %6478 = vmatpush1.msra.mxu0 0.0
        %6479 = vmatprep.subr.mxu0 0.0
        %6480 = vmatpush1.msra.mxu0 0.0
        %6481 = vmatprep.subr.mxu0 0.0
        %6482 = vmatpush1.msra.mxu0 0.0
        %6483 = vmatprep.subr.mxu0 0.0
        %6484 = vmatpush1.msra.mxu0 0.0
        %6485 = vmatprep.mubr.f32.mxu0 0.0
        %6486 = vmatmul.mubr.f32.gmra.mrb[0].mxu0 %v6340
        %v6487 = vpop.f32.mrb[0].mxu0
        %v6488 = vadd.f32 0.0, %v6487
        %v6489 = vpop.f32.mrb[0].mxu0
        %v6490 = vadd.f32 0.0, %v6489
        %6491 = vdwg.mxu0
        %v6492 = vadd.f32 %v6318, %v6417
        %v6493 = vadd.f32 %v6319, %v6419
        %v6494 = vadd.f32 %v6320, %v6488
        %v6495 = vadd.f32 %v6321, %v6490
        %s6496 = scalar_lea.vmem %s1, 288
        %v6497 = vld [vmem:[%s6496] sm:$0xff]
        %6498 = vrot.lane.b32.xlu0 %v246, 17
        %v6499 = vpop.permute.xlu0 %6498
        %6500 = vrot.lane.b32.xlu0 %v255, 17
        %v6501 = vpop.permute.xlu0 %6500
        %6502 = vrot.lane.b32.xlu0 %v247, 17
        %v6503 = vpop.permute.xlu0 %6502
        %6504 = vrot.lane.b32.xlu0 %v256, 17
        %v6505 = vpop.permute.xlu0 %6504
        %6506 = vrot.lane.b32.xlu0 %v248, 17
        %v6507 = vpop.permute.xlu0 %6506
        %vm6508 = vcmask 138240
        %v6509 = vsel %vm6508, %v6499, %v6501
        %v6510 = vsel %vm6508, %v6501, %v6503
        %v6511 = vsel %vm6508, %v6503, %v6505
        %v6512 = vsel %vm6508, %v6505, %v6507
        %v6514 = vsel %vm272, %v6497, 0
        %v6516 = vsel %vm276, %v6509, 0
        %v6518 = vsel %vm276, %v6510, 0
        %v6520 = vsel %vm276, %v6511, 0
        %v6522 = vsel %vm276, %v6512, 0
        %6524 = vmatprep.subr.mxu0 %v6518
        %6525 = vmatpush1.msra.mxu0 %v6516
        %6526 = vmatprep.subr.mxu0 0.0
        %6527 = vmatpush1.msra.mxu0 0.0
        %6528 = vmatprep.subr.mxu0 0.0
        %6529 = vmatpush1.msra.mxu0 0.0
        %6530 = vmatprep.subr.mxu0 0.0
        %6531 = vmatpush1.msra.mxu0 0.0
        %6532 = vmatprep.subr.mxu0 0.0
        %6533 = vmatpush1.msra.mxu0 0.0
        %6534 = vmatprep.subr.mxu0 0.0
        %6535 = vmatpush1.msra.mxu0 0.0
        %6536 = vmatprep.subr.mxu0 0.0
        %6537 = vmatpush1.msra.mxu0 0.0
        %6538 = vmatprep.subr.mxu0 0.0
        %6539 = vmatpush1.msra.mxu0 0.0
        %6540 = vmatprep.subr.mxu0 0.0
        %6541 = vmatpush1.msra.mxu0 0.0
        %6542 = vmatprep.subr.mxu0 0.0
        %6543 = vmatpush1.msra.mxu0 0.0
        %6544 = vmatprep.subr.mxu0 0.0
        %6545 = vmatpush1.msra.mxu0 0.0
        %6546 = vmatprep.subr.mxu0 0.0
        %6547 = vmatpush1.msra.mxu0 0.0
        %6548 = vmatprep.subr.mxu0 0.0
        %6549 = vmatpush1.msra.mxu0 0.0
        %6550 = vmatprep.subr.mxu0 0.0
        %6551 = vmatpush1.msra.mxu0 0.0
        %6552 = vmatprep.subr.mxu0 0.0
        %6553 = vmatpush1.msra.mxu0 0.0
        %6554 = vmatprep.subr.mxu0 0.0
        %6555 = vmatpush1.msra.mxu0 0.0
        %6556 = vmatprep.subr.mxu0 0.0
        %6557 = vmatpush1.msra.mxu0 0.0
        %6558 = vmatprep.subr.mxu0 0.0
        %6559 = vmatpush1.msra.mxu0 0.0
        %6560 = vmatprep.subr.mxu0 0.0
        %6561 = vmatpush1.msra.mxu0 0.0
        %6562 = vmatprep.subr.mxu0 0.0
        %6563 = vmatpush1.msra.mxu0 0.0
        %6564 = vmatprep.subr.mxu0 0.0
        %6565 = vmatpush1.msra.mxu0 0.0
        %6566 = vmatprep.subr.mxu0 0.0
        %6567 = vmatpush1.msra.mxu0 0.0
        %6568 = vmatprep.subr.mxu0 0.0
        %6569 = vmatpush1.msra.mxu0 0.0
        %6570 = vmatprep.subr.mxu0 0.0
        %6571 = vmatpush1.msra.mxu0 0.0
        %6572 = vmatprep.subr.mxu0 0.0
        %6573 = vmatpush1.msra.mxu0 0.0
        %6574 = vmatprep.subr.mxu0 0.0
        %6575 = vmatpush1.msra.mxu0 0.0
        %6576 = vmatprep.subr.mxu0 0.0
        %6577 = vmatpush1.msra.mxu0 0.0
        %6578 = vmatprep.subr.mxu0 0.0
        %6579 = vmatpush1.msra.mxu0 0.0
        %6580 = vmatprep.subr.mxu0 0.0
        %6581 = vmatpush1.msra.mxu0 0.0
        %6582 = vmatprep.subr.mxu0 0.0
        %6583 = vmatpush1.msra.mxu0 0.0
        %6584 = vmatprep.subr.mxu0 0.0
        %6585 = vmatpush1.msra.mxu0 0.0
        %6586 = vmatprep.subr.mxu0 0.0
        %6587 = vmatpush1.msra.mxu0 0.0
        %6588 = vmatprep.mubr.f32.mxu0 0.0
        %6589 = vmatmul.mubr.f32.gmra.mrb[0].mxu0 %v6514
        %v6590 = vpop.f32.mrb[0].mxu0
        %v6591 = vadd.f32 0.0, %v6590
        %v6592 = vpop.f32.mrb[0].mxu0
        %v6593 = vadd.f32 0.0, %v6592
        %6594 = vdwg.mxu0
        %6595 = vmatprep.subr.mxu0 %v6522
        %6596 = vmatpush1.msra.mxu0 %v6520
        %6597 = vmatprep.subr.mxu0 0.0
        %6598 = vmatpush1.msra.mxu0 0.0
        %6599 = vmatprep.subr.mxu0 0.0
        %6600 = vmatpush1.msra.mxu0 0.0
        %6601 = vmatprep.subr.mxu0 0.0
        %6602 = vmatpush1.msra.mxu0 0.0
        %6603 = vmatprep.subr.mxu0 0.0
        %6604 = vmatpush1.msra.mxu0 0.0
        %6605 = vmatprep.subr.mxu0 0.0
        %6606 = vmatpush1.msra.mxu0 0.0
        %6607 = vmatprep.subr.mxu0 0.0
        %6608 = vmatpush1.msra.mxu0 0.0
        %6609 = vmatprep.subr.mxu0 0.0
        %6610 = vmatpush1.msra.mxu0 0.0
        %6611 = vmatprep.subr.mxu0 0.0
        %6612 = vmatpush1.msra.mxu0 0.0
        %6613 = vmatprep.subr.mxu0 0.0
        %6614 = vmatpush1.msra.mxu0 0.0
        %6615 = vmatprep.subr.mxu0 0.0
        %6616 = vmatpush1.msra.mxu0 0.0
        %6617 = vmatprep.subr.mxu0 0.0
        %6618 = vmatpush1.msra.mxu0 0.0
        %6619 = vmatprep.subr.mxu0 0.0
        %6620 = vmatpush1.msra.mxu0 0.0
        %6621 = vmatprep.subr.mxu0 0.0
        %6622 = vmatpush1.msra.mxu0 0.0
        %6623 = vmatprep.subr.mxu0 0.0
        %6624 = vmatpush1.msra.mxu0 0.0
        %6625 = vmatprep.subr.mxu0 0.0
        %6626 = vmatpush1.msra.mxu0 0.0
        %6627 = vmatprep.subr.mxu0 0.0
        %6628 = vmatpush1.msra.mxu0 0.0
        %6629 = vmatprep.subr.mxu0 0.0
        %6630 = vmatpush1.msra.mxu0 0.0
        %6631 = vmatprep.subr.mxu0 0.0
        %6632 = vmatpush1.msra.mxu0 0.0
        %6633 = vmatprep.subr.mxu0 0.0
        %6634 = vmatpush1.msra.mxu0 0.0
        %6635 = vmatprep.subr.mxu0 0.0
        %6636 = vmatpush1.msra.mxu0 0.0
        %6637 = vmatprep.subr.mxu0 0.0
        %6638 = vmatpush1.msra.mxu0 0.0
        %6639 = vmatprep.subr.mxu0 0.0
        %6640 = vmatpush1.msra.mxu0 0.0
        %6641 = vmatprep.subr.mxu0 0.0
        %6642 = vmatpush1.msra.mxu0 0.0
        %6643 = vmatprep.subr.mxu0 0.0
        %6644 = vmatpush1.msra.mxu0 0.0
        %6645 = vmatprep.subr.mxu0 0.0
        %6646 = vmatpush1.msra.mxu0 0.0
        %6647 = vmatprep.subr.mxu0 0.0
        %6648 = vmatpush1.msra.mxu0 0.0
        %6649 = vmatprep.subr.mxu0 0.0
        %6650 = vmatpush1.msra.mxu0 0.0
        %6651 = vmatprep.subr.mxu0 0.0
        %6652 = vmatpush1.msra.mxu0 0.0
        %6653 = vmatprep.subr.mxu0 0.0
        %6654 = vmatpush1.msra.mxu0 0.0
        %6655 = vmatprep.subr.mxu0 0.0
        %6656 = vmatpush1.msra.mxu0 0.0
        %6657 = vmatprep.subr.mxu0 0.0
        %6658 = vmatpush1.msra.mxu0 0.0
        %6659 = vmatprep.mubr.f32.mxu0 0.0
        %6660 = vmatmul.mubr.f32.gmra.mrb[0].mxu0 %v6514
        %v6661 = vpop.f32.mrb[0].mxu0
        %v6662 = vadd.f32 0.0, %v6661
        %v6663 = vpop.f32.mrb[0].mxu0
        %v6664 = vadd.f32 0.0, %v6663
        %6665 = vdwg.mxu0
        %v6666 = vadd.f32 %v6492, %v6591
        %v6667 = vadd.f32 %v6493, %v6593
        %v6668 = vadd.f32 %v6494, %v6662
        %v6669 = vadd.f32 %v6495, %v6664
        %s6670 = scalar_lea.vmem %s1, 296
        %v6671 = vld [vmem:[%s6670] sm:$0xff]
        %6672 = vrot.lane.b32.xlu0 %v246, 16
        %v6673 = vpop.permute.xlu0 %6672
        %6674 = vrot.lane.b32.xlu0 %v255, 16
        %v6675 = vpop.permute.xlu0 %6674
        %6676 = vrot.lane.b32.xlu0 %v247, 16
        %v6677 = vpop.permute.xlu0 %6676
        %6678 = vrot.lane.b32.xlu0 %v256, 16
        %v6679 = vpop.permute.xlu0 %6678
        %6680 = vrot.lane.b32.xlu0 %v248, 16
        %v6681 = vpop.permute.xlu0 %6680
        %vm6682 = vcmask 130048
        %v6683 = vsel %vm6682, %v6673, %v6675
        %v6684 = vsel %vm6682, %v6675, %v6677
        %v6685 = vsel %vm6682, %v6677, %v6679
        %v6686 = vsel %vm6682, %v6679, %v6681
        %v6688 = vsel %vm272, %v6671, 0
        %v6690 = vsel %vm276, %v6683, 0
        %v6692 = vsel %vm276, %v6684, 0
        %v6694 = vsel %vm276, %v6685, 0
        %v6696 = vsel %vm276, %v6686, 0
        %6698 = vmatprep.subr.mxu0 %v6692
        %6699 = vmatpush1.msra.mxu0 %v6690
        %6700 = vmatprep.subr.mxu0 0.0
        %6701 = vmatpush1.msra.mxu0 0.0
        %6702 = vmatprep.subr.mxu0 0.0
        %6703 = vmatpush1.msra.mxu0 0.0
        %6704 = vmatprep.subr.mxu0 0.0
        %6705 = vmatpush1.msra.mxu0 0.0
        %6706 = vmatprep.subr.mxu0 0.0
        %6707 = vmatpush1.msra.mxu0 0.0
        %6708 = vmatprep.subr.mxu0 0.0
        %6709 = vmatpush1.msra.mxu0 0.0
        %6710 = vmatprep.subr.mxu0 0.0
        %6711 = vmatpush1.msra.mxu0 0.0
        %6712 = vmatprep.subr.mxu0 0.0
        %6713 = vmatpush1.msra.mxu0 0.0
        %6714 = vmatprep.subr.mxu0 0.0
        %6715 = vmatpush1.msra.mxu0 0.0
        %6716 = vmatprep.subr.mxu0 0.0
        %6717 = vmatpush1.msra.mxu0 0.0
        %6718 = vmatprep.subr.mxu0 0.0
        %6719 = vmatpush1.msra.mxu0 0.0
        %6720 = vmatprep.subr.mxu0 0.0
        %6721 = vmatpush1.msra.mxu0 0.0
        %6722 = vmatprep.subr.mxu0 0.0
        %6723 = vmatpush1.msra.mxu0 0.0
        %6724 = vmatprep.subr.mxu0 0.0
        %6725 = vmatpush1.msra.mxu0 0.0
        %6726 = vmatprep.subr.mxu0 0.0
        %6727 = vmatpush1.msra.mxu0 0.0
        %6728 = vmatprep.subr.mxu0 0.0
        %6729 = vmatpush1.msra.mxu0 0.0
        %6730 = vmatprep.subr.mxu0 0.0
        %6731 = vmatpush1.msra.mxu0 0.0
        %6732 = vmatprep.subr.mxu0 0.0
        %6733 = vmatpush1.msra.mxu0 0.0
        %6734 = vmatprep.subr.mxu0 0.0
        %6735 = vmatpush1.msra.mxu0 0.0
        %6736 = vmatprep.subr.mxu0 0.0
        %6737 = vmatpush1.msra.mxu0 0.0
        %6738 = vmatprep.subr.mxu0 0.0
        %6739 = vmatpush1.msra.mxu0 0.0
        %6740 = vmatprep.subr.mxu0 0.0
        %6741 = vmatpush1.msra.mxu0 0.0
        %6742 = vmatprep.subr.mxu0 0.0
        %6743 = vmatpush1.msra.mxu0 0.0
        %6744 = vmatprep.subr.mxu0 0.0
        %6745 = vmatpush1.msra.mxu0 0.0
        %6746 = vmatprep.subr.mxu0 0.0
        %6747 = vmatpush1.msra.mxu0 0.0
        %6748 = vmatprep.subr.mxu0 0.0
        %6749 = vmatpush1.msra.mxu0 0.0
        %6750 = vmatprep.subr.mxu0 0.0
        %6751 = vmatpush1.msra.mxu0 0.0
        %6752 = vmatprep.subr.mxu0 0.0
        %6753 = vmatpush1.msra.mxu0 0.0
        %6754 = vmatprep.subr.mxu0 0.0
        %6755 = vmatpush1.msra.mxu0 0.0
        %6756 = vmatprep.subr.mxu0 0.0
        %6757 = vmatpush1.msra.mxu0 0.0
        %6758 = vmatprep.subr.mxu0 0.0
        %6759 = vmatpush1.msra.mxu0 0.0
        %6760 = vmatprep.subr.mxu0 0.0
        %6761 = vmatpush1.msra.mxu0 0.0
        %6762 = vmatprep.mubr.f32.mxu0 0.0
        %6763 = vmatmul.mubr.f32.gmra.mrb[0].mxu0 %v6688
        %v6764 = vpop.f32.mrb[0].mxu0
        %v6765 = vadd.f32 0.0, %v6764
        %v6766 = vpop.f32.mrb[0].mxu0
        %v6767 = vadd.f32 0.0, %v6766
        %6768 = vdwg.mxu0
        %6769 = vmatprep.subr.mxu0 %v6696
        %6770 = vmatpush1.msra.mxu0 %v6694
        %6771 = vmatprep.subr.mxu0 0.0
        %6772 = vmatpush1.msra.mxu0 0.0
        %6773 = vmatprep.subr.mxu0 0.0
        %6774 = vmatpush1.msra.mxu0 0.0
        %6775 = vmatprep.subr.mxu0 0.0
        %6776 = vmatpush1.msra.mxu0 0.0
        %6777 = vmatprep.subr.mxu0 0.0
        %6778 = vmatpush1.msra.mxu0 0.0
        %6779 = vmatprep.subr.mxu0 0.0
        %6780 = vmatpush1.msra.mxu0 0.0
        %6781 = vmatprep.subr.mxu0 0.0
        %6782 = vmatpush1.msra.mxu0 0.0
        %6783 = vmatprep.subr.mxu0 0.0
        %6784 = vmatpush1.msra.mxu0 0.0
        %6785 = vmatprep.subr.mxu0 0.0
        %6786 = vmatpush1.msra.mxu0 0.0
        %6787 = vmatprep.subr.mxu0 0.0
        %6788 = vmatpush1.msra.mxu0 0.0
        %6789 = vmatprep.subr.mxu0 0.0
        %6790 = vmatpush1.msra.mxu0 0.0
        %6791 = vmatprep.subr.mxu0 0.0
        %6792 = vmatpush1.msra.mxu0 0.0
        %6793 = vmatprep.subr.mxu0 0.0
        %6794 = vmatpush1.msra.mxu0 0.0
        %6795 = vmatprep.subr.mxu0 0.0
        %6796 = vmatpush1.msra.mxu0 0.0
        %6797 = vmatprep.subr.mxu0 0.0
        %6798 = vmatpush1.msra.mxu0 0.0
        %6799 = vmatprep.subr.mxu0 0.0
        %6800 = vmatpush1.msra.mxu0 0.0
        %6801 = vmatprep.subr.mxu0 0.0
        %6802 = vmatpush1.msra.mxu0 0.0
        %6803 = vmatprep.subr.mxu0 0.0
        %6804 = vmatpush1.msra.mxu0 0.0
        %6805 = vmatprep.subr.mxu0 0.0
        %6806 = vmatpush1.msra.mxu0 0.0
        %6807 = vmatprep.subr.mxu0 0.0
        %6808 = vmatpush1.msra.mxu0 0.0
        %6809 = vmatprep.subr.mxu0 0.0
        %6810 = vmatpush1.msra.mxu0 0.0
        %6811 = vmatprep.subr.mxu0 0.0
        %6812 = vmatpush1.msra.mxu0 0.0
        %6813 = vmatprep.subr.mxu0 0.0
        %6814 = vmatpush1.msra.mxu0 0.0
        %6815 = vmatprep.subr.mxu0 0.0
        %6816 = vmatpush1.msra.mxu0 0.0
        %6817 = vmatprep.subr.mxu0 0.0
        %6818 = vmatpush1.msra.mxu0 0.0
        %6819 = vmatprep.subr.mxu0 0.0
        %6820 = vmatpush1.msra.mxu0 0.0
        %6821 = vmatprep.subr.mxu0 0.0
        %6822 = vmatpush1.msra.mxu0 0.0
        %6823 = vmatprep.subr.mxu0 0.0
        %6824 = vmatpush1.msra.mxu0 0.0
        %6825 = vmatprep.subr.mxu0 0.0
        %6826 = vmatpush1.msra.mxu0 0.0
        %6827 = vmatprep.subr.mxu0 0.0
        %6828 = vmatpush1.msra.mxu0 0.0
        %6829 = vmatprep.subr.mxu0 0.0
        %6830 = vmatpush1.msra.mxu0 0.0
        %6831 = vmatprep.subr.mxu0 0.0
        %6832 = vmatpush1.msra.mxu0 0.0
        %6833 = vmatprep.mubr.f32.mxu0 0.0
        %6834 = vmatmul.mubr.f32.gmra.mrb[0].mxu0 %v6688
        %v6835 = vpop.f32.mrb[0].mxu0
        %v6836 = vadd.f32 0.0, %v6835
        %v6837 = vpop.f32.mrb[0].mxu0
        %v6838 = vadd.f32 0.0, %v6837
        %6839 = vdwg.mxu0
        %v6840 = vadd.f32 %v6666, %v6765
        %v6841 = vadd.f32 %v6667, %v6767
        %v6842 = vadd.f32 %v6668, %v6836
        %v6843 = vadd.f32 %v6669, %v6838
        %s6844 = scalar_lea.vmem %s1, 304
        %v6845 = vld [vmem:[%s6844] sm:$0xff]
        %6846 = vrot.lane.b32.xlu0 %v246, 15
        %v6847 = vpop.permute.xlu0 %6846
        %6848 = vrot.lane.b32.xlu0 %v255, 15
        %v6849 = vpop.permute.xlu0 %6848
        %6850 = vrot.lane.b32.xlu0 %v247, 15
        %v6851 = vpop.permute.xlu0 %6850
        %6852 = vrot.lane.b32.xlu0 %v256, 15
        %v6853 = vpop.permute.xlu0 %6852
        %6854 = vrot.lane.b32.xlu0 %v248, 15
        %v6855 = vpop.permute.xlu0 %6854
        %vm6856 = vcmask 121856
        %v6857 = vsel %vm6856, %v6847, %v6849
        %v6858 = vsel %vm6856, %v6849, %v6851
        %v6859 = vsel %vm6856, %v6851, %v6853
        %v6860 = vsel %vm6856, %v6853, %v6855
        %v6862 = vsel %vm272, %v6845, 0
        %v6864 = vsel %vm276, %v6857, 0
        %v6866 = vsel %vm276, %v6858, 0
        %v6868 = vsel %vm276, %v6859, 0
        %v6870 = vsel %vm276, %v6860, 0
        %6872 = vmatprep.subr.mxu0 %v6866
        %6873 = vmatpush1.msra.mxu0 %v6864
        %6874 = vmatprep.subr.mxu0 0.0
        %6875 = vmatpush1.msra.mxu0 0.0
        %6876 = vmatprep.subr.mxu0 0.0
        %6877 = vmatpush1.msra.mxu0 0.0
        %6878 = vmatprep.subr.mxu0 0.0
        %6879 = vmatpush1.msra.mxu0 0.0
        %6880 = vmatprep.subr.mxu0 0.0
        %6881 = vmatpush1.msra.mxu0 0.0
        %6882 = vmatprep.subr.mxu0 0.0
        %6883 = vmatpush1.msra.mxu0 0.0
        %6884 = vmatprep.subr.mxu0 0.0
        %6885 = vmatpush1.msra.mxu0 0.0
        %6886 = vmatprep.subr.mxu0 0.0
        %6887 = vmatpush1.msra.mxu0 0.0
        %6888 = vmatprep.subr.mxu0 0.0
        %6889 = vmatpush1.msra.mxu0 0.0
        %6890 = vmatprep.subr.mxu0 0.0
        %6891 = vmatpush1.msra.mxu0 0.0
        %6892 = vmatprep.subr.mxu0 0.0
        %6893 = vmatpush1.msra.mxu0 0.0
        %6894 = vmatprep.subr.mxu0 0.0
        %6895 = vmatpush1.msra.mxu0 0.0
        %6896 = vmatprep.subr.mxu0 0.0
        %6897 = vmatpush1.msra.mxu0 0.0
        %6898 = vmatprep.subr.mxu0 0.0
        %6899 = vmatpush1.msra.mxu0 0.0
        %6900 = vmatprep.subr.mxu0 0.0
        %6901 = vmatpush1.msra.mxu0 0.0
        %6902 = vmatprep.subr.mxu0 0.0
        %6903 = vmatpush1.msra.mxu0 0.0
        %6904 = vmatprep.subr.mxu0 0.0
        %6905 = vmatpush1.msra.mxu0 0.0
        %6906 = vmatprep.subr.mxu0 0.0
        %6907 = vmatpush1.msra.mxu0 0.0
        %6908 = vmatprep.subr.mxu0 0.0
        %6909 = vmatpush1.msra.mxu0 0.0
        %6910 = vmatprep.subr.mxu0 0.0
        %6911 = vmatpush1.msra.mxu0 0.0
        %6912 = vmatprep.subr.mxu0 0.0
        %6913 = vmatpush1.msra.mxu0 0.0
        %6914 = vmatprep.subr.mxu0 0.0
        %6915 = vmatpush1.msra.mxu0 0.0
        %6916 = vmatprep.subr.mxu0 0.0
        %6917 = vmatpush1.msra.mxu0 0.0
        %6918 = vmatprep.subr.mxu0 0.0
        %6919 = vmatpush1.msra.mxu0 0.0
        %6920 = vmatprep.subr.mxu0 0.0
        %6921 = vmatpush1.msra.mxu0 0.0
        %6922 = vmatprep.subr.mxu0 0.0
        %6923 = vmatpush1.msra.mxu0 0.0
        %6924 = vmatprep.subr.mxu0 0.0
        %6925 = vmatpush1.msra.mxu0 0.0
        %6926 = vmatprep.subr.mxu0 0.0
        %6927 = vmatpush1.msra.mxu0 0.0
        %6928 = vmatprep.subr.mxu0 0.0
        %6929 = vmatpush1.msra.mxu0 0.0
        %6930 = vmatprep.subr.mxu0 0.0
        %6931 = vmatpush1.msra.mxu0 0.0
        %6932 = vmatprep.subr.mxu0 0.0
        %6933 = vmatpush1.msra.mxu0 0.0
        %6934 = vmatprep.subr.mxu0 0.0
        %6935 = vmatpush1.msra.mxu0 0.0
        %6936 = vmatprep.mubr.f32.mxu0 0.0
        %6937 = vmatmul.mubr.f32.gmra.mrb[0].mxu0 %v6862
        %v6938 = vpop.f32.mrb[0].mxu0
        %v6939 = vadd.f32 0.0, %v6938
        %v6940 = vpop.f32.mrb[0].mxu0
        %v6941 = vadd.f32 0.0, %v6940
        %6942 = vdwg.mxu0
        %6943 = vmatprep.subr.mxu0 %v6870
        %6944 = vmatpush1.msra.mxu0 %v6868
        %6945 = vmatprep.subr.mxu0 0.0
        %6946 = vmatpush1.msra.mxu0 0.0
        %6947 = vmatprep.subr.mxu0 0.0
        %6948 = vmatpush1.msra.mxu0 0.0
        %6949 = vmatprep.subr.mxu0 0.0
        %6950 = vmatpush1.msra.mxu0 0.0
        %6951 = vmatprep.subr.mxu0 0.0
        %6952 = vmatpush1.msra.mxu0 0.0
        %6953 = vmatprep.subr.mxu0 0.0
        %6954 = vmatpush1.msra.mxu0 0.0
        %6955 = vmatprep.subr.mxu0 0.0
        %6956 = vmatpush1.msra.mxu0 0.0
        %6957 = vmatprep.subr.mxu0 0.0
        %6958 = vmatpush1.msra.mxu0 0.0
        %6959 = vmatprep.subr.mxu0 0.0
        %6960 = vmatpush1.msra.mxu0 0.0
        %6961 = vmatprep.subr.mxu0 0.0
        %6962 = vmatpush1.msra.mxu0 0.0
        %6963 = vmatprep.subr.mxu0 0.0
        %6964 = vmatpush1.msra.mxu0 0.0
        %6965 = vmatprep.subr.mxu0 0.0
        %6966 = vmatpush1.msra.mxu0 0.0
        %6967 = vmatprep.subr.mxu0 0.0
        %6968 = vmatpush1.msra.mxu0 0.0
        %6969 = vmatprep.subr.mxu0 0.0
        %6970 = vmatpush1.msra.mxu0 0.0
        %6971 = vmatprep.subr.mxu0 0.0
        %6972 = vmatpush1.msra.mxu0 0.0
        %6973 = vmatprep.subr.mxu0 0.0
        %6974 = vmatpush1.msra.mxu0 0.0
        %6975 = vmatprep.subr.mxu0 0.0
        %6976 = vmatpush1.msra.mxu0 0.0
        %6977 = vmatprep.subr.mxu0 0.0
        %6978 = vmatpush1.msra.mxu0 0.0
        %6979 = vmatprep.subr.mxu0 0.0
        %6980 = vmatpush1.msra.mxu0 0.0
        %6981 = vmatprep.subr.mxu0 0.0
        %6982 = vmatpush1.msra.mxu0 0.0
        %6983 = vmatprep.subr.mxu0 0.0
        %6984 = vmatpush1.msra.mxu0 0.0
        %6985 = vmatprep.subr.mxu0 0.0
        %6986 = vmatpush1.msra.mxu0 0.0
        %6987 = vmatprep.subr.mxu0 0.0
        %6988 = vmatpush1.msra.mxu0 0.0
        %6989 = vmatprep.subr.mxu0 0.0
        %6990 = vmatpush1.msra.mxu0 0.0
        %6991 = vmatprep.subr.mxu0 0.0
        %6992 = vmatpush1.msra.mxu0 0.0
        %6993 = vmatprep.subr.mxu0 0.0
        %6994 = vmatpush1.msra.mxu0 0.0
        %6995 = vmatprep.subr.mxu0 0.0
        %6996 = vmatpush1.msra.mxu0 0.0
        %6997 = vmatprep.subr.mxu0 0.0
        %6998 = vmatpush1.msra.mxu0 0.0
        %6999 = vmatprep.subr.mxu0 0.0
        %7000 = vmatpush1.msra.mxu0 0.0
        %7001 = vmatprep.subr.mxu0 0.0
        %7002 = vmatpush1.msra.mxu0 0.0
        %7003 = vmatprep.subr.mxu0 0.0
        %7004 = vmatpush1.msra.mxu0 0.0
        %7005 = vmatprep.subr.mxu0 0.0
        %7006 = vmatpush1.msra.mxu0 0.0
        %7007 = vmatprep.mubr.f32.mxu0 0.0
        %7008 = vmatmul.mubr.f32.gmra.mrb[0].mxu0 %v6862
        %v7009 = vpop.f32.mrb[0].mxu0
        %v7010 = vadd.f32 0.0, %v7009
        %v7011 = vpop.f32.mrb[0].mxu0
        %v7012 = vadd.f32 0.0, %v7011
        %7013 = vdwg.mxu0
        %v7014 = vadd.f32 %v6840, %v6939
        %v7015 = vadd.f32 %v6841, %v6941
        %v7016 = vadd.f32 %v6842, %v7010
        %v7017 = vadd.f32 %v6843, %v7012
        %s7018 = scalar_lea.vmem %s1, 312
        %v7019 = vld [vmem:[%s7018] sm:$0xff]
        %7020 = vrot.lane.b32.xlu0 %v246, 14
        %v7021 = vpop.permute.xlu0 %7020
        %7022 = vrot.lane.b32.xlu0 %v255, 14
        %v7023 = vpop.permute.xlu0 %7022
        %7024 = vrot.lane.b32.xlu0 %v247, 14
        %v7025 = vpop.permute.xlu0 %7024
        %7026 = vrot.lane.b32.xlu0 %v256, 14
        %v7027 = vpop.permute.xlu0 %7026
        %7028 = vrot.lane.b32.xlu0 %v248, 14
        %v7029 = vpop.permute.xlu0 %7028
        %vm7030 = vcmask 113664
        %v7031 = vsel %vm7030, %v7021, %v7023
        %v7032 = vsel %vm7030, %v7023, %v7025
        %v7033 = vsel %vm7030, %v7025, %v7027
        %v7034 = vsel %vm7030, %v7027, %v7029
        %v7036 = vsel %vm272, %v7019, 0
        %v7038 = vsel %vm276, %v7031, 0
        %v7040 = vsel %vm276, %v7032, 0
        %v7042 = vsel %vm276, %v7033, 0
        %v7044 = vsel %vm276, %v7034, 0
        %7046 = vmatprep.subr.mxu0 %v7040
        %7047 = vmatpush1.msra.mxu0 %v7038
        %7048 = vmatprep.subr.mxu0 0.0
        %7049 = vmatpush1.msra.mxu0 0.0
        %7050 = vmatprep.subr.mxu0 0.0
        %7051 = vmatpush1.msra.mxu0 0.0
        %7052 = vmatprep.subr.mxu0 0.0
        %7053 = vmatpush1.msra.mxu0 0.0
        %7054 = vmatprep.subr.mxu0 0.0
        %7055 = vmatpush1.msra.mxu0 0.0
        %7056 = vmatprep.subr.mxu0 0.0
        %7057 = vmatpush1.msra.mxu0 0.0
        %7058 = vmatprep.subr.mxu0 0.0
        %7059 = vmatpush1.msra.mxu0 0.0
        %7060 = vmatprep.subr.mxu0 0.0
        %7061 = vmatpush1.msra.mxu0 0.0
        %7062 = vmatprep.subr.mxu0 0.0
        %7063 = vmatpush1.msra.mxu0 0.0
        %7064 = vmatprep.subr.mxu0 0.0
        %7065 = vmatpush1.msra.mxu0 0.0
        %7066 = vmatprep.subr.mxu0 0.0
        %7067 = vmatpush1.msra.mxu0 0.0
        %7068 = vmatprep.subr.mxu0 0.0
        %7069 = vmatpush1.msra.mxu0 0.0
        %7070 = vmatprep.subr.mxu0 0.0
        %7071 = vmatpush1.msra.mxu0 0.0
        %7072 = vmatprep.subr.mxu0 0.0
        %7073 = vmatpush1.msra.mxu0 0.0
        %7074 = vmatprep.subr.mxu0 0.0
        %7075 = vmatpush1.msra.mxu0 0.0
        %7076 = vmatprep.subr.mxu0 0.0
        %7077 = vmatpush1.msra.mxu0 0.0
        %7078 = vmatprep.subr.mxu0 0.0
        %7079 = vmatpush1.msra.mxu0 0.0
        %7080 = vmatprep.subr.mxu0 0.0
        %7081 = vmatpush1.msra.mxu0 0.0
        %7082 = vmatprep.subr.mxu0 0.0
        %7083 = vmatpush1.msra.mxu0 0.0
        %7084 = vmatprep.subr.mxu0 0.0
        %7085 = vmatpush1.msra.mxu0 0.0
        %7086 = vmatprep.subr.mxu0 0.0
        %7087 = vmatpush1.msra.mxu0 0.0
        %7088 = vmatprep.subr.mxu0 0.0
        %7089 = vmatpush1.msra.mxu0 0.0
        %7090 = vmatprep.subr.mxu0 0.0
        %7091 = vmatpush1.msra.mxu0 0.0
        %7092 = vmatprep.subr.mxu0 0.0
        %7093 = vmatpush1.msra.mxu0 0.0
        %7094 = vmatprep.subr.mxu0 0.0
        %7095 = vmatpush1.msra.mxu0 0.0
        %7096 = vmatprep.subr.mxu0 0.0
        %7097 = vmatpush1.msra.mxu0 0.0
        %7098 = vmatprep.subr.mxu0 0.0
        %7099 = vmatpush1.msra.mxu0 0.0
        %7100 = vmatprep.subr.mxu0 0.0
        %7101 = vmatpush1.msra.mxu0 0.0
        %7102 = vmatprep.subr.mxu0 0.0
        %7103 = vmatpush1.msra.mxu0 0.0
        %7104 = vmatprep.subr.mxu0 0.0
        %7105 = vmatpush1.msra.mxu0 0.0
        %7106 = vmatprep.subr.mxu0 0.0
        %7107 = vmatpush1.msra.mxu0 0.0
        %7108 = vmatprep.subr.mxu0 0.0
        %7109 = vmatpush1.msra.mxu0 0.0
        %7110 = vmatprep.mubr.f32.mxu0 0.0
        %7111 = vmatmul.mubr.f32.gmra.mrb[0].mxu0 %v7036
        %v7112 = vpop.f32.mrb[0].mxu0
        %v7113 = vadd.f32 0.0, %v7112
        %v7114 = vpop.f32.mrb[0].mxu0
        %v7115 = vadd.f32 0.0, %v7114
        %7116 = vdwg.mxu0
        %7117 = vmatprep.subr.mxu0 %v7044
        %7118 = vmatpush1.msra.mxu0 %v7042
        %7119 = vmatprep.subr.mxu0 0.0
        %7120 = vmatpush1.msra.mxu0 0.0
        %7121 = vmatprep.subr.mxu0 0.0
        %7122 = vmatpush1.msra.mxu0 0.0
        %7123 = vmatprep.subr.mxu0 0.0
        %7124 = vmatpush1.msra.mxu0 0.0
        %7125 = vmatprep.subr.mxu0 0.0
        %7126 = vmatpush1.msra.mxu0 0.0
        %7127 = vmatprep.subr.mxu0 0.0
        %7128 = vmatpush1.msra.mxu0 0.0
        %7129 = vmatprep.subr.mxu0 0.0
        %7130 = vmatpush1.msra.mxu0 0.0
        %7131 = vmatprep.subr.mxu0 0.0
        %7132 = vmatpush1.msra.mxu0 0.0
        %7133 = vmatprep.subr.mxu0 0.0
        %7134 = vmatpush1.msra.mxu0 0.0
        %7135 = vmatprep.subr.mxu0 0.0
        %7136 = vmatpush1.msra.mxu0 0.0
        %7137 = vmatprep.subr.mxu0 0.0
        %7138 = vmatpush1.msra.mxu0 0.0
        %7139 = vmatprep.subr.mxu0 0.0
        %7140 = vmatpush1.msra.mxu0 0.0
        %7141 = vmatprep.subr.mxu0 0.0
        %7142 = vmatpush1.msra.mxu0 0.0
        %7143 = vmatprep.subr.mxu0 0.0
        %7144 = vmatpush1.msra.mxu0 0.0
        %7145 = vmatprep.subr.mxu0 0.0
        %7146 = vmatpush1.msra.mxu0 0.0
        %7147 = vmatprep.subr.mxu0 0.0
        %7148 = vmatpush1.msra.mxu0 0.0
        %7149 = vmatprep.subr.mxu0 0.0
        %7150 = vmatpush1.msra.mxu0 0.0
        %7151 = vmatprep.subr.mxu0 0.0
        %7152 = vmatpush1.msra.mxu0 0.0
        %7153 = vmatprep.subr.mxu0 0.0
        %7154 = vmatpush1.msra.mxu0 0.0
        %7155 = vmatprep.subr.mxu0 0.0
        %7156 = vmatpush1.msra.mxu0 0.0
        %7157 = vmatprep.subr.mxu0 0.0
        %7158 = vmatpush1.msra.mxu0 0.0
        %7159 = vmatprep.subr.mxu0 0.0
        %7160 = vmatpush1.msra.mxu0 0.0
        %7161 = vmatprep.subr.mxu0 0.0
        %7162 = vmatpush1.msra.mxu0 0.0
        %7163 = vmatprep.subr.mxu0 0.0
        %7164 = vmatpush1.msra.mxu0 0.0
        %7165 = vmatprep.subr.mxu0 0.0
        %7166 = vmatpush1.msra.mxu0 0.0
        %7167 = vmatprep.subr.mxu0 0.0
        %7168 = vmatpush1.msra.mxu0 0.0
        %7169 = vmatprep.subr.mxu0 0.0
        %7170 = vmatpush1.msra.mxu0 0.0
        %7171 = vmatprep.subr.mxu0 0.0
        %7172 = vmatpush1.msra.mxu0 0.0
        %7173 = vmatprep.subr.mxu0 0.0
        %7174 = vmatpush1.msra.mxu0 0.0
        %7175 = vmatprep.subr.mxu0 0.0
        %7176 = vmatpush1.msra.mxu0 0.0
        %7177 = vmatprep.subr.mxu0 0.0
        %7178 = vmatpush1.msra.mxu0 0.0
        %7179 = vmatprep.subr.mxu0 0.0
        %7180 = vmatpush1.msra.mxu0 0.0
        %7181 = vmatprep.mubr.f32.mxu0 0.0
        %7182 = vmatmul.mubr.f32.gmra.mrb[0].mxu0 %v7036
        %v7183 = vpop.f32.mrb[0].mxu0
        %v7184 = vadd.f32 0.0, %v7183
        %v7185 = vpop.f32.mrb[0].mxu0
        %v7186 = vadd.f32 0.0, %v7185
        %7187 = vdwg.mxu0
        %v7188 = vadd.f32 %v7014, %v7113
        %v7189 = vadd.f32 %v7015, %v7115
        %v7190 = vadd.f32 %v7016, %v7184
        %v7191 = vadd.f32 %v7017, %v7186
        %s7192 = scalar_lea.vmem %s1, 320
        %v7193 = vld [vmem:[%s7192] sm:$0xff]
        %7194 = vrot.lane.b32.xlu0 %v246, 13
        %v7195 = vpop.permute.xlu0 %7194
        %7196 = vrot.lane.b32.xlu0 %v255, 13
        %v7197 = vpop.permute.xlu0 %7196
        %7198 = vrot.lane.b32.xlu0 %v247, 13
        %v7199 = vpop.permute.xlu0 %7198
        %7200 = vrot.lane.b32.xlu0 %v256, 13
        %v7201 = vpop.permute.xlu0 %7200
        %7202 = vrot.lane.b32.xlu0 %v248, 13
        %v7203 = vpop.permute.xlu0 %7202
        %vm7204 = vcmask 105472
        %v7205 = vsel %vm7204, %v7195, %v7197
        %v7206 = vsel %vm7204, %v7197, %v7199
        %v7207 = vsel %vm7204, %v7199, %v7201
        %v7208 = vsel %vm7204, %v7201, %v7203
        %v7210 = vsel %vm272, %v7193, 0
        %v7212 = vsel %vm276, %v7205, 0
        %v7214 = vsel %vm276, %v7206, 0
        %v7216 = vsel %vm276, %v7207, 0
        %v7218 = vsel %vm276, %v7208, 0
        %7220 = vmatprep.subr.mxu0 %v7214
        %7221 = vmatpush1.msra.mxu0 %v7212
        %7222 = vmatprep.subr.mxu0 0.0
        %7223 = vmatpush1.msra.mxu0 0.0
        %7224 = vmatprep.subr.mxu0 0.0
        %7225 = vmatpush1.msra.mxu0 0.0
        %7226 = vmatprep.subr.mxu0 0.0
        %7227 = vmatpush1.msra.mxu0 0.0
        %7228 = vmatprep.subr.mxu0 0.0
        %7229 = vmatpush1.msra.mxu0 0.0
        %7230 = vmatprep.subr.mxu0 0.0
        %7231 = vmatpush1.msra.mxu0 0.0
        %7232 = vmatprep.subr.mxu0 0.0
        %7233 = vmatpush1.msra.mxu0 0.0
        %7234 = vmatprep.subr.mxu0 0.0
        %7235 = vmatpush1.msra.mxu0 0.0
        %7236 = vmatprep.subr.mxu0 0.0
        %7237 = vmatpush1.msra.mxu0 0.0
        %7238 = vmatprep.subr.mxu0 0.0
        %7239 = vmatpush1.msra.mxu0 0.0
        %7240 = vmatprep.subr.mxu0 0.0
        %7241 = vmatpush1.msra.mxu0 0.0
        %7242 = vmatprep.subr.mxu0 0.0
        %7243 = vmatpush1.msra.mxu0 0.0
        %7244 = vmatprep.subr.mxu0 0.0
        %7245 = vmatpush1.msra.mxu0 0.0
        %7246 = vmatprep.subr.mxu0 0.0
        %7247 = vmatpush1.msra.mxu0 0.0
        %7248 = vmatprep.subr.mxu0 0.0
        %7249 = vmatpush1.msra.mxu0 0.0
        %7250 = vmatprep.subr.mxu0 0.0
        %7251 = vmatpush1.msra.mxu0 0.0
        %7252 = vmatprep.subr.mxu0 0.0
        %7253 = vmatpush1.msra.mxu0 0.0
        %7254 = vmatprep.subr.mxu0 0.0
        %7255 = vmatpush1.msra.mxu0 0.0
        %7256 = vmatprep.subr.mxu0 0.0
        %7257 = vmatpush1.msra.mxu0 0.0
        %7258 = vmatprep.subr.mxu0 0.0
        %7259 = vmatpush1.msra.mxu0 0.0
        %7260 = vmatprep.subr.mxu0 0.0
        %7261 = vmatpush1.msra.mxu0 0.0
        %7262 = vmatprep.subr.mxu0 0.0
        %7263 = vmatpush1.msra.mxu0 0.0
        %7264 = vmatprep.subr.mxu0 0.0
        %7265 = vmatpush1.msra.mxu0 0.0
        %7266 = vmatprep.subr.mxu0 0.0
        %7267 = vmatpush1.msra.mxu0 0.0
        %7268 = vmatprep.subr.mxu0 0.0
        %7269 = vmatpush1.msra.mxu0 0.0
        %7270 = vmatprep.subr.mxu0 0.0
        %7271 = vmatpush1.msra.mxu0 0.0
        %7272 = vmatprep.subr.mxu0 0.0
        %7273 = vmatpush1.msra.mxu0 0.0
        %7274 = vmatprep.subr.mxu0 0.0
        %7275 = vmatpush1.msra.mxu0 0.0
        %7276 = vmatprep.subr.mxu0 0.0
        %7277 = vmatpush1.msra.mxu0 0.0
        %7278 = vmatprep.subr.mxu0 0.0
        %7279 = vmatpush1.msra.mxu0 0.0
        %7280 = vmatprep.subr.mxu0 0.0
        %7281 = vmatpush1.msra.mxu0 0.0
        %7282 = vmatprep.subr.mxu0 0.0
        %7283 = vmatpush1.msra.mxu0 0.0
        %7284 = vmatprep.mubr.f32.mxu0 0.0
        %7285 = vmatmul.mubr.f32.gmra.mrb[0].mxu0 %v7210
        %v7286 = vpop.f32.mrb[0].mxu0
        %v7287 = vadd.f32 0.0, %v7286
        %v7288 = vpop.f32.mrb[0].mxu0
        %v7289 = vadd.f32 0.0, %v7288
        %7290 = vdwg.mxu0
        %7291 = vmatprep.subr.mxu0 %v7218
        %7292 = vmatpush1.msra.mxu0 %v7216
        %7293 = vmatprep.subr.mxu0 0.0
        %7294 = vmatpush1.msra.mxu0 0.0
        %7295 = vmatprep.subr.mxu0 0.0
        %7296 = vmatpush1.msra.mxu0 0.0
        %7297 = vmatprep.subr.mxu0 0.0
        %7298 = vmatpush1.msra.mxu0 0.0
        %7299 = vmatprep.subr.mxu0 0.0
        %7300 = vmatpush1.msra.mxu0 0.0
        %7301 = vmatprep.subr.mxu0 0.0
        %7302 = vmatpush1.msra.mxu0 0.0
        %7303 = vmatprep.subr.mxu0 0.0
        %7304 = vmatpush1.msra.mxu0 0.0
        %7305 = vmatprep.subr.mxu0 0.0
        %7306 = vmatpush1.msra.mxu0 0.0
        %7307 = vmatprep.subr.mxu0 0.0
        %7308 = vmatpush1.msra.mxu0 0.0
        %7309 = vmatprep.subr.mxu0 0.0
        %7310 = vmatpush1.msra.mxu0 0.0
        %7311 = vmatprep.subr.mxu0 0.0
        %7312 = vmatpush1.msra.mxu0 0.0
        %7313 = vmatprep.subr.mxu0 0.0
        %7314 = vmatpush1.msra.mxu0 0.0
        %7315 = vmatprep.subr.mxu0 0.0
        %7316 = vmatpush1.msra.mxu0 0.0
        %7317 = vmatprep.subr.mxu0 0.0
        %7318 = vmatpush1.msra.mxu0 0.0
        %7319 = vmatprep.subr.mxu0 0.0
        %7320 = vmatpush1.msra.mxu0 0.0
        %7321 = vmatprep.subr.mxu0 0.0
        %7322 = vmatpush1.msra.mxu0 0.0
        %7323 = vmatprep.subr.mxu0 0.0
        %7324 = vmatpush1.msra.mxu0 0.0
        %7325 = vmatprep.subr.mxu0 0.0
        %7326 = vmatpush1.msra.mxu0 0.0
        %7327 = vmatprep.subr.mxu0 0.0
        %7328 = vmatpush1.msra.mxu0 0.0
        %7329 = vmatprep.subr.mxu0 0.0
        %7330 = vmatpush1.msra.mxu0 0.0
        %7331 = vmatprep.subr.mxu0 0.0
        %7332 = vmatpush1.msra.mxu0 0.0
        %7333 = vmatprep.subr.mxu0 0.0
        %7334 = vmatpush1.msra.mxu0 0.0
        %7335 = vmatprep.subr.mxu0 0.0
        %7336 = vmatpush1.msra.mxu0 0.0
        %7337 = vmatprep.subr.mxu0 0.0
        %7338 = vmatpush1.msra.mxu0 0.0
        %7339 = vmatprep.subr.mxu0 0.0
        %7340 = vmatpush1.msra.mxu0 0.0
        %7341 = vmatprep.subr.mxu0 0.0
        %7342 = vmatpush1.msra.mxu0 0.0
        %7343 = vmatprep.subr.mxu0 0.0
        %7344 = vmatpush1.msra.mxu0 0.0
        %7345 = vmatprep.subr.mxu0 0.0
        %7346 = vmatpush1.msra.mxu0 0.0
        %7347 = vmatprep.subr.mxu0 0.0
        %7348 = vmatpush1.msra.mxu0 0.0
        %7349 = vmatprep.subr.mxu0 0.0
        %7350 = vmatpush1.msra.mxu0 0.0
        %7351 = vmatprep.subr.mxu0 0.0
        %7352 = vmatpush1.msra.mxu0 0.0
        %7353 = vmatprep.subr.mxu0 0.0
        %7354 = vmatpush1.msra.mxu0 0.0
        %7355 = vmatprep.mubr.f32.mxu0 0.0
        %7356 = vmatmul.mubr.f32.gmra.mrb[0].mxu0 %v7210
        %v7357 = vpop.f32.mrb[0].mxu0
        %v7358 = vadd.f32 0.0, %v7357
        %v7359 = vpop.f32.mrb[0].mxu0
        %v7360 = vadd.f32 0.0, %v7359
        %7361 = vdwg.mxu0
        %v7362 = vadd.f32 %v7188, %v7287
        %v7363 = vadd.f32 %v7189, %v7289
        %v7364 = vadd.f32 %v7190, %v7358
        %v7365 = vadd.f32 %v7191, %v7360
        %s7366 = scalar_lea.vmem %s1, 328
        %v7367 = vld [vmem:[%s7366] sm:$0xff]
        %7368 = vrot.lane.b32.xlu0 %v246, 12
        %v7369 = vpop.permute.xlu0 %7368
        %7370 = vrot.lane.b32.xlu0 %v255, 12
        %v7371 = vpop.permute.xlu0 %7370
        %7372 = vrot.lane.b32.xlu0 %v247, 12
        %v7373 = vpop.permute.xlu0 %7372
        %7374 = vrot.lane.b32.xlu0 %v256, 12
        %v7375 = vpop.permute.xlu0 %7374
        %7376 = vrot.lane.b32.xlu0 %v248, 12
        %v7377 = vpop.permute.xlu0 %7376
        %vm7378 = vcmask 97280
        %v7379 = vsel %vm7378, %v7369, %v7371
        %v7380 = vsel %vm7378, %v7371, %v7373
        %v7381 = vsel %vm7378, %v7373, %v7375
        %v7382 = vsel %vm7378, %v7375, %v7377
        %v7384 = vsel %vm272, %v7367, 0
        %v7386 = vsel %vm276, %v7379, 0
        %v7388 = vsel %vm276, %v7380, 0
        %v7390 = vsel %vm276, %v7381, 0
        %v7392 = vsel %vm276, %v7382, 0
        %7394 = vmatprep.subr.mxu0 %v7388
        %7395 = vmatpush1.msra.mxu0 %v7386
        %7396 = vmatprep.subr.mxu0 0.0
        %7397 = vmatpush1.msra.mxu0 0.0
        %7398 = vmatprep.subr.mxu0 0.0
        %7399 = vmatpush1.msra.mxu0 0.0
        %7400 = vmatprep.subr.mxu0 0.0
        %7401 = vmatpush1.msra.mxu0 0.0
        %7402 = vmatprep.subr.mxu0 0.0
        %7403 = vmatpush1.msra.mxu0 0.0
        %7404 = vmatprep.subr.mxu0 0.0
        %7405 = vmatpush1.msra.mxu0 0.0
        %7406 = vmatprep.subr.mxu0 0.0
        %7407 = vmatpush1.msra.mxu0 0.0
        %7408 = vmatprep.subr.mxu0 0.0
        %7409 = vmatpush1.msra.mxu0 0.0
        %7410 = vmatprep.subr.mxu0 0.0
        %7411 = vmatpush1.msra.mxu0 0.0
        %7412 = vmatprep.subr.mxu0 0.0
        %7413 = vmatpush1.msra.mxu0 0.0
        %7414 = vmatprep.subr.mxu0 0.0
        %7415 = vmatpush1.msra.mxu0 0.0
        %7416 = vmatprep.subr.mxu0 0.0
        %7417 = vmatpush1.msra.mxu0 0.0
        %7418 = vmatprep.subr.mxu0 0.0
        %7419 = vmatpush1.msra.mxu0 0.0
        %7420 = vmatprep.subr.mxu0 0.0
        %7421 = vmatpush1.msra.mxu0 0.0
        %7422 = vmatprep.subr.mxu0 0.0
        %7423 = vmatpush1.msra.mxu0 0.0
        %7424 = vmatprep.subr.mxu0 0.0
        %7425 = vmatpush1.msra.mxu0 0.0
        %7426 = vmatprep.subr.mxu0 0.0
        %7427 = vmatpush1.msra.mxu0 0.0
        %7428 = vmatprep.subr.mxu0 0.0
        %7429 = vmatpush1.msra.mxu0 0.0
        %7430 = vmatprep.subr.mxu0 0.0
        %7431 = vmatpush1.msra.mxu0 0.0
        %7432 = vmatprep.subr.mxu0 0.0
        %7433 = vmatpush1.msra.mxu0 0.0
        %7434 = vmatprep.subr.mxu0 0.0
        %7435 = vmatpush1.msra.mxu0 0.0
        %7436 = vmatprep.subr.mxu0 0.0
        %7437 = vmatpush1.msra.mxu0 0.0
        %7438 = vmatprep.subr.mxu0 0.0
        %7439 = vmatpush1.msra.mxu0 0.0
        %7440 = vmatprep.subr.mxu0 0.0
        %7441 = vmatpush1.msra.mxu0 0.0
        %7442 = vmatprep.subr.mxu0 0.0
        %7443 = vmatpush1.msra.mxu0 0.0
        %7444 = vmatprep.subr.mxu0 0.0
        %7445 = vmatpush1.msra.mxu0 0.0
        %7446 = vmatprep.subr.mxu0 0.0
        %7447 = vmatpush1.msra.mxu0 0.0
        %7448 = vmatprep.subr.mxu0 0.0
        %7449 = vmatpush1.msra.mxu0 0.0
        %7450 = vmatprep.subr.mxu0 0.0
        %7451 = vmatpush1.msra.mxu0 0.0
        %7452 = vmatprep.subr.mxu0 0.0
        %7453 = vmatpush1.msra.mxu0 0.0
        %7454 = vmatprep.subr.mxu0 0.0
        %7455 = vmatpush1.msra.mxu0 0.0
        %7456 = vmatprep.subr.mxu0 0.0
        %7457 = vmatpush1.msra.mxu0 0.0
        %7458 = vmatprep.mubr.f32.mxu0 0.0
        %7459 = vmatmul.mubr.f32.gmra.mrb[0].mxu0 %v7384
        %v7460 = vpop.f32.mrb[0].mxu0
        %v7461 = vadd.f32 0.0, %v7460
        %v7462 = vpop.f32.mrb[0].mxu0
        %v7463 = vadd.f32 0.0, %v7462
        %7464 = vdwg.mxu0
        %7465 = vmatprep.subr.mxu0 %v7392
        %7466 = vmatpush1.msra.mxu0 %v7390
        %7467 = vmatprep.subr.mxu0 0.0
        %7468 = vmatpush1.msra.mxu0 0.0
        %7469 = vmatprep.subr.mxu0 0.0
        %7470 = vmatpush1.msra.mxu0 0.0
        %7471 = vmatprep.subr.mxu0 0.0
        %7472 = vmatpush1.msra.mxu0 0.0
        %7473 = vmatprep.subr.mxu0 0.0
        %7474 = vmatpush1.msra.mxu0 0.0
        %7475 = vmatprep.subr.mxu0 0.0
        %7476 = vmatpush1.msra.mxu0 0.0
        %7477 = vmatprep.subr.mxu0 0.0
        %7478 = vmatpush1.msra.mxu0 0.0
        %7479 = vmatprep.subr.mxu0 0.0
        %7480 = vmatpush1.msra.mxu0 0.0
        %7481 = vmatprep.subr.mxu0 0.0
        %7482 = vmatpush1.msra.mxu0 0.0
        %7483 = vmatprep.subr.mxu0 0.0
        %7484 = vmatpush1.msra.mxu0 0.0
        %7485 = vmatprep.subr.mxu0 0.0
        %7486 = vmatpush1.msra.mxu0 0.0
        %7487 = vmatprep.subr.mxu0 0.0
        %7488 = vmatpush1.msra.mxu0 0.0
        %7489 = vmatprep.subr.mxu0 0.0
        %7490 = vmatpush1.msra.mxu0 0.0
        %7491 = vmatprep.subr.mxu0 0.0
        %7492 = vmatpush1.msra.mxu0 0.0
        %7493 = vmatprep.subr.mxu0 0.0
        %7494 = vmatpush1.msra.mxu0 0.0
        %7495 = vmatprep.subr.mxu0 0.0
        %7496 = vmatpush1.msra.mxu0 0.0
        %7497 = vmatprep.subr.mxu0 0.0
        %7498 = vmatpush1.msra.mxu0 0.0
        %7499 = vmatprep.subr.mxu0 0.0
        %7500 = vmatpush1.msra.mxu0 0.0
        %7501 = vmatprep.subr.mxu0 0.0
        %7502 = vmatpush1.msra.mxu0 0.0
        %7503 = vmatprep.subr.mxu0 0.0
        %7504 = vmatpush1.msra.mxu0 0.0
        %7505 = vmatprep.subr.mxu0 0.0
        %7506 = vmatpush1.msra.mxu0 0.0
        %7507 = vmatprep.subr.mxu0 0.0
        %7508 = vmatpush1.msra.mxu0 0.0
        %7509 = vmatprep.subr.mxu0 0.0
        %7510 = vmatpush1.msra.mxu0 0.0
        %7511 = vmatprep.subr.mxu0 0.0
        %7512 = vmatpush1.msra.mxu0 0.0
        %7513 = vmatprep.subr.mxu0 0.0
        %7514 = vmatpush1.msra.mxu0 0.0
        %7515 = vmatprep.subr.mxu0 0.0
        %7516 = vmatpush1.msra.mxu0 0.0
        %7517 = vmatprep.subr.mxu0 0.0
        %7518 = vmatpush1.msra.mxu0 0.0
        %7519 = vmatprep.subr.mxu0 0.0
        %7520 = vmatpush1.msra.mxu0 0.0
        %7521 = vmatprep.subr.mxu0 0.0
        %7522 = vmatpush1.msra.mxu0 0.0
        %7523 = vmatprep.subr.mxu0 0.0
        %7524 = vmatpush1.msra.mxu0 0.0
        %7525 = vmatprep.subr.mxu0 0.0
        %7526 = vmatpush1.msra.mxu0 0.0
        %7527 = vmatprep.subr.mxu0 0.0
        %7528 = vmatpush1.msra.mxu0 0.0
        %7529 = vmatprep.mubr.f32.mxu0 0.0
        %7530 = vmatmul.mubr.f32.gmra.mrb[0].mxu0 %v7384
        %v7531 = vpop.f32.mrb[0].mxu0
        %v7532 = vadd.f32 0.0, %v7531
        %v7533 = vpop.f32.mrb[0].mxu0
        %v7534 = vadd.f32 0.0, %v7533
        %7535 = vdwg.mxu0
        %v7536 = vadd.f32 %v7362, %v7461
        %v7537 = vadd.f32 %v7363, %v7463
        %v7538 = vadd.f32 %v7364, %v7532
        %v7539 = vadd.f32 %v7365, %v7534
        %s7540 = scalar_lea.vmem %s1, 336
        %v7541 = vld [vmem:[%s7540] sm:$0xff]
        %v7542 = vcombine.high %v248, %v248
        %7543 = vrot.lane.b32.xlu0 %v7542, 124
        %v7544 = vpop.permute.xlu0 %7543
        %v7545 = vsel %vm940, %v939, %v7544
        %v7547 = vsel %vm272, %v7541, 0
        %v7549 = vsel %vm276, %v7545, 0
        %7551 = vmatprep.subr.mxu0 %v952
        %7552 = vmatpush1.msra.mxu0 %v950
        %7553 = vmatprep.subr.mxu0 0.0
        %7554 = vmatpush1.msra.mxu0 0.0
        %7555 = vmatprep.subr.mxu0 0.0
        %7556 = vmatpush1.msra.mxu0 0.0
        %7557 = vmatprep.subr.mxu0 0.0
        %7558 = vmatpush1.msra.mxu0 0.0
        %7559 = vmatprep.subr.mxu0 0.0
        %7560 = vmatpush1.msra.mxu0 0.0
        %7561 = vmatprep.subr.mxu0 0.0
        %7562 = vmatpush1.msra.mxu0 0.0
        %7563 = vmatprep.subr.mxu0 0.0
        %7564 = vmatpush1.msra.mxu0 0.0
        %7565 = vmatprep.subr.mxu0 0.0
        %7566 = vmatpush1.msra.mxu0 0.0
        %7567 = vmatprep.subr.mxu0 0.0
        %7568 = vmatpush1.msra.mxu0 0.0
        %7569 = vmatprep.subr.mxu0 0.0
        %7570 = vmatpush1.msra.mxu0 0.0
        %7571 = vmatprep.subr.mxu0 0.0
        %7572 = vmatpush1.msra.mxu0 0.0
        %7573 = vmatprep.subr.mxu0 0.0
        %7574 = vmatpush1.msra.mxu0 0.0
        %7575 = vmatprep.subr.mxu0 0.0
        %7576 = vmatpush1.msra.mxu0 0.0
        %7577 = vmatprep.subr.mxu0 0.0
        %7578 = vmatpush1.msra.mxu0 0.0
        %7579 = vmatprep.subr.mxu0 0.0
        %7580 = vmatpush1.msra.mxu0 0.0
        %7581 = vmatprep.subr.mxu0 0.0
        %7582 = vmatpush1.msra.mxu0 0.0
        %7583 = vmatprep.subr.mxu0 0.0
        %7584 = vmatpush1.msra.mxu0 0.0
        %7585 = vmatprep.subr.mxu0 0.0
        %7586 = vmatpush1.msra.mxu0 0.0
        %7587 = vmatprep.subr.mxu0 0.0
        %7588 = vmatpush1.msra.mxu0 0.0
        %7589 = vmatprep.subr.mxu0 0.0
        %7590 = vmatpush1.msra.mxu0 0.0
        %7591 = vmatprep.subr.mxu0 0.0
        %7592 = vmatpush1.msra.mxu0 0.0
        %7593 = vmatprep.subr.mxu0 0.0
        %7594 = vmatpush1.msra.mxu0 0.0
        %7595 = vmatprep.subr.mxu0 0.0
        %7596 = vmatpush1.msra.mxu0 0.0
        %7597 = vmatprep.subr.mxu0 0.0
        %7598 = vmatpush1.msra.mxu0 0.0
        %7599 = vmatprep.subr.mxu0 0.0
        %7600 = vmatpush1.msra.mxu0 0.0
        %7601 = vmatprep.subr.mxu0 0.0
        %7602 = vmatpush1.msra.mxu0 0.0
        %7603 = vmatprep.subr.mxu0 0.0
        %7604 = vmatpush1.msra.mxu0 0.0
        %7605 = vmatprep.subr.mxu0 0.0
        %7606 = vmatpush1.msra.mxu0 0.0
        %7607 = vmatprep.subr.mxu0 0.0
        %7608 = vmatpush1.msra.mxu0 0.0
        %7609 = vmatprep.subr.mxu0 0.0
        %7610 = vmatpush1.msra.mxu0 0.0
        %7611 = vmatprep.subr.mxu0 0.0
        %7612 = vmatpush1.msra.mxu0 0.0
        %7613 = vmatprep.subr.mxu0 0.0
        %7614 = vmatpush1.msra.mxu0 0.0
        %7615 = vmatprep.mubr.f32.mxu0 0.0
        %7616 = vmatmul.mubr.f32.gmra.mrb[0].mxu0 %v7547
        %v7617 = vpop.f32.mrb[0].mxu0
        %v7618 = vadd.f32 0.0, %v7617
        %v7619 = vpop.f32.mrb[0].mxu0
        %v7620 = vadd.f32 0.0, %v7619
        %7621 = vdwg.mxu0
        %7622 = vmatprep.subr.mxu0 %v7549
        %7623 = vmatpush1.msra.mxu0 %v954
        %7624 = vmatprep.subr.mxu0 0.0
        %7625 = vmatpush1.msra.mxu0 0.0
        %7626 = vmatprep.subr.mxu0 0.0
        %7627 = vmatpush1.msra.mxu0 0.0
        %7628 = vmatprep.subr.mxu0 0.0
        %7629 = vmatpush1.msra.mxu0 0.0
        %7630 = vmatprep.subr.mxu0 0.0
        %7631 = vmatpush1.msra.mxu0 0.0
        %7632 = vmatprep.subr.mxu0 0.0
        %7633 = vmatpush1.msra.mxu0 0.0
        %7634 = vmatprep.subr.mxu0 0.0
        %7635 = vmatpush1.msra.mxu0 0.0
        %7636 = vmatprep.subr.mxu0 0.0
        %7637 = vmatpush1.msra.mxu0 0.0
        %7638 = vmatprep.subr.mxu0 0.0
        %7639 = vmatpush1.msra.mxu0 0.0
        %7640 = vmatprep.subr.mxu0 0.0
        %7641 = vmatpush1.msra.mxu0 0.0
        %7642 = vmatprep.subr.mxu0 0.0
        %7643 = vmatpush1.msra.mxu0 0.0
        %7644 = vmatprep.subr.mxu0 0.0
        %7645 = vmatpush1.msra.mxu0 0.0
        %7646 = vmatprep.subr.mxu0 0.0
        %7647 = vmatpush1.msra.mxu0 0.0
        %7648 = vmatprep.subr.mxu0 0.0
        %7649 = vmatpush1.msra.mxu0 0.0
        %7650 = vmatprep.subr.mxu0 0.0
        %7651 = vmatpush1.msra.mxu0 0.0
        %7652 = vmatprep.subr.mxu0 0.0
        %7653 = vmatpush1.msra.mxu0 0.0
        %7654 = vmatprep.subr.mxu0 0.0
        %7655 = vmatpush1.msra.mxu0 0.0
        %7656 = vmatprep.subr.mxu0 0.0
        %7657 = vmatpush1.msra.mxu0 0.0
        %7658 = vmatprep.subr.mxu0 0.0
        %7659 = vmatpush1.msra.mxu0 0.0
        %7660 = vmatprep.subr.mxu0 0.0
        %7661 = vmatpush1.msra.mxu0 0.0
        %7662 = vmatprep.subr.mxu0 0.0
        %7663 = vmatpush1.msra.mxu0 0.0
        %7664 = vmatprep.subr.mxu0 0.0
        %7665 = vmatpush1.msra.mxu0 0.0
        %7666 = vmatprep.subr.mxu0 0.0
        %7667 = vmatpush1.msra.mxu0 0.0
        %7668 = vmatprep.subr.mxu0 0.0
        %7669 = vmatpush1.msra.mxu0 0.0
        %7670 = vmatprep.subr.mxu0 0.0
        %7671 = vmatpush1.msra.mxu0 0.0
        %7672 = vmatprep.subr.mxu0 0.0
        %7673 = vmatpush1.msra.mxu0 0.0
        %7674 = vmatprep.subr.mxu0 0.0
        %7675 = vmatpush1.msra.mxu0 0.0
        %7676 = vmatprep.subr.mxu0 0.0
        %7677 = vmatpush1.msra.mxu0 0.0
        %7678 = vmatprep.subr.mxu0 0.0
        %7679 = vmatpush1.msra.mxu0 0.0
        %7680 = vmatprep.subr.mxu0 0.0
        %7681 = vmatpush1.msra.mxu0 0.0
        %7682 = vmatprep.subr.mxu0 0.0
        %7683 = vmatpush1.msra.mxu0 0.0
        %7684 = vmatprep.subr.mxu0 0.0
        %7685 = vmatpush1.msra.mxu0 0.0
        %7686 = vmatprep.mubr.f32.mxu0 0.0
        %7687 = vmatmul.mubr.f32.gmra.mrb[0].mxu0 %v7547
        %v7688 = vpop.f32.mrb[0].mxu0
        %v7689 = vadd.f32 0.0, %v7688
        %v7690 = vpop.f32.mrb[0].mxu0
        %v7691 = vadd.f32 0.0, %v7690
        %7692 = vdwg.mxu0
        %v7693 = vadd.f32 %v7536, %v7618
        %v7694 = vadd.f32 %v7537, %v7620
        %v7695 = vadd.f32 %v7538, %v7689
        %v7696 = vadd.f32 %v7539, %v7691
        %s7697 = scalar_lea.vmem %s1, 344
        %v7698 = vld [vmem:[%s7697] sm:$0xff]
        %7699 = vrot.lane.b32.xlu0 %v7542, 123
        %v7700 = vpop.permute.xlu0 %7699
        %v7701 = vsel %vm1114, %v1113, %v7700
        %v7703 = vsel %vm272, %v7698, 0
        %v7705 = vsel %vm276, %v7701, 0
        %7707 = vmatprep.subr.mxu0 %v1126
        %7708 = vmatpush1.msra.mxu0 %v1124
        %7709 = vmatprep.subr.mxu0 0.0
        %7710 = vmatpush1.msra.mxu0 0.0
        %7711 = vmatprep.subr.mxu0 0.0
        %7712 = vmatpush1.msra.mxu0 0.0
        %7713 = vmatprep.subr.mxu0 0.0
        %7714 = vmatpush1.msra.mxu0 0.0
        %7715 = vmatprep.subr.mxu0 0.0
        %7716 = vmatpush1.msra.mxu0 0.0
        %7717 = vmatprep.subr.mxu0 0.0
        %7718 = vmatpush1.msra.mxu0 0.0
        %7719 = vmatprep.subr.mxu0 0.0
        %7720 = vmatpush1.msra.mxu0 0.0
        %7721 = vmatprep.subr.mxu0 0.0
        %7722 = vmatpush1.msra.mxu0 0.0
        %7723 = vmatprep.subr.mxu0 0.0
        %7724 = vmatpush1.msra.mxu0 0.0
        %7725 = vmatprep.subr.mxu0 0.0
        %7726 = vmatpush1.msra.mxu0 0.0
        %7727 = vmatprep.subr.mxu0 0.0
        %7728 = vmatpush1.msra.mxu0 0.0
        %7729 = vmatprep.subr.mxu0 0.0
        %7730 = vmatpush1.msra.mxu0 0.0
        %7731 = vmatprep.subr.mxu0 0.0
        %7732 = vmatpush1.msra.mxu0 0.0
        %7733 = vmatprep.subr.mxu0 0.0
        %7734 = vmatpush1.msra.mxu0 0.0
        %7735 = vmatprep.subr.mxu0 0.0
        %7736 = vmatpush1.msra.mxu0 0.0
        %7737 = vmatprep.subr.mxu0 0.0
        %7738 = vmatpush1.msra.mxu0 0.0
        %7739 = vmatprep.subr.mxu0 0.0
        %7740 = vmatpush1.msra.mxu0 0.0
        %7741 = vmatprep.subr.mxu0 0.0
        %7742 = vmatpush1.msra.mxu0 0.0
        %7743 = vmatprep.subr.mxu0 0.0
        %7744 = vmatpush1.msra.mxu0 0.0
        %7745 = vmatprep.subr.mxu0 0.0
        %7746 = vmatpush1.msra.mxu0 0.0
        %7747 = vmatprep.subr.mxu0 0.0
        %7748 = vmatpush1.msra.mxu0 0.0
        %7749 = vmatprep.subr.mxu0 0.0
        %7750 = vmatpush1.msra.mxu0 0.0
        %7751 = vmatprep.subr.mxu0 0.0
        %7752 = vmatpush1.msra.mxu0 0.0
        %7753 = vmatprep.subr.mxu0 0.0
        %7754 = vmatpush1.msra.mxu0 0.0
        %7755 = vmatprep.subr.mxu0 0.0
        %7756 = vmatpush1.msra.mxu0 0.0
        %7757 = vmatprep.subr.mxu0 0.0
        %7758 = vmatpush1.msra.mxu0 0.0
        %7759 = vmatprep.subr.mxu0 0.0
        %7760 = vmatpush1.msra.mxu0 0.0
        %7761 = vmatprep.subr.mxu0 0.0
        %7762 = vmatpush1.msra.mxu0 0.0
        %7763 = vmatprep.subr.mxu0 0.0
        %7764 = vmatpush1.msra.mxu0 0.0
        %7765 = vmatprep.subr.mxu0 0.0
        %7766 = vmatpush1.msra.mxu0 0.0
        %7767 = vmatprep.subr.mxu0 0.0
        %7768 = vmatpush1.msra.mxu0 0.0
        %7769 = vmatprep.subr.mxu0 0.0
        %7770 = vmatpush1.msra.mxu0 0.0
        %7771 = vmatprep.mubr.f32.mxu0 0.0
        %7772 = vmatmul.mubr.f32.gmra.mrb[0].mxu0 %v7703
        %v7773 = vpop.f32.mrb[0].mxu0
        %v7774 = vadd.f32 0.0, %v7773
        %v7775 = vpop.f32.mrb[0].mxu0
        %v7776 = vadd.f32 0.0, %v7775
        %7777 = vdwg.mxu0
        %7778 = vmatprep.subr.mxu0 %v7705
        %7779 = vmatpush1.msra.mxu0 %v1128
        %7780 = vmatprep.subr.mxu0 0.0
        %7781 = vmatpush1.msra.mxu0 0.0
        %7782 = vmatprep.subr.mxu0 0.0
        %7783 = vmatpush1.msra.mxu0 0.0
        %7784 = vmatprep.subr.mxu0 0.0
        %7785 = vmatpush1.msra.mxu0 0.0
        %7786 = vmatprep.subr.mxu0 0.0
        %7787 = vmatpush1.msra.mxu0 0.0
        %7788 = vmatprep.subr.mxu0 0.0
        %7789 = vmatpush1.msra.mxu0 0.0
        %7790 = vmatprep.subr.mxu0 0.0
        %7791 = vmatpush1.msra.mxu0 0.0
        %7792 = vmatprep.subr.mxu0 0.0
        %7793 = vmatpush1.msra.mxu0 0.0
        %7794 = vmatprep.subr.mxu0 0.0
        %7795 = vmatpush1.msra.mxu0 0.0
        %7796 = vmatprep.subr.mxu0 0.0
        %7797 = vmatpush1.msra.mxu0 0.0
        %7798 = vmatprep.subr.mxu0 0.0
        %7799 = vmatpush1.msra.mxu0 0.0
        %7800 = vmatprep.subr.mxu0 0.0
        %7801 = vmatpush1.msra.mxu0 0.0
        %7802 = vmatprep.subr.mxu0 0.0
        %7803 = vmatpush1.msra.mxu0 0.0
        %7804 = vmatprep.subr.mxu0 0.0
        %7805 = vmatpush1.msra.mxu0 0.0
        %7806 = vmatprep.subr.mxu0 0.0
        %7807 = vmatpush1.msra.mxu0 0.0
        %7808 = vmatprep.subr.mxu0 0.0
        %7809 = vmatpush1.msra.mxu0 0.0
        %7810 = vmatprep.subr.mxu0 0.0
        %7811 = vmatpush1.msra.mxu0 0.0
        %7812 = vmatprep.subr.mxu0 0.0
        %7813 = vmatpush1.msra.mxu0 0.0
        %7814 = vmatprep.subr.mxu0 0.0
        %7815 = vmatpush1.msra.mxu0 0.0
        %7816 = vmatprep.subr.mxu0 0.0
        %7817 = vmatpush1.msra.mxu0 0.0
        %7818 = vmatprep.subr.mxu0 0.0
        %7819 = vmatpush1.msra.mxu0 0.0
        %7820 = vmatprep.subr.mxu0 0.0
        %7821 = vmatpush1.msra.mxu0 0.0
        %7822 = vmatprep.subr.mxu0 0.0
        %7823 = vmatpush1.msra.mxu0 0.0
        %7824 = vmatprep.subr.mxu0 0.0
        %7825 = vmatpush1.msra.mxu0 0.0
        %7826 = vmatprep.subr.mxu0 0.0
        %7827 = vmatpush1.msra.mxu0 0.0
        %7828 = vmatprep.subr.mxu0 0.0
        %7829 = vmatpush1.msra.mxu0 0.0
        %7830 = vmatprep.subr.mxu0 0.0
        %7831 = vmatpush1.msra.mxu0 0.0
        %7832 = vmatprep.subr.mxu0 0.0
        %7833 = vmatpush1.msra.mxu0 0.0
        %7834 = vmatprep.subr.mxu0 0.0
        %7835 = vmatpush1.msra.mxu0 0.0
        %7836 = vmatprep.subr.mxu0 0.0
        %7837 = vmatpush1.msra.mxu0 0.0
        %7838 = vmatprep.subr.mxu0 0.0
        %7839 = vmatpush1.msra.mxu0 0.0
        %7840 = vmatprep.subr.mxu0 0.0
        %7841 = vmatpush1.msra.mxu0 0.0
        %7842 = vmatprep.mubr.f32.mxu0 0.0
        %7843 = vmatmul.mubr.f32.gmra.mrb[0].mxu0 %v7703
        %v7844 = vpop.f32.mrb[0].mxu0
        %v7845 = vadd.f32 0.0, %v7844
        %v7846 = vpop.f32.mrb[0].mxu0
        %v7847 = vadd.f32 0.0, %v7846
        %7848 = vdwg.mxu0
        %v7849 = vadd.f32 %v7693, %v7774
        %v7850 = vadd.f32 %v7694, %v7776
        %v7851 = vadd.f32 %v7695, %v7845
        %v7852 = vadd.f32 %v7696, %v7847
        %s7853 = scalar_lea.vmem %s1, 352
        %v7854 = vld [vmem:[%s7853] sm:$0xff]
        %7855 = vrot.lane.b32.xlu0 %v7542, 122
        %v7856 = vpop.permute.xlu0 %7855
        %v7857 = vsel %vm1288, %v1287, %v7856
        %v7859 = vsel %vm272, %v7854, 0
        %v7861 = vsel %vm276, %v7857, 0
        %7863 = vmatprep.subr.mxu0 %v1300
        %7864 = vmatpush1.msra.mxu0 %v1298
        %7865 = vmatprep.subr.mxu0 0.0
        %7866 = vmatpush1.msra.mxu0 0.0
        %7867 = vmatprep.subr.mxu0 0.0
        %7868 = vmatpush1.msra.mxu0 0.0
        %7869 = vmatprep.subr.mxu0 0.0
        %7870 = vmatpush1.msra.mxu0 0.0
        %7871 = vmatprep.subr.mxu0 0.0
        %7872 = vmatpush1.msra.mxu0 0.0
        %7873 = vmatprep.subr.mxu0 0.0
        %7874 = vmatpush1.msra.mxu0 0.0
        %7875 = vmatprep.subr.mxu0 0.0
        %7876 = vmatpush1.msra.mxu0 0.0
        %7877 = vmatprep.subr.mxu0 0.0
        %7878 = vmatpush1.msra.mxu0 0.0
        %7879 = vmatprep.subr.mxu0 0.0
        %7880 = vmatpush1.msra.mxu0 0.0
        %7881 = vmatprep.subr.mxu0 0.0
        %7882 = vmatpush1.msra.mxu0 0.0
        %7883 = vmatprep.subr.mxu0 0.0
        %7884 = vmatpush1.msra.mxu0 0.0
        %7885 = vmatprep.subr.mxu0 0.0
        %7886 = vmatpush1.msra.mxu0 0.0
        %7887 = vmatprep.subr.mxu0 0.0
        %7888 = vmatpush1.msra.mxu0 0.0
        %7889 = vmatprep.subr.mxu0 0.0
        %7890 = vmatpush1.msra.mxu0 0.0
        %7891 = vmatprep.subr.mxu0 0.0
        %7892 = vmatpush1.msra.mxu0 0.0
        %7893 = vmatprep.subr.mxu0 0.0
        %7894 = vmatpush1.msra.mxu0 0.0
        %7895 = vmatprep.subr.mxu0 0.0
        %7896 = vmatpush1.msra.mxu0 0.0
        %7897 = vmatprep.subr.mxu0 0.0
        %7898 = vmatpush1.msra.mxu0 0.0
        %7899 = vmatprep.subr.mxu0 0.0
        %7900 = vmatpush1.msra.mxu0 0.0
        %7901 = vmatprep.subr.mxu0 0.0
        %7902 = vmatpush1.msra.mxu0 0.0
        %7903 = vmatprep.subr.mxu0 0.0
        %7904 = vmatpush1.msra.mxu0 0.0
        %7905 = vmatprep.subr.mxu0 0.0
        %7906 = vmatpush1.msra.mxu0 0.0
        %7907 = vmatprep.subr.mxu0 0.0
        %7908 = vmatpush1.msra.mxu0 0.0
        %7909 = vmatprep.subr.mxu0 0.0
        %7910 = vmatpush1.msra.mxu0 0.0
        %7911 = vmatprep.subr.mxu0 0.0
        %7912 = vmatpush1.msra.mxu0 0.0
        %7913 = vmatprep.subr.mxu0 0.0
        %7914 = vmatpush1.msra.mxu0 0.0
        %7915 = vmatprep.subr.mxu0 0.0
        %7916 = vmatpush1.msra.mxu0 0.0
        %7917 = vmatprep.subr.mxu0 0.0
        %7918 = vmatpush1.msra.mxu0 0.0
        %7919 = vmatprep.subr.mxu0 0.0
        %7920 = vmatpush1.msra.mxu0 0.0
        %7921 = vmatprep.subr.mxu0 0.0
        %7922 = vmatpush1.msra.mxu0 0.0
        %7923 = vmatprep.subr.mxu0 0.0
        %7924 = vmatpush1.msra.mxu0 0.0
        %7925 = vmatprep.subr.mxu0 0.0
        %7926 = vmatpush1.msra.mxu0 0.0
        %7927 = vmatprep.mubr.f32.mxu0 0.0
        %7928 = vmatmul.mubr.f32.gmra.mrb[0].mxu0 %v7859
        %v7929 = vpop.f32.mrb[0].mxu0
        %v7930 = vadd.f32 0.0, %v7929
        %v7931 = vpop.f32.mrb[0].mxu0
        %v7932 = vadd.f32 0.0, %v7931
        %7933 = vdwg.mxu0
        %7934 = vmatprep.subr.mxu0 %v7861
        %7935 = vmatpush1.msra.mxu0 %v1302
        %7936 = vmatprep.subr.mxu0 0.0
        %7937 = vmatpush1.msra.mxu0 0.0
        %7938 = vmatprep.subr.mxu0 0.0
        %7939 = vmatpush1.msra.mxu0 0.0
        %7940 = vmatprep.subr.mxu0 0.0
        %7941 = vmatpush1.msra.mxu0 0.0
        %7942 = vmatprep.subr.mxu0 0.0
        %7943 = vmatpush1.msra.mxu0 0.0
        %7944 = vmatprep.subr.mxu0 0.0
        %7945 = vmatpush1.msra.mxu0 0.0
        %7946 = vmatprep.subr.mxu0 0.0
        %7947 = vmatpush1.msra.mxu0 0.0
        %7948 = vmatprep.subr.mxu0 0.0
        %7949 = vmatpush1.msra.mxu0 0.0
        %7950 = vmatprep.subr.mxu0 0.0
        %7951 = vmatpush1.msra.mxu0 0.0
        %7952 = vmatprep.subr.mxu0 0.0
        %7953 = vmatpush1.msra.mxu0 0.0
        %7954 = vmatprep.subr.mxu0 0.0
        %7955 = vmatpush1.msra.mxu0 0.0
        %7956 = vmatprep.subr.mxu0 0.0
        %7957 = vmatpush1.msra.mxu0 0.0
        %7958 = vmatprep.subr.mxu0 0.0
        %7959 = vmatpush1.msra.mxu0 0.0
        %7960 = vmatprep.subr.mxu0 0.0
        %7961 = vmatpush1.msra.mxu0 0.0
        %7962 = vmatprep.subr.mxu0 0.0
        %7963 = vmatpush1.msra.mxu0 0.0
        %7964 = vmatprep.subr.mxu0 0.0
        %7965 = vmatpush1.msra.mxu0 0.0
        %7966 = vmatprep.subr.mxu0 0.0
        %7967 = vmatpush1.msra.mxu0 0.0
        %7968 = vmatprep.subr.mxu0 0.0
        %7969 = vmatpush1.msra.mxu0 0.0
        %7970 = vmatprep.subr.mxu0 0.0
        %7971 = vmatpush1.msra.mxu0 0.0
        %7972 = vmatprep.subr.mxu0 0.0
        %7973 = vmatpush1.msra.mxu0 0.0
        %7974 = vmatprep.subr.mxu0 0.0
        %7975 = vmatpush1.msra.mxu0 0.0
        %7976 = vmatprep.subr.mxu0 0.0
        %7977 = vmatpush1.msra.mxu0 0.0
        %7978 = vmatprep.subr.mxu0 0.0
        %7979 = vmatpush1.msra.mxu0 0.0
        %7980 = vmatprep.subr.mxu0 0.0
        %7981 = vmatpush1.msra.mxu0 0.0
        %7982 = vmatprep.subr.mxu0 0.0
        %7983 = vmatpush1.msra.mxu0 0.0
        %7984 = vmatprep.subr.mxu0 0.0
        %7985 = vmatpush1.msra.mxu0 0.0
        %7986 = vmatprep.subr.mxu0 0.0
        %7987 = vmatpush1.msra.mxu0 0.0
        %7988 = vmatprep.subr.mxu0 0.0
        %7989 = vmatpush1.msra.mxu0 0.0
        %7990 = vmatprep.subr.mxu0 0.0
        %7991 = vmatpush1.msra.mxu0 0.0
        %7992 = vmatprep.subr.mxu0 0.0
        %7993 = vmatpush1.msra.mxu0 0.0
        %7994 = vmatprep.subr.mxu0 0.0
        %7995 = vmatpush1.msra.mxu0 0.0
        %7996 = vmatprep.subr.mxu0 0.0
        %7997 = vmatpush1.msra.mxu0 0.0
        %7998 = vmatprep.mubr.f32.mxu0 0.0
        %7999 = vmatmul.mubr.f32.gmra.mrb[0].mxu0 %v7859
        %v8000 = vpop.f32.mrb[0].mxu0
        %v8001 = vadd.f32 0.0, %v8000
        %v8002 = vpop.f32.mrb[0].mxu0
        %v8003 = vadd.f32 0.0, %v8002
        %8004 = vdwg.mxu0
        %v8005 = vadd.f32 %v7849, %v7930
        %v8006 = vadd.f32 %v7850, %v7932
        %v8007 = vadd.f32 %v7851, %v8001
        %v8008 = vadd.f32 %v7852, %v8003
        %s8009 = scalar_lea.vmem %s1, 360
        %v8010 = vld [vmem:[%s8009] sm:$0xff]
        %8011 = vrot.lane.b32.xlu0 %v255, 121
        %v8012 = vpop.permute.xlu0 %8011
        %8013 = vrot.lane.b32.xlu0 %v247, 121
        %v8014 = vpop.permute.xlu0 %8013
        %8015 = vrot.lane.b32.xlu0 %v256, 121
        %v8016 = vpop.permute.xlu0 %8015
        %8017 = vrot.lane.b32.xlu0 %v248, 121
        %v8018 = vpop.permute.xlu0 %8017
        %8019 = vrot.lane.b32.xlu0 %v7542, 121
        %v8020 = vpop.permute.xlu0 %8019
        %vm8021 = vcmask 990208
        %v8022 = vsel %vm8021, %v8012, %v8014
        %v8023 = vsel %vm8021, %v8014, %v8016
        %v8024 = vsel %vm8021, %v8016, %v8018
        %v8025 = vsel %vm8021, %v8018, %v8020
        %v8027 = vsel %vm272, %v8010, 0
        %v8029 = vsel %vm276, %v8022, 0
        %v8031 = vsel %vm276, %v8023, 0
        %v8033 = vsel %vm276, %v8024, 0
        %v8035 = vsel %vm276, %v8025, 0
        %8037 = vmatprep.subr.mxu0 %v8031
        %8038 = vmatpush1.msra.mxu0 %v8029
        %8039 = vmatprep.subr.mxu0 0.0
        %8040 = vmatpush1.msra.mxu0 0.0
        %8041 = vmatprep.subr.mxu0 0.0
        %8042 = vmatpush1.msra.mxu0 0.0
        %8043 = vmatprep.subr.mxu0 0.0
        %8044 = vmatpush1.msra.mxu0 0.0
        %8045 = vmatprep.subr.mxu0 0.0
        %8046 = vmatpush1.msra.mxu0 0.0
        %8047 = vmatprep.subr.mxu0 0.0
        %8048 = vmatpush1.msra.mxu0 0.0
        %8049 = vmatprep.subr.mxu0 0.0
        %8050 = vmatpush1.msra.mxu0 0.0
        %8051 = vmatprep.subr.mxu0 0.0
        %8052 = vmatpush1.msra.mxu0 0.0
        %8053 = vmatprep.subr.mxu0 0.0
        %8054 = vmatpush1.msra.mxu0 0.0
        %8055 = vmatprep.subr.mxu0 0.0
        %8056 = vmatpush1.msra.mxu0 0.0
        %8057 = vmatprep.subr.mxu0 0.0
        %8058 = vmatpush1.msra.mxu0 0.0
        %8059 = vmatprep.subr.mxu0 0.0
        %8060 = vmatpush1.msra.mxu0 0.0
        %8061 = vmatprep.subr.mxu0 0.0
        %8062 = vmatpush1.msra.mxu0 0.0
        %8063 = vmatprep.subr.mxu0 0.0
        %8064 = vmatpush1.msra.mxu0 0.0
        %8065 = vmatprep.subr.mxu0 0.0
        %8066 = vmatpush1.msra.mxu0 0.0
        %8067 = vmatprep.subr.mxu0 0.0
        %8068 = vmatpush1.msra.mxu0 0.0
        %8069 = vmatprep.subr.mxu0 0.0
        %8070 = vmatpush1.msra.mxu0 0.0
        %8071 = vmatprep.subr.mxu0 0.0
        %8072 = vmatpush1.msra.mxu0 0.0
        %8073 = vmatprep.subr.mxu0 0.0
        %8074 = vmatpush1.msra.mxu0 0.0
        %8075 = vmatprep.subr.mxu0 0.0
        %8076 = vmatpush1.msra.mxu0 0.0
        %8077 = vmatprep.subr.mxu0 0.0
        %8078 = vmatpush1.msra.mxu0 0.0
        %8079 = vmatprep.subr.mxu0 0.0
        %8080 = vmatpush1.msra.mxu0 0.0
        %8081 = vmatprep.subr.mxu0 0.0
        %8082 = vmatpush1.msra.mxu0 0.0
        %8083 = vmatprep.subr.mxu0 0.0
        %8084 = vmatpush1.msra.mxu0 0.0
        %8085 = vmatprep.subr.mxu0 0.0
        %8086 = vmatpush1.msra.mxu0 0.0
        %8087 = vmatprep.subr.mxu0 0.0
        %8088 = vmatpush1.msra.mxu0 0.0
        %8089 = vmatprep.subr.mxu0 0.0
        %8090 = vmatpush1.msra.mxu0 0.0
        %8091 = vmatprep.subr.mxu0 0.0
        %8092 = vmatpush1.msra.mxu0 0.0
        %8093 = vmatprep.subr.mxu0 0.0
        %8094 = vmatpush1.msra.mxu0 0.0
        %8095 = vmatprep.subr.mxu0 0.0
        %8096 = vmatpush1.msra.mxu0 0.0
        %8097 = vmatprep.subr.mxu0 0.0
        %8098 = vmatpush1.msra.mxu0 0.0
        %8099 = vmatprep.subr.mxu0 0.0
        %8100 = vmatpush1.msra.mxu0 0.0
        %8101 = vmatprep.mubr.f32.mxu0 0.0
        %8102 = vmatmul.mubr.f32.gmra.mrb[0].mxu0 %v8027
        %v8103 = vpop.f32.mrb[0].mxu0
        %v8104 = vadd.f32 0.0, %v8103
        %v8105 = vpop.f32.mrb[0].mxu0
        %v8106 = vadd.f32 0.0, %v8105
        %8107 = vdwg.mxu0
        %8108 = vmatprep.subr.mxu0 %v8035
        %8109 = vmatpush1.msra.mxu0 %v8033
        %8110 = vmatprep.subr.mxu0 0.0
        %8111 = vmatpush1.msra.mxu0 0.0
        %8112 = vmatprep.subr.mxu0 0.0
        %8113 = vmatpush1.msra.mxu0 0.0
        %8114 = vmatprep.subr.mxu0 0.0
        %8115 = vmatpush1.msra.mxu0 0.0
        %8116 = vmatprep.subr.mxu0 0.0
        %8117 = vmatpush1.msra.mxu0 0.0
        %8118 = vmatprep.subr.mxu0 0.0
        %8119 = vmatpush1.msra.mxu0 0.0
        %8120 = vmatprep.subr.mxu0 0.0
        %8121 = vmatpush1.msra.mxu0 0.0
        %8122 = vmatprep.subr.mxu0 0.0
        %8123 = vmatpush1.msra.mxu0 0.0
        %8124 = vmatprep.subr.mxu0 0.0
        %8125 = vmatpush1.msra.mxu0 0.0
        %8126 = vmatprep.subr.mxu0 0.0
        %8127 = vmatpush1.msra.mxu0 0.0
        %8128 = vmatprep.subr.mxu0 0.0
        %8129 = vmatpush1.msra.mxu0 0.0
        %8130 = vmatprep.subr.mxu0 0.0
        %8131 = vmatpush1.msra.mxu0 0.0
        %8132 = vmatprep.subr.mxu0 0.0
        %8133 = vmatpush1.msra.mxu0 0.0
        %8134 = vmatprep.subr.mxu0 0.0
        %8135 = vmatpush1.msra.mxu0 0.0
        %8136 = vmatprep.subr.mxu0 0.0
        %8137 = vmatpush1.msra.mxu0 0.0
        %8138 = vmatprep.subr.mxu0 0.0
        %8139 = vmatpush1.msra.mxu0 0.0
        %8140 = vmatprep.subr.mxu0 0.0
        %8141 = vmatpush1.msra.mxu0 0.0
        %8142 = vmatprep.subr.mxu0 0.0
        %8143 = vmatpush1.msra.mxu0 0.0
        %8144 = vmatprep.subr.mxu0 0.0
        %8145 = vmatpush1.msra.mxu0 0.0
        %8146 = vmatprep.subr.mxu0 0.0
        %8147 = vmatpush1.msra.mxu0 0.0
        %8148 = vmatprep.subr.mxu0 0.0
        %8149 = vmatpush1.msra.mxu0 0.0
        %8150 = vmatprep.subr.mxu0 0.0
        %8151 = vmatpush1.msra.mxu0 0.0
        %8152 = vmatprep.subr.mxu0 0.0
        %8153 = vmatpush1.msra.mxu0 0.0
        %8154 = vmatprep.subr.mxu0 0.0
        %8155 = vmatpush1.msra.mxu0 0.0
        %8156 = vmatprep.subr.mxu0 0.0
        %8157 = vmatpush1.msra.mxu0 0.0
        %8158 = vmatprep.subr.mxu0 0.0
        %8159 = vmatpush1.msra.mxu0 0.0
        %8160 = vmatprep.subr.mxu0 0.0
        %8161 = vmatpush1.msra.mxu0 0.0
        %8162 = vmatprep.subr.mxu0 0.0
        %8163 = vmatpush1.msra.mxu0 0.0
        %8164 = vmatprep.subr.mxu0 0.0
        %8165 = vmatpush1.msra.mxu0 0.0
        %8166 = vmatprep.subr.mxu0 0.0
        %8167 = vmatpush1.msra.mxu0 0.0
        %8168 = vmatprep.subr.mxu0 0.0
        %8169 = vmatpush1.msra.mxu0 0.0
        %8170 = vmatprep.subr.mxu0 0.0
        %8171 = vmatpush1.msra.mxu0 0.0
        %8172 = vmatprep.mubr.f32.mxu0 0.0
        %8173 = vmatmul.mubr.f32.gmra.mrb[0].mxu0 %v8027
        %v8174 = vpop.f32.mrb[0].mxu0
        %v8175 = vadd.f32 0.0, %v8174
        %v8176 = vpop.f32.mrb[0].mxu0
        %v8177 = vadd.f32 0.0, %v8176
        %8178 = vdwg.mxu0
        %v8179 = vadd.f32 %v8005, %v8104
        %v8180 = vadd.f32 %v8006, %v8106
        %v8181 = vadd.f32 %v8007, %v8175
        %v8182 = vadd.f32 %v8008, %v8177
        %s8183 = scalar_lea.vmem %s1, 368
        %v8184 = vld [vmem:[%s8183] sm:$0xff]
        %8185 = vrot.lane.b32.xlu0 %v255, 120
        %v8186 = vpop.permute.xlu0 %8185
        %8187 = vrot.lane.b32.xlu0 %v247, 120
        %v8188 = vpop.permute.xlu0 %8187
        %8189 = vrot.lane.b32.xlu0 %v256, 120
        %v8190 = vpop.permute.xlu0 %8189
        %8191 = vrot.lane.b32.xlu0 %v248, 120
        %v8192 = vpop.permute.xlu0 %8191
        %8193 = vrot.lane.b32.xlu0 %v7542, 120
        %v8194 = vpop.permute.xlu0 %8193
        %vm8195 = vcmask 982016
        %v8196 = vsel %vm8195, %v8186, %v8188
        %v8197 = vsel %vm8195, %v8188, %v8190
        %v8198 = vsel %vm8195, %v8190, %v8192
        %v8199 = vsel %vm8195, %v8192, %v8194
        %v8201 = vsel %vm272, %v8184, 0
        %v8203 = vsel %vm276, %v8196, 0
        %v8205 = vsel %vm276, %v8197, 0
        %v8207 = vsel %vm276, %v8198, 0
        %v8209 = vsel %vm276, %v8199, 0
        %8211 = vmatprep.subr.mxu0 %v8205
        %8212 = vmatpush1.msra.mxu0 %v8203
        %8213 = vmatprep.subr.mxu0 0.0
        %8214 = vmatpush1.msra.mxu0 0.0
        %8215 = vmatprep.subr.mxu0 0.0
        %8216 = vmatpush1.msra.mxu0 0.0
        %8217 = vmatprep.subr.mxu0 0.0
        %8218 = vmatpush1.msra.mxu0 0.0
        %8219 = vmatprep.subr.mxu0 0.0
        %8220 = vmatpush1.msra.mxu0 0.0
        %8221 = vmatprep.subr.mxu0 0.0
        %8222 = vmatpush1.msra.mxu0 0.0
        %8223 = vmatprep.subr.mxu0 0.0
        %8224 = vmatpush1.msra.mxu0 0.0
        %8225 = vmatprep.subr.mxu0 0.0
        %8226 = vmatpush1.msra.mxu0 0.0
        %8227 = vmatprep.subr.mxu0 0.0
        %8228 = vmatpush1.msra.mxu0 0.0
        %8229 = vmatprep.subr.mxu0 0.0
        %8230 = vmatpush1.msra.mxu0 0.0
        %8231 = vmatprep.subr.mxu0 0.0
        %8232 = vmatpush1.msra.mxu0 0.0
        %8233 = vmatprep.subr.mxu0 0.0
        %8234 = vmatpush1.msra.mxu0 0.0
        %8235 = vmatprep.subr.mxu0 0.0
        %8236 = vmatpush1.msra.mxu0 0.0
        %8237 = vmatprep.subr.mxu0 0.0
        %8238 = vmatpush1.msra.mxu0 0.0
        %8239 = vmatprep.subr.mxu0 0.0
        %8240 = vmatpush1.msra.mxu0 0.0
        %8241 = vmatprep.subr.mxu0 0.0
        %8242 = vmatpush1.msra.mxu0 0.0
        %8243 = vmatprep.subr.mxu0 0.0
        %8244 = vmatpush1.msra.mxu0 0.0
        %8245 = vmatprep.subr.mxu0 0.0
        %8246 = vmatpush1.msra.mxu0 0.0
        %8247 = vmatprep.subr.mxu0 0.0
        %8248 = vmatpush1.msra.mxu0 0.0
        %8249 = vmatprep.subr.mxu0 0.0
        %8250 = vmatpush1.msra.mxu0 0.0
        %8251 = vmatprep.subr.mxu0 0.0
        %8252 = vmatpush1.msra.mxu0 0.0
        %8253 = vmatprep.subr.mxu0 0.0
        %8254 = vmatpush1.msra.mxu0 0.0
        %8255 = vmatprep.subr.mxu0 0.0
        %8256 = vmatpush1.msra.mxu0 0.0
        %8257 = vmatprep.subr.mxu0 0.0
        %8258 = vmatpush1.msra.mxu0 0.0
        %8259 = vmatprep.subr.mxu0 0.0
        %8260 = vmatpush1.msra.mxu0 0.0
        %8261 = vmatprep.subr.mxu0 0.0
        %8262 = vmatpush1.msra.mxu0 0.0
        %8263 = vmatprep.subr.mxu0 0.0
        %8264 = vmatpush1.msra.mxu0 0.0
        %8265 = vmatprep.subr.mxu0 0.0
        %8266 = vmatpush1.msra.mxu0 0.0
        %8267 = vmatprep.subr.mxu0 0.0
        %8268 = vmatpush1.msra.mxu0 0.0
        %8269 = vmatprep.subr.mxu0 0.0
        %8270 = vmatpush1.msra.mxu0 0.0
        %8271 = vmatprep.subr.mxu0 0.0
        %8272 = vmatpush1.msra.mxu0 0.0
        %8273 = vmatprep.subr.mxu0 0.0
        %8274 = vmatpush1.msra.mxu0 0.0
        %8275 = vmatprep.mubr.f32.mxu0 0.0
        %8276 = vmatmul.mubr.f32.gmra.mrb[0].mxu0 %v8201
        %v8277 = vpop.f32.mrb[0].mxu0
        %v8278 = vadd.f32 0.0, %v8277
        %v8279 = vpop.f32.mrb[0].mxu0
        %v8280 = vadd.f32 0.0, %v8279
        %8281 = vdwg.mxu0
        %8282 = vmatprep.subr.mxu0 %v8209
        %8283 = vmatpush1.msra.mxu0 %v8207
        %8284 = vmatprep.subr.mxu0 0.0
        %8285 = vmatpush1.msra.mxu0 0.0
        %8286 = vmatprep.subr.mxu0 0.0
        %8287 = vmatpush1.msra.mxu0 0.0
        %8288 = vmatprep.subr.mxu0 0.0
        %8289 = vmatpush1.msra.mxu0 0.0
        %8290 = vmatprep.subr.mxu0 0.0
        %8291 = vmatpush1.msra.mxu0 0.0
        %8292 = vmatprep.subr.mxu0 0.0
        %8293 = vmatpush1.msra.mxu0 0.0
        %8294 = vmatprep.subr.mxu0 0.0
        %8295 = vmatpush1.msra.mxu0 0.0
        %8296 = vmatprep.subr.mxu0 0.0
        %8297 = vmatpush1.msra.mxu0 0.0
        %8298 = vmatprep.subr.mxu0 0.0
        %8299 = vmatpush1.msra.mxu0 0.0
        %8300 = vmatprep.subr.mxu0 0.0
        %8301 = vmatpush1.msra.mxu0 0.0
        %8302 = vmatprep.subr.mxu0 0.0
        %8303 = vmatpush1.msra.mxu0 0.0
        %8304 = vmatprep.subr.mxu0 0.0
        %8305 = vmatpush1.msra.mxu0 0.0
        %8306 = vmatprep.subr.mxu0 0.0
        %8307 = vmatpush1.msra.mxu0 0.0
        %8308 = vmatprep.subr.mxu0 0.0
        %8309 = vmatpush1.msra.mxu0 0.0
        %8310 = vmatprep.subr.mxu0 0.0
        %8311 = vmatpush1.msra.mxu0 0.0
        %8312 = vmatprep.subr.mxu0 0.0
        %8313 = vmatpush1.msra.mxu0 0.0
        %8314 = vmatprep.subr.mxu0 0.0
        %8315 = vmatpush1.msra.mxu0 0.0
        %8316 = vmatprep.subr.mxu0 0.0
        %8317 = vmatpush1.msra.mxu0 0.0
        %8318 = vmatprep.subr.mxu0 0.0
        %8319 = vmatpush1.msra.mxu0 0.0
        %8320 = vmatprep.subr.mxu0 0.0
        %8321 = vmatpush1.msra.mxu0 0.0
        %8322 = vmatprep.subr.mxu0 0.0
        %8323 = vmatpush1.msra.mxu0 0.0
        %8324 = vmatprep.subr.mxu0 0.0
        %8325 = vmatpush1.msra.mxu0 0.0
        %8326 = vmatprep.subr.mxu0 0.0
        %8327 = vmatpush1.msra.mxu0 0.0
        %8328 = vmatprep.subr.mxu0 0.0
        %8329 = vmatpush1.msra.mxu0 0.0
        %8330 = vmatprep.subr.mxu0 0.0
        %8331 = vmatpush1.msra.mxu0 0.0
        %8332 = vmatprep.subr.mxu0 0.0
        %8333 = vmatpush1.msra.mxu0 0.0
        %8334 = vmatprep.subr.mxu0 0.0
        %8335 = vmatpush1.msra.mxu0 0.0
        %8336 = vmatprep.subr.mxu0 0.0
        %8337 = vmatpush1.msra.mxu0 0.0
        %8338 = vmatprep.subr.mxu0 0.0
        %8339 = vmatpush1.msra.mxu0 0.0
        %8340 = vmatprep.subr.mxu0 0.0
        %8341 = vmatpush1.msra.mxu0 0.0
        %8342 = vmatprep.subr.mxu0 0.0
        %8343 = vmatpush1.msra.mxu0 0.0
        %8344 = vmatprep.subr.mxu0 0.0
        %8345 = vmatpush1.msra.mxu0 0.0
        %8346 = vmatprep.mubr.f32.mxu0 0.0
        %8347 = vmatmul.mubr.f32.gmra.mrb[0].mxu0 %v8201
        %v8348 = vpop.f32.mrb[0].mxu0
        %v8349 = vadd.f32 0.0, %v8348
        %v8350 = vpop.f32.mrb[0].mxu0
        %v8351 = vadd.f32 0.0, %v8350
        %8352 = vdwg.mxu0
        %v8353 = vadd.f32 %v8179, %v8278
        %v8354 = vadd.f32 %v8180, %v8280
        %v8355 = vadd.f32 %v8181, %v8349
        %v8356 = vadd.f32 %v8182, %v8351
        %s8357 = scalar_lea.vmem %s1, 376
        %v8358 = vld [vmem:[%s8357] sm:$0xff]
        %8359 = vrot.lane.b32.xlu0 %v255, 119
        %v8360 = vpop.permute.xlu0 %8359
        %8361 = vrot.lane.b32.xlu0 %v247, 119
        %v8362 = vpop.permute.xlu0 %8361
        %8363 = vrot.lane.b32.xlu0 %v256, 119
        %v8364 = vpop.permute.xlu0 %8363
        %8365 = vrot.lane.b32.xlu0 %v248, 119
        %v8366 = vpop.permute.xlu0 %8365
        %8367 = vrot.lane.b32.xlu0 %v7542, 119
        %v8368 = vpop.permute.xlu0 %8367
        %vm8369 = vcmask 973824
        %v8370 = vsel %vm8369, %v8360, %v8362
        %v8371 = vsel %vm8369, %v8362, %v8364
        %v8372 = vsel %vm8369, %v8364, %v8366
        %v8373 = vsel %vm8369, %v8366, %v8368
        %v8375 = vsel %vm272, %v8358, 0
        %v8377 = vsel %vm276, %v8370, 0
        %v8379 = vsel %vm276, %v8371, 0
        %v8381 = vsel %vm276, %v8372, 0
        %v8383 = vsel %vm276, %v8373, 0
        %8385 = vmatprep.subr.mxu0 %v8379
        %8386 = vmatpush1.msra.mxu0 %v8377
        %8387 = vmatprep.subr.mxu0 0.0
        %8388 = vmatpush1.msra.mxu0 0.0
        %8389 = vmatprep.subr.mxu0 0.0
        %8390 = vmatpush1.msra.mxu0 0.0
        %8391 = vmatprep.subr.mxu0 0.0
        %8392 = vmatpush1.msra.mxu0 0.0
        %8393 = vmatprep.subr.mxu0 0.0
        %8394 = vmatpush1.msra.mxu0 0.0
        %8395 = vmatprep.subr.mxu0 0.0
        %8396 = vmatpush1.msra.mxu0 0.0
        %8397 = vmatprep.subr.mxu0 0.0
        %8398 = vmatpush1.msra.mxu0 0.0
        %8399 = vmatprep.subr.mxu0 0.0
        %8400 = vmatpush1.msra.mxu0 0.0
        %8401 = vmatprep.subr.mxu0 0.0
        %8402 = vmatpush1.msra.mxu0 0.0
        %8403 = vmatprep.subr.mxu0 0.0
        %8404 = vmatpush1.msra.mxu0 0.0
        %8405 = vmatprep.subr.mxu0 0.0
        %8406 = vmatpush1.msra.mxu0 0.0
        %8407 = vmatprep.subr.mxu0 0.0
        %8408 = vmatpush1.msra.mxu0 0.0
        %8409 = vmatprep.subr.mxu0 0.0
        %8410 = vmatpush1.msra.mxu0 0.0
        %8411 = vmatprep.subr.mxu0 0.0
        %8412 = vmatpush1.msra.mxu0 0.0
        %8413 = vmatprep.subr.mxu0 0.0
        %8414 = vmatpush1.msra.mxu0 0.0
        %8415 = vmatprep.subr.mxu0 0.0
        %8416 = vmatpush1.msra.mxu0 0.0
        %8417 = vmatprep.subr.mxu0 0.0
        %8418 = vmatpush1.msra.mxu0 0.0
        %8419 = vmatprep.subr.mxu0 0.0
        %8420 = vmatpush1.msra.mxu0 0.0
        %8421 = vmatprep.subr.mxu0 0.0
        %8422 = vmatpush1.msra.mxu0 0.0
        %8423 = vmatprep.subr.mxu0 0.0
        %8424 = vmatpush1.msra.mxu0 0.0
        %8425 = vmatprep.subr.mxu0 0.0
        %8426 = vmatpush1.msra.mxu0 0.0
        %8427 = vmatprep.subr.mxu0 0.0
        %8428 = vmatpush1.msra.mxu0 0.0
        %8429 = vmatprep.subr.mxu0 0.0
        %8430 = vmatpush1.msra.mxu0 0.0
        %8431 = vmatprep.subr.mxu0 0.0
        %8432 = vmatpush1.msra.mxu0 0.0
        %8433 = vmatprep.subr.mxu0 0.0
        %8434 = vmatpush1.msra.mxu0 0.0
        %8435 = vmatprep.subr.mxu0 0.0
        %8436 = vmatpush1.msra.mxu0 0.0
        %8437 = vmatprep.subr.mxu0 0.0
        %8438 = vmatpush1.msra.mxu0 0.0
        %8439 = vmatprep.subr.mxu0 0.0
        %8440 = vmatpush1.msra.mxu0 0.0
        %8441 = vmatprep.subr.mxu0 0.0
        %8442 = vmatpush1.msra.mxu0 0.0
        %8443 = vmatprep.subr.mxu0 0.0
        %8444 = vmatpush1.msra.mxu0 0.0
        %8445 = vmatprep.subr.mxu0 0.0
        %8446 = vmatpush1.msra.mxu0 0.0
        %8447 = vmatprep.subr.mxu0 0.0
        %8448 = vmatpush1.msra.mxu0 0.0
        %8449 = vmatprep.mubr.f32.mxu0 0.0
        %8450 = vmatmul.mubr.f32.gmra.mrb[0].mxu0 %v8375
        %v8451 = vpop.f32.mrb[0].mxu0
        %v8452 = vadd.f32 0.0, %v8451
        %v8453 = vpop.f32.mrb[0].mxu0
        %v8454 = vadd.f32 0.0, %v8453
        %8455 = vdwg.mxu0
        %8456 = vmatprep.subr.mxu0 %v8383
        %8457 = vmatpush1.msra.mxu0 %v8381
        %8458 = vmatprep.subr.mxu0 0.0
        %8459 = vmatpush1.msra.mxu0 0.0
        %8460 = vmatprep.subr.mxu0 0.0
        %8461 = vmatpush1.msra.mxu0 0.0
        %8462 = vmatprep.subr.mxu0 0.0
        %8463 = vmatpush1.msra.mxu0 0.0
        %8464 = vmatprep.subr.mxu0 0.0
        %8465 = vmatpush1.msra.mxu0 0.0
        %8466 = vmatprep.subr.mxu0 0.0
        %8467 = vmatpush1.msra.mxu0 0.0
        %8468 = vmatprep.subr.mxu0 0.0
        %8469 = vmatpush1.msra.mxu0 0.0
        %8470 = vmatprep.subr.mxu0 0.0
        %8471 = vmatpush1.msra.mxu0 0.0
        %8472 = vmatprep.subr.mxu0 0.0
        %8473 = vmatpush1.msra.mxu0 0.0
        %8474 = vmatprep.subr.mxu0 0.0
        %8475 = vmatpush1.msra.mxu0 0.0
        %8476 = vmatprep.subr.mxu0 0.0
        %8477 = vmatpush1.msra.mxu0 0.0
        %8478 = vmatprep.subr.mxu0 0.0
        %8479 = vmatpush1.msra.mxu0 0.0
        %8480 = vmatprep.subr.mxu0 0.0
        %8481 = vmatpush1.msra.mxu0 0.0
        %8482 = vmatprep.subr.mxu0 0.0
        %8483 = vmatpush1.msra.mxu0 0.0
        %8484 = vmatprep.subr.mxu0 0.0
        %8485 = vmatpush1.msra.mxu0 0.0
        %8486 = vmatprep.subr.mxu0 0.0
        %8487 = vmatpush1.msra.mxu0 0.0
        %8488 = vmatprep.subr.mxu0 0.0
        %8489 = vmatpush1.msra.mxu0 0.0
        %8490 = vmatprep.subr.mxu0 0.0
        %8491 = vmatpush1.msra.mxu0 0.0
        %8492 = vmatprep.subr.mxu0 0.0
        %8493 = vmatpush1.msra.mxu0 0.0
        %8494 = vmatprep.subr.mxu0 0.0
        %8495 = vmatpush1.msra.mxu0 0.0
        %8496 = vmatprep.subr.mxu0 0.0
        %8497 = vmatpush1.msra.mxu0 0.0
        %8498 = vmatprep.subr.mxu0 0.0
        %8499 = vmatpush1.msra.mxu0 0.0
        %8500 = vmatprep.subr.mxu0 0.0
        %8501 = vmatpush1.msra.mxu0 0.0
        %8502 = vmatprep.subr.mxu0 0.0
        %8503 = vmatpush1.msra.mxu0 0.0
        %8504 = vmatprep.subr.mxu0 0.0
        %8505 = vmatpush1.msra.mxu0 0.0
        %8506 = vmatprep.subr.mxu0 0.0
        %8507 = vmatpush1.msra.mxu0 0.0
        %8508 = vmatprep.subr.mxu0 0.0
        %8509 = vmatpush1.msra.mxu0 0.0
        %8510 = vmatprep.subr.mxu0 0.0
        %8511 = vmatpush1.msra.mxu0 0.0
        %8512 = vmatprep.subr.mxu0 0.0
        %8513 = vmatpush1.msra.mxu0 0.0
        %8514 = vmatprep.subr.mxu0 0.0
        %8515 = vmatpush1.msra.mxu0 0.0
        %8516 = vmatprep.subr.mxu0 0.0
        %8517 = vmatpush1.msra.mxu0 0.0
        %8518 = vmatprep.subr.mxu0 0.0
        %8519 = vmatpush1.msra.mxu0 0.0
        %8520 = vmatprep.mubr.f32.mxu0 0.0
        %8521 = vmatmul.mubr.f32.gmra.mrb[0].mxu0 %v8375
        %v8522 = vpop.f32.mrb[0].mxu0
        %v8523 = vadd.f32 0.0, %v8522
        %v8524 = vpop.f32.mrb[0].mxu0
        %v8525 = vadd.f32 0.0, %v8524
        %8526 = vdwg.mxu0
        %v8527 = vadd.f32 %v8353, %v8452
        %v8528 = vadd.f32 %v8354, %v8454
        %v8529 = vadd.f32 %v8355, %v8523
        %v8530 = vadd.f32 %v8356, %v8525
        %s8531 = scalar_lea.vmem %s1, 384
        %v8532 = vld [vmem:[%s8531] sm:$0xff]
        %8533 = vrot.lane.b32.xlu0 %v255, 118
        %v8534 = vpop.permute.xlu0 %8533
        %8535 = vrot.lane.b32.xlu0 %v247, 118
        %v8536 = vpop.permute.xlu0 %8535
        %8537 = vrot.lane.b32.xlu0 %v256, 118
        %v8538 = vpop.permute.xlu0 %8537
        %8539 = vrot.lane.b32.xlu0 %v248, 118
        %v8540 = vpop.permute.xlu0 %8539
        %8541 = vrot.lane.b32.xlu0 %v7542, 118
        %v8542 = vpop.permute.xlu0 %8541
        %vm8543 = vcmask 965632
        %v8544 = vsel %vm8543, %v8534, %v8536
        %v8545 = vsel %vm8543, %v8536, %v8538
        %v8546 = vsel %vm8543, %v8538, %v8540
        %v8547 = vsel %vm8543, %v8540, %v8542
        %v8549 = vsel %vm272, %v8532, 0
        %v8551 = vsel %vm276, %v8544, 0
        %v8553 = vsel %vm276, %v8545, 0
        %v8555 = vsel %vm276, %v8546, 0
        %v8557 = vsel %vm276, %v8547, 0
        %8559 = vmatprep.subr.mxu0 %v8553
        %8560 = vmatpush1.msra.mxu0 %v8551
        %8561 = vmatprep.subr.mxu0 0.0
        %8562 = vmatpush1.msra.mxu0 0.0
        %8563 = vmatprep.subr.mxu0 0.0
        %8564 = vmatpush1.msra.mxu0 0.0
        %8565 = vmatprep.subr.mxu0 0.0
        %8566 = vmatpush1.msra.mxu0 0.0
        %8567 = vmatprep.subr.mxu0 0.0
        %8568 = vmatpush1.msra.mxu0 0.0
        %8569 = vmatprep.subr.mxu0 0.0
        %8570 = vmatpush1.msra.mxu0 0.0
        %8571 = vmatprep.subr.mxu0 0.0
        %8572 = vmatpush1.msra.mxu0 0.0
        %8573 = vmatprep.subr.mxu0 0.0
        %8574 = vmatpush1.msra.mxu0 0.0
        %8575 = vmatprep.subr.mxu0 0.0
        %8576 = vmatpush1.msra.mxu0 0.0
        %8577 = vmatprep.subr.mxu0 0.0
        %8578 = vmatpush1.msra.mxu0 0.0
        %8579 = vmatprep.subr.mxu0 0.0
        %8580 = vmatpush1.msra.mxu0 0.0
        %8581 = vmatprep.subr.mxu0 0.0
        %8582 = vmatpush1.msra.mxu0 0.0
        %8583 = vmatprep.subr.mxu0 0.0
        %8584 = vmatpush1.msra.mxu0 0.0
        %8585 = vmatprep.subr.mxu0 0.0
        %8586 = vmatpush1.msra.mxu0 0.0
        %8587 = vmatprep.subr.mxu0 0.0
        %8588 = vmatpush1.msra.mxu0 0.0
        %8589 = vmatprep.subr.mxu0 0.0
        %8590 = vmatpush1.msra.mxu0 0.0
        %8591 = vmatprep.subr.mxu0 0.0
        %8592 = vmatpush1.msra.mxu0 0.0
        %8593 = vmatprep.subr.mxu0 0.0
        %8594 = vmatpush1.msra.mxu0 0.0
        %8595 = vmatprep.subr.mxu0 0.0
        %8596 = vmatpush1.msra.mxu0 0.0
        %8597 = vmatprep.subr.mxu0 0.0
        %8598 = vmatpush1.msra.mxu0 0.0
        %8599 = vmatprep.subr.mxu0 0.0
        %8600 = vmatpush1.msra.mxu0 0.0
        %8601 = vmatprep.subr.mxu0 0.0
        %8602 = vmatpush1.msra.mxu0 0.0
        %8603 = vmatprep.subr.mxu0 0.0
        %8604 = vmatpush1.msra.mxu0 0.0
        %8605 = vmatprep.subr.mxu0 0.0
        %8606 = vmatpush1.msra.mxu0 0.0
        %8607 = vmatprep.subr.mxu0 0.0
        %8608 = vmatpush1.msra.mxu0 0.0
        %8609 = vmatprep.subr.mxu0 0.0
        %8610 = vmatpush1.msra.mxu0 0.0
        %8611 = vmatprep.subr.mxu0 0.0
        %8612 = vmatpush1.msra.mxu0 0.0
        %8613 = vmatprep.subr.mxu0 0.0
        %8614 = vmatpush1.msra.mxu0 0.0
        %8615 = vmatprep.subr.mxu0 0.0
        %8616 = vmatpush1.msra.mxu0 0.0
        %8617 = vmatprep.subr.mxu0 0.0
        %8618 = vmatpush1.msra.mxu0 0.0
        %8619 = vmatprep.subr.mxu0 0.0
        %8620 = vmatpush1.msra.mxu0 0.0
        %8621 = vmatprep.subr.mxu0 0.0
        %8622 = vmatpush1.msra.mxu0 0.0
        %8623 = vmatprep.mubr.f32.mxu0 0.0
        %8624 = vmatmul.mubr.f32.gmra.mrb[0].mxu0 %v8549
        %v8625 = vpop.f32.mrb[0].mxu0
        %v8626 = vadd.f32 0.0, %v8625
        %v8627 = vpop.f32.mrb[0].mxu0
        %v8628 = vadd.f32 0.0, %v8627
        %8629 = vdwg.mxu0
        %8630 = vmatprep.subr.mxu0 %v8557
        %8631 = vmatpush1.msra.mxu0 %v8555
        %8632 = vmatprep.subr.mxu0 0.0
        %8633 = vmatpush1.msra.mxu0 0.0
        %8634 = vmatprep.subr.mxu0 0.0
        %8635 = vmatpush1.msra.mxu0 0.0
        %8636 = vmatprep.subr.mxu0 0.0
        %8637 = vmatpush1.msra.mxu0 0.0
        %8638 = vmatprep.subr.mxu0 0.0
        %8639 = vmatpush1.msra.mxu0 0.0
        %8640 = vmatprep.subr.mxu0 0.0
        %8641 = vmatpush1.msra.mxu0 0.0
        %8642 = vmatprep.subr.mxu0 0.0
        %8643 = vmatpush1.msra.mxu0 0.0
        %8644 = vmatprep.subr.mxu0 0.0
        %8645 = vmatpush1.msra.mxu0 0.0
        %8646 = vmatprep.subr.mxu0 0.0
        %8647 = vmatpush1.msra.mxu0 0.0
        %8648 = vmatprep.subr.mxu0 0.0
        %8649 = vmatpush1.msra.mxu0 0.0
        %8650 = vmatprep.subr.mxu0 0.0
        %8651 = vmatpush1.msra.mxu0 0.0
        %8652 = vmatprep.subr.mxu0 0.0
        %8653 = vmatpush1.msra.mxu0 0.0
        %8654 = vmatprep.subr.mxu0 0.0
        %8655 = vmatpush1.msra.mxu0 0.0
        %8656 = vmatprep.subr.mxu0 0.0
        %8657 = vmatpush1.msra.mxu0 0.0
        %8658 = vmatprep.subr.mxu0 0.0
        %8659 = vmatpush1.msra.mxu0 0.0
        %8660 = vmatprep.subr.mxu0 0.0
        %8661 = vmatpush1.msra.mxu0 0.0
        %8662 = vmatprep.subr.mxu0 0.0
        %8663 = vmatpush1.msra.mxu0 0.0
        %8664 = vmatprep.subr.mxu0 0.0
        %8665 = vmatpush1.msra.mxu0 0.0
        %8666 = vmatprep.subr.mxu0 0.0
        %8667 = vmatpush1.msra.mxu0 0.0
        %8668 = vmatprep.subr.mxu0 0.0
        %8669 = vmatpush1.msra.mxu0 0.0
        %8670 = vmatprep.subr.mxu0 0.0
        %8671 = vmatpush1.msra.mxu0 0.0
        %8672 = vmatprep.subr.mxu0 0.0
        %8673 = vmatpush1.msra.mxu0 0.0
        %8674 = vmatprep.subr.mxu0 0.0
        %8675 = vmatpush1.msra.mxu0 0.0
        %8676 = vmatprep.subr.mxu0 0.0
        %8677 = vmatpush1.msra.mxu0 0.0
        %8678 = vmatprep.subr.mxu0 0.0
        %8679 = vmatpush1.msra.mxu0 0.0
        %8680 = vmatprep.subr.mxu0 0.0
        %8681 = vmatpush1.msra.mxu0 0.0
        %8682 = vmatprep.subr.mxu0 0.0
        %8683 = vmatpush1.msra.mxu0 0.0
        %8684 = vmatprep.subr.mxu0 0.0
        %8685 = vmatpush1.msra.mxu0 0.0
        %8686 = vmatprep.subr.mxu0 0.0
        %8687 = vmatpush1.msra.mxu0 0.0
        %8688 = vmatprep.subr.mxu0 0.0
        %8689 = vmatpush1.msra.mxu0 0.0
        %8690 = vmatprep.subr.mxu0 0.0
        %8691 = vmatpush1.msra.mxu0 0.0
        %8692 = vmatprep.subr.mxu0 0.0
        %8693 = vmatpush1.msra.mxu0 0.0
        %8694 = vmatprep.mubr.f32.mxu0 0.0
        %8695 = vmatmul.mubr.f32.gmra.mrb[0].mxu0 %v8549
        %v8696 = vpop.f32.mrb[0].mxu0
        %v8697 = vadd.f32 0.0, %v8696
        %v8698 = vpop.f32.mrb[0].mxu0
        %v8699 = vadd.f32 0.0, %v8698
        %8700 = vdwg.mxu0
        %v8701 = vadd.f32 %v8527, %v8626
        %v8702 = vadd.f32 %v8528, %v8628
        %v8703 = vadd.f32 %v8529, %v8697
        %v8704 = vadd.f32 %v8530, %v8699
        %8705 = vst [vmem:[%s219] sm:$0xff] %v8701
        %8706 = vst [vmem:[%s219 + $0x8] sm:$0xff] %v8702
        %8707 = vst [vmem:[%s219 + $0x10] sm:$0xff] %v8703
        %8708 = vst [vmem:[%s219 + $0x18] sm:$0xff] %v8704
        %v8709 = vld [vmem:[%s234] sm:$0xf]
        %v8711 = vlaneseq
        %v8712 = vshrl.u32 %v8711, 7
        %v8713 = vsub.s32 0, %v8712
        %v8714 = vrot.slane %v8709, %v8713
        %v8715 = vlaneseq
        %v8716 = vshrl.u32 %v8715, 7
        %v8717 = vsub.s32 1, %v8716
        %v8718 = vrot.slane %v8709, %v8717
        %v8719 = vlaneseq
        %v8720 = vshrl.u32 %v8719, 7
        %v8721 = vsub.s32 2, %v8720
        %v8722 = vrot.slane %v8709, %v8721
        %v8723 = vlaneseq
        %v8724 = vshrl.u32 %v8723, 7
        %v8725 = vsub.s32 3, %v8724
        %v8726 = vrot.slane %v8709, %v8725
        %v8731 = vmul.f32 %v8701, %v8714
        %v8732 = vmul.f32 %v8702, %v8718
        %v8733 = vmul.f32 %v8703, %v8722
        %v8734 = vmul.f32 %v8704, %v8726
        %v8735 = vadd.f32 %v8731, %v8732
        %v8736 = vadd.f32 %v8735, %v8733
        %v8737 = vadd.f32 %v8736, %v8734
        %8738 = vadd.xlane.f32.xlu0 %v8737
        %v8739 = vpop.xlane.xlu0 %8738
        %v8740 = vmul.f32 %v8701, %v8701
        %v8741 = vmul.f32 %v8702, %v8702
        %v8742 = vmul.f32 %v8703, %v8703
        %v8743 = vmul.f32 %v8704, %v8704
        %v8744 = vmul.f32 %v8740, %v8714
        %v8745 = vmul.f32 %v8741, %v8718
        %v8746 = vmul.f32 %v8742, %v8722
        %v8747 = vmul.f32 %v8743, %v8726
        %v8748 = vadd.f32 %v8744, %v8745
        %v8749 = vadd.f32 %v8748, %v8746
        %v8750 = vadd.f32 %v8749, %v8747
        %8751 = vadd.xlane.f32.xlu0 %v8750
        %v8752 = vpop.xlane.xlu0 %8751
        %p8753 = scmp.eq.s32.totalorder %s24, 0
        // Predicated region
        $region33: #{tpu_custom_call.1} parent=31 // pred_check
          %p8754 = pneg %p8753
        $region34: #{tpu_custom_call.1} parent=31 // pred_check_branch
          %8756 = sbr.rel (%p8754) target = $region36
        $region35: #{tpu_custom_call.1} parent=31 // pred_region
          %vm8757 = vcmask 15360
          %8758 = vst.msk [vmem:[%s240] sm:$0xff] %vm8757, 0.0
        $region36: #{tpu_custom_call.1} parent=31 // pred_fallthru
          _
        %v8759 = vld [vmem:[%s240] sm:$0xff]
        %vm8760 = vcmask 7168
        %v8761 = vsel %vm8760, %v8739, %v8752
        %v8762 = vadd.f32 %v8759, %v8761
        %vm8763 = vcmask 15360
        %8764 = vst.msk [vmem:[%s240] sm:$0xff] %vm8763, %v8762
        %s8765 = sand.u32 %s114, 1
        %s8766 = scalar_lea.sflag [#allocation3], %s8765
        %s8767 = sand.u32 %s114, 1
        %s8768 = smul.addr %s8767, 32
        %s8769 = scalar_lea.vmem [#allocation2], %s8768
        %p8770 = scmp.lt.s32.totalorder %s23, 1
        %s8771 = scalar_select %p8770, %s23, 1
        %s8772 = smul.addr %s8771, 8
        %s8773 = scalar_lea.vmem %s4, %s8772
        // Predicated region
        $region37: #{tpu_custom_call.1} parent=31 // pred_check
          %p8774 = pneg %p124
        $region38: #{tpu_custom_call.1} parent=31 // pred_check_branch
          %8776 = sbr.rel (%p8774) target = $region40
        $region39: #{tpu_custom_call.1} parent=31 // pred_region
          %s8777 = smul.u32 4, %s24
          %s8779 = ssub.s32 512, 512
          %8780 = vsyncadd %s8766, %s8779
          %s8781 = smul.addr %s23, 4
          %s8782 = sadd.s32 %s8777, %s8781
          %s8783 = smul.addr %s8782, 128
          %s8784 = scalar_lea.hbm %s3, %s8783
          %s8786 = sshll.u32 %s8769, 4
          %s8787 = int_to_ptr.vmem [resolvable:$true] %s8786
          %8789 = dma.vmem_to_hbm [thread:$0]  %s8787, 512, %s8784, %s8766
        $region40: #{tpu_custom_call.1} parent=31 // pred_fallthru
          _
        // Predicated region
        $region41: #{tpu_custom_call.1} parent=31 // pred_check
          %p8790 = pneg %p150
        $region42: #{tpu_custom_call.1} parent=31 // pred_check_branch
          %8792 = sbr.rel (%p8790) target = $region44
        $region43: #{tpu_custom_call.1} parent=31 // pred_region
          _
        $region44: #{tpu_custom_call.1} parent=31 // pred_fallthru
          _
      $region32: #{tpu_custom_call.1} parent=5 // pred_fallthru
        _
      %p8793 = scmp.le.s32.totalorder 2, %s14
      // Predicated region
      $region45: #{tpu_custom_call.1} parent=5 // pred_check
        %p8794 = pneg %p8793
      $region46: #{tpu_custom_call.1} parent=5 // pred_check_branch
        %8796 = sbr.rel (%p8794) target = $region48
      $region47: #{tpu_custom_call.1} parent=5 // pred_region
        %s8797 = ssub.s32 %s14, 2
        // Predicated region
        $region49: #{tpu_custom_call.1} parent=47 // pred_check
          %p8798 = pneg %p130
        $region50: #{tpu_custom_call.1} parent=47 // pred_check_branch
          %8800 = sbr.rel (%p8798) target = $region52
        $region51: #{tpu_custom_call.1} parent=47 // pred_region
          %s8801 = sand.u32 %s115, 1
          %s8802 = scalar_lea.sflag [#allocation3], %s8801
          %s8803 = sand.u32 %s115, 1
          %s8804 = smul.addr %s8803, 32
          %s8805 = scalar_lea.vmem [#allocation2], %s8804
          %8806 = dma.done %s8802, 512
        $region52: #{tpu_custom_call.1} parent=47 // pred_fallthru
          _
        // Predicated region
        $region53: #{tpu_custom_call.1} parent=47 // pred_check
          %p8807 = pneg %p156
        $region54: #{tpu_custom_call.1} parent=47 // pred_check_branch
          %8809 = sbr.rel (%p8807) target = $region56
        $region55: #{tpu_custom_call.1} parent=47 // pred_region
          %p8810 = scmp.lt.s32.totalorder %s25, 1
          %s8811 = scalar_select %p8810, %s25, 1
          %s8812 = smul.addr %s8811, 8
          %s8813 = scalar_lea.vmem %s4, %s8812
        $region56: #{tpu_custom_call.1} parent=47 // pred_fallthru
          _
      $region48: #{tpu_custom_call.1} parent=5 // pred_fallthru
        _
    $region6: #{tpu_custom_call.1} parent=1 // loop_footer
      %s18 = sadd.s32 1, %s14
    $region7: #{tpu_custom_call.1} parent=1 // loop_footer_branch
      %13 = sbr.rel target = $region3
    $region8: #{tpu_custom_call.1} parent=1 // loop_exit
      _
    %8814 = vsyncpa [#allocation3], 1
    %s8815 = scalar_lea.sflag [#allocation3], 1
    %8816 = vsyncpa %s8815, 1

</llo_original>
